<compile_context>
chip_gen: v5e
topology: v5e:2x2
jax: 0.10.0
libtpu: 0.0.40
codegen_flags: <defaults>
</compile_context>

<pallas_src>
import jax
import jax.numpy as jnp
from jax.experimental import pallas as pl
from jax.experimental.pallas import tpu as pltpu

# --- small-but-consistent model hyperparameters -----------------------------
VOCAB_SIZE = 65
V_PAD = 128           # vocab padded to a lane-dense multiple of 128
N_EMBD = 128          # C
N_HEAD = 4            # the module builds Block(n_embd, n_head=4)
HEAD_SIZE = N_EMBD // N_HEAD
BLOCK_SIZE = 64       # max context length
N_LAYERS = 3
LN_EPS = 1e-5
NEG_INF = -1e30       # large finite negative instead of -inf (robust masking)


def _layer_norm(x, gamma, beta):
    """One-pass LayerNorm: var = E[x^2] - E[x]^2 (both reductions independent)."""
    mu = jnp.mean(x, axis=-1, keepdims=True)
    ms = jnp.mean(x * x, axis=-1, keepdims=True)
    var = ms - mu * mu
    return (x - mu) * jax.lax.rsqrt(var + LN_EPS) * gamma + beta


# ----------------------------------------------------------------------------
# Fused Pallas kernel: 3 Blocks + lm_head, whole (B*T, C) slab resident in VMEM
# ----------------------------------------------------------------------------
def fused_forward_kernel(x_ref, bias_ref,
                         g1_ref, b1_ref,
                         wqkv_ref,
                         wproj_ref, bproj_ref,
                         g2_ref, b2_ref,
                         wff1_ref, bff1_ref, wff2_ref, bff2_ref,
                         wlm_ref, blm_ref,
                         out_ref,
                         cat_ref):
    x = x_ref[...]                                   # (M, C) f32, M = B*T
    bias = bias_ref[...]                             # (M, M) f32 additive causal bias

    for l in range(N_LAYERS):
        # --- LayerNorm 1 (f32 stats) ---
        xln = _layer_norm(x, g1_ref[l], b1_ref[l]).astype(jnp.bfloat16)

        # --- fused QKV projection: one (M,C)@(C,3C) matmul, cast to bf16 once ---
        qkv = jnp.dot(xln, wqkv_ref[l],
                      preferred_element_type=jnp.float32).astype(jnp.bfloat16)  # (M, 3C)

        # --- per-head attention; head outputs written into lane slices of scratch ---
        for h in range(N_HEAD):
            lo = h * HEAD_SIZE
            qh = qkv[:, lo:lo + HEAD_SIZE]                                   # (M, hs) bf16
            kh = qkv[:, N_EMBD + lo:N_EMBD + lo + HEAD_SIZE]
            vh = qkv[:, 2 * N_EMBD + lo:2 * N_EMBD + lo + HEAD_SIZE]
            # q @ k^T (NO 1/sqrt(d) scaling, matching the reference module)
            wei = jax.lax.dot_general(qh, kh, (((1,), (1,)), ((), ())),
                                      preferred_element_type=jnp.float32)   # (M, M)
            wei = wei + bias                                                 # additive mask
            wei = wei - jnp.max(wei, axis=-1, keepdims=True)
            e = jnp.exp(wei)
            p = e * pl.reciprocal(jnp.sum(e, axis=-1, keepdims=True), approx=True)
            oh = jnp.dot(p.astype(jnp.bfloat16), vh,
                         preferred_element_type=jnp.float32)                 # (M, hs)
            cat_ref[:, lo:lo + HEAD_SIZE] = oh.astype(jnp.bfloat16)

        # --- single K=128 projection over the concatenated heads ---
        sa = jnp.dot(cat_ref[...], wproj_ref[l],
                     preferred_element_type=jnp.float32) + bproj_ref[l]

        # --- LayerNorm 2 (applied to attention output; reference has no residual) ---
        yln = _layer_norm(sa, g2_ref[l], b2_ref[l]).astype(jnp.bfloat16)

        # --- FeedForward: Linear -> ReLU -> Linear (dropout = identity) ---
        h1 = jnp.dot(yln, wff1_ref[l], preferred_element_type=jnp.float32) + bff1_ref[l]
        h1 = jnp.maximum(h1, 0.0).astype(jnp.bfloat16)
        x = jnp.dot(h1, wff2_ref[l], preferred_element_type=jnp.float32) + bff2_ref[l]

    # --- lm_head on the padded (lane-dense) vocab ---
    out_ref[...] = (jnp.dot(x.astype(jnp.bfloat16), wlm_ref[...],
                            preferred_element_type=jnp.float32) + blm_ref[...])


def fused_forward(params, x2d, bias):
    """x2d: (B*T, C) f32, bias: (B*T, B*T) f32 -> padded logits (B*T, V_PAD) f32."""
    weights = (params["g1"], params["b1"],
               params["wqkv"],
               params["wproj"], params["bproj"],
               params["g2"], params["b2"],
               params["wff1"], params["bff1"], params["wff2"], params["bff2"],
               params["w_lm"], params["b_lm"])
    M = x2d.shape[0]
    vmem = pl.BlockSpec(memory_space=pltpu.MemorySpace.VMEM)
    return pl.pallas_call(
        fused_forward_kernel,
        out_shape=jax.ShapeDtypeStruct((M, V_PAD), jnp.float32),
        in_specs=[vmem] * (2 + len(weights)),
        out_specs=vmem,
        scratch_shapes=[pltpu.VMEM((M, N_EMBD), jnp.bfloat16)],  # head-concat scratch
    )(x2d, bias, *weights)


# ----------------------------------------------------------------------------
# Block-diagonal causal additive bias (batch folded into the M axis)
# ----------------------------------------------------------------------------
def _block_causal_bias(batch, seq_len):
    m = batch * seq_len
    row = jnp.arange(m, dtype=jnp.int32)
    col = jnp.arange(m, dtype=jnp.int32)
    same_batch = (row[:, None] // seq_len) == (col[None, :] // seq_len)
    causal = row[:, None] >= col[None, :]
    return jnp.where(same_batch & causal, 0.0, NEG_INF).astype(jnp.float32)


# ----------------------------------------------------------------------------
# Parameter construction (deterministic, synthetic; per-layer weights stacked)
# ----------------------------------------------------------------------------
def init_params(key):
    L, C, F, V = N_LAYERS, N_EMBD, 4 * N_EMBD, VOCAB_SIZE

    def nrm(k, shape, scale=0.02):
        return scale * jax.random.normal(k, shape, dtype=jnp.float32)

    keys = jax.random.split(key, 3 + L)
    w_lm = jnp.zeros((C, V_PAD), jnp.float32).at[:, :V].set(nrm(keys[2], (C, V)))

    wqkv, wp, wf1, bf1, wf2, bf2 = ([] for _ in range(6))
    for l in range(L):
        bk = jax.random.split(keys[3 + l], 8)
        wq = nrm(bk[0], (C, C))
        wk = nrm(bk[1], (C, C))
        wv = nrm(bk[2], (C, C))
        wqkv.append(jnp.concatenate([wq, wk, wv], axis=-1))     # (C, 3C)
        wp.append(nrm(bk[3], (C, C)))
        wf1.append(nrm(bk[4], (C, F)))
        bf1.append(nrm(bk[5], (1, F)))
        wf2.append(nrm(bk[6], (F, C)))
        bf2.append(nrm(bk[7], (1, C)))

    bf16 = jnp.bfloat16
    return {
        "tok_emb": nrm(keys[0], (V, C)),
        "pos_emb": nrm(keys[1], (BLOCK_SIZE, C)),
        "w_lm": w_lm.astype(bf16),
        "b_lm": jnp.zeros((1, V_PAD), jnp.float32),
        "g1": jnp.ones((L, 1, C), jnp.float32),
        "b1": jnp.zeros((L, 1, C), jnp.float32),
        "g2": jnp.ones((L, 1, C), jnp.float32),
        "b2": jnp.zeros((L, 1, C), jnp.float32),
        "wqkv": jnp.stack(wqkv).astype(bf16),                   # (L, C, 3C)
        "wproj": jnp.stack(wp).astype(bf16),
        "bproj": jnp.zeros((L, 1, C), jnp.float32),
        "wff1": jnp.stack(wf1).astype(bf16),
        "bff1": jnp.stack(bf1),
        "wff2": jnp.stack(wf2).astype(bf16),
        "bff2": jnp.stack(bf2),
    }


# ----------------------------------------------------------------------------
# Full model forward (embeddings / gathers are glue in plain JAX)
# ----------------------------------------------------------------------------
@jax.jit
def forward(params, idx):
    B, T = idx.shape
    tok_emb = jnp.take(params["tok_emb"], idx, axis=0)        # (B, T, C)
    pos_emb = params["pos_emb"][:T]                           # (T, C)
    x2d = (tok_emb + pos_emb[None]).reshape(B * T, N_EMBD).astype(jnp.float32)
    bias = _block_causal_bias(B, T)                           # (B*T, B*T) additive mask
    logits_pad = fused_forward(params, x2d, bias)             # (B*T, V_PAD)
    logits = logits_pad[:, :VOCAB_SIZE].reshape(B, T, VOCAB_SIZE)
    return logits                                             # targets=None -> loss=None


# ----------------------------------------------------------------------------
# Pure-JAX f32 reference for a correctness sanity check
# ----------------------------------------------------------------------------
def forward_ref(params, idx):
    B, T = idx.shape
    C = N_EMBD
    f32 = lambda a: a.astype(jnp.float32)
    x = jnp.take(params["tok_emb"], idx, axis=0) + params["pos_emb"][:T][None]
    causal = jnp.tril(jnp.ones((T, T), bool))
    for l in range(N_LAYERS):
        mu = x.mean(-1, keepdims=True)
        var = ((x - mu) ** 2).mean(-1, keepdims=True)
        xln = (x - mu) / jnp.sqrt(var + LN_EPS) * params["g1"][l, 0] + params["b1"][l, 0]
        wqkv = f32(params["wqkv"][l])
        q = xln @ wqkv[:, :C]
        k = xln @ wqkv[:, C:2 * C]
        v = xln @ wqkv[:, 2 * C:]
        outs = []
        for h in range(N_HEAD):
            sl = slice(h * HEAD_SIZE, (h + 1) * HEAD_SIZE)
            wei = q[:, :, sl] @ jnp.swapaxes(k[:, :, sl], -1, -2)
            wei = jnp.where(causal, wei, NEG_INF)
            wei = jax.nn.softmax(wei, axis=-1)
            outs.append(wei @ v[:, :, sl])
        sa = jnp.concatenate(outs, -1) @ f32(params["wproj"][l]) + params["bproj"][l, 0]
        mu2 = sa.mean(-1, keepdims=True)
        var2 = ((sa - mu2) ** 2).mean(-1, keepdims=True)
        yln = (sa - mu2) / jnp.sqrt(var2 + LN_EPS) * params["g2"][l, 0] + params["b2"][l, 0]
        h1 = jnp.maximum(yln @ f32(params["wff1"][l]) + params["bff1"][l, 0], 0.0)
        x = h1 @ f32(params["wff2"][l]) + params["bff2"][l, 0]
    logits = x @ f32(params["w_lm"]) + params["b_lm"][0]
    return logits[:, :, :VOCAB_SIZE]


if __name__ == "__main__":
    key = jax.random.PRNGKey(0)
    pkey, ikey = jax.random.split(key)
    params = init_params(pkey)

    B, T = 2, BLOCK_SIZE
    idx = jax.random.randint(ikey, (B, T), 0, VOCAB_SIZE, dtype=jnp.int32)

    logits = jax.block_until_ready(forward(params, idx))
    assert logits.shape == (B, T, VOCAB_SIZE), logits.shape

    ref = jax.block_until_ready(forward_ref(params, idx))
    max_err = float(jnp.max(jnp.abs(logits - ref)))
    assert jnp.allclose(logits, ref, rtol=2e-2, atol=2e-2), max_err

    print("KERNEL_OK")
</pallas_src>

<mosaic_0001>
module attributes {stable_mosaic.version = 11 : i64} {
  func.func @fused_forward_kernel(%arg0: memref<128x128xf32, #tpu.memory_space<vmem>>, %arg1: memref<128x128xf32, #tpu.memory_space<vmem>>, %arg2: memref<3x1x128xf32, #tpu.memory_space<vmem>>, %arg3: memref<3x1x128xf32, #tpu.memory_space<vmem>>, %arg4: memref<3x128x384xbf16, #tpu.memory_space<vmem>>, %arg5: memref<3x128x128xbf16, #tpu.memory_space<vmem>>, %arg6: memref<3x1x128xf32, #tpu.memory_space<vmem>>, %arg7: memref<3x1x128xf32, #tpu.memory_space<vmem>>, %arg8: memref<3x1x128xf32, #tpu.memory_space<vmem>>, %arg9: memref<3x128x512xbf16, #tpu.memory_space<vmem>>, %arg10: memref<3x1x512xf32, #tpu.memory_space<vmem>>, %arg11: memref<3x512x128xbf16, #tpu.memory_space<vmem>>, %arg12: memref<3x1x128xf32, #tpu.memory_space<vmem>>, %arg13: memref<128x128xbf16, #tpu.memory_space<vmem>>, %arg14: memref<1x128xf32, #tpu.memory_space<vmem>>, %arg15: memref<128x128xf32, #tpu.memory_space<vmem>>, %arg16: memref<128x128xbf16, #tpu.memory_space<vmem>>) attributes {dimension_semantics = [], scalar_prefetch = 0 : i64, scratch_operands = 1 : i64, tpu.core_type = #tpu.core_type<tc>} {
    %c0 = arith.constant 0 : index
    %c0_0 = arith.constant 0 : index
    %0 = vector.load %arg0[%c0, %c0_0] : memref<128x128xf32, #tpu.memory_space<vmem>>, vector<128x128xf32>
    %c0_1 = arith.constant 0 : index
    %c0_2 = arith.constant 0 : index
    %1 = vector.load %arg1[%c0_1, %c0_2] : memref<128x128xf32, #tpu.memory_space<vmem>>, vector<128x128xf32>
    %c0_3 = arith.constant 0 : index
    %c0_4 = arith.constant 0 : index
    %c0_5 = arith.constant 0 : index
    %2 = vector.load %arg2[%c0_3, %c0_4, %c0_5] : memref<3x1x128xf32, #tpu.memory_space<vmem>>, vector<1x1x128xf32>
    %3 = vector.shape_cast %2 : vector<1x1x128xf32> to vector<1x128xf32>
    %c0_6 = arith.constant 0 : index
    %c0_7 = arith.constant 0 : index
    %c0_8 = arith.constant 0 : index
    %4 = vector.load %arg3[%c0_6, %c0_7, %c0_8] : memref<3x1x128xf32, #tpu.memory_space<vmem>>, vector<1x1x128xf32>
    %5 = vector.shape_cast %4 : vector<1x1x128xf32> to vector<1x128xf32>
    %cst = arith.constant dense<0.000000e+00> : vector<128xf32>
    %6 = vector.multi_reduction <add>, %0, %cst [1] : vector<128x128xf32> to vector<128xf32>
    %7 = vector.shape_cast %6 : vector<128xf32> to vector<128x1xf32>
    %cst_9 = arith.constant 1.280000e+02 : f32
    %8 = vector.broadcast %cst_9 : f32 to vector<128x1xf32>
    %9 = arith.divf %7, %8 : vector<128x1xf32>
    %10 = arith.mulf %0, %0 : vector<128x128xf32>
    %cst_10 = arith.constant dense<0.000000e+00> : vector<128xf32>
    %11 = vector.multi_reduction <add>, %10, %cst_10 [1] : vector<128x128xf32> to vector<128xf32>
    %12 = vector.shape_cast %11 : vector<128xf32> to vector<128x1xf32>
    %cst_11 = arith.constant 1.280000e+02 : f32
    %13 = vector.broadcast %cst_11 : f32 to vector<128x1xf32>
    %14 = arith.divf %12, %13 : vector<128x1xf32>
    %15 = arith.mulf %9, %9 : vector<128x1xf32>
    %16 = arith.subf %14, %15 : vector<128x1xf32>
    %17 = vector.broadcast %9 : vector<128x1xf32> to vector<128x128xf32>
    %18 = arith.subf %0, %17 : vector<128x128xf32>
    %cst_12 = arith.constant 9.99999974E-6 : f32
    %19 = vector.broadcast %cst_12 : f32 to vector<128x1xf32>
    %20 = arith.addf %16, %19 : vector<128x1xf32>
    %21 = math.rsqrt %20 : vector<128x1xf32>
    %22 = vector.broadcast %21 : vector<128x1xf32> to vector<128x128xf32>
    %23 = arith.mulf %18, %22 : vector<128x128xf32>
    %24 = vector.broadcast %3 : vector<1x128xf32> to vector<128x128xf32>
    %25 = arith.mulf %23, %24 : vector<128x128xf32>
    %26 = vector.broadcast %5 : vector<1x128xf32> to vector<128x128xf32>
    %27 = arith.addf %25, %26 : vector<128x128xf32>
    %28 = arith.truncf %27 : vector<128x128xf32> to vector<128x128xbf16>
    %c0_13 = arith.constant 0 : index
    %c0_14 = arith.constant 0 : index
    %c0_15 = arith.constant 0 : index
    %29 = vector.load %arg4[%c0_13, %c0_14, %c0_15] : memref<3x128x384xbf16, #tpu.memory_space<vmem>>, vector<1x128x384xbf16>
    %30 = vector.shape_cast %29 : vector<1x128x384xbf16> to vector<128x384xbf16>
    %cst_16 = arith.constant dense<0.000000e+00> : vector<128x384xf32>
    %31 = tpu.matmul %28, %30, %cst_16 {dimension_numbers = #tpu.dot_dimension_numbers<[1], [0], [0], [1], [0, 0, 1, 1], [], []>} : vector<128x128xbf16>, vector<128x384xbf16>, vector<128x384xf32> -> vector<128x384xf32>
    %32 = arith.truncf %31 : vector<128x384xf32> to vector<128x384xbf16>
    %33 = vector.extract_strided_slice %32 {offsets = [0, 0], sizes = [128, 32], strides = [1, 1]} : vector<128x384xbf16> to vector<128x32xbf16>
    %34 = vector.extract_strided_slice %32 {offsets = [0, 128], sizes = [128, 32], strides = [1, 1]} : vector<128x384xbf16> to vector<128x32xbf16>
    %35 = vector.extract_strided_slice %32 {offsets = [0, 256], sizes = [128, 32], strides = [1, 1]} : vector<128x384xbf16> to vector<128x32xbf16>
    %cst_17 = arith.constant dense<0.000000e+00> : vector<128x128xf32>
    %36 = tpu.matmul %33, %34, %cst_17 {dimension_numbers = #tpu.dot_dimension_numbers<[1], [1], [0], [0], [0, 0, 1, 0], [], []>} : vector<128x32xbf16>, vector<128x32xbf16>, vector<128x128xf32> -> vector<128x128xf32>
    %37 = arith.addf %36, %1 : vector<128x128xf32>
    %cst_18 = arith.constant dense<0xFF800000> : vector<128xf32>
    %38 = vector.multi_reduction <maximumf>, %37, %cst_18 [1] : vector<128x128xf32> to vector<128xf32>
    %39 = vector.shape_cast %38 : vector<128xf32> to vector<128x1xf32>
    %40 = vector.broadcast %39 : vector<128x1xf32> to vector<128x128xf32>
    %41 = arith.subf %37, %40 : vector<128x128xf32>
    %42 = math.exp %41 : vector<128x128xf32>
    %cst_19 = arith.constant dense<0.000000e+00> : vector<128xf32>
    %43 = vector.multi_reduction <add>, %42, %cst_19 [1] : vector<128x128xf32> to vector<128xf32>
    %44 = vector.shape_cast %43 : vector<128xf32> to vector<128x1xf32>
    %45 = tpu.reciprocal %44 {approx = true} : vector<128x1xf32> -> vector<128x1xf32>
    %46 = vector.broadcast %45 : vector<128x1xf32> to vector<128x128xf32>
    %47 = arith.mulf %42, %46 : vector<128x128xf32>
    %48 = arith.truncf %47 : vector<128x128xf32> to vector<128x128xbf16>
    %cst_20 = arith.constant dense<0.000000e+00> : vector<128x32xf32>
    %49 = tpu.matmul %48, %35, %cst_20 {dimension_numbers = #tpu.dot_dimension_numbers<[1], [0], [0], [1], [0, 0, 1, 1], [], []>} : vector<128x128xbf16>, vector<128x32xbf16>, vector<128x32xf32> -> vector<128x32xf32>
    %50 = arith.truncf %49 : vector<128x32xf32> to vector<128x32xbf16>
    %c0_21 = arith.constant 0 : index
    %c0_22 = arith.constant 0 : index
    %51 = vector.load %arg16[%c0_21, %c0_22] : memref<128x128xbf16, #tpu.memory_space<vmem>>, vector<128x32xbf16>
    tpu.vector_store %arg16[%c0_21, %c0_22], %50 {strides = array<i32>} : memref<128x128xbf16, #tpu.memory_space<vmem>>, vector<128x32xbf16>,
    %52 = vector.extract_strided_slice %32 {offsets = [0, 32], sizes = [128, 32], strides = [1, 1]} : vector<128x384xbf16> to vector<128x32xbf16>
    %53 = vector.extract_strided_slice %32 {offsets = [0, 160], sizes = [128, 32], strides = [1, 1]} : vector<128x384xbf16> to vector<128x32xbf16>
    %54 = vector.extract_strided_slice %32 {offsets = [0, 288], sizes = [128, 32], strides = [1, 1]} : vector<128x384xbf16> to vector<128x32xbf16>
    %cst_23 = arith.constant dense<0.000000e+00> : vector<128x128xf32>
    %55 = tpu.matmul %52, %53, %cst_23 {dimension_numbers = #tpu.dot_dimension_numbers<[1], [1], [0], [0], [0, 0, 1, 0], [], []>} : vector<128x32xbf16>, vector<128x32xbf16>, vector<128x128xf32> -> vector<128x128xf32>
    %56 = arith.addf %55, %1 : vector<128x128xf32>
    %cst_24 = arith.constant dense<0xFF800000> : vector<128xf32>
    %57 = vector.multi_reduction <maximumf>, %56, %cst_24 [1] : vector<128x128xf32> to vector<128xf32>
    %58 = vector.shape_cast %57 : vector<128xf32> to vector<128x1xf32>
    %59 = vector.broadcast %58 : vector<128x1xf32> to vector<128x128xf32>
    %60 = arith.subf %56, %59 : vector<128x128xf32>
    %61 = math.exp %60 : vector<128x128xf32>
    %cst_25 = arith.constant dense<0.000000e+00> : vector<128xf32>
    %62 = vector.multi_reduction <add>, %61, %cst_25 [1] : vector<128x128xf32> to vector<128xf32>
    %63 = vector.shape_cast %62 : vector<128xf32> to vector<128x1xf32>
    %64 = tpu.reciprocal %63 {approx = true} : vector<128x1xf32> -> vector<128x1xf32>
    %65 = vector.broadcast %64 : vector<128x1xf32> to vector<128x128xf32>
    %66 = arith.mulf %61, %65 : vector<128x128xf32>
    %67 = arith.truncf %66 : vector<128x128xf32> to vector<128x128xbf16>
    %cst_26 = arith.constant dense<0.000000e+00> : vector<128x32xf32>
    %68 = tpu.matmul %67, %54, %cst_26 {dimension_numbers = #tpu.dot_dimension_numbers<[1], [0], [0], [1], [0, 0, 1, 1], [], []>} : vector<128x128xbf16>, vector<128x32xbf16>, vector<128x32xf32> -> vector<128x32xf32>
    %69 = arith.truncf %68 : vector<128x32xf32> to vector<128x32xbf16>
    %c0_27 = arith.constant 0 : index
    %c32 = arith.constant 32 : index
    %70 = vector.load %arg16[%c0_27, %c32] : memref<128x128xbf16, #tpu.memory_space<vmem>>, vector<128x32xbf16>
    tpu.vector_store %arg16[%c0_27, %c32], %69 {strides = array<i32>} : memref<128x128xbf16, #tpu.memory_space<vmem>>, vector<128x32xbf16>,
    %71 = vector.extract_strided_slice %32 {offsets = [0, 64], sizes = [128, 32], strides = [1, 1]} : vector<128x384xbf16> to vector<128x32xbf16>
    %72 = vector.extract_strided_slice %32 {offsets = [0, 192], sizes = [128, 32], strides = [1, 1]} : vector<128x384xbf16> to vector<128x32xbf16>
    %73 = vector.extract_strided_slice %32 {offsets = [0, 320], sizes = [128, 32], strides = [1, 1]} : vector<128x384xbf16> to vector<128x32xbf16>
    %cst_28 = arith.constant dense<0.000000e+00> : vector<128x128xf32>
    %74 = tpu.matmul %71, %72, %cst_28 {dimension_numbers = #tpu.dot_dimension_numbers<[1], [1], [0], [0], [0, 0, 1, 0], [], []>} : vector<128x32xbf16>, vector<128x32xbf16>, vector<128x128xf32> -> vector<128x128xf32>
    %75 = arith.addf %74, %1 : vector<128x128xf32>
    %cst_29 = arith.constant dense<0xFF800000> : vector<128xf32>
    %76 = vector.multi_reduction <maximumf>, %75, %cst_29 [1] : vector<128x128xf32> to vector<128xf32>
    %77 = vector.shape_cast %76 : vector<128xf32> to vector<128x1xf32>
    %78 = vector.broadcast %77 : vector<128x1xf32> to vector<128x128xf32>
    %79 = arith.subf %75, %78 : vector<128x128xf32>
    %80 = math.exp %79 : vector<128x128xf32>
    %cst_30 = arith.constant dense<0.000000e+00> : vector<128xf32>
    %81 = vector.multi_reduction <add>, %80, %cst_30 [1] : vector<128x128xf32> to vector<128xf32>
    %82 = vector.shape_cast %81 : vector<128xf32> to vector<128x1xf32>
    %83 = tpu.reciprocal %82 {approx = true} : vector<128x1xf32> -> vector<128x1xf32>
    %84 = vector.broadcast %83 : vector<128x1xf32> to vector<128x128xf32>
    %85 = arith.mulf %80, %84 : vector<128x128xf32>
    %86 = arith.truncf %85 : vector<128x128xf32> to vector<128x128xbf16>
    %cst_31 = arith.constant dense<0.000000e+00> : vector<128x32xf32>
    %87 = tpu.matmul %86, %73, %cst_31 {dimension_numbers = #tpu.dot_dimension_numbers<[1], [0], [0], [1], [0, 0, 1, 1], [], []>} : vector<128x128xbf16>, vector<128x32xbf16>, vector<128x32xf32> -> vector<128x32xf32>
    %88 = arith.truncf %87 : vector<128x32xf32> to vector<128x32xbf16>
    %c0_32 = arith.constant 0 : index
    %c64 = arith.constant 64 : index
    %89 = vector.load %arg16[%c0_32, %c64] : memref<128x128xbf16, #tpu.memory_space<vmem>>, vector<128x32xbf16>
    tpu.vector_store %arg16[%c0_32, %c64], %88 {strides = array<i32>} : memref<128x128xbf16, #tpu.memory_space<vmem>>, vector<128x32xbf16>,
    %90 = vector.extract_strided_slice %32 {offsets = [0, 96], sizes = [128, 32], strides = [1, 1]} : vector<128x384xbf16> to vector<128x32xbf16>
    %91 = vector.extract_strided_slice %32 {offsets = [0, 224], sizes = [128, 32], strides = [1, 1]} : vector<128x384xbf16> to vector<128x32xbf16>
    %92 = vector.extract_strided_slice %32 {offsets = [0, 352], sizes = [128, 32], strides = [1, 1]} : vector<128x384xbf16> to vector<128x32xbf16>
    %cst_33 = arith.constant dense<0.000000e+00> : vector<128x128xf32>
    %93 = tpu.matmul %90, %91, %cst_33 {dimension_numbers = #tpu.dot_dimension_numbers<[1], [1], [0], [0], [0, 0, 1, 0], [], []>} : vector<128x32xbf16>, vector<128x32xbf16>, vector<128x128xf32> -> vector<128x128xf32>
    %94 = arith.addf %93, %1 : vector<128x128xf32>
    %cst_34 = arith.constant dense<0xFF800000> : vector<128xf32>
    %95 = vector.multi_reduction <maximumf>, %94, %cst_34 [1] : vector<128x128xf32> to vector<128xf32>
    %96 = vector.shape_cast %95 : vector<128xf32> to vector<128x1xf32>
    %97 = vector.broadcast %96 : vector<128x1xf32> to vector<128x128xf32>
    %98 = arith.subf %94, %97 : vector<128x128xf32>
    %99 = math.exp %98 : vector<128x128xf32>
    %cst_35 = arith.constant dense<0.000000e+00> : vector<128xf32>
    %100 = vector.multi_reduction <add>, %99, %cst_35 [1] : vector<128x128xf32> to vector<128xf32>
    %101 = vector.shape_cast %100 : vector<128xf32> to vector<128x1xf32>
    %102 = tpu.reciprocal %101 {approx = true} : vector<128x1xf32> -> vector<128x1xf32>
    %103 = vector.broadcast %102 : vector<128x1xf32> to vector<128x128xf32>
    %104 = arith.mulf %99, %103 : vector<128x128xf32>
    %105 = arith.truncf %104 : vector<128x128xf32> to vector<128x128xbf16>
    %cst_36 = arith.constant dense<0.000000e+00> : vector<128x32xf32>
    %106 = tpu.matmul %105, %92, %cst_36 {dimension_numbers = #tpu.dot_dimension_numbers<[1], [0], [0], [1], [0, 0, 1, 1], [], []>} : vector<128x128xbf16>, vector<128x32xbf16>, vector<128x32xf32> -> vector<128x32xf32>
    %107 = arith.truncf %106 : vector<128x32xf32> to vector<128x32xbf16>
    %c0_37 = arith.constant 0 : index
    %c96 = arith.constant 96 : index
    %108 = vector.load %arg16[%c0_37, %c96] : memref<128x128xbf16, #tpu.memory_space<vmem>>, vector<128x32xbf16>
    tpu.vector_store %arg16[%c0_37, %c96], %107 {strides = array<i32>} : memref<128x128xbf16, #tpu.memory_space<vmem>>, vector<128x32xbf16>,
    %c0_38 = arith.constant 0 : index
    %c0_39 = arith.constant 0 : index
    %109 = vector.load %arg16[%c0_38, %c0_39] : memref<128x128xbf16, #tpu.memory_space<vmem>>, vector<128x128xbf16>
    %c0_40 = arith.constant 0 : index
    %c0_41 = arith.constant 0 : index
    %c0_42 = arith.constant 0 : index
    %110 = vector.load %arg5[%c0_40, %c0_41, %c0_42] : memref<3x128x128xbf16, #tpu.memory_space<vmem>>, vector<1x128x128xbf16>
    %111 = vector.shape_cast %110 : vector<1x128x128xbf16> to vector<128x128xbf16>
    %cst_43 = arith.constant dense<0.000000e+00> : vector<128x128xf32>
    %112 = tpu.matmul %109, %111, %cst_43 {dimension_numbers = #tpu.dot_dimension_numbers<[1], [0], [0], [1], [0, 0, 1, 1], [], []>} : vector<128x128xbf16>, vector<128x128xbf16>, vector<128x128xf32> -> vector<128x128xf32>
    %c0_44 = arith.constant 0 : index
    %c0_45 = arith.constant 0 : index
    %c0_46 = arith.constant 0 : index
    %113 = vector.load %arg6[%c0_44, %c0_45, %c0_46] : memref<3x1x128xf32, #tpu.memory_space<vmem>>, vector<1x1x128xf32>
    %114 = vector.shape_cast %113 : vector<1x1x128xf32> to vector<1x128xf32>
    %115 = vector.broadcast %114 : vector<1x128xf32> to vector<128x128xf32>
    %116 = arith.addf %112, %115 : vector<128x128xf32>
    %c0_47 = arith.constant 0 : index
    %c0_48 = arith.constant 0 : index
    %c0_49 = arith.constant 0 : index
    %117 = vector.load %arg7[%c0_47, %c0_48, %c0_49] : memref<3x1x128xf32, #tpu.memory_space<vmem>>, vector<1x1x128xf32>
    %118 = vector.shape_cast %117 : vector<1x1x128xf32> to vector<1x128xf32>
    %c0_50 = arith.constant 0 : index
    %c0_51 = arith.constant 0 : index
    %c0_52 = arith.constant 0 : index
    %119 = vector.load %arg8[%c0_50, %c0_51, %c0_52] : memref<3x1x128xf32, #tpu.memory_space<vmem>>, vector<1x1x128xf32>
    %120 = vector.shape_cast %119 : vector<1x1x128xf32> to vector<1x128xf32>
    %cst_53 = arith.constant dense<0.000000e+00> : vector<128xf32>
    %121 = vector.multi_reduction <add>, %116, %cst_53 [1] : vector<128x128xf32> to vector<128xf32>
    %122 = vector.shape_cast %121 : vector<128xf32> to vector<128x1xf32>
    %cst_54 = arith.constant 1.280000e+02 : f32
    %123 = vector.broadcast %cst_54 : f32 to vector<128x1xf32>
    %124 = arith.divf %122, %123 : vector<128x1xf32>
    %125 = arith.mulf %116, %116 : vector<128x128xf32>
    %cst_55 = arith.constant dense<0.000000e+00> : vector<128xf32>
    %126 = vector.multi_reduction <add>, %125, %cst_55 [1] : vector<128x128xf32> to vector<128xf32>
    %127 = vector.shape_cast %126 : vector<128xf32> to vector<128x1xf32>
    %cst_56 = arith.constant 1.280000e+02 : f32
    %128 = vector.broadcast %cst_56 : f32 to vector<128x1xf32>
    %129 = arith.divf %127, %128 : vector<128x1xf32>
    %130 = arith.mulf %124, %124 : vector<128x1xf32>
    %131 = arith.subf %129, %130 : vector<128x1xf32>
    %132 = vector.broadcast %124 : vector<128x1xf32> to vector<128x128xf32>
    %133 = arith.subf %116, %132 : vector<128x128xf32>
    %cst_57 = arith.constant 9.99999974E-6 : f32
    %134 = vector.broadcast %cst_57 : f32 to vector<128x1xf32>
    %135 = arith.addf %131, %134 : vector<128x1xf32>
    %136 = math.rsqrt %135 : vector<128x1xf32>
    %137 = vector.broadcast %136 : vector<128x1xf32> to vector<128x128xf32>
    %138 = arith.mulf %133, %137 : vector<128x128xf32>
    %139 = vector.broadcast %118 : vector<1x128xf32> to vector<128x128xf32>
    %140 = arith.mulf %138, %139 : vector<128x128xf32>
    %141 = vector.broadcast %120 : vector<1x128xf32> to vector<128x128xf32>
    %142 = arith.addf %140, %141 : vector<128x128xf32>
    %143 = arith.truncf %142 : vector<128x128xf32> to vector<128x128xbf16>
    %c0_58 = arith.constant 0 : index
    %c0_59 = arith.constant 0 : index
    %c0_60 = arith.constant 0 : index
    %144 = vector.load %arg9[%c0_58, %c0_59, %c0_60] : memref<3x128x512xbf16, #tpu.memory_space<vmem>>, vector<1x128x512xbf16>
    %145 = vector.shape_cast %144 : vector<1x128x512xbf16> to vector<128x512xbf16>
    %cst_61 = arith.constant dense<0.000000e+00> : vector<128x512xf32>
    %146 = tpu.matmul %143, %145, %cst_61 {dimension_numbers = #tpu.dot_dimension_numbers<[1], [0], [0], [1], [0, 0, 1, 1], [], []>} : vector<128x128xbf16>, vector<128x512xbf16>, vector<128x512xf32> -> vector<128x512xf32>
    %c0_62 = arith.constant 0 : index
    %c0_63 = arith.constant 0 : index
    %c0_64 = arith.constant 0 : index
    %147 = vector.load %arg10[%c0_62, %c0_63, %c0_64] : memref<3x1x512xf32, #tpu.memory_space<vmem>>, vector<1x1x512xf32>
    %148 = vector.shape_cast %147 : vector<1x1x512xf32> to vector<1x512xf32>
    %149 = vector.broadcast %148 : vector<1x512xf32> to vector<128x512xf32>
    %150 = arith.addf %146, %149 : vector<128x512xf32>
    %cst_65 = arith.constant 0.000000e+00 : f32
    %151 = vector.broadcast %cst_65 : f32 to vector<128x512xf32>
    %152 = arith.maximumf %150, %151 : vector<128x512xf32>
    %153 = arith.truncf %152 : vector<128x512xf32> to vector<128x512xbf16>
    %c0_66 = arith.constant 0 : index
    %c0_67 = arith.constant 0 : index
    %c0_68 = arith.constant 0 : index
    %154 = vector.load %arg11[%c0_66, %c0_67, %c0_68] : memref<3x512x128xbf16, #tpu.memory_space<vmem>>, vector<1x512x128xbf16>
    %155 = vector.shape_cast %154 : vector<1x512x128xbf16> to vector<512x128xbf16>
    %cst_69 = arith.constant dense<0.000000e+00> : vector<128x128xf32>
    %156 = tpu.matmul %153, %155, %cst_69 {dimension_numbers = #tpu.dot_dimension_numbers<[1], [0], [0], [1], [0, 0, 1, 1], [], []>} : vector<128x512xbf16>, vector<512x128xbf16>, vector<128x128xf32> -> vector<128x128xf32>
    %c0_70 = arith.constant 0 : index
    %c0_71 = arith.constant 0 : index
    %c0_72 = arith.constant 0 : index
    %157 = vector.load %arg12[%c0_70, %c0_71, %c0_72] : memref<3x1x128xf32, #tpu.memory_space<vmem>>, vector<1x1x128xf32>
    %158 = vector.shape_cast %157 : vector<1x1x128xf32> to vector<1x128xf32>
    %159 = vector.broadcast %158 : vector<1x128xf32> to vector<128x128xf32>
    %160 = arith.addf %156, %159 : vector<128x128xf32>
    %c1 = arith.constant 1 : index
    %c0_73 = arith.constant 0 : index
    %c0_74 = arith.constant 0 : index
    %161 = vector.load %arg2[%c1, %c0_73, %c0_74] : memref<3x1x128xf32, #tpu.memory_space<vmem>>, vector<1x1x128xf32>
    %162 = vector.shape_cast %161 : vector<1x1x128xf32> to vector<1x128xf32>
    %c1_75 = arith.constant 1 : index
    %c0_76 = arith.constant 0 : index
    %c0_77 = arith.constant 0 : index
    %163 = vector.load %arg3[%c1_75, %c0_76, %c0_77] : memref<3x1x128xf32, #tpu.memory_space<vmem>>, vector<1x1x128xf32>
    %164 = vector.shape_cast %163 : vector<1x1x128xf32> to vector<1x128xf32>
    %cst_78 = arith.constant dense<0.000000e+00> : vector<128xf32>
    %165 = vector.multi_reduction <add>, %160, %cst_78 [1] : vector<128x128xf32> to vector<128xf32>
    %166 = vector.shape_cast %165 : vector<128xf32> to vector<128x1xf32>
    %cst_79 = arith.constant 1.280000e+02 : f32
    %167 = vector.broadcast %cst_79 : f32 to vector<128x1xf32>
    %168 = arith.divf %166, %167 : vector<128x1xf32>
    %169 = arith.mulf %160, %160 : vector<128x128xf32>
    %cst_80 = arith.constant dense<0.000000e+00> : vector<128xf32>
    %170 = vector.multi_reduction <add>, %169, %cst_80 [1] : vector<128x128xf32> to vector<128xf32>
    %171 = vector.shape_cast %170 : vector<128xf32> to vector<128x1xf32>
    %cst_81 = arith.constant 1.280000e+02 : f32
    %172 = vector.broadcast %cst_81 : f32 to vector<128x1xf32>
    %173 = arith.divf %171, %172 : vector<128x1xf32>
    %174 = arith.mulf %168, %168 : vector<128x1xf32>
    %175 = arith.subf %173, %174 : vector<128x1xf32>
    %176 = vector.broadcast %168 : vector<128x1xf32> to vector<128x128xf32>
    %177 = arith.subf %160, %176 : vector<128x128xf32>
    %cst_82 = arith.constant 9.99999974E-6 : f32
    %178 = vector.broadcast %cst_82 : f32 to vector<128x1xf32>
    %179 = arith.addf %175, %178 : vector<128x1xf32>
    %180 = math.rsqrt %179 : vector<128x1xf32>
    %181 = vector.broadcast %180 : vector<128x1xf32> to vector<128x128xf32>
    %182 = arith.mulf %177, %181 : vector<128x128xf32>
    %183 = vector.broadcast %162 : vector<1x128xf32> to vector<128x128xf32>
    %184 = arith.mulf %182, %183 : vector<128x128xf32>
    %185 = vector.broadcast %164 : vector<1x128xf32> to vector<128x128xf32>
    %186 = arith.addf %184, %185 : vector<128x128xf32>
    %187 = arith.truncf %186 : vector<128x128xf32> to vector<128x128xbf16>
    %c1_83 = arith.constant 1 : index
    %c0_84 = arith.constant 0 : index
    %c0_85 = arith.constant 0 : index
    %188 = vector.load %arg4[%c1_83, %c0_84, %c0_85] : memref<3x128x384xbf16, #tpu.memory_space<vmem>>, vector<1x128x384xbf16>
    %189 = vector.shape_cast %188 : vector<1x128x384xbf16> to vector<128x384xbf16>
    %cst_86 = arith.constant dense<0.000000e+00> : vector<128x384xf32>
    %190 = tpu.matmul %187, %189, %cst_86 {dimension_numbers = #tpu.dot_dimension_numbers<[1], [0], [0], [1], [0, 0, 1, 1], [], []>} : vector<128x128xbf16>, vector<128x384xbf16>, vector<128x384xf32> -> vector<128x384xf32>
    %191 = arith.truncf %190 : vector<128x384xf32> to vector<128x384xbf16>
    %192 = vector.extract_strided_slice %191 {offsets = [0, 0], sizes = [128, 32], strides = [1, 1]} : vector<128x384xbf16> to vector<128x32xbf16>
    %193 = vector.extract_strided_slice %191 {offsets = [0, 128], sizes = [128, 32], strides = [1, 1]} : vector<128x384xbf16> to vector<128x32xbf16>
    %194 = vector.extract_strided_slice %191 {offsets = [0, 256], sizes = [128, 32], strides = [1, 1]} : vector<128x384xbf16> to vector<128x32xbf16>
    %cst_87 = arith.constant dense<0.000000e+00> : vector<128x128xf32>
    %195 = tpu.matmul %192, %193, %cst_87 {dimension_numbers = #tpu.dot_dimension_numbers<[1], [1], [0], [0], [0, 0, 1, 0], [], []>} : vector<128x32xbf16>, vector<128x32xbf16>, vector<128x128xf32> -> vector<128x128xf32>
    %196 = arith.addf %195, %1 : vector<128x128xf32>
    %cst_88 = arith.constant dense<0xFF800000> : vector<128xf32>
    %197 = vector.multi_reduction <maximumf>, %196, %cst_88 [1] : vector<128x128xf32> to vector<128xf32>
    %198 = vector.shape_cast %197 : vector<128xf32> to vector<128x1xf32>
    %199 = vector.broadcast %198 : vector<128x1xf32> to vector<128x128xf32>
    %200 = arith.subf %196, %199 : vector<128x128xf32>
    %201 = math.exp %200 : vector<128x128xf32>
    %cst_89 = arith.constant dense<0.000000e+00> : vector<128xf32>
    %202 = vector.multi_reduction <add>, %201, %cst_89 [1] : vector<128x128xf32> to vector<128xf32>
    %203 = vector.shape_cast %202 : vector<128xf32> to vector<128x1xf32>
    %204 = tpu.reciprocal %203 {approx = true} : vector<128x1xf32> -> vector<128x1xf32>
    %205 = vector.broadcast %204 : vector<128x1xf32> to vector<128x128xf32>
    %206 = arith.mulf %201, %205 : vector<128x128xf32>
    %207 = arith.truncf %206 : vector<128x128xf32> to vector<128x128xbf16>
    %cst_90 = arith.constant dense<0.000000e+00> : vector<128x32xf32>
    %208 = tpu.matmul %207, %194, %cst_90 {dimension_numbers = #tpu.dot_dimension_numbers<[1], [0], [0], [1], [0, 0, 1, 1], [], []>} : vector<128x128xbf16>, vector<128x32xbf16>, vector<128x32xf32> -> vector<128x32xf32>
    %209 = arith.truncf %208 : vector<128x32xf32> to vector<128x32xbf16>
    %c0_91 = arith.constant 0 : index
    %c0_92 = arith.constant 0 : index
    %210 = vector.load %arg16[%c0_91, %c0_92] : memref<128x128xbf16, #tpu.memory_space<vmem>>, vector<128x32xbf16>
    tpu.vector_store %arg16[%c0_91, %c0_92], %209 {strides = array<i32>} : memref<128x128xbf16, #tpu.memory_space<vmem>>, vector<128x32xbf16>,
    %211 = vector.extract_strided_slice %191 {offsets = [0, 32], sizes = [128, 32], strides = [1, 1]} : vector<128x384xbf16> to vector<128x32xbf16>
    %212 = vector.extract_strided_slice %191 {offsets = [0, 160], sizes = [128, 32], strides = [1, 1]} : vector<128x384xbf16> to vector<128x32xbf16>
    %213 = vector.extract_strided_slice %191 {offsets = [0, 288], sizes = [128, 32], strides = [1, 1]} : vector<128x384xbf16> to vector<128x32xbf16>
    %cst_93 = arith.constant dense<0.000000e+00> : vector<128x128xf32>
    %214 = tpu.matmul %211, %212, %cst_93 {dimension_numbers = #tpu.dot_dimension_numbers<[1], [1], [0], [0], [0, 0, 1, 0], [], []>} : vector<128x32xbf16>, vector<128x32xbf16>, vector<128x128xf32> -> vector<128x128xf32>
    %215 = arith.addf %214, %1 : vector<128x128xf32>
    %cst_94 = arith.constant dense<0xFF800000> : vector<128xf32>
    %216 = vector.multi_reduction <maximumf>, %215, %cst_94 [1] : vector<128x128xf32> to vector<128xf32>
    %217 = vector.shape_cast %216 : vector<128xf32> to vector<128x1xf32>
    %218 = vector.broadcast %217 : vector<128x1xf32> to vector<128x128xf32>
    %219 = arith.subf %215, %218 : vector<128x128xf32>
    %220 = math.exp %219 : vector<128x128xf32>
    %cst_95 = arith.constant dense<0.000000e+00> : vector<128xf32>
    %221 = vector.multi_reduction <add>, %220, %cst_95 [1] : vector<128x128xf32> to vector<128xf32>
    %222 = vector.shape_cast %221 : vector<128xf32> to vector<128x1xf32>
    %223 = tpu.reciprocal %222 {approx = true} : vector<128x1xf32> -> vector<128x1xf32>
    %224 = vector.broadcast %223 : vector<128x1xf32> to vector<128x128xf32>
    %225 = arith.mulf %220, %224 : vector<128x128xf32>
    %226 = arith.truncf %225 : vector<128x128xf32> to vector<128x128xbf16>
    %cst_96 = arith.constant dense<0.000000e+00> : vector<128x32xf32>
    %227 = tpu.matmul %226, %213, %cst_96 {dimension_numbers = #tpu.dot_dimension_numbers<[1], [0], [0], [1], [0, 0, 1, 1], [], []>} : vector<128x128xbf16>, vector<128x32xbf16>, vector<128x32xf32> -> vector<128x32xf32>
    %228 = arith.truncf %227 : vector<128x32xf32> to vector<128x32xbf16>
    %c0_97 = arith.constant 0 : index
    %c32_98 = arith.constant 32 : index
    %229 = vector.load %arg16[%c0_97, %c32_98] : memref<128x128xbf16, #tpu.memory_space<vmem>>, vector<128x32xbf16>
    tpu.vector_store %arg16[%c0_97, %c32_98], %228 {strides = array<i32>} : memref<128x128xbf16, #tpu.memory_space<vmem>>, vector<128x32xbf16>,
    %230 = vector.extract_strided_slice %191 {offsets = [0, 64], sizes = [128, 32], strides = [1, 1]} : vector<128x384xbf16> to vector<128x32xbf16>
    %231 = vector.extract_strided_slice %191 {offsets = [0, 192], sizes = [128, 32], strides = [1, 1]} : vector<128x384xbf16> to vector<128x32xbf16>
    %232 = vector.extract_strided_slice %191 {offsets = [0, 320], sizes = [128, 32], strides = [1, 1]} : vector<128x384xbf16> to vector<128x32xbf16>
    %cst_99 = arith.constant dense<0.000000e+00> : vector<128x128xf32>
    %233 = tpu.matmul %230, %231, %cst_99 {dimension_numbers = #tpu.dot_dimension_numbers<[1], [1], [0], [0], [0, 0, 1, 0], [], []>} : vector<128x32xbf16>, vector<128x32xbf16>, vector<128x128xf32> -> vector<128x128xf32>
    %234 = arith.addf %233, %1 : vector<128x128xf32>
    %cst_100 = arith.constant dense<0xFF800000> : vector<128xf32>
    %235 = vector.multi_reduction <maximumf>, %234, %cst_100 [1] : vector<128x128xf32> to vector<128xf32>
    %236 = vector.shape_cast %235 : vector<128xf32> to vector<128x1xf32>
    %237 = vector.broadcast %236 : vector<128x1xf32> to vector<128x128xf32>
    %238 = arith.subf %234, %237 : vector<128x128xf32>
    %239 = math.exp %238 : vector<128x128xf32>
    %cst_101 = arith.constant dense<0.000000e+00> : vector<128xf32>
    %240 = vector.multi_reduction <add>, %239, %cst_101 [1] : vector<128x128xf32> to vector<128xf32>
    %241 = vector.shape_cast %240 : vector<128xf32> to vector<128x1xf32>
    %242 = tpu.reciprocal %241 {approx = true} : vector<128x1xf32> -> vector<128x1xf32>
    %243 = vector.broadcast %242 : vector<128x1xf32> to vector<128x128xf32>
    %244 = arith.mulf %239, %243 : vector<128x128xf32>
    %245 = arith.truncf %244 : vector<128x128xf32> to vector<128x128xbf16>
    %cst_102 = arith.constant dense<0.000000e+00> : vector<128x32xf32>
    %246 = tpu.matmul %245, %232, %cst_102 {dimension_numbers = #tpu.dot_dimension_numbers<[1], [0], [0], [1], [0, 0, 1, 1], [], []>} : vector<128x128xbf16>, vector<128x32xbf16>, vector<128x32xf32> -> vector<128x32xf32>
    %247 = arith.truncf %246 : vector<128x32xf32> to vector<128x32xbf16>
    %c0_103 = arith.constant 0 : index
    %c64_104 = arith.constant 64 : index
    %248 = vector.load %arg16[%c0_103, %c64_104] : memref<128x128xbf16, #tpu.memory_space<vmem>>, vector<128x32xbf16>
    tpu.vector_store %arg16[%c0_103, %c64_104], %247 {strides = array<i32>} : memref<128x128xbf16, #tpu.memory_space<vmem>>, vector<128x32xbf16>,
    %249 = vector.extract_strided_slice %191 {offsets = [0, 96], sizes = [128, 32], strides = [1, 1]} : vector<128x384xbf16> to vector<128x32xbf16>
    %250 = vector.extract_strided_slice %191 {offsets = [0, 224], sizes = [128, 32], strides = [1, 1]} : vector<128x384xbf16> to vector<128x32xbf16>
    %251 = vector.extract_strided_slice %191 {offsets = [0, 352], sizes = [128, 32], strides = [1, 1]} : vector<128x384xbf16> to vector<128x32xbf16>
    %cst_105 = arith.constant dense<0.000000e+00> : vector<128x128xf32>
    %252 = tpu.matmul %249, %250, %cst_105 {dimension_numbers = #tpu.dot_dimension_numbers<[1], [1], [0], [0], [0, 0, 1, 0], [], []>} : vector<128x32xbf16>, vector<128x32xbf16>, vector<128x128xf32> -> vector<128x128xf32>
    %253 = arith.addf %252, %1 : vector<128x128xf32>
    %cst_106 = arith.constant dense<0xFF800000> : vector<128xf32>
    %254 = vector.multi_reduction <maximumf>, %253, %cst_106 [1] : vector<128x128xf32> to vector<128xf32>
    %255 = vector.shape_cast %254 : vector<128xf32> to vector<128x1xf32>
    %256 = vector.broadcast %255 : vector<128x1xf32> to vector<128x128xf32>
    %257 = arith.subf %253, %256 : vector<128x128xf32>
    %258 = math.exp %257 : vector<128x128xf32>
    %cst_107 = arith.constant dense<0.000000e+00> : vector<128xf32>
    %259 = vector.multi_reduction <add>, %258, %cst_107 [1] : vector<128x128xf32> to vector<128xf32>
    %260 = vector.shape_cast %259 : vector<128xf32> to vector<128x1xf32>
    %261 = tpu.reciprocal %260 {approx = true} : vector<128x1xf32> -> vector<128x1xf32>
    %262 = vector.broadcast %261 : vector<128x1xf32> to vector<128x128xf32>
    %263 = arith.mulf %258, %262 : vector<128x128xf32>
    %264 = arith.truncf %263 : vector<128x128xf32> to vector<128x128xbf16>
    %cst_108 = arith.constant dense<0.000000e+00> : vector<128x32xf32>
    %265 = tpu.matmul %264, %251, %cst_108 {dimension_numbers = #tpu.dot_dimension_numbers<[1], [0], [0], [1], [0, 0, 1, 1], [], []>} : vector<128x128xbf16>, vector<128x32xbf16>, vector<128x32xf32> -> vector<128x32xf32>
    %266 = arith.truncf %265 : vector<128x32xf32> to vector<128x32xbf16>
    %c0_109 = arith.constant 0 : index
    %c96_110 = arith.constant 96 : index
    %267 = vector.load %arg16[%c0_109, %c96_110] : memref<128x128xbf16, #tpu.memory_space<vmem>>, vector<128x32xbf16>
    tpu.vector_store %arg16[%c0_109, %c96_110], %266 {strides = array<i32>} : memref<128x128xbf16, #tpu.memory_space<vmem>>, vector<128x32xbf16>,
    %c0_111 = arith.constant 0 : index
    %c0_112 = arith.constant 0 : index
    %268 = vector.load %arg16[%c0_111, %c0_112] : memref<128x128xbf16, #tpu.memory_space<vmem>>, vector<128x128xbf16>
    %c1_113 = arith.constant 1 : index
    %c0_114 = arith.constant 0 : index
    %c0_115 = arith.constant 0 : index
    %269 = vector.load %arg5[%c1_113, %c0_114, %c0_115] : memref<3x128x128xbf16, #tpu.memory_space<vmem>>, vector<1x128x128xbf16>
    %270 = vector.shape_cast %269 : vector<1x128x128xbf16> to vector<128x128xbf16>
    %cst_116 = arith.constant dense<0.000000e+00> : vector<128x128xf32>
    %271 = tpu.matmul %268, %270, %cst_116 {dimension_numbers = #tpu.dot_dimension_numbers<[1], [0], [0], [1], [0, 0, 1, 1], [], []>} : vector<128x128xbf16>, vector<128x128xbf16>, vector<128x128xf32> -> vector<128x128xf32>
    %c1_117 = arith.constant 1 : index
    %c0_118 = arith.constant 0 : index
    %c0_119 = arith.constant 0 : index
    %272 = vector.load %arg6[%c1_117, %c0_118, %c0_119] : memref<3x1x128xf32, #tpu.memory_space<vmem>>, vector<1x1x128xf32>
    %273 = vector.shape_cast %272 : vector<1x1x128xf32> to vector<1x128xf32>
    %274 = vector.broadcast %273 : vector<1x128xf32> to vector<128x128xf32>
    %275 = arith.addf %271, %274 : vector<128x128xf32>
    %c1_120 = arith.constant 1 : index
    %c0_121 = arith.constant 0 : index
    %c0_122 = arith.constant 0 : index
    %276 = vector.load %arg7[%c1_120, %c0_121, %c0_122] : memref<3x1x128xf32, #tpu.memory_space<vmem>>, vector<1x1x128xf32>
    %277 = vector.shape_cast %276 : vector<1x1x128xf32> to vector<1x128xf32>
    %c1_123 = arith.constant 1 : index
    %c0_124 = arith.constant 0 : index
    %c0_125 = arith.constant 0 : index
    %278 = vector.load %arg8[%c1_123, %c0_124, %c0_125] : memref<3x1x128xf32, #tpu.memory_space<vmem>>, vector<1x1x128xf32>
    %279 = vector.shape_cast %278 : vector<1x1x128xf32> to vector<1x128xf32>
    %cst_126 = arith.constant dense<0.000000e+00> : vector<128xf32>
    %280 = vector.multi_reduction <add>, %275, %cst_126 [1] : vector<128x128xf32> to vector<128xf32>
    %281 = vector.shape_cast %280 : vector<128xf32> to vector<128x1xf32>
    %cst_127 = arith.constant 1.280000e+02 : f32
    %282 = vector.broadcast %cst_127 : f32 to vector<128x1xf32>
    %283 = arith.divf %281, %282 : vector<128x1xf32>
    %284 = arith.mulf %275, %275 : vector<128x128xf32>
    %cst_128 = arith.constant dense<0.000000e+00> : vector<128xf32>
    %285 = vector.multi_reduction <add>, %284, %cst_128 [1] : vector<128x128xf32> to vector<128xf32>
    %286 = vector.shape_cast %285 : vector<128xf32> to vector<128x1xf32>
    %cst_129 = arith.constant 1.280000e+02 : f32
    %287 = vector.broadcast %cst_129 : f32 to vector<128x1xf32>
    %288 = arith.divf %286, %287 : vector<128x1xf32>
    %289 = arith.mulf %283, %283 : vector<128x1xf32>
    %290 = arith.subf %288, %289 : vector<128x1xf32>
    %291 = vector.broadcast %283 : vector<128x1xf32> to vector<128x128xf32>
    %292 = arith.subf %275, %291 : vector<128x128xf32>
    %cst_130 = arith.constant 9.99999974E-6 : f32
    %293 = vector.broadcast %cst_130 : f32 to vector<128x1xf32>
    %294 = arith.addf %290, %293 : vector<128x1xf32>
    %295 = math.rsqrt %294 : vector<128x1xf32>
    %296 = vector.broadcast %295 : vector<128x1xf32> to vector<128x128xf32>
    %297 = arith.mulf %292, %296 : vector<128x128xf32>
    %298 = vector.broadcast %277 : vector<1x128xf32> to vector<128x128xf32>
    %299 = arith.mulf %297, %298 : vector<128x128xf32>
    %300 = vector.broadcast %279 : vector<1x128xf32> to vector<128x128xf32>
    %301 = arith.addf %299, %300 : vector<128x128xf32>
    %302 = arith.truncf %301 : vector<128x128xf32> to vector<128x128xbf16>
    %c1_131 = arith.constant 1 : index
    %c0_132 = arith.constant 0 : index
    %c0_133 = arith.constant 0 : index
    %303 = vector.load %arg9[%c1_131, %c0_132, %c0_133] : memref<3x128x512xbf16, #tpu.memory_space<vmem>>, vector<1x128x512xbf16>
    %304 = vector.shape_cast %303 : vector<1x128x512xbf16> to vector<128x512xbf16>
    %cst_134 = arith.constant dense<0.000000e+00> : vector<128x512xf32>
    %305 = tpu.matmul %302, %304, %cst_134 {dimension_numbers = #tpu.dot_dimension_numbers<[1], [0], [0], [1], [0, 0, 1, 1], [], []>} : vector<128x128xbf16>, vector<128x512xbf16>, vector<128x512xf32> -> vector<128x512xf32>
    %c1_135 = arith.constant 1 : index
    %c0_136 = arith.constant 0 : index
    %c0_137 = arith.constant 0 : index
    %306 = vector.load %arg10[%c1_135, %c0_136, %c0_137] : memref<3x1x512xf32, #tpu.memory_space<vmem>>, vector<1x1x512xf32>
    %307 = vector.shape_cast %306 : vector<1x1x512xf32> to vector<1x512xf32>
    %308 = vector.broadcast %307 : vector<1x512xf32> to vector<128x512xf32>
    %309 = arith.addf %305, %308 : vector<128x512xf32>
    %cst_138 = arith.constant 0.000000e+00 : f32
    %310 = vector.broadcast %cst_138 : f32 to vector<128x512xf32>
    %311 = arith.maximumf %309, %310 : vector<128x512xf32>
    %312 = arith.truncf %311 : vector<128x512xf32> to vector<128x512xbf16>
    %c1_139 = arith.constant 1 : index
    %c0_140 = arith.constant 0 : index
    %c0_141 = arith.constant 0 : index
    %313 = vector.load %arg11[%c1_139, %c0_140, %c0_141] : memref<3x512x128xbf16, #tpu.memory_space<vmem>>, vector<1x512x128xbf16>
    %314 = vector.shape_cast %313 : vector<1x512x128xbf16> to vector<512x128xbf16>
    %cst_142 = arith.constant dense<0.000000e+00> : vector<128x128xf32>
    %315 = tpu.matmul %312, %314, %cst_142 {dimension_numbers = #tpu.dot_dimension_numbers<[1], [0], [0], [1], [0, 0, 1, 1], [], []>} : vector<128x512xbf16>, vector<512x128xbf16>, vector<128x128xf32> -> vector<128x128xf32>
    %c1_143 = arith.constant 1 : index
    %c0_144 = arith.constant 0 : index
    %c0_145 = arith.constant 0 : index
    %316 = vector.load %arg12[%c1_143, %c0_144, %c0_145] : memref<3x1x128xf32, #tpu.memory_space<vmem>>, vector<1x1x128xf32>
    %317 = vector.shape_cast %316 : vector<1x1x128xf32> to vector<1x128xf32>
    %318 = vector.broadcast %317 : vector<1x128xf32> to vector<128x128xf32>
    %319 = arith.addf %315, %318 : vector<128x128xf32>
    %c2 = arith.constant 2 : index
    %c0_146 = arith.constant 0 : index
    %c0_147 = arith.constant 0 : index
    %320 = vector.load %arg2[%c2, %c0_146, %c0_147] : memref<3x1x128xf32, #tpu.memory_space<vmem>>, vector<1x1x128xf32>
    %321 = vector.shape_cast %320 : vector<1x1x128xf32> to vector<1x128xf32>
    %c2_148 = arith.constant 2 : index
    %c0_149 = arith.constant 0 : index
    %c0_150 = arith.constant 0 : index
    %322 = vector.load %arg3[%c2_148, %c0_149, %c0_150] : memref<3x1x128xf32, #tpu.memory_space<vmem>>, vector<1x1x128xf32>
    %323 = vector.shape_cast %322 : vector<1x1x128xf32> to vector<1x128xf32>
    %cst_151 = arith.constant dense<0.000000e+00> : vector<128xf32>
    %324 = vector.multi_reduction <add>, %319, %cst_151 [1] : vector<128x128xf32> to vector<128xf32>
    %325 = vector.shape_cast %324 : vector<128xf32> to vector<128x1xf32>
    %cst_152 = arith.constant 1.280000e+02 : f32
    %326 = vector.broadcast %cst_152 : f32 to vector<128x1xf32>
    %327 = arith.divf %325, %326 : vector<128x1xf32>
    %328 = arith.mulf %319, %319 : vector<128x128xf32>
    %cst_153 = arith.constant dense<0.000000e+00> : vector<128xf32>
    %329 = vector.multi_reduction <add>, %328, %cst_153 [1] : vector<128x128xf32> to vector<128xf32>
    %330 = vector.shape_cast %329 : vector<128xf32> to vector<128x1xf32>
    %cst_154 = arith.constant 1.280000e+02 : f32
    %331 = vector.broadcast %cst_154 : f32 to vector<128x1xf32>
    %332 = arith.divf %330, %331 : vector<128x1xf32>
    %333 = arith.mulf %327, %327 : vector<128x1xf32>
    %334 = arith.subf %332, %333 : vector<128x1xf32>
    %335 = vector.broadcast %327 : vector<128x1xf32> to vector<128x128xf32>
    %336 = arith.subf %319, %335 : vector<128x128xf32>
    %cst_155 = arith.constant 9.99999974E-6 : f32
    %337 = vector.broadcast %cst_155 : f32 to vector<128x1xf32>
    %338 = arith.addf %334, %337 : vector<128x1xf32>
    %339 = math.rsqrt %338 : vector<128x1xf32>
    %340 = vector.broadcast %339 : vector<128x1xf32> to vector<128x128xf32>
    %341 = arith.mulf %336, %340 : vector<128x128xf32>
    %342 = vector.broadcast %321 : vector<1x128xf32> to vector<128x128xf32>
    %343 = arith.mulf %341, %342 : vector<128x128xf32>
    %344 = vector.broadcast %323 : vector<1x128xf32> to vector<128x128xf32>
    %345 = arith.addf %343, %344 : vector<128x128xf32>
    %346 = arith.truncf %345 : vector<128x128xf32> to vector<128x128xbf16>
    %c2_156 = arith.constant 2 : index
    %c0_157 = arith.constant 0 : index
    %c0_158 = arith.constant 0 : index
    %347 = vector.load %arg4[%c2_156, %c0_157, %c0_158] : memref<3x128x384xbf16, #tpu.memory_space<vmem>>, vector<1x128x384xbf16>
    %348 = vector.shape_cast %347 : vector<1x128x384xbf16> to vector<128x384xbf16>
    %cst_159 = arith.constant dense<0.000000e+00> : vector<128x384xf32>
    %349 = tpu.matmul %346, %348, %cst_159 {dimension_numbers = #tpu.dot_dimension_numbers<[1], [0], [0], [1], [0, 0, 1, 1], [], []>} : vector<128x128xbf16>, vector<128x384xbf16>, vector<128x384xf32> -> vector<128x384xf32>
    %350 = arith.truncf %349 : vector<128x384xf32> to vector<128x384xbf16>
    %351 = vector.extract_strided_slice %350 {offsets = [0, 0], sizes = [128, 32], strides = [1, 1]} : vector<128x384xbf16> to vector<128x32xbf16>
    %352 = vector.extract_strided_slice %350 {offsets = [0, 128], sizes = [128, 32], strides = [1, 1]} : vector<128x384xbf16> to vector<128x32xbf16>
    %353 = vector.extract_strided_slice %350 {offsets = [0, 256], sizes = [128, 32], strides = [1, 1]} : vector<128x384xbf16> to vector<128x32xbf16>
    %cst_160 = arith.constant dense<0.000000e+00> : vector<128x128xf32>
    %354 = tpu.matmul %351, %352, %cst_160 {dimension_numbers = #tpu.dot_dimension_numbers<[1], [1], [0], [0], [0, 0, 1, 0], [], []>} : vector<128x32xbf16>, vector<128x32xbf16>, vector<128x128xf32> -> vector<128x128xf32>
    %355 = arith.addf %354, %1 : vector<128x128xf32>
    %cst_161 = arith.constant dense<0xFF800000> : vector<128xf32>
    %356 = vector.multi_reduction <maximumf>, %355, %cst_161 [1] : vector<128x128xf32> to vector<128xf32>
    %357 = vector.shape_cast %356 : vector<128xf32> to vector<128x1xf32>
    %358 = vector.broadcast %357 : vector<128x1xf32> to vector<128x128xf32>
    %359 = arith.subf %355, %358 : vector<128x128xf32>
    %360 = math.exp %359 : vector<128x128xf32>
    %cst_162 = arith.constant dense<0.000000e+00> : vector<128xf32>
    %361 = vector.multi_reduction <add>, %360, %cst_162 [1] : vector<128x128xf32> to vector<128xf32>
    %362 = vector.shape_cast %361 : vector<128xf32> to vector<128x1xf32>
    %363 = tpu.reciprocal %362 {approx = true} : vector<128x1xf32> -> vector<128x1xf32>
    %364 = vector.broadcast %363 : vector<128x1xf32> to vector<128x128xf32>
    %365 = arith.mulf %360, %364 : vector<128x128xf32>
    %366 = arith.truncf %365 : vector<128x128xf32> to vector<128x128xbf16>
    %cst_163 = arith.constant dense<0.000000e+00> : vector<128x32xf32>
    %367 = tpu.matmul %366, %353, %cst_163 {dimension_numbers = #tpu.dot_dimension_numbers<[1], [0], [0], [1], [0, 0, 1, 1], [], []>} : vector<128x128xbf16>, vector<128x32xbf16>, vector<128x32xf32> -> vector<128x32xf32>
    %368 = arith.truncf %367 : vector<128x32xf32> to vector<128x32xbf16>
    %c0_164 = arith.constant 0 : index
    %c0_165 = arith.constant 0 : index
    %369 = vector.load %arg16[%c0_164, %c0_165] : memref<128x128xbf16, #tpu.memory_space<vmem>>, vector<128x32xbf16>
    tpu.vector_store %arg16[%c0_164, %c0_165], %368 {strides = array<i32>} : memref<128x128xbf16, #tpu.memory_space<vmem>>, vector<128x32xbf16>,
    %370 = vector.extract_strided_slice %350 {offsets = [0, 32], sizes = [128, 32], strides = [1, 1]} : vector<128x384xbf16> to vector<128x32xbf16>
    %371 = vector.extract_strided_slice %350 {offsets = [0, 160], sizes = [128, 32], strides = [1, 1]} : vector<128x384xbf16> to vector<128x32xbf16>
    %372 = vector.extract_strided_slice %350 {offsets = [0, 288], sizes = [128, 32], strides = [1, 1]} : vector<128x384xbf16> to vector<128x32xbf16>
    %cst_166 = arith.constant dense<0.000000e+00> : vector<128x128xf32>
    %373 = tpu.matmul %370, %371, %cst_166 {dimension_numbers = #tpu.dot_dimension_numbers<[1], [1], [0], [0], [0, 0, 1, 0], [], []>} : vector<128x32xbf16>, vector<128x32xbf16>, vector<128x128xf32> -> vector<128x128xf32>
    %374 = arith.addf %373, %1 : vector<128x128xf32>
    %cst_167 = arith.constant dense<0xFF800000> : vector<128xf32>
    %375 = vector.multi_reduction <maximumf>, %374, %cst_167 [1] : vector<128x128xf32> to vector<128xf32>
    %376 = vector.shape_cast %375 : vector<128xf32> to vector<128x1xf32>
    %377 = vector.broadcast %376 : vector<128x1xf32> to vector<128x128xf32>
    %378 = arith.subf %374, %377 : vector<128x128xf32>
    %379 = math.exp %378 : vector<128x128xf32>
    %cst_168 = arith.constant dense<0.000000e+00> : vector<128xf32>
    %380 = vector.multi_reduction <add>, %379, %cst_168 [1] : vector<128x128xf32> to vector<128xf32>
    %381 = vector.shape_cast %380 : vector<128xf32> to vector<128x1xf32>
    %382 = tpu.reciprocal %381 {approx = true} : vector<128x1xf32> -> vector<128x1xf32>
    %383 = vector.broadcast %382 : vector<128x1xf32> to vector<128x128xf32>
    %384 = arith.mulf %379, %383 : vector<128x128xf32>
    %385 = arith.truncf %384 : vector<128x128xf32> to vector<128x128xbf16>
    %cst_169 = arith.constant dense<0.000000e+00> : vector<128x32xf32>
    %386 = tpu.matmul %385, %372, %cst_169 {dimension_numbers = #tpu.dot_dimension_numbers<[1], [0], [0], [1], [0, 0, 1, 1], [], []>} : vector<128x128xbf16>, vector<128x32xbf16>, vector<128x32xf32> -> vector<128x32xf32>
    %387 = arith.truncf %386 : vector<128x32xf32> to vector<128x32xbf16>
    %c0_170 = arith.constant 0 : index
    %c32_171 = arith.constant 32 : index
    %388 = vector.load %arg16[%c0_170, %c32_171] : memref<128x128xbf16, #tpu.memory_space<vmem>>, vector<128x32xbf16>
    tpu.vector_store %arg16[%c0_170, %c32_171], %387 {strides = array<i32>} : memref<128x128xbf16, #tpu.memory_space<vmem>>, vector<128x32xbf16>,
    %389 = vector.extract_strided_slice %350 {offsets = [0, 64], sizes = [128, 32], strides = [1, 1]} : vector<128x384xbf16> to vector<128x32xbf16>
    %390 = vector.extract_strided_slice %350 {offsets = [0, 192], sizes = [128, 32], strides = [1, 1]} : vector<128x384xbf16> to vector<128x32xbf16>
    %391 = vector.extract_strided_slice %350 {offsets = [0, 320], sizes = [128, 32], strides = [1, 1]} : vector<128x384xbf16> to vector<128x32xbf16>
    %cst_172 = arith.constant dense<0.000000e+00> : vector<128x128xf32>
    %392 = tpu.matmul %389, %390, %cst_172 {dimension_numbers = #tpu.dot_dimension_numbers<[1], [1], [0], [0], [0, 0, 1, 0], [], []>} : vector<128x32xbf16>, vector<128x32xbf16>, vector<128x128xf32> -> vector<128x128xf32>
    %393 = arith.addf %392, %1 : vector<128x128xf32>
    %cst_173 = arith.constant dense<0xFF800000> : vector<128xf32>
    %394 = vector.multi_reduction <maximumf>, %393, %cst_173 [1] : vector<128x128xf32> to vector<128xf32>
    %395 = vector.shape_cast %394 : vector<128xf32> to vector<128x1xf32>
    %396 = vector.broadcast %395 : vector<128x1xf32> to vector<128x128xf32>
    %397 = arith.subf %393, %396 : vector<128x128xf32>
    %398 = math.exp %397 : vector<128x128xf32>
    %cst_174 = arith.constant dense<0.000000e+00> : vector<128xf32>
    %399 = vector.multi_reduction <add>, %398, %cst_174 [1] : vector<128x128xf32> to vector<128xf32>
    %400 = vector.shape_cast %399 : vector<128xf32> to vector<128x1xf32>
    %401 = tpu.reciprocal %400 {approx = true} : vector<128x1xf32> -> vector<128x1xf32>
    %402 = vector.broadcast %401 : vector<128x1xf32> to vector<128x128xf32>
    %403 = arith.mulf %398, %402 : vector<128x128xf32>
    %404 = arith.truncf %403 : vector<128x128xf32> to vector<128x128xbf16>
    %cst_175 = arith.constant dense<0.000000e+00> : vector<128x32xf32>
    %405 = tpu.matmul %404, %391, %cst_175 {dimension_numbers = #tpu.dot_dimension_numbers<[1], [0], [0], [1], [0, 0, 1, 1], [], []>} : vector<128x128xbf16>, vector<128x32xbf16>, vector<128x32xf32> -> vector<128x32xf32>
    %406 = arith.truncf %405 : vector<128x32xf32> to vector<128x32xbf16>
    %c0_176 = arith.constant 0 : index
    %c64_177 = arith.constant 64 : index
    %407 = vector.load %arg16[%c0_176, %c64_177] : memref<128x128xbf16, #tpu.memory_space<vmem>>, vector<128x32xbf16>
    tpu.vector_store %arg16[%c0_176, %c64_177], %406 {strides = array<i32>} : memref<128x128xbf16, #tpu.memory_space<vmem>>, vector<128x32xbf16>,
    %408 = vector.extract_strided_slice %350 {offsets = [0, 96], sizes = [128, 32], strides = [1, 1]} : vector<128x384xbf16> to vector<128x32xbf16>
    %409 = vector.extract_strided_slice %350 {offsets = [0, 224], sizes = [128, 32], strides = [1, 1]} : vector<128x384xbf16> to vector<128x32xbf16>
    %410 = vector.extract_strided_slice %350 {offsets = [0, 352], sizes = [128, 32], strides = [1, 1]} : vector<128x384xbf16> to vector<128x32xbf16>
    %cst_178 = arith.constant dense<0.000000e+00> : vector<128x128xf32>
    %411 = tpu.matmul %408, %409, %cst_178 {dimension_numbers = #tpu.dot_dimension_numbers<[1], [1], [0], [0], [0, 0, 1, 0], [], []>} : vector<128x32xbf16>, vector<128x32xbf16>, vector<128x128xf32> -> vector<128x128xf32>
    %412 = arith.addf %411, %1 : vector<128x128xf32>
    %cst_179 = arith.constant dense<0xFF800000> : vector<128xf32>
    %413 = vector.multi_reduction <maximumf>, %412, %cst_179 [1] : vector<128x128xf32> to vector<128xf32>
    %414 = vector.shape_cast %413 : vector<128xf32> to vector<128x1xf32>
    %415 = vector.broadcast %414 : vector<128x1xf32> to vector<128x128xf32>
    %416 = arith.subf %412, %415 : vector<128x128xf32>
    %417 = math.exp %416 : vector<128x128xf32>
    %cst_180 = arith.constant dense<0.000000e+00> : vector<128xf32>
    %418 = vector.multi_reduction <add>, %417, %cst_180 [1] : vector<128x128xf32> to vector<128xf32>
    %419 = vector.shape_cast %418 : vector<128xf32> to vector<128x1xf32>
    %420 = tpu.reciprocal %419 {approx = true} : vector<128x1xf32> -> vector<128x1xf32>
    %421 = vector.broadcast %420 : vector<128x1xf32> to vector<128x128xf32>
    %422 = arith.mulf %417, %421 : vector<128x128xf32>
    %423 = arith.truncf %422 : vector<128x128xf32> to vector<128x128xbf16>
    %cst_181 = arith.constant dense<0.000000e+00> : vector<128x32xf32>
    %424 = tpu.matmul %423, %410, %cst_181 {dimension_numbers = #tpu.dot_dimension_numbers<[1], [0], [0], [1], [0, 0, 1, 1], [], []>} : vector<128x128xbf16>, vector<128x32xbf16>, vector<128x32xf32> -> vector<128x32xf32>
    %425 = arith.truncf %424 : vector<128x32xf32> to vector<128x32xbf16>
    %c0_182 = arith.constant 0 : index
    %c96_183 = arith.constant 96 : index
    %426 = vector.load %arg16[%c0_182, %c96_183] : memref<128x128xbf16, #tpu.memory_space<vmem>>, vector<128x32xbf16>
    tpu.vector_store %arg16[%c0_182, %c96_183], %425 {strides = array<i32>} : memref<128x128xbf16, #tpu.memory_space<vmem>>, vector<128x32xbf16>,
    %c0_184 = arith.constant 0 : index
    %c0_185 = arith.constant 0 : index
    %427 = vector.load %arg16[%c0_184, %c0_185] : memref<128x128xbf16, #tpu.memory_space<vmem>>, vector<128x128xbf16>
    %c2_186 = arith.constant 2 : index
    %c0_187 = arith.constant 0 : index
    %c0_188 = arith.constant 0 : index
    %428 = vector.load %arg5[%c2_186, %c0_187, %c0_188] : memref<3x128x128xbf16, #tpu.memory_space<vmem>>, vector<1x128x128xbf16>
    %429 = vector.shape_cast %428 : vector<1x128x128xbf16> to vector<128x128xbf16>
    %cst_189 = arith.constant dense<0.000000e+00> : vector<128x128xf32>
    %430 = tpu.matmul %427, %429, %cst_189 {dimension_numbers = #tpu.dot_dimension_numbers<[1], [0], [0], [1], [0, 0, 1, 1], [], []>} : vector<128x128xbf16>, vector<128x128xbf16>, vector<128x128xf32> -> vector<128x128xf32>
    %c2_190 = arith.constant 2 : index
    %c0_191 = arith.constant 0 : index
    %c0_192 = arith.constant 0 : index
    %431 = vector.load %arg6[%c2_190, %c0_191, %c0_192] : memref<3x1x128xf32, #tpu.memory_space<vmem>>, vector<1x1x128xf32>
    %432 = vector.shape_cast %431 : vector<1x1x128xf32> to vector<1x128xf32>
    %433 = vector.broadcast %432 : vector<1x128xf32> to vector<128x128xf32>
    %434 = arith.addf %430, %433 : vector<128x128xf32>
    %c2_193 = arith.constant 2 : index
    %c0_194 = arith.constant 0 : index
    %c0_195 = arith.constant 0 : index
    %435 = vector.load %arg7[%c2_193, %c0_194, %c0_195] : memref<3x1x128xf32, #tpu.memory_space<vmem>>, vector<1x1x128xf32>
    %436 = vector.shape_cast %435 : vector<1x1x128xf32> to vector<1x128xf32>
    %c2_196 = arith.constant 2 : index
    %c0_197 = arith.constant 0 : index
    %c0_198 = arith.constant 0 : index
    %437 = vector.load %arg8[%c2_196, %c0_197, %c0_198] : memref<3x1x128xf32, #tpu.memory_space<vmem>>, vector<1x1x128xf32>
    %438 = vector.shape_cast %437 : vector<1x1x128xf32> to vector<1x128xf32>
    %cst_199 = arith.constant dense<0.000000e+00> : vector<128xf32>
    %439 = vector.multi_reduction <add>, %434, %cst_199 [1] : vector<128x128xf32> to vector<128xf32>
    %440 = vector.shape_cast %439 : vector<128xf32> to vector<128x1xf32>
    %cst_200 = arith.constant 1.280000e+02 : f32
    %441 = vector.broadcast %cst_200 : f32 to vector<128x1xf32>
    %442 = arith.divf %440, %441 : vector<128x1xf32>
    %443 = arith.mulf %434, %434 : vector<128x128xf32>
    %cst_201 = arith.constant dense<0.000000e+00> : vector<128xf32>
    %444 = vector.multi_reduction <add>, %443, %cst_201 [1] : vector<128x128xf32> to vector<128xf32>
    %445 = vector.shape_cast %444 : vector<128xf32> to vector<128x1xf32>
    %cst_202 = arith.constant 1.280000e+02 : f32
    %446 = vector.broadcast %cst_202 : f32 to vector<128x1xf32>
    %447 = arith.divf %445, %446 : vector<128x1xf32>
    %448 = arith.mulf %442, %442 : vector<128x1xf32>
    %449 = arith.subf %447, %448 : vector<128x1xf32>
    %450 = vector.broadcast %442 : vector<128x1xf32> to vector<128x128xf32>
    %451 = arith.subf %434, %450 : vector<128x128xf32>
    %cst_203 = arith.constant 9.99999974E-6 : f32
    %452 = vector.broadcast %cst_203 : f32 to vector<128x1xf32>
    %453 = arith.addf %449, %452 : vector<128x1xf32>
    %454 = math.rsqrt %453 : vector<128x1xf32>
    %455 = vector.broadcast %454 : vector<128x1xf32> to vector<128x128xf32>
    %456 = arith.mulf %451, %455 : vector<128x128xf32>
    %457 = vector.broadcast %436 : vector<1x128xf32> to vector<128x128xf32>
    %458 = arith.mulf %456, %457 : vector<128x128xf32>
    %459 = vector.broadcast %438 : vector<1x128xf32> to vector<128x128xf32>
    %460 = arith.addf %458, %459 : vector<128x128xf32>
    %461 = arith.truncf %460 : vector<128x128xf32> to vector<128x128xbf16>
    %c2_204 = arith.constant 2 : index
    %c0_205 = arith.constant 0 : index
    %c0_206 = arith.constant 0 : index
    %462 = vector.load %arg9[%c2_204, %c0_205, %c0_206] : memref<3x128x512xbf16, #tpu.memory_space<vmem>>, vector<1x128x512xbf16>
    %463 = vector.shape_cast %462 : vector<1x128x512xbf16> to vector<128x512xbf16>
    %cst_207 = arith.constant dense<0.000000e+00> : vector<128x512xf32>
    %464 = tpu.matmul %461, %463, %cst_207 {dimension_numbers = #tpu.dot_dimension_numbers<[1], [0], [0], [1], [0, 0, 1, 1], [], []>} : vector<128x128xbf16>, vector<128x512xbf16>, vector<128x512xf32> -> vector<128x512xf32>
    %c2_208 = arith.constant 2 : index
    %c0_209 = arith.constant 0 : index
    %c0_210 = arith.constant 0 : index
    %465 = vector.load %arg10[%c2_208, %c0_209, %c0_210] : memref<3x1x512xf32, #tpu.memory_space<vmem>>, vector<1x1x512xf32>
    %466 = vector.shape_cast %465 : vector<1x1x512xf32> to vector<1x512xf32>
    %467 = vector.broadcast %466 : vector<1x512xf32> to vector<128x512xf32>
    %468 = arith.addf %464, %467 : vector<128x512xf32>
    %cst_211 = arith.constant 0.000000e+00 : f32
    %469 = vector.broadcast %cst_211 : f32 to vector<128x512xf32>
    %470 = arith.maximumf %468, %469 : vector<128x512xf32>
    %471 = arith.truncf %470 : vector<128x512xf32> to vector<128x512xbf16>
    %c2_212 = arith.constant 2 : index
    %c0_213 = arith.constant 0 : index
    %c0_214 = arith.constant 0 : index
    %472 = vector.load %arg11[%c2_212, %c0_213, %c0_214] : memref<3x512x128xbf16, #tpu.memory_space<vmem>>, vector<1x512x128xbf16>
    %473 = vector.shape_cast %472 : vector<1x512x128xbf16> to vector<512x128xbf16>
    %cst_215 = arith.constant dense<0.000000e+00> : vector<128x128xf32>
    %474 = tpu.matmul %471, %473, %cst_215 {dimension_numbers = #tpu.dot_dimension_numbers<[1], [0], [0], [1], [0, 0, 1, 1], [], []>} : vector<128x512xbf16>, vector<512x128xbf16>, vector<128x128xf32> -> vector<128x128xf32>
    %c2_216 = arith.constant 2 : index
    %c0_217 = arith.constant 0 : index
    %c0_218 = arith.constant 0 : index
    %475 = vector.load %arg12[%c2_216, %c0_217, %c0_218] : memref<3x1x128xf32, #tpu.memory_space<vmem>>, vector<1x1x128xf32>
    %476 = vector.shape_cast %475 : vector<1x1x128xf32> to vector<1x128xf32>
    %477 = vector.broadcast %476 : vector<1x128xf32> to vector<128x128xf32>
    %478 = arith.addf %474, %477 : vector<128x128xf32>
    %479 = arith.truncf %478 : vector<128x128xf32> to vector<128x128xbf16>
    %c0_219 = arith.constant 0 : index
    %c0_220 = arith.constant 0 : index
    %480 = vector.load %arg13[%c0_219, %c0_220] : memref<128x128xbf16, #tpu.memory_space<vmem>>, vector<128x128xbf16>
    %cst_221 = arith.constant dense<0.000000e+00> : vector<128x128xf32>
    %481 = tpu.matmul %479, %480, %cst_221 {dimension_numbers = #tpu.dot_dimension_numbers<[1], [0], [0], [1], [0, 0, 1, 1], [], []>} : vector<128x128xbf16>, vector<128x128xbf16>, vector<128x128xf32> -> vector<128x128xf32>
    %c0_222 = arith.constant 0 : index
    %c0_223 = arith.constant 0 : index
    %482 = vector.load %arg14[%c0_222, %c0_223] : memref<1x128xf32, #tpu.memory_space<vmem>>, vector<1x128xf32>
    %483 = vector.broadcast %482 : vector<1x128xf32> to vector<128x128xf32>
    %484 = arith.addf %481, %483 : vector<128x128xf32>
    %c0_224 = arith.constant 0 : index
    %c0_225 = arith.constant 0 : index
    %485 = vector.load %arg15[%c0_224, %c0_225] : memref<128x128xf32, #tpu.memory_space<vmem>>, vector<128x128xf32>
    tpu.vector_store %arg15[%c0_224, %c0_225], %484 {strides = array<i32>} : memref<128x128xf32, #tpu.memory_space<vmem>>, vector<128x128xf32>,
    return
  }
}

</mosaic_0001>

<llo_original>
// kernel: forward.1
$region0: #{forward.1}
  #allocation0 [shape = 'u32[]', space=smem, size = 0x4, offset = 0x4, fixed_abs, tag = 'smem constant byte address 0x4 - core index']
  #allocation1 [shape = 'u32[72,128]{1,0:T(1,128)}', space=vmem, size = 0x9000, scoped, tag = 'internal scratch']
  #allocation2 [shape = 'bf16[128,128]{1,0:T(8,128)(2,1)}', space=vmem, size = 0x8000, scoped, tag = 'scratch operand']
  %s0 = inlined_call_operand.vmem [shape: f32[128,128], index: 0, kind: input, shape index: {}]
  %s1 = inlined_call_operand.vmem [shape: f32[128,128], index: 1, kind: input, shape index: {}]
  %s2 = inlined_call_operand.vmem [shape: f32[3,1,128], index: 2, kind: input, shape index: {}]
  %s3 = inlined_call_operand.vmem [shape: f32[3,1,128], index: 3, kind: input, shape index: {}]
  %s4 = inlined_call_operand.hbm [shape: bf16[3,128,384], index: 4, kind: input, shape index: {}]
  %s5 = inlined_call_operand.vmem [shape: bf16[3,128,128], index: 5, kind: input, shape index: {}]
  %s6 = inlined_call_operand.vmem [shape: f32[3,1,128], index: 6, kind: input, shape index: {}]
  %s7 = inlined_call_operand.vmem [shape: f32[3,1,128], index: 7, kind: input, shape index: {}]
  %s8 = inlined_call_operand.vmem [shape: f32[3,1,128], index: 8, kind: input, shape index: {}]
  %s9 = inlined_call_operand.vmem [shape: bf16[3,128,512], index: 9, kind: input, shape index: {}]
  %s10 = inlined_call_operand.vmem [shape: f32[3,1,512], index: 10, kind: input, shape index: {}]
  %s11 = inlined_call_operand.vmem [shape: bf16[3,512,128], index: 11, kind: input, shape index: {}]
  %s12 = inlined_call_operand.hbm [shape: f32[3,1,128], index: 12, kind: input, shape index: {}]
  %s13 = inlined_call_operand.vmem [shape: bf16[128,128], index: 13, kind: input, shape index: {}]
  %s14 = inlined_call_operand.vmem [shape: f32[1,128], index: 14, kind: input, shape index: {}]
  %s15 = inlined_call_operand.hbm [shape: f32[128,128], index: 15, kind: output, shape index: {}]
  %s16 = sld [smem:[#allocation0]]
  $region78: #{forward.1} parent=0
    _
  %s18 = ssub.s32 1, %s16
  %s19 = scalar_select 0, %s18, %s16
  $region1: #{forward.1} parent=0
    #allocation3 [shape = 'u8[294912]{0}', space=vmem, size = 0x48000, scoped, tag = 'input window, operand 4, single buffered']
    #allocation4 [shape = 's32[1]{0}', space=sflag, size = 0x4, scoped, tag = 'scoped memory for forward.1']
    #allocation5 [shape = 's32[1]{0}', space=sflag, size = 0x4, scoped, tag = 'scoped memory for forward.1']
    #allocation6 [shape = 'u8[1536]{0}', space=vmem, size = 0x800, scoped, tag = 'input window, operand 12, single buffered']
    #allocation7 [shape = 's32[1]{0}', space=sflag, size = 0x4, scoped, tag = 'scoped memory for forward.1']
    #allocation8 [shape = 'u8[65536]{0}', space=vmem, size = 0x10000, scoped, tag = 'output window, operand 0, single buffered']
    %20 = vsyncpa [#allocation4], 0
    %21 = vsyncpa [#allocation7], 0
    %22 = vsyncpa [#allocation5], 0
    // Predicated region
    $region2: #{forward.1} parent=1 // pred_check
      _
    $region3: #{forward.1} parent=1 // pred_check_branch
      %24 = sbr.rel (0) target = $region5
    $region4: #{forward.1} parent=1 // pred_region
      _
    $region5: #{forward.1} parent=1 // pred_fallthru
      _
    // Predicated region
    $region6: #{forward.1} parent=1 // pred_check
      _
    $region7: #{forward.1} parent=1 // pred_check_branch
      %26 = sbr.rel (0) target = $region9
    $region8: #{forward.1} parent=1 // pred_region
      _
    $region9: #{forward.1} parent=1 // pred_fallthru
      _
    // Predicated region
    $region10: #{forward.1} parent=1 // pred_check
      _
    $region11: #{forward.1} parent=1 // pred_check_branch
      %28 = sbr.rel (0) target = $region13
    $region12: #{forward.1} parent=1 // pred_region
      _
    $region13: #{forward.1} parent=1 // pred_fallthru
      _
    // Predicated region
    $region14: #{forward.1} parent=1 // pred_check
      _
    $region15: #{forward.1} parent=1 // pred_check_branch
      %30 = sbr.rel (0) target = $region17
    $region16: #{forward.1} parent=1 // pred_region
      _
    $region17: #{forward.1} parent=1 // pred_fallthru
      _
    // Predicated region
    $region18: #{forward.1} parent=1 // pred_check
      _
    $region19: #{forward.1} parent=1 // pred_check_branch
      %32 = sbr.rel (0) target = $region21
    $region20: #{forward.1} parent=1 // pred_region
      %34 = vsyncadd [#allocation4], 0
      %s35 = sshll.u32 %s4, 4
      %s36 = int_to_ptr.hbm [resolvable:$true] %s35
      %s37 = sshll.u32 [#allocation3], 4
      %s38 = int_to_ptr.vmem [resolvable:$true] %s37
      %43 = dma.hbm_to_vmem [thread:$0]  %s36, 9216, %s38, [#allocation4], 192, 192, 12
    $region21: #{forward.1} parent=1 // pred_fallthru
      _
    // Predicated region
    $region22: #{forward.1} parent=1 // pred_check
      _
    $region23: #{forward.1} parent=1 // pred_check_branch
      %45 = sbr.rel (0) target = $region25
    $region24: #{forward.1} parent=1 // pred_region
      _
    $region25: #{forward.1} parent=1 // pred_fallthru
      _
    // Predicated region
    $region26: #{forward.1} parent=1 // pred_check
      _
    $region27: #{forward.1} parent=1 // pred_check_branch
      %47 = sbr.rel (0) target = $region29
    $region28: #{forward.1} parent=1 // pred_region
      _
    $region29: #{forward.1} parent=1 // pred_fallthru
      _
    // Predicated region
    $region30: #{forward.1} parent=1 // pred_check
      _
    $region31: #{forward.1} parent=1 // pred_check_branch
      %49 = sbr.rel (0) target = $region33
    $region32: #{forward.1} parent=1 // pred_region
      _
    $region33: #{forward.1} parent=1 // pred_fallthru
      _
    // Predicated region
    $region34: #{forward.1} parent=1 // pred_check
      _
    $region35: #{forward.1} parent=1 // pred_check_branch
      %51 = sbr.rel (0) target = $region37
    $region36: #{forward.1} parent=1 // pred_region
      _
    $region37: #{forward.1} parent=1 // pred_fallthru
      _
    // Predicated region
    $region38: #{forward.1} parent=1 // pred_check
      _
    $region39: #{forward.1} parent=1 // pred_check_branch
      %53 = sbr.rel (0) target = $region41
    $region40: #{forward.1} parent=1 // pred_region
      _
    $region41: #{forward.1} parent=1 // pred_fallthru
      _
    // Predicated region
    $region42: #{forward.1} parent=1 // pred_check
      _
    $region43: #{forward.1} parent=1 // pred_check_branch
      %55 = sbr.rel (0) target = $region45
    $region44: #{forward.1} parent=1 // pred_region
      _
    $region45: #{forward.1} parent=1 // pred_fallthru
      _
    // Predicated region
    $region46: #{forward.1} parent=1 // pred_check
      _
    $region47: #{forward.1} parent=1 // pred_check_branch
      %57 = sbr.rel (0) target = $region49
    $region48: #{forward.1} parent=1 // pred_region
      _
    $region49: #{forward.1} parent=1 // pred_fallthru
      _
    // Predicated region
    $region50: #{forward.1} parent=1 // pred_check
      _
    $region51: #{forward.1} parent=1 // pred_check_branch
      %59 = sbr.rel (0) target = $region53
    $region52: #{forward.1} parent=1 // pred_region
      %61 = vsyncadd [#allocation7], 0
      %s62 = sshll.u32 %s12, 4
      %s63 = int_to_ptr.hbm [resolvable:$true] %s62
      %s64 = sshll.u32 [#allocation6], 4
      %s65 = int_to_ptr.vmem [resolvable:$true] %s64
      %70 = dma.hbm_to_vmem [thread:$0]  %s63, 48, %s65, [#allocation7], 16, 16, 1
    $region53: #{forward.1} parent=1 // pred_fallthru
      _
    // Predicated region
    $region54: #{forward.1} parent=1 // pred_check
      _
    $region55: #{forward.1} parent=1 // pred_check_branch
      %72 = sbr.rel (0) target = $region57
    $region56: #{forward.1} parent=1 // pred_region
      _
    $region57: #{forward.1} parent=1 // pred_fallthru
      _
    // Predicated region
    $region58: #{forward.1} parent=1 // pred_check
      _
    $region59: #{forward.1} parent=1 // pred_check_branch
      %74 = sbr.rel (0) target = $region61
    $region60: #{forward.1} parent=1 // pred_region
      _
    $region61: #{forward.1} parent=1 // pred_fallthru
      _
    // Predicated region
    $region62: #{forward.1} parent=1 // pred_check
      _
    $region63: #{forward.1} parent=1 // pred_check_branch
      %76 = sbr.rel (0) target = $region65
    $region64: #{forward.1} parent=1 // pred_region
      %78 = dma.done [#allocation4], 9216
    $region65: #{forward.1} parent=1 // pred_fallthru
      _
    // Predicated region
    $region66: #{forward.1} parent=1 // pred_check
      _
    $region67: #{forward.1} parent=1 // pred_check_branch
      %80 = sbr.rel (0) target = $region69
    $region68: #{forward.1} parent=1 // pred_region
      %82 = dma.done [#allocation7], 48
    $region69: #{forward.1} parent=1 // pred_fallthru
      _
    %v83 = vld [vmem:[%s0] sm:$0xff]
    %v84 = vld [vmem:[%s0 + $0x8] sm:$0xff]
    %v85 = vld [vmem:[%s0 + $0x10] sm:$0xff]
    %v86 = vld [vmem:[%s0 + $0x18] sm:$0xff]
    %v87 = vld [vmem:[%s0 + $0x20] sm:$0xff]
    %v88 = vld [vmem:[%s0 + $0x28] sm:$0xff]
    %v89 = vld [vmem:[%s0 + $0x30] sm:$0xff]
    %v90 = vld [vmem:[%s0 + $0x38] sm:$0xff]
    %v91 = vld [vmem:[%s0 + $0x40] sm:$0xff]
    %v92 = vld [vmem:[%s0 + $0x48] sm:$0xff]
    %v93 = vld [vmem:[%s0 + $0x50] sm:$0xff]
    %v94 = vld [vmem:[%s0 + $0x58] sm:$0xff]
    %v95 = vld [vmem:[%s0 + $0x60] sm:$0xff]
    %v96 = vld [vmem:[%s0 + $0x68] sm:$0xff]
    %v97 = vld [vmem:[%s0 + $0x70] sm:$0xff]
    %v98 = vld [vmem:[%s0 + $0x78] sm:$0xff]
    %v99 = vld [vmem:[%s1] sm:$0xff]
    %v100 = vld [vmem:[%s1 + $0x8] sm:$0xff]
    %v101 = vld [vmem:[%s1 + $0x10] sm:$0xff]
    %v102 = vld [vmem:[%s1 + $0x18] sm:$0xff]
    %v103 = vld [vmem:[%s1 + $0x20] sm:$0xff]
    %v104 = vld [vmem:[%s1 + $0x28] sm:$0xff]
    %v105 = vld [vmem:[%s1 + $0x30] sm:$0xff]
    %v106 = vld [vmem:[%s1 + $0x38] sm:$0xff]
    %v107 = vld [vmem:[%s1 + $0x40] sm:$0xff]
    %v108 = vld [vmem:[%s1 + $0x48] sm:$0xff]
    %v109 = vld [vmem:[%s1 + $0x50] sm:$0xff]
    %v110 = vld [vmem:[%s1 + $0x58] sm:$0xff]
    %v111 = vld [vmem:[%s1 + $0x60] sm:$0xff]
    %v112 = vld [vmem:[%s1 + $0x68] sm:$0xff]
    %v113 = vld [vmem:[%s1 + $0x70] sm:$0xff]
    %v114 = vld [vmem:[%s1 + $0x78] sm:$0xff]
    %v115 = vld [vmem:[%s2] sm:$0x1]
    %v116 = vld [vmem:[%s3] sm:$0x1]
    %117 = vadd.xlane.f32.xlu0 %v83
    %v118 = vpop.xlane.xlu0 %117
    %119 = vadd.xlane.f32.xlu0 %v84
    %v120 = vpop.xlane.xlu0 %119
    %121 = vadd.xlane.f32.xlu0 %v85
    %v122 = vpop.xlane.xlu0 %121
    %123 = vadd.xlane.f32.xlu0 %v86
    %v124 = vpop.xlane.xlu0 %123
    %125 = vadd.xlane.f32.xlu0 %v87
    %v126 = vpop.xlane.xlu0 %125
    %127 = vadd.xlane.f32.xlu0 %v88
    %v128 = vpop.xlane.xlu0 %127
    %129 = vadd.xlane.f32.xlu0 %v89
    %v130 = vpop.xlane.xlu0 %129
    %131 = vadd.xlane.f32.xlu0 %v90
    %v132 = vpop.xlane.xlu0 %131
    %133 = vadd.xlane.f32.xlu0 %v91
    %v134 = vpop.xlane.xlu0 %133
    %135 = vadd.xlane.f32.xlu0 %v92
    %v136 = vpop.xlane.xlu0 %135
    %137 = vadd.xlane.f32.xlu0 %v93
    %v138 = vpop.xlane.xlu0 %137
    %139 = vadd.xlane.f32.xlu0 %v94
    %v140 = vpop.xlane.xlu0 %139
    %141 = vadd.xlane.f32.xlu0 %v95
    %v142 = vpop.xlane.xlu0 %141
    %143 = vadd.xlane.f32.xlu0 %v96
    %v144 = vpop.xlane.xlu0 %143
    %145 = vadd.xlane.f32.xlu0 %v97
    %v146 = vpop.xlane.xlu0 %145
    %147 = vadd.xlane.f32.xlu0 %v98
    %v148 = vpop.xlane.xlu0 %147
    %v149 = vrcp.pop 128.0
    %v150 = vmul.f32 128.0, %v149
    %v151 = vsub.f32 1.0, %v150
    %v152 = vmul.f32 %v149, %v151
    %v153 = vadd.f32 %v149, %v152
    %vm154 = vweird.f32 %v149
    %v155 = vsel %vm154, %v149, %v153
    %v156 = vmul.f32 %v118, %v155
    %v157 = vmul.f32 %v120, %v155
    %v158 = vmul.f32 %v122, %v155
    %v159 = vmul.f32 %v124, %v155
    %v160 = vmul.f32 %v126, %v155
    %v161 = vmul.f32 %v128, %v155
    %v162 = vmul.f32 %v130, %v155
    %v163 = vmul.f32 %v132, %v155
    %v164 = vmul.f32 %v134, %v155
    %v165 = vmul.f32 %v136, %v155
    %v166 = vmul.f32 %v138, %v155
    %v167 = vmul.f32 %v140, %v155
    %v168 = vmul.f32 %v142, %v155
    %v169 = vmul.f32 %v144, %v155
    %v170 = vmul.f32 %v146, %v155
    %v171 = vmul.f32 %v148, %v155
    %v172 = vmul.f32 %v83, %v83
    %v173 = vmul.f32 %v84, %v84
    %v174 = vmul.f32 %v85, %v85
    %v175 = vmul.f32 %v86, %v86
    %v176 = vmul.f32 %v87, %v87
    %v177 = vmul.f32 %v88, %v88
    %v178 = vmul.f32 %v89, %v89
    %v179 = vmul.f32 %v90, %v90
    %v180 = vmul.f32 %v91, %v91
    %v181 = vmul.f32 %v92, %v92
    %v182 = vmul.f32 %v93, %v93
    %v183 = vmul.f32 %v94, %v94
    %v184 = vmul.f32 %v95, %v95
    %v185 = vmul.f32 %v96, %v96
    %v186 = vmul.f32 %v97, %v97
    %v187 = vmul.f32 %v98, %v98
    %188 = vadd.xlane.f32.xlu0 %v172
    %v189 = vpop.xlane.xlu0 %188
    %190 = vadd.xlane.f32.xlu0 %v173
    %v191 = vpop.xlane.xlu0 %190
    %192 = vadd.xlane.f32.xlu0 %v174
    %v193 = vpop.xlane.xlu0 %192
    %194 = vadd.xlane.f32.xlu0 %v175
    %v195 = vpop.xlane.xlu0 %194
    %196 = vadd.xlane.f32.xlu0 %v176
    %v197 = vpop.xlane.xlu0 %196
    %198 = vadd.xlane.f32.xlu0 %v177
    %v199 = vpop.xlane.xlu0 %198
    %200 = vadd.xlane.f32.xlu0 %v178
    %v201 = vpop.xlane.xlu0 %200
    %202 = vadd.xlane.f32.xlu0 %v179
    %v203 = vpop.xlane.xlu0 %202
    %204 = vadd.xlane.f32.xlu0 %v180
    %v205 = vpop.xlane.xlu0 %204
    %206 = vadd.xlane.f32.xlu0 %v181
    %v207 = vpop.xlane.xlu0 %206
    %208 = vadd.xlane.f32.xlu0 %v182
    %v209 = vpop.xlane.xlu0 %208
    %210 = vadd.xlane.f32.xlu0 %v183
    %v211 = vpop.xlane.xlu0 %210
    %212 = vadd.xlane.f32.xlu0 %v184
    %v213 = vpop.xlane.xlu0 %212
    %214 = vadd.xlane.f32.xlu0 %v185
    %v215 = vpop.xlane.xlu0 %214
    %216 = vadd.xlane.f32.xlu0 %v186
    %v217 = vpop.xlane.xlu0 %216
    %218 = vadd.xlane.f32.xlu0 %v187
    %v219 = vpop.xlane.xlu0 %218
    %v220 = vmul.f32 %v189, %v155
    %v221 = vmul.f32 %v191, %v155
    %v222 = vmul.f32 %v193, %v155
    %v223 = vmul.f32 %v195, %v155
    %v224 = vmul.f32 %v197, %v155
    %v225 = vmul.f32 %v199, %v155
    %v226 = vmul.f32 %v201, %v155
    %v227 = vmul.f32 %v203, %v155
    %v228 = vmul.f32 %v205, %v155
    %v229 = vmul.f32 %v207, %v155
    %v230 = vmul.f32 %v209, %v155
    %v231 = vmul.f32 %v211, %v155
    %v232 = vmul.f32 %v213, %v155
    %v233 = vmul.f32 %v215, %v155
    %v234 = vmul.f32 %v217, %v155
    %v235 = vmul.f32 %v219, %v155
    %v236 = vmul.f32 %v156, %v156
    %v237 = vmul.f32 %v157, %v157
    %v238 = vmul.f32 %v158, %v158
    %v239 = vmul.f32 %v159, %v159
    %v240 = vmul.f32 %v160, %v160
    %v241 = vmul.f32 %v161, %v161
    %v242 = vmul.f32 %v162, %v162
    %v243 = vmul.f32 %v163, %v163
    %v244 = vmul.f32 %v164, %v164
    %v245 = vmul.f32 %v165, %v165
    %v246 = vmul.f32 %v166, %v166
    %v247 = vmul.f32 %v167, %v167
    %v248 = vmul.f32 %v168, %v168
    %v249 = vmul.f32 %v169, %v169
    %v250 = vmul.f32 %v170, %v170
    %v251 = vmul.f32 %v171, %v171
    %v252 = vsub.f32 %v220, %v236
    %v253 = vsub.f32 %v221, %v237
    %v254 = vsub.f32 %v222, %v238
    %v255 = vsub.f32 %v223, %v239
    %v256 = vsub.f32 %v224, %v240
    %v257 = vsub.f32 %v225, %v241
    %v258 = vsub.f32 %v226, %v242
    %v259 = vsub.f32 %v227, %v243
    %v260 = vsub.f32 %v228, %v244
    %v261 = vsub.f32 %v229, %v245
    %v262 = vsub.f32 %v230, %v246
    %v263 = vsub.f32 %v231, %v247
    %v264 = vsub.f32 %v232, %v248
    %v265 = vsub.f32 %v233, %v249
    %v266 = vsub.f32 %v234, %v250
    %v267 = vsub.f32 %v235, %v251
    %v268 = vsub.f32 %v83, %v156
    %v269 = vsub.f32 %v84, %v157
    %v270 = vsub.f32 %v85, %v158
    %v271 = vsub.f32 %v86, %v159
    %v272 = vsub.f32 %v87, %v160
    %v273 = vsub.f32 %v88, %v161
    %v274 = vsub.f32 %v89, %v162
    %v275 = vsub.f32 %v90, %v163
    %v276 = vsub.f32 %v91, %v164
    %v277 = vsub.f32 %v92, %v165
    %v278 = vsub.f32 %v93, %v166
    %v279 = vsub.f32 %v94, %v167
    %v280 = vsub.f32 %v95, %v168
    %v281 = vsub.f32 %v96, %v169
    %v282 = vsub.f32 %v97, %v170
    %v283 = vsub.f32 %v98, %v171
    %v284 = vadd.f32 %v252, 1e-05
    %v285 = vadd.f32 %v253, 1e-05
    %v286 = vadd.f32 %v254, 1e-05
    %v287 = vadd.f32 %v255, 1e-05
    %v288 = vadd.f32 %v256, 1e-05
    %v289 = vadd.f32 %v257, 1e-05
    %v290 = vadd.f32 %v258, 1e-05
    %v291 = vadd.f32 %v259, 1e-05
    %v292 = vadd.f32 %v260, 1e-05
    %v293 = vadd.f32 %v261, 1e-05
    %v294 = vadd.f32 %v262, 1e-05
    %v295 = vadd.f32 %v263, 1e-05
    %v296 = vadd.f32 %v264, 1e-05
    %v297 = vadd.f32 %v265, 1e-05
    %v298 = vadd.f32 %v266, 1e-05
    %v299 = vadd.f32 %v267, 1e-05
    %v300 = vrsqrt.pop %v284
    %v301 = vmul.f32 %v300, %v284
    %v302 = vmul.f32 %v301, %v300
    %v303 = vmul.f32 0.5, %v302
    %v304 = vsub.f32 1.5, %v303
    %v305 = vmul.f32 %v300, %v304
    %vm306 = vweird.f32 %v284
    %vm307 = vweird.f32 %v300
    %vm308 = vmor %vm306, %vm307
    %v309 = vsel %vm308, %v300, %v305
    %v310 = vrsqrt.pop %v285
    %v311 = vmul.f32 %v310, %v285
    %v312 = vmul.f32 %v311, %v310
    %v313 = vmul.f32 0.5, %v312
    %v314 = vsub.f32 1.5, %v313
    %v315 = vmul.f32 %v310, %v314
    %vm316 = vweird.f32 %v285
    %vm317 = vweird.f32 %v310
    %vm318 = vmor %vm316, %vm317
    %v319 = vsel %vm318, %v310, %v315
    %v320 = vrsqrt.pop %v286
    %v321 = vmul.f32 %v320, %v286
    %v322 = vmul.f32 %v321, %v320
    %v323 = vmul.f32 0.5, %v322
    %v324 = vsub.f32 1.5, %v323
    %v325 = vmul.f32 %v320, %v324
    %vm326 = vweird.f32 %v286
    %vm327 = vweird.f32 %v320
    %vm328 = vmor %vm326, %vm327
    %v329 = vsel %vm328, %v320, %v325
    %v330 = vrsqrt.pop %v287
    %v331 = vmul.f32 %v330, %v287
    %v332 = vmul.f32 %v331, %v330
    %v333 = vmul.f32 0.5, %v332
    %v334 = vsub.f32 1.5, %v333
    %v335 = vmul.f32 %v330, %v334
    %vm336 = vweird.f32 %v287
    %vm337 = vweird.f32 %v330
    %vm338 = vmor %vm336, %vm337
    %v339 = vsel %vm338, %v330, %v335
    %v340 = vrsqrt.pop %v288
    %v341 = vmul.f32 %v340, %v288
    %v342 = vmul.f32 %v341, %v340
    %v343 = vmul.f32 0.5, %v342
    %v344 = vsub.f32 1.5, %v343
    %v345 = vmul.f32 %v340, %v344
    %vm346 = vweird.f32 %v288
    %vm347 = vweird.f32 %v340
    %vm348 = vmor %vm346, %vm347
    %v349 = vsel %vm348, %v340, %v345
    %v350 = vrsqrt.pop %v289
    %v351 = vmul.f32 %v350, %v289
    %v352 = vmul.f32 %v351, %v350
    %v353 = vmul.f32 0.5, %v352
    %v354 = vsub.f32 1.5, %v353
    %v355 = vmul.f32 %v350, %v354
    %vm356 = vweird.f32 %v289
    %vm357 = vweird.f32 %v350
    %vm358 = vmor %vm356, %vm357
    %v359 = vsel %vm358, %v350, %v355
    %v360 = vrsqrt.pop %v290
    %v361 = vmul.f32 %v360, %v290
    %v362 = vmul.f32 %v361, %v360
    %v363 = vmul.f32 0.5, %v362
    %v364 = vsub.f32 1.5, %v363
    %v365 = vmul.f32 %v360, %v364
    %vm366 = vweird.f32 %v290
    %vm367 = vweird.f32 %v360
    %vm368 = vmor %vm366, %vm367
    %v369 = vsel %vm368, %v360, %v365
    %v370 = vrsqrt.pop %v291
    %v371 = vmul.f32 %v370, %v291
    %v372 = vmul.f32 %v371, %v370
    %v373 = vmul.f32 0.5, %v372
    %v374 = vsub.f32 1.5, %v373
    %v375 = vmul.f32 %v370, %v374
    %vm376 = vweird.f32 %v291
    %vm377 = vweird.f32 %v370
    %vm378 = vmor %vm376, %vm377
    %v379 = vsel %vm378, %v370, %v375
    %v380 = vrsqrt.pop %v292
    %v381 = vmul.f32 %v380, %v292
    %v382 = vmul.f32 %v381, %v380
    %v383 = vmul.f32 0.5, %v382
    %v384 = vsub.f32 1.5, %v383
    %v385 = vmul.f32 %v380, %v384
    %vm386 = vweird.f32 %v292
    %vm387 = vweird.f32 %v380
    %vm388 = vmor %vm386, %vm387
    %v389 = vsel %vm388, %v380, %v385
    %v390 = vrsqrt.pop %v293
    %v391 = vmul.f32 %v390, %v293
    %v392 = vmul.f32 %v391, %v390
    %v393 = vmul.f32 0.5, %v392
    %v394 = vsub.f32 1.5, %v393
    %v395 = vmul.f32 %v390, %v394
    %vm396 = vweird.f32 %v293
    %vm397 = vweird.f32 %v390
    %vm398 = vmor %vm396, %vm397
    %v399 = vsel %vm398, %v390, %v395
    %v400 = vrsqrt.pop %v294
    %v401 = vmul.f32 %v400, %v294
    %v402 = vmul.f32 %v401, %v400
    %v403 = vmul.f32 0.5, %v402
    %v404 = vsub.f32 1.5, %v403
    %v405 = vmul.f32 %v400, %v404
    %vm406 = vweird.f32 %v294
    %vm407 = vweird.f32 %v400
    %vm408 = vmor %vm406, %vm407
    %v409 = vsel %vm408, %v400, %v405
    %v410 = vrsqrt.pop %v295
    %v411 = vmul.f32 %v410, %v295
    %v412 = vmul.f32 %v411, %v410
    %v413 = vmul.f32 0.5, %v412
    %v414 = vsub.f32 1.5, %v413
    %v415 = vmul.f32 %v410, %v414
    %vm416 = vweird.f32 %v295
    %vm417 = vweird.f32 %v410
    %vm418 = vmor %vm416, %vm417
    %v419 = vsel %vm418, %v410, %v415
    %v420 = vrsqrt.pop %v296
    %v421 = vmul.f32 %v420, %v296
    %v422 = vmul.f32 %v421, %v420
    %v423 = vmul.f32 0.5, %v422
    %v424 = vsub.f32 1.5, %v423
    %v425 = vmul.f32 %v420, %v424
    %vm426 = vweird.f32 %v296
    %vm427 = vweird.f32 %v420
    %vm428 = vmor %vm426, %vm427
    %v429 = vsel %vm428, %v420, %v425
    %v430 = vrsqrt.pop %v297
    %v431 = vmul.f32 %v430, %v297
    %v432 = vmul.f32 %v431, %v430
    %v433 = vmul.f32 0.5, %v432
    %v434 = vsub.f32 1.5, %v433
    %v435 = vmul.f32 %v430, %v434
    %vm436 = vweird.f32 %v297
    %vm437 = vweird.f32 %v430
    %vm438 = vmor %vm436, %vm437
    %v439 = vsel %vm438, %v430, %v435
    %v440 = vrsqrt.pop %v298
    %v441 = vmul.f32 %v440, %v298
    %v442 = vmul.f32 %v441, %v440
    %v443 = vmul.f32 0.5, %v442
    %v444 = vsub.f32 1.5, %v443
    %v445 = vmul.f32 %v440, %v444
    %vm446 = vweird.f32 %v298
    %vm447 = vweird.f32 %v440
    %vm448 = vmor %vm446, %vm447
    %v449 = vsel %vm448, %v440, %v445
    %v450 = vrsqrt.pop %v299
    %v451 = vmul.f32 %v450, %v299
    %v452 = vmul.f32 %v451, %v450
    %v453 = vmul.f32 0.5, %v452
    %v454 = vsub.f32 1.5, %v453
    %v455 = vmul.f32 %v450, %v454
    %vm456 = vweird.f32 %v299
    %vm457 = vweird.f32 %v450
    %vm458 = vmor %vm456, %vm457
    %v459 = vsel %vm458, %v450, %v455
    %v460 = vmul.f32 %v268, %v309
    %v461 = vmul.f32 %v269, %v319
    %v462 = vmul.f32 %v270, %v329
    %v463 = vmul.f32 %v271, %v339
    %v464 = vmul.f32 %v272, %v349
    %v465 = vmul.f32 %v273, %v359
    %v466 = vmul.f32 %v274, %v369
    %v467 = vmul.f32 %v275, %v379
    %v468 = vmul.f32 %v276, %v389
    %v469 = vmul.f32 %v277, %v399
    %v470 = vmul.f32 %v278, %v409
    %v471 = vmul.f32 %v279, %v419
    %v472 = vmul.f32 %v280, %v429
    %v473 = vmul.f32 %v281, %v439
    %v474 = vmul.f32 %v282, %v449
    %v475 = vmul.f32 %v283, %v459
    %v477 = vperm.slane %v115, 0
    %v479 = vmul.f32 %v460, %v477
    %v480 = vmul.f32 %v461, %v477
    %v481 = vmul.f32 %v462, %v477
    %v482 = vmul.f32 %v463, %v477
    %v483 = vmul.f32 %v464, %v477
    %v484 = vmul.f32 %v465, %v477
    %v485 = vmul.f32 %v466, %v477
    %v486 = vmul.f32 %v467, %v477
    %v487 = vmul.f32 %v468, %v477
    %v488 = vmul.f32 %v469, %v477
    %v489 = vmul.f32 %v470, %v477
    %v490 = vmul.f32 %v471, %v477
    %v491 = vmul.f32 %v472, %v477
    %v492 = vmul.f32 %v473, %v477
    %v493 = vmul.f32 %v474, %v477
    %v494 = vmul.f32 %v475, %v477
    %v496 = vperm.slane %v116, 0
    %v498 = vadd.f32 %v479, %v496
    %v499 = vadd.f32 %v480, %v496
    %v500 = vadd.f32 %v481, %v496
    %v501 = vadd.f32 %v482, %v496
    %v502 = vadd.f32 %v483, %v496
    %v503 = vadd.f32 %v484, %v496
    %v504 = vadd.f32 %v485, %v496
    %v505 = vadd.f32 %v486, %v496
    %v506 = vadd.f32 %v487, %v496
    %v507 = vadd.f32 %v488, %v496
    %v508 = vadd.f32 %v489, %v496
    %v509 = vadd.f32 %v490, %v496
    %v510 = vadd.f32 %v491, %v496
    %v511 = vadd.f32 %v492, %v496
    %v512 = vadd.f32 %v493, %v496
    %v513 = vadd.f32 %v494, %v496
    %v514 = vpack.c.bf16 %v499, %v498
    %v515 = vpack.c.bf16 %v501, %v500
    %v516 = vpack.c.bf16 %v503, %v502
    %v517 = vpack.c.bf16 %v505, %v504
    %v518 = vpack.c.bf16 %v507, %v506
    %v519 = vpack.c.bf16 %v509, %v508
    %v520 = vpack.c.bf16 %v511, %v510
    %v521 = vpack.c.bf16 %v513, %v512
    %v522 = vld [vmem:[#allocation3] sm:$0xff]
    %v523 = vld [vmem:[#allocation3 + $0x8] sm:$0xf]
    %v524 = vld [vmem:[#allocation3 + $0xc] sm:$0xff]
    %v525 = vld [vmem:[#allocation3 + $0x14] sm:$0xf]
    %v526 = vld [vmem:[#allocation3 + $0x18] sm:$0xff]
    %v527 = vld [vmem:[#allocation3 + $0x20] sm:$0xf]
    %v528 = vld [vmem:[#allocation3 + $0x24] sm:$0xff]
    %v529 = vld [vmem:[#allocation3 + $0x2c] sm:$0xf]
    %v530 = vld [vmem:[#allocation3 + $0x30] sm:$0xff]
    %v531 = vld [vmem:[#allocation3 + $0x38] sm:$0xf]
    %v532 = vld [vmem:[#allocation3 + $0x3c] sm:$0xff]
    %v533 = vld [vmem:[#allocation3 + $0x44] sm:$0xf]
    %v534 = vld [vmem:[#allocation3 + $0x48] sm:$0xff]
    %v535 = vld [vmem:[#allocation3 + $0x50] sm:$0xf]
    %v536 = vld [vmem:[#allocation3 + $0x54] sm:$0xff]
    %v537 = vld [vmem:[#allocation3 + $0x5c] sm:$0xf]
    %v538 = vld [vmem:[#allocation3 + $0x60] sm:$0xff]
    %v539 = vld [vmem:[#allocation3 + $0x68] sm:$0xf]
    %v540 = vld [vmem:[#allocation3 + $0x6c] sm:$0xff]
    %v541 = vld [vmem:[#allocation3 + $0x74] sm:$0xf]
    %v542 = vld [vmem:[#allocation3 + $0x78] sm:$0xff]
    %v543 = vld [vmem:[#allocation3 + $0x80] sm:$0xf]
    %v544 = vld [vmem:[#allocation3 + $0x84] sm:$0xff]
    %v545 = vld [vmem:[#allocation3 + $0x8c] sm:$0xf]
    %v546 = vld [vmem:[#allocation3 + $0x90] sm:$0xff]
    %v547 = vld [vmem:[#allocation3 + $0x98] sm:$0xf]
    %v548 = vld [vmem:[#allocation3 + $0x9c] sm:$0xff]
    %v549 = vld [vmem:[#allocation3 + $0xa4] sm:$0xf]
    %v550 = vld [vmem:[#allocation3 + $0xa8] sm:$0xff]
    %v551 = vld [vmem:[#allocation3 + $0xb0] sm:$0xf]
    %v552 = vld [vmem:[#allocation3 + $0xb4] sm:$0xff]
    %v553 = vld [vmem:[#allocation3 + $0xbc] sm:$0xf]
    %v586 = vunpack.c.l.b16 %v522
    %v587 = vunpack.c.h.b16 %v522
    %v588 = vunpack.c.l.b16 %v523
    %v589 = vunpack.c.l.b16 %v524
    %v590 = vunpack.c.h.b16 %v524
    %v591 = vunpack.c.l.b16 %v525
    %v592 = vunpack.c.l.b16 %v526
    %v593 = vunpack.c.h.b16 %v526
    %v594 = vunpack.c.l.b16 %v527
    %v595 = vunpack.c.l.b16 %v528
    %v596 = vunpack.c.h.b16 %v528
    %v597 = vunpack.c.l.b16 %v529
    %v598 = vunpack.c.l.b16 %v530
    %v599 = vunpack.c.h.b16 %v530
    %v600 = vunpack.c.l.b16 %v531
    %v601 = vunpack.c.l.b16 %v532
    %v602 = vunpack.c.h.b16 %v532
    %v603 = vunpack.c.l.b16 %v533
    %v604 = vunpack.c.l.b16 %v534
    %v605 = vunpack.c.h.b16 %v534
    %v606 = vunpack.c.l.b16 %v535
    %v607 = vunpack.c.l.b16 %v536
    %v608 = vunpack.c.h.b16 %v536
    %v609 = vunpack.c.l.b16 %v537
    %v610 = vunpack.c.l.b16 %v538
    %v611 = vunpack.c.h.b16 %v538
    %v612 = vunpack.c.l.b16 %v539
    %v613 = vunpack.c.l.b16 %v540
    %v614 = vunpack.c.h.b16 %v540
    %v615 = vunpack.c.l.b16 %v541
    %v616 = vunpack.c.l.b16 %v542
    %v617 = vunpack.c.h.b16 %v542
    %v618 = vunpack.c.l.b16 %v543
    %v619 = vunpack.c.l.b16 %v544
    %v620 = vunpack.c.h.b16 %v544
    %v621 = vunpack.c.l.b16 %v545
    %v622 = vunpack.c.l.b16 %v546
    %v623 = vunpack.c.h.b16 %v546
    %v624 = vunpack.c.l.b16 %v547
    %v625 = vunpack.c.l.b16 %v548
    %v626 = vunpack.c.h.b16 %v548
    %v627 = vunpack.c.l.b16 %v549
    %v628 = vunpack.c.l.b16 %v550
    %v629 = vunpack.c.h.b16 %v550
    %v630 = vunpack.c.l.b16 %v551
    %v631 = vunpack.c.l.b16 %v552
    %v632 = vunpack.c.h.b16 %v552
    %v633 = vunpack.c.l.b16 %v553
    %v634 = vpack.c.b16 %v589, %v586
    %v635 = vpack.c.b16 %v590, %v587
    %v636 = vpack.c.b16 %v591, %v588
    %v637 = vpack.c.b16 %v595, %v592
    %v638 = vpack.c.b16 %v596, %v593
    %v639 = vpack.c.b16 %v597, %v594
    %v640 = vpack.c.b16 %v601, %v598
    %v641 = vpack.c.b16 %v602, %v599
    %v642 = vpack.c.b16 %v603, %v600
    %v643 = vpack.c.b16 %v607, %v604
    %v644 = vpack.c.b16 %v608, %v605
    %v645 = vpack.c.b16 %v609, %v606
    %v646 = vpack.c.b16 %v613, %v610
    %v647 = vpack.c.b16 %v614, %v611
    %v648 = vpack.c.b16 %v615, %v612
    %v649 = vpack.c.b16 %v619, %v616
    %v650 = vpack.c.b16 %v620, %v617
    %v651 = vpack.c.b16 %v621, %v618
    %v652 = vpack.c.b16 %v625, %v622
    %v653 = vpack.c.b16 %v626, %v623
    %v654 = vpack.c.b16 %v627, %v624
    %v655 = vpack.c.b16 %v631, %v628
    %v656 = vpack.c.b16 %v632, %v629
    %v657 = vpack.c.b16 %v633, %v630
    %682 = vmatpush.bf16.msra.mxu0 %v655
    %683 = vmatpush.bf16.msra.mxu0 %v652
    %684 = vmatpush.bf16.msra.mxu0 %v649
    %685 = vmatpush.bf16.msra.mxu0 %v646
    %686 = vmatpush.bf16.msra.mxu0 %v643
    %687 = vmatpush.bf16.msra.mxu0 %v640
    %688 = vmatpush.bf16.msra.mxu0 %v637
    %689 = vmatpush.bf16.msra.mxu0 %v634
    %690 = vmatmul.bf16.gmra.mxu0 %v514
    %v691 = vpop.f32.mrf.mxu0
    %v692 = vadd.f32 0.0, %v691
    %v693 = vpop.f32.mrf.mxu0
    %v694 = vadd.f32 0.0, %v693
    %695 = vmatmul.bf16.gmra.mxu0 %v515
    %v696 = vpop.f32.mrf.mxu0
    %v697 = vadd.f32 0.0, %v696
    %v698 = vpop.f32.mrf.mxu0
    %v699 = vadd.f32 0.0, %v698
    %700 = vmatmul.bf16.gmra.mxu0 %v516
    %v701 = vpop.f32.mrf.mxu0
    %v702 = vadd.f32 0.0, %v701
    %v703 = vpop.f32.mrf.mxu0
    %v704 = vadd.f32 0.0, %v703
    %705 = vmatmul.bf16.gmra.mxu0 %v517
    %v706 = vpop.f32.mrf.mxu0
    %v707 = vadd.f32 0.0, %v706
    %v708 = vpop.f32.mrf.mxu0
    %v709 = vadd.f32 0.0, %v708
    %710 = vmatmul.bf16.gmra.mxu0 %v518
    %v711 = vpop.f32.mrf.mxu0
    %v712 = vadd.f32 0.0, %v711
    %v713 = vpop.f32.mrf.mxu0
    %v714 = vadd.f32 0.0, %v713
    %715 = vmatmul.bf16.gmra.mxu0 %v519
    %v716 = vpop.f32.mrf.mxu0
    %v717 = vadd.f32 0.0, %v716
    %v718 = vpop.f32.mrf.mxu0
    %v719 = vadd.f32 0.0, %v718
    %720 = vmatmul.bf16.gmra.mxu0 %v520
    %v721 = vpop.f32.mrf.mxu0
    %v722 = vadd.f32 0.0, %v721
    %v723 = vpop.f32.mrf.mxu0
    %v724 = vadd.f32 0.0, %v723
    %725 = vmatmul.bf16.gmra.mxu0 %v521
    %v726 = vpop.f32.mrf.mxu0
    %v727 = vadd.f32 0.0, %v726
    %v728 = vpop.f32.mrf.mxu0
    %v729 = vadd.f32 0.0, %v728
    %730 = vdwg.mxu0
    %731 = vmatpush.bf16.msra.mxu0 %v656
    %732 = vmatpush.bf16.msra.mxu0 %v653
    %733 = vmatpush.bf16.msra.mxu0 %v650
    %734 = vmatpush.bf16.msra.mxu0 %v647
    %735 = vmatpush.bf16.msra.mxu0 %v644
    %736 = vmatpush.bf16.msra.mxu0 %v641
    %737 = vmatpush.bf16.msra.mxu0 %v638
    %738 = vmatpush.bf16.msra.mxu0 %v635
    %739 = vmatmul.bf16.gmra.mxu0 %v514
    %v740 = vpop.f32.mrf.mxu0
    %v741 = vadd.f32 0.0, %v740
    %v742 = vpop.f32.mrf.mxu0
    %v743 = vadd.f32 0.0, %v742
    %744 = vmatmul.bf16.gmra.mxu0 %v515
    %v745 = vpop.f32.mrf.mxu0
    %v746 = vadd.f32 0.0, %v745
    %v747 = vpop.f32.mrf.mxu0
    %v748 = vadd.f32 0.0, %v747
    %749 = vmatmul.bf16.gmra.mxu0 %v516
    %v750 = vpop.f32.mrf.mxu0
    %v751 = vadd.f32 0.0, %v750
    %v752 = vpop.f32.mrf.mxu0
    %v753 = vadd.f32 0.0, %v752
    %754 = vmatmul.bf16.gmra.mxu0 %v517
    %v755 = vpop.f32.mrf.mxu0
    %v756 = vadd.f32 0.0, %v755
    %v757 = vpop.f32.mrf.mxu0
    %v758 = vadd.f32 0.0, %v757
    %759 = vmatmul.bf16.gmra.mxu0 %v518
    %v760 = vpop.f32.mrf.mxu0
    %v761 = vadd.f32 0.0, %v760
    %v762 = vpop.f32.mrf.mxu0
    %v763 = vadd.f32 0.0, %v762
    %764 = vmatmul.bf16.gmra.mxu0 %v519
    %v765 = vpop.f32.mrf.mxu0
    %v766 = vadd.f32 0.0, %v765
    %v767 = vpop.f32.mrf.mxu0
    %v768 = vadd.f32 0.0, %v767
    %769 = vmatmul.bf16.gmra.mxu0 %v520
    %v770 = vpop.f32.mrf.mxu0
    %v771 = vadd.f32 0.0, %v770
    %v772 = vpop.f32.mrf.mxu0
    %v773 = vadd.f32 0.0, %v772
    %774 = vmatmul.bf16.gmra.mxu0 %v521
    %v775 = vpop.f32.mrf.mxu0
    %v776 = vadd.f32 0.0, %v775
    %v777 = vpop.f32.mrf.mxu0
    %v778 = vadd.f32 0.0, %v777
    %779 = vdwg.mxu0
    %780 = vmatpush.bf16.msra.mxu0 %v657
    %781 = vmatpush.bf16.msra.mxu0 %v654
    %782 = vmatpush.bf16.msra.mxu0 %v651
    %783 = vmatpush.bf16.msra.mxu0 %v648
    %784 = vmatpush.bf16.msra.mxu0 %v645
    %785 = vmatpush.bf16.msra.mxu0 %v642
    %786 = vmatpush.bf16.msra.mxu0 %v639
    %787 = vmatpush.bf16.msra.mxu0 %v636
    %788 = vmatmul.bf16.gmra.mxu0 %v514
    %v789 = vpop.f32.mrf.mxu0
    %v790 = vadd.f32 0.0, %v789
    %v791 = vpop.f32.mrf.mxu0
    %v792 = vadd.f32 0.0, %v791
    %793 = vmatmul.bf16.gmra.mxu0 %v515
    %v794 = vpop.f32.mrf.mxu0
    %v795 = vadd.f32 0.0, %v794
    %v796 = vpop.f32.mrf.mxu0
    %v797 = vadd.f32 0.0, %v796
    %798 = vmatmul.bf16.gmra.mxu0 %v516
    %v799 = vpop.f32.mrf.mxu0
    %v800 = vadd.f32 0.0, %v799
    %v801 = vpop.f32.mrf.mxu0
    %v802 = vadd.f32 0.0, %v801
    %803 = vmatmul.bf16.gmra.mxu0 %v517
    %v804 = vpop.f32.mrf.mxu0
    %v805 = vadd.f32 0.0, %v804
    %v806 = vpop.f32.mrf.mxu0
    %v807 = vadd.f32 0.0, %v806
    %808 = vmatmul.bf16.gmra.mxu0 %v518
    %v809 = vpop.f32.mrf.mxu0
    %v810 = vadd.f32 0.0, %v809
    %v811 = vpop.f32.mrf.mxu0
    %v812 = vadd.f32 0.0, %v811
    %813 = vmatmul.bf16.gmra.mxu0 %v519
    %v814 = vpop.f32.mrf.mxu0
    %v815 = vadd.f32 0.0, %v814
    %v816 = vpop.f32.mrf.mxu0
    %v817 = vadd.f32 0.0, %v816
    %818 = vmatmul.bf16.gmra.mxu0 %v520
    %v819 = vpop.f32.mrf.mxu0
    %v820 = vadd.f32 0.0, %v819
    %v821 = vpop.f32.mrf.mxu0
    %v822 = vadd.f32 0.0, %v821
    %823 = vmatmul.bf16.gmra.mxu0 %v521
    %v824 = vpop.f32.mrf.mxu0
    %v825 = vadd.f32 0.0, %v824
    %v826 = vpop.f32.mrf.mxu0
    %v827 = vadd.f32 0.0, %v826
    %828 = vdwg.mxu0
    %v829 = vpack.c.bf16 %v741, %v692
    %v830 = vpack.c.bf16 %v790, %v790
    %v831 = vpack.c.bf16 %v743, %v694
    %v832 = vpack.c.bf16 %v792, %v792
    %v833 = vpack.c.bf16 %v746, %v697
    %v834 = vpack.c.bf16 %v795, %v795
    %v835 = vpack.c.bf16 %v748, %v699
    %v836 = vpack.c.bf16 %v797, %v797
    %v837 = vpack.c.bf16 %v751, %v702
    %v838 = vpack.c.bf16 %v800, %v800
    %v839 = vpack.c.bf16 %v753, %v704
    %v840 = vpack.c.bf16 %v802, %v802
    %v841 = vpack.c.bf16 %v756, %v707
    %v842 = vpack.c.bf16 %v805, %v805
    %v843 = vpack.c.bf16 %v758, %v709
    %v844 = vpack.c.bf16 %v807, %v807
    %v845 = vpack.c.bf16 %v761, %v712
    %v846 = vpack.c.bf16 %v810, %v810
    %v847 = vpack.c.bf16 %v763, %v714
    %v848 = vpack.c.bf16 %v812, %v812
    %v849 = vpack.c.bf16 %v766, %v717
    %v850 = vpack.c.bf16 %v815, %v815
    %v851 = vpack.c.bf16 %v768, %v719
    %v852 = vpack.c.bf16 %v817, %v817
    %v853 = vpack.c.bf16 %v771, %v722
    %v854 = vpack.c.bf16 %v820, %v820
    %v855 = vpack.c.bf16 %v773, %v724
    %v856 = vpack.c.bf16 %v822, %v822
    %v857 = vpack.c.bf16 %v776, %v727
    %v858 = vpack.c.bf16 %v825, %v825
    %v859 = vpack.c.bf16 %v778, %v729
    %v860 = vpack.c.bf16 %v827, %v827
    %v877 = vunpack.c.l.b16 %v829
    %v878 = vunpack.c.l.b16 %v831
    %v879 = vunpack.c.l.b16 %v833
    %v880 = vunpack.c.l.b16 %v835
    %v881 = vunpack.c.l.b16 %v837
    %v882 = vunpack.c.l.b16 %v839
    %v883 = vunpack.c.l.b16 %v841
    %v884 = vunpack.c.l.b16 %v843
    %v885 = vunpack.c.l.b16 %v845
    %v886 = vunpack.c.l.b16 %v847
    %v887 = vunpack.c.l.b16 %v849
    %v888 = vunpack.c.l.b16 %v851
    %v889 = vunpack.c.l.b16 %v853
    %v890 = vunpack.c.l.b16 %v855
    %v891 = vunpack.c.l.b16 %v857
    %v892 = vunpack.c.l.b16 %v859
    %v893 = vpack.c.b16 %v878, %v877
    %v894 = vpack.c.b16 %v880, %v879
    %v895 = vpack.c.b16 %v882, %v881
    %v896 = vpack.c.b16 %v884, %v883
    %v897 = vpack.c.b16 %v886, %v885
    %v898 = vpack.c.b16 %v888, %v887
    %v899 = vpack.c.b16 %v890, %v889
    %v900 = vpack.c.b16 %v892, %v891
    %v901 = vunpack.c.h.b16 %v829
    %v902 = vunpack.c.h.b16 %v831
    %v903 = vunpack.c.h.b16 %v833
    %v904 = vunpack.c.h.b16 %v835
    %v905 = vunpack.c.h.b16 %v837
    %v906 = vunpack.c.h.b16 %v839
    %v907 = vunpack.c.h.b16 %v841
    %v908 = vunpack.c.h.b16 %v843
    %v909 = vunpack.c.h.b16 %v845
    %v910 = vunpack.c.h.b16 %v847
    %v911 = vunpack.c.h.b16 %v849
    %v912 = vunpack.c.h.b16 %v851
    %v913 = vunpack.c.h.b16 %v853
    %v914 = vunpack.c.h.b16 %v855
    %v915 = vunpack.c.h.b16 %v857
    %v916 = vunpack.c.h.b16 %v859
    %v917 = vpack.c.b16 %v902, %v901
    %v918 = vpack.c.b16 %v904, %v903
    %v919 = vpack.c.b16 %v906, %v905
    %v920 = vpack.c.b16 %v908, %v907
    %v921 = vpack.c.b16 %v910, %v909
    %v922 = vpack.c.b16 %v912, %v911
    %v923 = vpack.c.b16 %v914, %v913
    %v924 = vpack.c.b16 %v916, %v915
    %vm925 = vcmask 261120
    %v927 = vsel %vm925, %v893, 0
    %v930 = vsel %vm925, %v894, 0
    %v933 = vsel %vm925, %v895, 0
    %v936 = vsel %vm925, %v896, 0
    %v939 = vsel %vm925, %v897, 0
    %v942 = vsel %vm925, %v898, 0
    %v945 = vsel %vm925, %v899, 0
    %v948 = vsel %vm925, %v900, 0
    %v951 = vsel %vm925, %v917, 0
    %v954 = vsel %vm925, %v918, 0
    %v957 = vsel %vm925, %v919, 0
    %v960 = vsel %vm925, %v920, 0
    %v963 = vsel %vm925, %v921, 0
    %v966 = vsel %vm925, %v922, 0
    %v969 = vsel %vm925, %v923, 0
    %v972 = vsel %vm925, %v924, 0
    %974 = vmatpush.bf16.xpose.msra.mxu0 %v972
    %975 = vmatpush.bf16.xpose.msra.mxu0 %v969
    %976 = vmatpush.bf16.xpose.msra.mxu0 %v966
    %977 = vmatpush.bf16.xpose.msra.mxu0 %v963
    %978 = vmatpush.bf16.xpose.msra.mxu0 %v960
    %979 = vmatpush.bf16.xpose.msra.mxu0 %v957
    %980 = vmatpush.bf16.xpose.msra.mxu0 %v954
    %981 = vmatpush.bf16.xpose.msra.mxu0 %v951
    %982 = vmatmul.bf16.gmra.mxu0 %v927
    %v983 = vpop.f32.mrf.mxu0
    %v984 = vadd.f32 %v99, %v983
    %v985 = vpop.f32.mrf.mxu0
    %v986 = vadd.f32 %v100, %v985
    %987 = vmatmul.bf16.gmra.mxu0 %v930
    %v988 = vpop.f32.mrf.mxu0
    %v989 = vadd.f32 %v101, %v988
    %v990 = vpop.f32.mrf.mxu0
    %v991 = vadd.f32 %v102, %v990
    %992 = vmatmul.bf16.gmra.mxu0 %v933
    %v993 = vpop.f32.mrf.mxu0
    %v994 = vadd.f32 %v103, %v993
    %v995 = vpop.f32.mrf.mxu0
    %v996 = vadd.f32 %v104, %v995
    %997 = vmatmul.bf16.gmra.mxu0 %v936
    %v998 = vpop.f32.mrf.mxu0
    %v999 = vadd.f32 %v105, %v998
    %v1000 = vpop.f32.mrf.mxu0
    %v1001 = vadd.f32 %v106, %v1000
    %1002 = vmatmul.bf16.gmra.mxu0 %v939
    %v1003 = vpop.f32.mrf.mxu0
    %v1004 = vadd.f32 %v107, %v1003
    %v1005 = vpop.f32.mrf.mxu0
    %v1006 = vadd.f32 %v108, %v1005
    %1007 = vmatmul.bf16.gmra.mxu0 %v942
    %v1008 = vpop.f32.mrf.mxu0
    %v1009 = vadd.f32 %v109, %v1008
    %v1010 = vpop.f32.mrf.mxu0
    %v1011 = vadd.f32 %v110, %v1010
    %1012 = vmatmul.bf16.gmra.mxu0 %v945
    %v1013 = vpop.f32.mrf.mxu0
    %v1014 = vadd.f32 %v111, %v1013
    %v1015 = vpop.f32.mrf.mxu0
    %v1016 = vadd.f32 %v112, %v1015
    %1017 = vmatmul.bf16.gmra.mxu0 %v948
    %v1018 = vpop.f32.mrf.mxu0
    %v1019 = vadd.f32 %v113, %v1018
    %v1020 = vpop.f32.mrf.mxu0
    %v1021 = vadd.f32 %v114, %v1020
    %1022 = vdwg.mxu0
    %1023 = vmax.xlane.f32.xlu0 %v984
    %v1024 = vpop.xlane.xlu0 %1023
    %1025 = vmax.xlane.f32.xlu0 %v986
    %v1026 = vpop.xlane.xlu0 %1025
    %1027 = vmax.xlane.f32.xlu0 %v989
    %v1028 = vpop.xlane.xlu0 %1027
    %1029 = vmax.xlane.f32.xlu0 %v991
    %v1030 = vpop.xlane.xlu0 %1029
    %1031 = vmax.xlane.f32.xlu0 %v994
    %v1032 = vpop.xlane.xlu0 %1031
    %1033 = vmax.xlane.f32.xlu0 %v996
    %v1034 = vpop.xlane.xlu0 %1033
    %1035 = vmax.xlane.f32.xlu0 %v999
    %v1036 = vpop.xlane.xlu0 %1035
    %1037 = vmax.xlane.f32.xlu0 %v1001
    %v1038 = vpop.xlane.xlu0 %1037
    %1039 = vmax.xlane.f32.xlu0 %v1004
    %v1040 = vpop.xlane.xlu0 %1039
    %1041 = vmax.xlane.f32.xlu0 %v1006
    %v1042 = vpop.xlane.xlu0 %1041
    %1043 = vmax.xlane.f32.xlu0 %v1009
    %v1044 = vpop.xlane.xlu0 %1043
    %1045 = vmax.xlane.f32.xlu0 %v1011
    %v1046 = vpop.xlane.xlu0 %1045
    %1047 = vmax.xlane.f32.xlu0 %v1014
    %v1048 = vpop.xlane.xlu0 %1047
    %1049 = vmax.xlane.f32.xlu0 %v1016
    %v1050 = vpop.xlane.xlu0 %1049
    %1051 = vmax.xlane.f32.xlu0 %v1019
    %v1052 = vpop.xlane.xlu0 %1051
    %1053 = vmax.xlane.f32.xlu0 %v1021
    %v1054 = vpop.xlane.xlu0 %1053
    %v1055 = vsub.f32 %v984, %v1024
    %v1056 = vsub.f32 %v986, %v1026
    %v1057 = vsub.f32 %v989, %v1028
    %v1058 = vsub.f32 %v991, %v1030
    %v1059 = vsub.f32 %v994, %v1032
    %v1060 = vsub.f32 %v996, %v1034
    %v1061 = vsub.f32 %v999, %v1036
    %v1062 = vsub.f32 %v1001, %v1038
    %v1063 = vsub.f32 %v1004, %v1040
    %v1064 = vsub.f32 %v1006, %v1042
    %v1065 = vsub.f32 %v1009, %v1044
    %v1066 = vsub.f32 %v1011, %v1046
    %v1067 = vsub.f32 %v1014, %v1048
    %v1068 = vsub.f32 %v1016, %v1050
    %v1069 = vsub.f32 %v1019, %v1052
    %v1070 = vsub.f32 %v1021, %v1054
    %v1071 = vmul.f32 %v1055, 1.442695
    %v1072 = vpow.pop %v1071
    %v1073 = vmul.f32 %v1056, 1.442695
    %v1074 = vpow.pop %v1073
    %v1075 = vmul.f32 %v1057, 1.442695
    %v1076 = vpow.pop %v1075
    %v1077 = vmul.f32 %v1058, 1.442695
    %v1078 = vpow.pop %v1077
    %v1079 = vmul.f32 %v1059, 1.442695
    %v1080 = vpow.pop %v1079
    %v1081 = vmul.f32 %v1060, 1.442695
    %v1082 = vpow.pop %v1081
    %v1083 = vmul.f32 %v1061, 1.442695
    %v1084 = vpow.pop %v1083
    %v1085 = vmul.f32 %v1062, 1.442695
    %v1086 = vpow.pop %v1085
    %v1087 = vmul.f32 %v1063, 1.442695
    %v1088 = vpow.pop %v1087
    %v1089 = vmul.f32 %v1064, 1.442695
    %v1090 = vpow.pop %v1089
    %v1091 = vmul.f32 %v1065, 1.442695
    %v1092 = vpow.pop %v1091
    %v1093 = vmul.f32 %v1066, 1.442695
    %v1094 = vpow.pop %v1093
    %v1095 = vmul.f32 %v1067, 1.442695
    %v1096 = vpow.pop %v1095
    %v1097 = vmul.f32 %v1068, 1.442695
    %v1098 = vpow.pop %v1097
    %v1099 = vmul.f32 %v1069, 1.442695
    %v1100 = vpow.pop %v1099
    %v1101 = vmul.f32 %v1070, 1.442695
    %v1102 = vpow.pop %v1101
    %1103 = vadd.xlane.f32.xlu0 %v1072
    %v1104 = vpop.xlane.xlu0 %1103
    %1105 = vadd.xlane.f32.xlu0 %v1074
    %v1106 = vpop.xlane.xlu0 %1105
    %1107 = vadd.xlane.f32.xlu0 %v1076
    %v1108 = vpop.xlane.xlu0 %1107
    %1109 = vadd.xlane.f32.xlu0 %v1078
    %v1110 = vpop.xlane.xlu0 %1109
    %1111 = vadd.xlane.f32.xlu0 %v1080
    %v1112 = vpop.xlane.xlu0 %1111
    %1113 = vadd.xlane.f32.xlu0 %v1082
    %v1114 = vpop.xlane.xlu0 %1113
    %1115 = vadd.xlane.f32.xlu0 %v1084
    %v1116 = vpop.xlane.xlu0 %1115
    %1117 = vadd.xlane.f32.xlu0 %v1086
    %v1118 = vpop.xlane.xlu0 %1117
    %1119 = vadd.xlane.f32.xlu0 %v1088
    %v1120 = vpop.xlane.xlu0 %1119
    %1121 = vadd.xlane.f32.xlu0 %v1090
    %v1122 = vpop.xlane.xlu0 %1121
    %1123 = vadd.xlane.f32.xlu0 %v1092
    %v1124 = vpop.xlane.xlu0 %1123
    %1125 = vadd.xlane.f32.xlu0 %v1094
    %v1126 = vpop.xlane.xlu0 %1125
    %1127 = vadd.xlane.f32.xlu0 %v1096
    %v1128 = vpop.xlane.xlu0 %1127
    %1129 = vadd.xlane.f32.xlu0 %v1098
    %v1130 = vpop.xlane.xlu0 %1129
    %1131 = vadd.xlane.f32.xlu0 %v1100
    %v1132 = vpop.xlane.xlu0 %1131
    %1133 = vadd.xlane.f32.xlu0 %v1102
    %v1134 = vpop.xlane.xlu0 %1133
    %v1135 = vrcp.pop %v1104
    %v1136 = vrcp.pop %v1106
    %v1137 = vrcp.pop %v1108
    %v1138 = vrcp.pop %v1110
    %v1139 = vrcp.pop %v1112
    %v1140 = vrcp.pop %v1114
    %v1141 = vrcp.pop %v1116
    %v1142 = vrcp.pop %v1118
    %v1143 = vrcp.pop %v1120
    %v1144 = vrcp.pop %v1122
    %v1145 = vrcp.pop %v1124
    %v1146 = vrcp.pop %v1126
    %v1147 = vrcp.pop %v1128
    %v1148 = vrcp.pop %v1130
    %v1149 = vrcp.pop %v1132
    %v1150 = vrcp.pop %v1134
    %v1151 = vmul.f32 %v1072, %v1135
    %v1152 = vmul.f32 %v1074, %v1136
    %v1153 = vmul.f32 %v1076, %v1137
    %v1154 = vmul.f32 %v1078, %v1138
    %v1155 = vmul.f32 %v1080, %v1139
    %v1156 = vmul.f32 %v1082, %v1140
    %v1157 = vmul.f32 %v1084, %v1141
    %v1158 = vmul.f32 %v1086, %v1142
    %v1159 = vmul.f32 %v1088, %v1143
    %v1160 = vmul.f32 %v1090, %v1144
    %v1161 = vmul.f32 %v1092, %v1145
    %v1162 = vmul.f32 %v1094, %v1146
    %v1163 = vmul.f32 %v1096, %v1147
    %v1164 = vmul.f32 %v1098, %v1148
    %v1165 = vmul.f32 %v1100, %v1149
    %v1166 = vmul.f32 %v1102, %v1150
    %v1167 = vpack.c.bf16 %v1152, %v1151
    %v1168 = vpack.c.bf16 %v1154, %v1153
    %v1169 = vpack.c.bf16 %v1156, %v1155
    %v1170 = vpack.c.bf16 %v1158, %v1157
    %v1171 = vpack.c.bf16 %v1160, %v1159
    %v1172 = vpack.c.bf16 %v1162, %v1161
    %v1173 = vpack.c.bf16 %v1164, %v1163
    %v1174 = vpack.c.bf16 %v1166, %v1165
    %v1191 = vunpack.c.l.b16 %v830
    %v1192 = vunpack.c.l.b16 %v832
    %v1193 = vunpack.c.l.b16 %v834
    %v1194 = vunpack.c.l.b16 %v836
    %v1195 = vunpack.c.l.b16 %v838
    %v1196 = vunpack.c.l.b16 %v840
    %v1197 = vunpack.c.l.b16 %v842
    %v1198 = vunpack.c.l.b16 %v844
    %v1199 = vunpack.c.l.b16 %v846
    %v1200 = vunpack.c.l.b16 %v848
    %v1201 = vunpack.c.l.b16 %v850
    %v1202 = vunpack.c.l.b16 %v852
    %v1203 = vunpack.c.l.b16 %v854
    %v1204 = vunpack.c.l.b16 %v856
    %v1205 = vunpack.c.l.b16 %v858
    %v1206 = vunpack.c.l.b16 %v860
    %v1207 = vpack.c.b16 %v1192, %v1191
    %v1208 = vpack.c.b16 %v1194, %v1193
    %v1209 = vpack.c.b16 %v1196, %v1195
    %v1210 = vpack.c.b16 %v1198, %v1197
    %v1211 = vpack.c.b16 %v1200, %v1199
    %v1212 = vpack.c.b16 %v1202, %v1201
    %v1213 = vpack.c.b16 %v1204, %v1203
    %v1214 = vpack.c.b16 %v1206, %v1205
    %1223 = vmatpush.bf16.msra.mxu0 %v1214
    %1224 = vmatpush.bf16.msra.mxu0 %v1213
    %1225 = vmatpush.bf16.msra.mxu0 %v1212
    %1226 = vmatpush.bf16.msra.mxu0 %v1211
    %1227 = vmatpush.bf16.msra.mxu0 %v1210
    %1228 = vmatpush.bf16.msra.mxu0 %v1209
    %1229 = vmatpush.bf16.msra.mxu0 %v1208
    %1230 = vmatpush.bf16.msra.mxu0 %v1207
    %1231 = vmatmul.bf16.gmra.mxu0 %v1167
    %v1232 = vpop.f32.mrf.mxu0
    %v1233 = vadd.f32 0.0, %v1232
    %v1234 = vpop.f32.mrf.mxu0
    %v1235 = vadd.f32 0.0, %v1234
    %1236 = vmatmul.bf16.gmra.mxu0 %v1168
    %v1237 = vpop.f32.mrf.mxu0
    %v1238 = vadd.f32 0.0, %v1237
    %v1239 = vpop.f32.mrf.mxu0
    %v1240 = vadd.f32 0.0, %v1239
    %1241 = vmatmul.bf16.gmra.mxu0 %v1169
    %v1242 = vpop.f32.mrf.mxu0
    %v1243 = vadd.f32 0.0, %v1242
    %v1244 = vpop.f32.mrf.mxu0
    %v1245 = vadd.f32 0.0, %v1244
    %1246 = vmatmul.bf16.gmra.mxu0 %v1170
    %v1247 = vpop.f32.mrf.mxu0
    %v1248 = vadd.f32 0.0, %v1247
    %v1249 = vpop.f32.mrf.mxu0
    %v1250 = vadd.f32 0.0, %v1249
    %1251 = vmatmul.bf16.gmra.mxu0 %v1171
    %v1252 = vpop.f32.mrf.mxu0
    %v1253 = vadd.f32 0.0, %v1252
    %v1254 = vpop.f32.mrf.mxu0
    %v1255 = vadd.f32 0.0, %v1254
    %1256 = vmatmul.bf16.gmra.mxu0 %v1172
    %v1257 = vpop.f32.mrf.mxu0
    %v1258 = vadd.f32 0.0, %v1257
    %v1259 = vpop.f32.mrf.mxu0
    %v1260 = vadd.f32 0.0, %v1259
    %1261 = vmatmul.bf16.gmra.mxu0 %v1173
    %v1262 = vpop.f32.mrf.mxu0
    %v1263 = vadd.f32 0.0, %v1262
    %v1264 = vpop.f32.mrf.mxu0
    %v1265 = vadd.f32 0.0, %v1264
    %1266 = vmatmul.bf16.gmra.mxu0 %v1174
    %v1267 = vpop.f32.mrf.mxu0
    %v1268 = vadd.f32 0.0, %v1267
    %v1269 = vpop.f32.mrf.mxu0
    %v1270 = vadd.f32 0.0, %v1269
    %1271 = vdwg.mxu0
    %v1272 = vpack.c.bf16 %v1233, %v1233
    %v1273 = vpack.c.bf16 %v1235, %v1235
    %v1274 = vpack.c.bf16 %v1238, %v1238
    %v1275 = vpack.c.bf16 %v1240, %v1240
    %v1276 = vpack.c.bf16 %v1243, %v1243
    %v1277 = vpack.c.bf16 %v1245, %v1245
    %v1278 = vpack.c.bf16 %v1248, %v1248
    %v1279 = vpack.c.bf16 %v1250, %v1250
    %v1280 = vpack.c.bf16 %v1253, %v1253
    %v1281 = vpack.c.bf16 %v1255, %v1255
    %v1282 = vpack.c.bf16 %v1258, %v1258
    %v1283 = vpack.c.bf16 %v1260, %v1260
    %v1284 = vpack.c.bf16 %v1263, %v1263
    %v1285 = vpack.c.bf16 %v1265, %v1265
    %v1286 = vpack.c.bf16 %v1268, %v1268
    %v1287 = vpack.c.bf16 %v1270, %v1270
    %vm1288 = vcmask 257024
    %1289 = vst.msk [vmem:[#allocation2] sm:$0xf] %vm1288, %v1272
    %1290 = vst.msk [vmem:[#allocation2 + $0x4] sm:$0xf] %vm1288, %v1273
    %1291 = vst.msk [vmem:[#allocation2 + $0x8] sm:$0xf] %vm1288, %v1274
    %1292 = vst.msk [vmem:[#allocation2 + $0xc] sm:$0xf] %vm1288, %v1275
    %1293 = vst.msk [vmem:[#allocation2 + $0x10] sm:$0xf] %vm1288, %v1276
    %1294 = vst.msk [vmem:[#allocation2 + $0x14] sm:$0xf] %vm1288, %v1277
    %1295 = vst.msk [vmem:[#allocation2 + $0x18] sm:$0xf] %vm1288, %v1278
    %1296 = vst.msk [vmem:[#allocation2 + $0x1c] sm:$0xf] %vm1288, %v1279
    %1297 = vst.msk [vmem:[#allocation2 + $0x20] sm:$0xf] %vm1288, %v1280
    %1298 = vst.msk [vmem:[#allocation2 + $0x24] sm:$0xf] %vm1288, %v1281
    %1299 = vst.msk [vmem:[#allocation2 + $0x28] sm:$0xf] %vm1288, %v1282
    %1300 = vst.msk [vmem:[#allocation2 + $0x2c] sm:$0xf] %vm1288, %v1283
    %1301 = vst.msk [vmem:[#allocation2 + $0x30] sm:$0xf] %vm1288, %v1284
    %1302 = vst.msk [vmem:[#allocation2 + $0x34] sm:$0xf] %vm1288, %v1285
    %1303 = vst.msk [vmem:[#allocation2 + $0x38] sm:$0xf] %vm1288, %v1286
    %1304 = vst.msk [vmem:[#allocation2 + $0x3c] sm:$0xf] %vm1288, %v1287
    %1305 = vrot.lane.b32.xlu0 %v893, 96
    %v1306 = vpop.permute.xlu0 %1305
    %1307 = vrot.lane.b32.xlu0 %v894, 96
    %v1308 = vpop.permute.xlu0 %1307
    %1309 = vrot.lane.b32.xlu0 %v895, 96
    %v1310 = vpop.permute.xlu0 %1309
    %1311 = vrot.lane.b32.xlu0 %v896, 96
    %v1312 = vpop.permute.xlu0 %1311
    %1313 = vrot.lane.b32.xlu0 %v897, 96
    %v1314 = vpop.permute.xlu0 %1313
    %1315 = vrot.lane.b32.xlu0 %v898, 96
    %v1316 = vpop.permute.xlu0 %1315
    %1317 = vrot.lane.b32.xlu0 %v899, 96
    %v1318 = vpop.permute.xlu0 %1317
    %1319 = vrot.lane.b32.xlu0 %v900, 96
    %v1320 = vpop.permute.xlu0 %1319
    %1321 = vrot.lane.b32.xlu0 %v917, 96
    %v1322 = vpop.permute.xlu0 %1321
    %1323 = vrot.lane.b32.xlu0 %v918, 96
    %v1324 = vpop.permute.xlu0 %1323
    %1325 = vrot.lane.b32.xlu0 %v919, 96
    %v1326 = vpop.permute.xlu0 %1325
    %1327 = vrot.lane.b32.xlu0 %v920, 96
    %v1328 = vpop.permute.xlu0 %1327
    %1329 = vrot.lane.b32.xlu0 %v921, 96
    %v1330 = vpop.permute.xlu0 %1329
    %1331 = vrot.lane.b32.xlu0 %v922, 96
    %v1332 = vpop.permute.xlu0 %1331
    %1333 = vrot.lane.b32.xlu0 %v923, 96
    %v1334 = vpop.permute.xlu0 %1333
    %1335 = vrot.lane.b32.xlu0 %v924, 96
    %v1336 = vpop.permute.xlu0 %1335
    %v1338 = vsel %vm925, %v1306, 0
    %v1341 = vsel %vm925, %v1308, 0
    %v1344 = vsel %vm925, %v1310, 0
    %v1347 = vsel %vm925, %v1312, 0
    %v1350 = vsel %vm925, %v1314, 0
    %v1353 = vsel %vm925, %v1316, 0
    %v1356 = vsel %vm925, %v1318, 0
    %v1359 = vsel %vm925, %v1320, 0
    %v1362 = vsel %vm925, %v1322, 0
    %v1365 = vsel %vm925, %v1324, 0
    %v1368 = vsel %vm925, %v1326, 0
    %v1371 = vsel %vm925, %v1328, 0
    %v1374 = vsel %vm925, %v1330, 0
    %v1377 = vsel %vm925, %v1332, 0
    %v1380 = vsel %vm925, %v1334, 0
    %v1383 = vsel %vm925, %v1336, 0
    %1385 = vmatpush.bf16.xpose.msra.mxu0 %v1383
    %1386 = vmatpush.bf16.xpose.msra.mxu0 %v1380
    %1387 = vmatpush.bf16.xpose.msra.mxu0 %v1377
    %1388 = vmatpush.bf16.xpose.msra.mxu0 %v1374
    %1389 = vmatpush.bf16.xpose.msra.mxu0 %v1371
    %1390 = vmatpush.bf16.xpose.msra.mxu0 %v1368
    %1391 = vmatpush.bf16.xpose.msra.mxu0 %v1365
    %1392 = vmatpush.bf16.xpose.msra.mxu0 %v1362
    %1393 = vmatmul.bf16.gmra.mxu0 %v1338
    %v1394 = vpop.f32.mrf.mxu0
    %v1395 = vadd.f32 %v99, %v1394
    %v1396 = vpop.f32.mrf.mxu0
    %v1397 = vadd.f32 %v100, %v1396
    %1398 = vmatmul.bf16.gmra.mxu0 %v1341
    %v1399 = vpop.f32.mrf.mxu0
    %v1400 = vadd.f32 %v101, %v1399
    %v1401 = vpop.f32.mrf.mxu0
    %v1402 = vadd.f32 %v102, %v1401
    %1403 = vmatmul.bf16.gmra.mxu0 %v1344
    %v1404 = vpop.f32.mrf.mxu0
    %v1405 = vadd.f32 %v103, %v1404
    %v1406 = vpop.f32.mrf.mxu0
    %v1407 = vadd.f32 %v104, %v1406
    %1408 = vmatmul.bf16.gmra.mxu0 %v1347
    %v1409 = vpop.f32.mrf.mxu0
    %v1410 = vadd.f32 %v105, %v1409
    %v1411 = vpop.f32.mrf.mxu0
    %v1412 = vadd.f32 %v106, %v1411
    %1413 = vmatmul.bf16.gmra.mxu0 %v1350
    %v1414 = vpop.f32.mrf.mxu0
    %v1415 = vadd.f32 %v107, %v1414
    %v1416 = vpop.f32.mrf.mxu0
    %v1417 = vadd.f32 %v108, %v1416
    %1418 = vmatmul.bf16.gmra.mxu0 %v1353
    %v1419 = vpop.f32.mrf.mxu0
    %v1420 = vadd.f32 %v109, %v1419
    %v1421 = vpop.f32.mrf.mxu0
    %v1422 = vadd.f32 %v110, %v1421
    %1423 = vmatmul.bf16.gmra.mxu0 %v1356
    %v1424 = vpop.f32.mrf.mxu0
    %v1425 = vadd.f32 %v111, %v1424
    %v1426 = vpop.f32.mrf.mxu0
    %v1427 = vadd.f32 %v112, %v1426
    %1428 = vmatmul.bf16.gmra.mxu0 %v1359
    %v1429 = vpop.f32.mrf.mxu0
    %v1430 = vadd.f32 %v113, %v1429
    %v1431 = vpop.f32.mrf.mxu0
    %v1432 = vadd.f32 %v114, %v1431
    %1433 = vdwg.mxu0
    %1434 = vmax.xlane.f32.xlu0 %v1395
    %v1435 = vpop.xlane.xlu0 %1434
    %1436 = vmax.xlane.f32.xlu0 %v1397
    %v1437 = vpop.xlane.xlu0 %1436
    %1438 = vmax.xlane.f32.xlu0 %v1400
    %v1439 = vpop.xlane.xlu0 %1438
    %1440 = vmax.xlane.f32.xlu0 %v1402
    %v1441 = vpop.xlane.xlu0 %1440
    %1442 = vmax.xlane.f32.xlu0 %v1405
    %v1443 = vpop.xlane.xlu0 %1442
    %1444 = vmax.xlane.f32.xlu0 %v1407
    %v1445 = vpop.xlane.xlu0 %1444
    %1446 = vmax.xlane.f32.xlu0 %v1410
    %v1447 = vpop.xlane.xlu0 %1446
    %1448 = vmax.xlane.f32.xlu0 %v1412
    %v1449 = vpop.xlane.xlu0 %1448
    %1450 = vmax.xlane.f32.xlu0 %v1415
    %v1451 = vpop.xlane.xlu0 %1450
    %1452 = vmax.xlane.f32.xlu0 %v1417
    %v1453 = vpop.xlane.xlu0 %1452
    %1454 = vmax.xlane.f32.xlu0 %v1420
    %v1455 = vpop.xlane.xlu0 %1454
    %1456 = vmax.xlane.f32.xlu0 %v1422
    %v1457 = vpop.xlane.xlu0 %1456
    %1458 = vmax.xlane.f32.xlu0 %v1425
    %v1459 = vpop.xlane.xlu0 %1458
    %1460 = vmax.xlane.f32.xlu0 %v1427
    %v1461 = vpop.xlane.xlu0 %1460
    %1462 = vmax.xlane.f32.xlu0 %v1430
    %v1463 = vpop.xlane.xlu0 %1462
    %1464 = vmax.xlane.f32.xlu0 %v1432
    %v1465 = vpop.xlane.xlu0 %1464
    %v1466 = vsub.f32 %v1395, %v1435
    %v1467 = vsub.f32 %v1397, %v1437
    %v1468 = vsub.f32 %v1400, %v1439
    %v1469 = vsub.f32 %v1402, %v1441
    %v1470 = vsub.f32 %v1405, %v1443
    %v1471 = vsub.f32 %v1407, %v1445
    %v1472 = vsub.f32 %v1410, %v1447
    %v1473 = vsub.f32 %v1412, %v1449
    %v1474 = vsub.f32 %v1415, %v1451
    %v1475 = vsub.f32 %v1417, %v1453
    %v1476 = vsub.f32 %v1420, %v1455
    %v1477 = vsub.f32 %v1422, %v1457
    %v1478 = vsub.f32 %v1425, %v1459
    %v1479 = vsub.f32 %v1427, %v1461
    %v1480 = vsub.f32 %v1430, %v1463
    %v1481 = vsub.f32 %v1432, %v1465
    %v1482 = vmul.f32 %v1466, 1.442695
    %v1483 = vpow.pop %v1482
    %v1484 = vmul.f32 %v1467, 1.442695
    %v1485 = vpow.pop %v1484
    %v1486 = vmul.f32 %v1468, 1.442695
    %v1487 = vpow.pop %v1486
    %v1488 = vmul.f32 %v1469, 1.442695
    %v1489 = vpow.pop %v1488
    %v1490 = vmul.f32 %v1470, 1.442695
    %v1491 = vpow.pop %v1490
    %v1492 = vmul.f32 %v1471, 1.442695
    %v1493 = vpow.pop %v1492
    %v1494 = vmul.f32 %v1472, 1.442695
    %v1495 = vpow.pop %v1494
    %v1496 = vmul.f32 %v1473, 1.442695
    %v1497 = vpow.pop %v1496
    %v1498 = vmul.f32 %v1474, 1.442695
    %v1499 = vpow.pop %v1498
    %v1500 = vmul.f32 %v1475, 1.442695
    %v1501 = vpow.pop %v1500
    %v1502 = vmul.f32 %v1476, 1.442695
    %v1503 = vpow.pop %v1502
    %v1504 = vmul.f32 %v1477, 1.442695
    %v1505 = vpow.pop %v1504
    %v1506 = vmul.f32 %v1478, 1.442695
    %v1507 = vpow.pop %v1506
    %v1508 = vmul.f32 %v1479, 1.442695
    %v1509 = vpow.pop %v1508
    %v1510 = vmul.f32 %v1480, 1.442695
    %v1511 = vpow.pop %v1510
    %v1512 = vmul.f32 %v1481, 1.442695
    %v1513 = vpow.pop %v1512
    %1514 = vadd.xlane.f32.xlu0 %v1483
    %v1515 = vpop.xlane.xlu0 %1514
    %1516 = vadd.xlane.f32.xlu0 %v1485
    %v1517 = vpop.xlane.xlu0 %1516
    %1518 = vadd.xlane.f32.xlu0 %v1487
    %v1519 = vpop.xlane.xlu0 %1518
    %1520 = vadd.xlane.f32.xlu0 %v1489
    %v1521 = vpop.xlane.xlu0 %1520
    %1522 = vadd.xlane.f32.xlu0 %v1491
    %v1523 = vpop.xlane.xlu0 %1522
    %1524 = vadd.xlane.f32.xlu0 %v1493
    %v1525 = vpop.xlane.xlu0 %1524
    %1526 = vadd.xlane.f32.xlu0 %v1495
    %v1527 = vpop.xlane.xlu0 %1526
    %1528 = vadd.xlane.f32.xlu0 %v1497
    %v1529 = vpop.xlane.xlu0 %1528
    %1530 = vadd.xlane.f32.xlu0 %v1499
    %v1531 = vpop.xlane.xlu0 %1530
    %1532 = vadd.xlane.f32.xlu0 %v1501
    %v1533 = vpop.xlane.xlu0 %1532
    %1534 = vadd.xlane.f32.xlu0 %v1503
    %v1535 = vpop.xlane.xlu0 %1534
    %1536 = vadd.xlane.f32.xlu0 %v1505
    %v1537 = vpop.xlane.xlu0 %1536
    %1538 = vadd.xlane.f32.xlu0 %v1507
    %v1539 = vpop.xlane.xlu0 %1538
    %1540 = vadd.xlane.f32.xlu0 %v1509
    %v1541 = vpop.xlane.xlu0 %1540
    %1542 = vadd.xlane.f32.xlu0 %v1511
    %v1543 = vpop.xlane.xlu0 %1542
    %1544 = vadd.xlane.f32.xlu0 %v1513
    %v1545 = vpop.xlane.xlu0 %1544
    %v1546 = vrcp.pop %v1515
    %v1547 = vrcp.pop %v1517
    %v1548 = vrcp.pop %v1519
    %v1549 = vrcp.pop %v1521
    %v1550 = vrcp.pop %v1523
    %v1551 = vrcp.pop %v1525
    %v1552 = vrcp.pop %v1527
    %v1553 = vrcp.pop %v1529
    %v1554 = vrcp.pop %v1531
    %v1555 = vrcp.pop %v1533
    %v1556 = vrcp.pop %v1535
    %v1557 = vrcp.pop %v1537
    %v1558 = vrcp.pop %v1539
    %v1559 = vrcp.pop %v1541
    %v1560 = vrcp.pop %v1543
    %v1561 = vrcp.pop %v1545
    %v1562 = vmul.f32 %v1483, %v1546
    %v1563 = vmul.f32 %v1485, %v1547
    %v1564 = vmul.f32 %v1487, %v1548
    %v1565 = vmul.f32 %v1489, %v1549
    %v1566 = vmul.f32 %v1491, %v1550
    %v1567 = vmul.f32 %v1493, %v1551
    %v1568 = vmul.f32 %v1495, %v1552
    %v1569 = vmul.f32 %v1497, %v1553
    %v1570 = vmul.f32 %v1499, %v1554
    %v1571 = vmul.f32 %v1501, %v1555
    %v1572 = vmul.f32 %v1503, %v1556
    %v1573 = vmul.f32 %v1505, %v1557
    %v1574 = vmul.f32 %v1507, %v1558
    %v1575 = vmul.f32 %v1509, %v1559
    %v1576 = vmul.f32 %v1511, %v1560
    %v1577 = vmul.f32 %v1513, %v1561
    %v1578 = vpack.c.bf16 %v1563, %v1562
    %v1579 = vpack.c.bf16 %v1565, %v1564
    %v1580 = vpack.c.bf16 %v1567, %v1566
    %v1581 = vpack.c.bf16 %v1569, %v1568
    %v1582 = vpack.c.bf16 %v1571, %v1570
    %v1583 = vpack.c.bf16 %v1573, %v1572
    %v1584 = vpack.c.bf16 %v1575, %v1574
    %v1585 = vpack.c.bf16 %v1577, %v1576
    %1586 = vrot.lane.b32.xlu0 %v1207, 96
    %v1587 = vpop.permute.xlu0 %1586
    %1588 = vrot.lane.b32.xlu0 %v1208, 96
    %v1589 = vpop.permute.xlu0 %1588
    %1590 = vrot.lane.b32.xlu0 %v1209, 96
    %v1591 = vpop.permute.xlu0 %1590
    %1592 = vrot.lane.b32.xlu0 %v1210, 96
    %v1593 = vpop.permute.xlu0 %1592
    %1594 = vrot.lane.b32.xlu0 %v1211, 96
    %v1595 = vpop.permute.xlu0 %1594
    %1596 = vrot.lane.b32.xlu0 %v1212, 96
    %v1597 = vpop.permute.xlu0 %1596
    %1598 = vrot.lane.b32.xlu0 %v1213, 96
    %v1599 = vpop.permute.xlu0 %1598
    %1600 = vrot.lane.b32.xlu0 %v1214, 96
    %v1601 = vpop.permute.xlu0 %1600
    %1610 = vmatpush.bf16.msra.mxu0 %v1601
    %1611 = vmatpush.bf16.msra.mxu0 %v1599
    %1612 = vmatpush.bf16.msra.mxu0 %v1597
    %1613 = vmatpush.bf16.msra.mxu0 %v1595
    %1614 = vmatpush.bf16.msra.mxu0 %v1593
    %1615 = vmatpush.bf16.msra.mxu0 %v1591
    %1616 = vmatpush.bf16.msra.mxu0 %v1589
    %1617 = vmatpush.bf16.msra.mxu0 %v1587
    %1618 = vmatmul.bf16.gmra.mxu0 %v1578
    %v1619 = vpop.f32.mrf.mxu0
    %v1620 = vadd.f32 0.0, %v1619
    %v1621 = vpop.f32.mrf.mxu0
    %v1622 = vadd.f32 0.0, %v1621
    %1623 = vmatmul.bf16.gmra.mxu0 %v1579
    %v1624 = vpop.f32.mrf.mxu0
    %v1625 = vadd.f32 0.0, %v1624
    %v1626 = vpop.f32.mrf.mxu0
    %v1627 = vadd.f32 0.0, %v1626
    %1628 = vmatmul.bf16.gmra.mxu0 %v1580
    %v1629 = vpop.f32.mrf.mxu0
    %v1630 = vadd.f32 0.0, %v1629
    %v1631 = vpop.f32.mrf.mxu0
    %v1632 = vadd.f32 0.0, %v1631
    %1633 = vmatmul.bf16.gmra.mxu0 %v1581
    %v1634 = vpop.f32.mrf.mxu0
    %v1635 = vadd.f32 0.0, %v1634
    %v1636 = vpop.f32.mrf.mxu0
    %v1637 = vadd.f32 0.0, %v1636
    %1638 = vmatmul.bf16.gmra.mxu0 %v1582
    %v1639 = vpop.f32.mrf.mxu0
    %v1640 = vadd.f32 0.0, %v1639
    %v1641 = vpop.f32.mrf.mxu0
    %v1642 = vadd.f32 0.0, %v1641
    %1643 = vmatmul.bf16.gmra.mxu0 %v1583
    %v1644 = vpop.f32.mrf.mxu0
    %v1645 = vadd.f32 0.0, %v1644
    %v1646 = vpop.f32.mrf.mxu0
    %v1647 = vadd.f32 0.0, %v1646
    %1648 = vmatmul.bf16.gmra.mxu0 %v1584
    %v1649 = vpop.f32.mrf.mxu0
    %v1650 = vadd.f32 0.0, %v1649
    %v1651 = vpop.f32.mrf.mxu0
    %v1652 = vadd.f32 0.0, %v1651
    %1653 = vmatmul.bf16.gmra.mxu0 %v1585
    %v1654 = vpop.f32.mrf.mxu0
    %v1655 = vadd.f32 0.0, %v1654
    %v1656 = vpop.f32.mrf.mxu0
    %v1657 = vadd.f32 0.0, %v1656
    %1658 = vdwg.mxu0
    %v1659 = vpack.c.bf16 %v1620, %v1620
    %v1660 = vpack.c.bf16 %v1622, %v1622
    %v1661 = vpack.c.bf16 %v1625, %v1625
    %v1662 = vpack.c.bf16 %v1627, %v1627
    %v1663 = vpack.c.bf16 %v1630, %v1630
    %v1664 = vpack.c.bf16 %v1632, %v1632
    %v1665 = vpack.c.bf16 %v1635, %v1635
    %v1666 = vpack.c.bf16 %v1637, %v1637
    %v1667 = vpack.c.bf16 %v1640, %v1640
    %v1668 = vpack.c.bf16 %v1642, %v1642
    %v1669 = vpack.c.bf16 %v1645, %v1645
    %v1670 = vpack.c.bf16 %v1647, %v1647
    %v1671 = vpack.c.bf16 %v1650, %v1650
    %v1672 = vpack.c.bf16 %v1652, %v1652
    %v1673 = vpack.c.bf16 %v1655, %v1655
    %v1674 = vpack.c.bf16 %v1657, %v1657
    %1691 = vrot.lane.b32.xlu0 %v1659, 32
    %v1692 = vpop.permute.xlu0 %1691
    %1693 = vrot.lane.b32.xlu0 %v1660, 32
    %v1694 = vpop.permute.xlu0 %1693
    %1695 = vrot.lane.b32.xlu0 %v1661, 32
    %v1696 = vpop.permute.xlu0 %1695
    %1697 = vrot.lane.b32.xlu0 %v1662, 32
    %v1698 = vpop.permute.xlu0 %1697
    %1699 = vrot.lane.b32.xlu0 %v1663, 32
    %v1700 = vpop.permute.xlu0 %1699
    %1701 = vrot.lane.b32.xlu0 %v1664, 32
    %v1702 = vpop.permute.xlu0 %1701
    %1703 = vrot.lane.b32.xlu0 %v1665, 32
    %v1704 = vpop.permute.xlu0 %1703
    %1705 = vrot.lane.b32.xlu0 %v1666, 32
    %v1706 = vpop.permute.xlu0 %1705
    %1707 = vrot.lane.b32.xlu0 %v1667, 32
    %v1708 = vpop.permute.xlu0 %1707
    %1709 = vrot.lane.b32.xlu0 %v1668, 32
    %v1710 = vpop.permute.xlu0 %1709
    %1711 = vrot.lane.b32.xlu0 %v1669, 32
    %v1712 = vpop.permute.xlu0 %1711
    %1713 = vrot.lane.b32.xlu0 %v1670, 32
    %v1714 = vpop.permute.xlu0 %1713
    %1715 = vrot.lane.b32.xlu0 %v1671, 32
    %v1716 = vpop.permute.xlu0 %1715
    %1717 = vrot.lane.b32.xlu0 %v1672, 32
    %v1718 = vpop.permute.xlu0 %1717
    %1719 = vrot.lane.b32.xlu0 %v1673, 32
    %v1720 = vpop.permute.xlu0 %1719
    %1721 = vrot.lane.b32.xlu0 %v1674, 32
    %v1722 = vpop.permute.xlu0 %1721
    %vm1739 = vcmask 519424
    %1740 = vst.msk [vmem:[#allocation2] sm:$0xf] %vm1739, %v1692
    %1741 = vst.msk [vmem:[#allocation2 + $0x4] sm:$0xf] %vm1739, %v1694
    %1742 = vst.msk [vmem:[#allocation2 + $0x8] sm:$0xf] %vm1739, %v1696
    %1743 = vst.msk [vmem:[#allocation2 + $0xc] sm:$0xf] %vm1739, %v1698
    %1744 = vst.msk [vmem:[#allocation2 + $0x10] sm:$0xf] %vm1739, %v1700
    %1745 = vst.msk [vmem:[#allocation2 + $0x14] sm:$0xf] %vm1739, %v1702
    %1746 = vst.msk [vmem:[#allocation2 + $0x18] sm:$0xf] %vm1739, %v1704
    %1747 = vst.msk [vmem:[#allocation2 + $0x1c] sm:$0xf] %vm1739, %v1706
    %1748 = vst.msk [vmem:[#allocation2 + $0x20] sm:$0xf] %vm1739, %v1708
    %1749 = vst.msk [vmem:[#allocation2 + $0x24] sm:$0xf] %vm1739, %v1710
    %1750 = vst.msk [vmem:[#allocation2 + $0x28] sm:$0xf] %vm1739, %v1712
    %1751 = vst.msk [vmem:[#allocation2 + $0x2c] sm:$0xf] %vm1739, %v1714
    %1752 = vst.msk [vmem:[#allocation2 + $0x30] sm:$0xf] %vm1739, %v1716
    %1753 = vst.msk [vmem:[#allocation2 + $0x34] sm:$0xf] %vm1739, %v1718
    %1754 = vst.msk [vmem:[#allocation2 + $0x38] sm:$0xf] %vm1739, %v1720
    %1755 = vst.msk [vmem:[#allocation2 + $0x3c] sm:$0xf] %vm1739, %v1722
    %1756 = vrot.lane.b32.xlu0 %v893, 64
    %v1757 = vpop.permute.xlu0 %1756
    %1758 = vrot.lane.b32.xlu0 %v894, 64
    %v1759 = vpop.permute.xlu0 %1758
    %1760 = vrot.lane.b32.xlu0 %v895, 64
    %v1761 = vpop.permute.xlu0 %1760
    %1762 = vrot.lane.b32.xlu0 %v896, 64
    %v1763 = vpop.permute.xlu0 %1762
    %1764 = vrot.lane.b32.xlu0 %v897, 64
    %v1765 = vpop.permute.xlu0 %1764
    %1766 = vrot.lane.b32.xlu0 %v898, 64
    %v1767 = vpop.permute.xlu0 %1766
    %1768 = vrot.lane.b32.xlu0 %v899, 64
    %v1769 = vpop.permute.xlu0 %1768
    %1770 = vrot.lane.b32.xlu0 %v900, 64
    %v1771 = vpop.permute.xlu0 %1770
    %1772 = vrot.lane.b32.xlu0 %v917, 64
    %v1773 = vpop.permute.xlu0 %1772
    %1774 = vrot.lane.b32.xlu0 %v918, 64
    %v1775 = vpop.permute.xlu0 %1774
    %1776 = vrot.lane.b32.xlu0 %v919, 64
    %v1777 = vpop.permute.xlu0 %1776
    %1778 = vrot.lane.b32.xlu0 %v920, 64
    %v1779 = vpop.permute.xlu0 %1778
    %1780 = vrot.lane.b32.xlu0 %v921, 64
    %v1781 = vpop.permute.xlu0 %1780
    %1782 = vrot.lane.b32.xlu0 %v922, 64
    %v1783 = vpop.permute.xlu0 %1782
    %1784 = vrot.lane.b32.xlu0 %v923, 64
    %v1785 = vpop.permute.xlu0 %1784
    %1786 = vrot.lane.b32.xlu0 %v924, 64
    %v1787 = vpop.permute.xlu0 %1786
    %v1789 = vsel %vm925, %v1757, 0
    %v1792 = vsel %vm925, %v1759, 0
    %v1795 = vsel %vm925, %v1761, 0
    %v1798 = vsel %vm925, %v1763, 0
    %v1801 = vsel %vm925, %v1765, 0
    %v1804 = vsel %vm925, %v1767, 0
    %v1807 = vsel %vm925, %v1769, 0
    %v1810 = vsel %vm925, %v1771, 0
    %v1813 = vsel %vm925, %v1773, 0
    %v1816 = vsel %vm925, %v1775, 0
    %v1819 = vsel %vm925, %v1777, 0
    %v1822 = vsel %vm925, %v1779, 0
    %v1825 = vsel %vm925, %v1781, 0
    %v1828 = vsel %vm925, %v1783, 0
    %v1831 = vsel %vm925, %v1785, 0
    %v1834 = vsel %vm925, %v1787, 0
    %1836 = vmatpush.bf16.xpose.msra.mxu0 %v1834
    %1837 = vmatpush.bf16.xpose.msra.mxu0 %v1831
    %1838 = vmatpush.bf16.xpose.msra.mxu0 %v1828
    %1839 = vmatpush.bf16.xpose.msra.mxu0 %v1825
    %1840 = vmatpush.bf16.xpose.msra.mxu0 %v1822
    %1841 = vmatpush.bf16.xpose.msra.mxu0 %v1819
    %1842 = vmatpush.bf16.xpose.msra.mxu0 %v1816
    %1843 = vmatpush.bf16.xpose.msra.mxu0 %v1813
    %1844 = vmatmul.bf16.gmra.mxu0 %v1789
    %v1845 = vpop.f32.mrf.mxu0
    %v1846 = vadd.f32 %v99, %v1845
    %v1847 = vpop.f32.mrf.mxu0
    %v1848 = vadd.f32 %v100, %v1847
    %1849 = vmatmul.bf16.gmra.mxu0 %v1792
    %v1850 = vpop.f32.mrf.mxu0
    %v1851 = vadd.f32 %v101, %v1850
    %v1852 = vpop.f32.mrf.mxu0
    %v1853 = vadd.f32 %v102, %v1852
    %1854 = vmatmul.bf16.gmra.mxu0 %v1795
    %v1855 = vpop.f32.mrf.mxu0
    %v1856 = vadd.f32 %v103, %v1855
    %v1857 = vpop.f32.mrf.mxu0
    %v1858 = vadd.f32 %v104, %v1857
    %1859 = vmatmul.bf16.gmra.mxu0 %v1798
    %v1860 = vpop.f32.mrf.mxu0
    %v1861 = vadd.f32 %v105, %v1860
    %v1862 = vpop.f32.mrf.mxu0
    %v1863 = vadd.f32 %v106, %v1862
    %1864 = vmatmul.bf16.gmra.mxu0 %v1801
    %v1865 = vpop.f32.mrf.mxu0
    %v1866 = vadd.f32 %v107, %v1865
    %v1867 = vpop.f32.mrf.mxu0
    %v1868 = vadd.f32 %v108, %v1867
    %1869 = vmatmul.bf16.gmra.mxu0 %v1804
    %v1870 = vpop.f32.mrf.mxu0
    %v1871 = vadd.f32 %v109, %v1870
    %v1872 = vpop.f32.mrf.mxu0
    %v1873 = vadd.f32 %v110, %v1872
    %1874 = vmatmul.bf16.gmra.mxu0 %v1807
    %v1875 = vpop.f32.mrf.mxu0
    %v1876 = vadd.f32 %v111, %v1875
    %v1877 = vpop.f32.mrf.mxu0
    %v1878 = vadd.f32 %v112, %v1877
    %1879 = vmatmul.bf16.gmra.mxu0 %v1810
    %v1880 = vpop.f32.mrf.mxu0
    %v1881 = vadd.f32 %v113, %v1880
    %v1882 = vpop.f32.mrf.mxu0
    %v1883 = vadd.f32 %v114, %v1882
    %1884 = vdwg.mxu0
    %1885 = vmax.xlane.f32.xlu0 %v1846
    %v1886 = vpop.xlane.xlu0 %1885
    %1887 = vmax.xlane.f32.xlu0 %v1848
    %v1888 = vpop.xlane.xlu0 %1887
    %1889 = vmax.xlane.f32.xlu0 %v1851
    %v1890 = vpop.xlane.xlu0 %1889
    %1891 = vmax.xlane.f32.xlu0 %v1853
    %v1892 = vpop.xlane.xlu0 %1891
    %1893 = vmax.xlane.f32.xlu0 %v1856
    %v1894 = vpop.xlane.xlu0 %1893
    %1895 = vmax.xlane.f32.xlu0 %v1858
    %v1896 = vpop.xlane.xlu0 %1895
    %1897 = vmax.xlane.f32.xlu0 %v1861
    %v1898 = vpop.xlane.xlu0 %1897
    %1899 = vmax.xlane.f32.xlu0 %v1863
    %v1900 = vpop.xlane.xlu0 %1899
    %1901 = vmax.xlane.f32.xlu0 %v1866
    %v1902 = vpop.xlane.xlu0 %1901
    %1903 = vmax.xlane.f32.xlu0 %v1868
    %v1904 = vpop.xlane.xlu0 %1903
    %1905 = vmax.xlane.f32.xlu0 %v1871
    %v1906 = vpop.xlane.xlu0 %1905
    %1907 = vmax.xlane.f32.xlu0 %v1873
    %v1908 = vpop.xlane.xlu0 %1907
    %1909 = vmax.xlane.f32.xlu0 %v1876
    %v1910 = vpop.xlane.xlu0 %1909
    %1911 = vmax.xlane.f32.xlu0 %v1878
    %v1912 = vpop.xlane.xlu0 %1911
    %1913 = vmax.xlane.f32.xlu0 %v1881
    %v1914 = vpop.xlane.xlu0 %1913
    %1915 = vmax.xlane.f32.xlu0 %v1883
    %v1916 = vpop.xlane.xlu0 %1915
    %v1917 = vsub.f32 %v1846, %v1886
    %v1918 = vsub.f32 %v1848, %v1888
    %v1919 = vsub.f32 %v1851, %v1890
    %v1920 = vsub.f32 %v1853, %v1892
    %v1921 = vsub.f32 %v1856, %v1894
    %v1922 = vsub.f32 %v1858, %v1896
    %v1923 = vsub.f32 %v1861, %v1898
    %v1924 = vsub.f32 %v1863, %v1900
    %v1925 = vsub.f32 %v1866, %v1902
    %v1926 = vsub.f32 %v1868, %v1904
    %v1927 = vsub.f32 %v1871, %v1906
    %v1928 = vsub.f32 %v1873, %v1908
    %v1929 = vsub.f32 %v1876, %v1910
    %v1930 = vsub.f32 %v1878, %v1912
    %v1931 = vsub.f32 %v1881, %v1914
    %v1932 = vsub.f32 %v1883, %v1916
    %v1933 = vmul.f32 %v1917, 1.442695
    %v1934 = vpow.pop %v1933
    %v1935 = vmul.f32 %v1918, 1.442695
    %v1936 = vpow.pop %v1935
    %v1937 = vmul.f32 %v1919, 1.442695
    %v1938 = vpow.pop %v1937
    %v1939 = vmul.f32 %v1920, 1.442695
    %v1940 = vpow.pop %v1939
    %v1941 = vmul.f32 %v1921, 1.442695
    %v1942 = vpow.pop %v1941
    %v1943 = vmul.f32 %v1922, 1.442695
    %v1944 = vpow.pop %v1943
    %v1945 = vmul.f32 %v1923, 1.442695
    %v1946 = vpow.pop %v1945
    %v1947 = vmul.f32 %v1924, 1.442695
    %v1948 = vpow.pop %v1947
    %v1949 = vmul.f32 %v1925, 1.442695
    %v1950 = vpow.pop %v1949
    %v1951 = vmul.f32 %v1926, 1.442695
    %v1952 = vpow.pop %v1951
    %v1953 = vmul.f32 %v1927, 1.442695
    %v1954 = vpow.pop %v1953
    %v1955 = vmul.f32 %v1928, 1.442695
    %v1956 = vpow.pop %v1955
    %v1957 = vmul.f32 %v1929, 1.442695
    %v1958 = vpow.pop %v1957
    %v1959 = vmul.f32 %v1930, 1.442695
    %v1960 = vpow.pop %v1959
    %v1961 = vmul.f32 %v1931, 1.442695
    %v1962 = vpow.pop %v1961
    %v1963 = vmul.f32 %v1932, 1.442695
    %v1964 = vpow.pop %v1963
    %1965 = vadd.xlane.f32.xlu0 %v1934
    %v1966 = vpop.xlane.xlu0 %1965
    %1967 = vadd.xlane.f32.xlu0 %v1936
    %v1968 = vpop.xlane.xlu0 %1967
    %1969 = vadd.xlane.f32.xlu0 %v1938
    %v1970 = vpop.xlane.xlu0 %1969
    %1971 = vadd.xlane.f32.xlu0 %v1940
    %v1972 = vpop.xlane.xlu0 %1971
    %1973 = vadd.xlane.f32.xlu0 %v1942
    %v1974 = vpop.xlane.xlu0 %1973
    %1975 = vadd.xlane.f32.xlu0 %v1944
    %v1976 = vpop.xlane.xlu0 %1975
    %1977 = vadd.xlane.f32.xlu0 %v1946
    %v1978 = vpop.xlane.xlu0 %1977
    %1979 = vadd.xlane.f32.xlu0 %v1948
    %v1980 = vpop.xlane.xlu0 %1979
    %1981 = vadd.xlane.f32.xlu0 %v1950
    %v1982 = vpop.xlane.xlu0 %1981
    %1983 = vadd.xlane.f32.xlu0 %v1952
    %v1984 = vpop.xlane.xlu0 %1983
    %1985 = vadd.xlane.f32.xlu0 %v1954
    %v1986 = vpop.xlane.xlu0 %1985
    %1987 = vadd.xlane.f32.xlu0 %v1956
    %v1988 = vpop.xlane.xlu0 %1987
    %1989 = vadd.xlane.f32.xlu0 %v1958
    %v1990 = vpop.xlane.xlu0 %1989
    %1991 = vadd.xlane.f32.xlu0 %v1960
    %v1992 = vpop.xlane.xlu0 %1991
    %1993 = vadd.xlane.f32.xlu0 %v1962
    %v1994 = vpop.xlane.xlu0 %1993
    %1995 = vadd.xlane.f32.xlu0 %v1964
    %v1996 = vpop.xlane.xlu0 %1995
    %v1997 = vrcp.pop %v1966
    %v1998 = vrcp.pop %v1968
    %v1999 = vrcp.pop %v1970
    %v2000 = vrcp.pop %v1972
    %v2001 = vrcp.pop %v1974
    %v2002 = vrcp.pop %v1976
    %v2003 = vrcp.pop %v1978
    %v2004 = vrcp.pop %v1980
    %v2005 = vrcp.pop %v1982
    %v2006 = vrcp.pop %v1984
    %v2007 = vrcp.pop %v1986
    %v2008 = vrcp.pop %v1988
    %v2009 = vrcp.pop %v1990
    %v2010 = vrcp.pop %v1992
    %v2011 = vrcp.pop %v1994
    %v2012 = vrcp.pop %v1996
    %v2013 = vmul.f32 %v1934, %v1997
    %v2014 = vmul.f32 %v1936, %v1998
    %v2015 = vmul.f32 %v1938, %v1999
    %v2016 = vmul.f32 %v1940, %v2000
    %v2017 = vmul.f32 %v1942, %v2001
    %v2018 = vmul.f32 %v1944, %v2002
    %v2019 = vmul.f32 %v1946, %v2003
    %v2020 = vmul.f32 %v1948, %v2004
    %v2021 = vmul.f32 %v1950, %v2005
    %v2022 = vmul.f32 %v1952, %v2006
    %v2023 = vmul.f32 %v1954, %v2007
    %v2024 = vmul.f32 %v1956, %v2008
    %v2025 = vmul.f32 %v1958, %v2009
    %v2026 = vmul.f32 %v1960, %v2010
    %v2027 = vmul.f32 %v1962, %v2011
    %v2028 = vmul.f32 %v1964, %v2012
    %v2029 = vpack.c.bf16 %v2014, %v2013
    %v2030 = vpack.c.bf16 %v2016, %v2015
    %v2031 = vpack.c.bf16 %v2018, %v2017
    %v2032 = vpack.c.bf16 %v2020, %v2019
    %v2033 = vpack.c.bf16 %v2022, %v2021
    %v2034 = vpack.c.bf16 %v2024, %v2023
    %v2035 = vpack.c.bf16 %v2026, %v2025
    %v2036 = vpack.c.bf16 %v2028, %v2027
    %2037 = vrot.lane.b32.xlu0 %v1207, 64
    %v2038 = vpop.permute.xlu0 %2037
    %2039 = vrot.lane.b32.xlu0 %v1208, 64
    %v2040 = vpop.permute.xlu0 %2039
    %2041 = vrot.lane.b32.xlu0 %v1209, 64
    %v2042 = vpop.permute.xlu0 %2041
    %2043 = vrot.lane.b32.xlu0 %v1210, 64
    %v2044 = vpop.permute.xlu0 %2043
    %2045 = vrot.lane.b32.xlu0 %v1211, 64
    %v2046 = vpop.permute.xlu0 %2045
    %2047 = vrot.lane.b32.xlu0 %v1212, 64
    %v2048 = vpop.permute.xlu0 %2047
    %2049 = vrot.lane.b32.xlu0 %v1213, 64
    %v2050 = vpop.permute.xlu0 %2049
    %2051 = vrot.lane.b32.xlu0 %v1214, 64
    %v2052 = vpop.permute.xlu0 %2051
    %2061 = vmatpush.bf16.msra.mxu0 %v2052
    %2062 = vmatpush.bf16.msra.mxu0 %v2050
    %2063 = vmatpush.bf16.msra.mxu0 %v2048
    %2064 = vmatpush.bf16.msra.mxu0 %v2046
    %2065 = vmatpush.bf16.msra.mxu0 %v2044
    %2066 = vmatpush.bf16.msra.mxu0 %v2042
    %2067 = vmatpush.bf16.msra.mxu0 %v2040
    %2068 = vmatpush.bf16.msra.mxu0 %v2038
    %2069 = vmatmul.bf16.gmra.mxu0 %v2029
    %v2070 = vpop.f32.mrf.mxu0
    %v2071 = vadd.f32 0.0, %v2070
    %v2072 = vpop.f32.mrf.mxu0
    %v2073 = vadd.f32 0.0, %v2072
    %2074 = vmatmul.bf16.gmra.mxu0 %v2030
    %v2075 = vpop.f32.mrf.mxu0
    %v2076 = vadd.f32 0.0, %v2075
    %v2077 = vpop.f32.mrf.mxu0
    %v2078 = vadd.f32 0.0, %v2077
    %2079 = vmatmul.bf16.gmra.mxu0 %v2031
    %v2080 = vpop.f32.mrf.mxu0
    %v2081 = vadd.f32 0.0, %v2080
    %v2082 = vpop.f32.mrf.mxu0
    %v2083 = vadd.f32 0.0, %v2082
    %2084 = vmatmul.bf16.gmra.mxu0 %v2032
    %v2085 = vpop.f32.mrf.mxu0
    %v2086 = vadd.f32 0.0, %v2085
    %v2087 = vpop.f32.mrf.mxu0
    %v2088 = vadd.f32 0.0, %v2087
    %2089 = vmatmul.bf16.gmra.mxu0 %v2033
    %v2090 = vpop.f32.mrf.mxu0
    %v2091 = vadd.f32 0.0, %v2090
    %v2092 = vpop.f32.mrf.mxu0
    %v2093 = vadd.f32 0.0, %v2092
    %2094 = vmatmul.bf16.gmra.mxu0 %v2034
    %v2095 = vpop.f32.mrf.mxu0
    %v2096 = vadd.f32 0.0, %v2095
    %v2097 = vpop.f32.mrf.mxu0
    %v2098 = vadd.f32 0.0, %v2097
    %2099 = vmatmul.bf16.gmra.mxu0 %v2035
    %v2100 = vpop.f32.mrf.mxu0
    %v2101 = vadd.f32 0.0, %v2100
    %v2102 = vpop.f32.mrf.mxu0
    %v2103 = vadd.f32 0.0, %v2102
    %2104 = vmatmul.bf16.gmra.mxu0 %v2036
    %v2105 = vpop.f32.mrf.mxu0
    %v2106 = vadd.f32 0.0, %v2105
    %v2107 = vpop.f32.mrf.mxu0
    %v2108 = vadd.f32 0.0, %v2107
    %2109 = vdwg.mxu0
    %v2110 = vpack.c.bf16 %v2071, %v2071
    %v2111 = vpack.c.bf16 %v2073, %v2073
    %v2112 = vpack.c.bf16 %v2076, %v2076
    %v2113 = vpack.c.bf16 %v2078, %v2078
    %v2114 = vpack.c.bf16 %v2081, %v2081
    %v2115 = vpack.c.bf16 %v2083, %v2083
    %v2116 = vpack.c.bf16 %v2086, %v2086
    %v2117 = vpack.c.bf16 %v2088, %v2088
    %v2118 = vpack.c.bf16 %v2091, %v2091
    %v2119 = vpack.c.bf16 %v2093, %v2093
    %v2120 = vpack.c.bf16 %v2096, %v2096
    %v2121 = vpack.c.bf16 %v2098, %v2098
    %v2122 = vpack.c.bf16 %v2101, %v2101
    %v2123 = vpack.c.bf16 %v2103, %v2103
    %v2124 = vpack.c.bf16 %v2106, %v2106
    %v2125 = vpack.c.bf16 %v2108, %v2108
    %2142 = vrot.lane.b32.xlu0 %v2110, 64
    %v2143 = vpop.permute.xlu0 %2142
    %2144 = vrot.lane.b32.xlu0 %v2111, 64
    %v2145 = vpop.permute.xlu0 %2144
    %2146 = vrot.lane.b32.xlu0 %v2112, 64
    %v2147 = vpop.permute.xlu0 %2146
    %2148 = vrot.lane.b32.xlu0 %v2113, 64
    %v2149 = vpop.permute.xlu0 %2148
    %2150 = vrot.lane.b32.xlu0 %v2114, 64
    %v2151 = vpop.permute.xlu0 %2150
    %2152 = vrot.lane.b32.xlu0 %v2115, 64
    %v2153 = vpop.permute.xlu0 %2152
    %2154 = vrot.lane.b32.xlu0 %v2116, 64
    %v2155 = vpop.permute.xlu0 %2154
    %2156 = vrot.lane.b32.xlu0 %v2117, 64
    %v2157 = vpop.permute.xlu0 %2156
    %2158 = vrot.lane.b32.xlu0 %v2118, 64
    %v2159 = vpop.permute.xlu0 %2158
    %2160 = vrot.lane.b32.xlu0 %v2119, 64
    %v2161 = vpop.permute.xlu0 %2160
    %2162 = vrot.lane.b32.xlu0 %v2120, 64
    %v2163 = vpop.permute.xlu0 %2162
    %2164 = vrot.lane.b32.xlu0 %v2121, 64
    %v2165 = vpop.permute.xlu0 %2164
    %2166 = vrot.lane.b32.xlu0 %v2122, 64
    %v2167 = vpop.permute.xlu0 %2166
    %2168 = vrot.lane.b32.xlu0 %v2123, 64
    %v2169 = vpop.permute.xlu0 %2168
    %2170 = vrot.lane.b32.xlu0 %v2124, 64
    %v2171 = vpop.permute.xlu0 %2170
    %2172 = vrot.lane.b32.xlu0 %v2125, 64
    %v2173 = vpop.permute.xlu0 %2172
    %vm2190 = vcmask 781824
    %2191 = vst.msk [vmem:[#allocation2] sm:$0xf] %vm2190, %v2143
    %2192 = vst.msk [vmem:[#allocation2 + $0x4] sm:$0xf] %vm2190, %v2145
    %2193 = vst.msk [vmem:[#allocation2 + $0x8] sm:$0xf] %vm2190, %v2147
    %2194 = vst.msk [vmem:[#allocation2 + $0xc] sm:$0xf] %vm2190, %v2149
    %2195 = vst.msk [vmem:[#allocation2 + $0x10] sm:$0xf] %vm2190, %v2151
    %2196 = vst.msk [vmem:[#allocation2 + $0x14] sm:$0xf] %vm2190, %v2153
    %2197 = vst.msk [vmem:[#allocation2 + $0x18] sm:$0xf] %vm2190, %v2155
    %2198 = vst.msk [vmem:[#allocation2 + $0x1c] sm:$0xf] %vm2190, %v2157
    %2199 = vst.msk [vmem:[#allocation2 + $0x20] sm:$0xf] %vm2190, %v2159
    %2200 = vst.msk [vmem:[#allocation2 + $0x24] sm:$0xf] %vm2190, %v2161
    %2201 = vst.msk [vmem:[#allocation2 + $0x28] sm:$0xf] %vm2190, %v2163
    %2202 = vst.msk [vmem:[#allocation2 + $0x2c] sm:$0xf] %vm2190, %v2165
    %2203 = vst.msk [vmem:[#allocation2 + $0x30] sm:$0xf] %vm2190, %v2167
    %2204 = vst.msk [vmem:[#allocation2 + $0x34] sm:$0xf] %vm2190, %v2169
    %2205 = vst.msk [vmem:[#allocation2 + $0x38] sm:$0xf] %vm2190, %v2171
    %2206 = vst.msk [vmem:[#allocation2 + $0x3c] sm:$0xf] %vm2190, %v2173
    %2207 = vrot.lane.b32.xlu0 %v893, 32
    %v2208 = vpop.permute.xlu0 %2207
    %2209 = vrot.lane.b32.xlu0 %v894, 32
    %v2210 = vpop.permute.xlu0 %2209
    %2211 = vrot.lane.b32.xlu0 %v895, 32
    %v2212 = vpop.permute.xlu0 %2211
    %2213 = vrot.lane.b32.xlu0 %v896, 32
    %v2214 = vpop.permute.xlu0 %2213
    %2215 = vrot.lane.b32.xlu0 %v897, 32
    %v2216 = vpop.permute.xlu0 %2215
    %2217 = vrot.lane.b32.xlu0 %v898, 32
    %v2218 = vpop.permute.xlu0 %2217
    %2219 = vrot.lane.b32.xlu0 %v899, 32
    %v2220 = vpop.permute.xlu0 %2219
    %2221 = vrot.lane.b32.xlu0 %v900, 32
    %v2222 = vpop.permute.xlu0 %2221
    %2223 = vrot.lane.b32.xlu0 %v917, 32
    %v2224 = vpop.permute.xlu0 %2223
    %2225 = vrot.lane.b32.xlu0 %v918, 32
    %v2226 = vpop.permute.xlu0 %2225
    %2227 = vrot.lane.b32.xlu0 %v919, 32
    %v2228 = vpop.permute.xlu0 %2227
    %2229 = vrot.lane.b32.xlu0 %v920, 32
    %v2230 = vpop.permute.xlu0 %2229
    %2231 = vrot.lane.b32.xlu0 %v921, 32
    %v2232 = vpop.permute.xlu0 %2231
    %2233 = vrot.lane.b32.xlu0 %v922, 32
    %v2234 = vpop.permute.xlu0 %2233
    %2235 = vrot.lane.b32.xlu0 %v923, 32
    %v2236 = vpop.permute.xlu0 %2235
    %2237 = vrot.lane.b32.xlu0 %v924, 32
    %v2238 = vpop.permute.xlu0 %2237
    %v2240 = vsel %vm925, %v2208, 0
    %v2243 = vsel %vm925, %v2210, 0
    %v2246 = vsel %vm925, %v2212, 0
    %v2249 = vsel %vm925, %v2214, 0
    %v2252 = vsel %vm925, %v2216, 0
    %v2255 = vsel %vm925, %v2218, 0
    %v2258 = vsel %vm925, %v2220, 0
    %v2261 = vsel %vm925, %v2222, 0
    %v2264 = vsel %vm925, %v2224, 0
    %v2267 = vsel %vm925, %v2226, 0
    %v2270 = vsel %vm925, %v2228, 0
    %v2273 = vsel %vm925, %v2230, 0
    %v2276 = vsel %vm925, %v2232, 0
    %v2279 = vsel %vm925, %v2234, 0
    %v2282 = vsel %vm925, %v2236, 0
    %v2285 = vsel %vm925, %v2238, 0
    %2287 = vmatpush.bf16.xpose.msra.mxu0 %v2285
    %2288 = vmatpush.bf16.xpose.msra.mxu0 %v2282
    %2289 = vmatpush.bf16.xpose.msra.mxu0 %v2279
    %2290 = vmatpush.bf16.xpose.msra.mxu0 %v2276
    %2291 = vmatpush.bf16.xpose.msra.mxu0 %v2273
    %2292 = vmatpush.bf16.xpose.msra.mxu0 %v2270
    %2293 = vmatpush.bf16.xpose.msra.mxu0 %v2267
    %2294 = vmatpush.bf16.xpose.msra.mxu0 %v2264
    %2295 = vmatmul.bf16.gmra.mxu0 %v2240
    %v2296 = vpop.f32.mrf.mxu0
    %v2297 = vadd.f32 %v99, %v2296
    %v2298 = vpop.f32.mrf.mxu0
    %v2299 = vadd.f32 %v100, %v2298
    %2300 = vmatmul.bf16.gmra.mxu0 %v2243
    %v2301 = vpop.f32.mrf.mxu0
    %v2302 = vadd.f32 %v101, %v2301
    %v2303 = vpop.f32.mrf.mxu0
    %v2304 = vadd.f32 %v102, %v2303
    %2305 = vmatmul.bf16.gmra.mxu0 %v2246
    %v2306 = vpop.f32.mrf.mxu0
    %v2307 = vadd.f32 %v103, %v2306
    %v2308 = vpop.f32.mrf.mxu0
    %v2309 = vadd.f32 %v104, %v2308
    %2310 = vmatmul.bf16.gmra.mxu0 %v2249
    %v2311 = vpop.f32.mrf.mxu0
    %v2312 = vadd.f32 %v105, %v2311
    %v2313 = vpop.f32.mrf.mxu0
    %v2314 = vadd.f32 %v106, %v2313
    %2315 = vmatmul.bf16.gmra.mxu0 %v2252
    %v2316 = vpop.f32.mrf.mxu0
    %v2317 = vadd.f32 %v107, %v2316
    %v2318 = vpop.f32.mrf.mxu0
    %v2319 = vadd.f32 %v108, %v2318
    %2320 = vmatmul.bf16.gmra.mxu0 %v2255
    %v2321 = vpop.f32.mrf.mxu0
    %v2322 = vadd.f32 %v109, %v2321
    %v2323 = vpop.f32.mrf.mxu0
    %v2324 = vadd.f32 %v110, %v2323
    %2325 = vmatmul.bf16.gmra.mxu0 %v2258
    %v2326 = vpop.f32.mrf.mxu0
    %v2327 = vadd.f32 %v111, %v2326
    %v2328 = vpop.f32.mrf.mxu0
    %v2329 = vadd.f32 %v112, %v2328
    %2330 = vmatmul.bf16.gmra.mxu0 %v2261
    %v2331 = vpop.f32.mrf.mxu0
    %v2332 = vadd.f32 %v113, %v2331
    %v2333 = vpop.f32.mrf.mxu0
    %v2334 = vadd.f32 %v114, %v2333
    %2335 = vdwg.mxu0
    %2336 = vmax.xlane.f32.xlu0 %v2297
    %v2337 = vpop.xlane.xlu0 %2336
    %2338 = vmax.xlane.f32.xlu0 %v2299
    %v2339 = vpop.xlane.xlu0 %2338
    %2340 = vmax.xlane.f32.xlu0 %v2302
    %v2341 = vpop.xlane.xlu0 %2340
    %2342 = vmax.xlane.f32.xlu0 %v2304
    %v2343 = vpop.xlane.xlu0 %2342
    %2344 = vmax.xlane.f32.xlu0 %v2307
    %v2345 = vpop.xlane.xlu0 %2344
    %2346 = vmax.xlane.f32.xlu0 %v2309
    %v2347 = vpop.xlane.xlu0 %2346
    %2348 = vmax.xlane.f32.xlu0 %v2312
    %v2349 = vpop.xlane.xlu0 %2348
    %2350 = vmax.xlane.f32.xlu0 %v2314
    %v2351 = vpop.xlane.xlu0 %2350
    %2352 = vmax.xlane.f32.xlu0 %v2317
    %v2353 = vpop.xlane.xlu0 %2352
    %2354 = vmax.xlane.f32.xlu0 %v2319
    %v2355 = vpop.xlane.xlu0 %2354
    %2356 = vmax.xlane.f32.xlu0 %v2322
    %v2357 = vpop.xlane.xlu0 %2356
    %2358 = vmax.xlane.f32.xlu0 %v2324
    %v2359 = vpop.xlane.xlu0 %2358
    %2360 = vmax.xlane.f32.xlu0 %v2327
    %v2361 = vpop.xlane.xlu0 %2360
    %2362 = vmax.xlane.f32.xlu0 %v2329
    %v2363 = vpop.xlane.xlu0 %2362
    %2364 = vmax.xlane.f32.xlu0 %v2332
    %v2365 = vpop.xlane.xlu0 %2364
    %2366 = vmax.xlane.f32.xlu0 %v2334
    %v2367 = vpop.xlane.xlu0 %2366
    %v2368 = vsub.f32 %v2297, %v2337
    %v2369 = vsub.f32 %v2299, %v2339
    %v2370 = vsub.f32 %v2302, %v2341
    %v2371 = vsub.f32 %v2304, %v2343
    %v2372 = vsub.f32 %v2307, %v2345
    %v2373 = vsub.f32 %v2309, %v2347
    %v2374 = vsub.f32 %v2312, %v2349
    %v2375 = vsub.f32 %v2314, %v2351
    %v2376 = vsub.f32 %v2317, %v2353
    %v2377 = vsub.f32 %v2319, %v2355
    %v2378 = vsub.f32 %v2322, %v2357
    %v2379 = vsub.f32 %v2324, %v2359
    %v2380 = vsub.f32 %v2327, %v2361
    %v2381 = vsub.f32 %v2329, %v2363
    %v2382 = vsub.f32 %v2332, %v2365
    %v2383 = vsub.f32 %v2334, %v2367
    %v2384 = vmul.f32 %v2368, 1.442695
    %v2385 = vpow.pop %v2384
    %v2386 = vmul.f32 %v2369, 1.442695
    %v2387 = vpow.pop %v2386
    %v2388 = vmul.f32 %v2370, 1.442695
    %v2389 = vpow.pop %v2388
    %v2390 = vmul.f32 %v2371, 1.442695
    %v2391 = vpow.pop %v2390
    %v2392 = vmul.f32 %v2372, 1.442695
    %v2393 = vpow.pop %v2392
    %v2394 = vmul.f32 %v2373, 1.442695
    %v2395 = vpow.pop %v2394
    %v2396 = vmul.f32 %v2374, 1.442695
    %v2397 = vpow.pop %v2396
    %v2398 = vmul.f32 %v2375, 1.442695
    %v2399 = vpow.pop %v2398
    %v2400 = vmul.f32 %v2376, 1.442695
    %v2401 = vpow.pop %v2400
    %v2402 = vmul.f32 %v2377, 1.442695
    %v2403 = vpow.pop %v2402
    %v2404 = vmul.f32 %v2378, 1.442695
    %v2405 = vpow.pop %v2404
    %v2406 = vmul.f32 %v2379, 1.442695
    %v2407 = vpow.pop %v2406
    %v2408 = vmul.f32 %v2380, 1.442695
    %v2409 = vpow.pop %v2408
    %v2410 = vmul.f32 %v2381, 1.442695
    %v2411 = vpow.pop %v2410
    %v2412 = vmul.f32 %v2382, 1.442695
    %v2413 = vpow.pop %v2412
    %v2414 = vmul.f32 %v2383, 1.442695
    %v2415 = vpow.pop %v2414
    %2416 = vadd.xlane.f32.xlu0 %v2385
    %v2417 = vpop.xlane.xlu0 %2416
    %2418 = vadd.xlane.f32.xlu0 %v2387
    %v2419 = vpop.xlane.xlu0 %2418
    %2420 = vadd.xlane.f32.xlu0 %v2389
    %v2421 = vpop.xlane.xlu0 %2420
    %2422 = vadd.xlane.f32.xlu0 %v2391
    %v2423 = vpop.xlane.xlu0 %2422
    %2424 = vadd.xlane.f32.xlu0 %v2393
    %v2425 = vpop.xlane.xlu0 %2424
    %2426 = vadd.xlane.f32.xlu0 %v2395
    %v2427 = vpop.xlane.xlu0 %2426
    %2428 = vadd.xlane.f32.xlu0 %v2397
    %v2429 = vpop.xlane.xlu0 %2428
    %2430 = vadd.xlane.f32.xlu0 %v2399
    %v2431 = vpop.xlane.xlu0 %2430
    %2432 = vadd.xlane.f32.xlu0 %v2401
    %v2433 = vpop.xlane.xlu0 %2432
    %2434 = vadd.xlane.f32.xlu0 %v2403
    %v2435 = vpop.xlane.xlu0 %2434
    %2436 = vadd.xlane.f32.xlu0 %v2405
    %v2437 = vpop.xlane.xlu0 %2436
    %2438 = vadd.xlane.f32.xlu0 %v2407
    %v2439 = vpop.xlane.xlu0 %2438
    %2440 = vadd.xlane.f32.xlu0 %v2409
    %v2441 = vpop.xlane.xlu0 %2440
    %2442 = vadd.xlane.f32.xlu0 %v2411
    %v2443 = vpop.xlane.xlu0 %2442
    %2444 = vadd.xlane.f32.xlu0 %v2413
    %v2445 = vpop.xlane.xlu0 %2444
    %2446 = vadd.xlane.f32.xlu0 %v2415
    %v2447 = vpop.xlane.xlu0 %2446
    %v2448 = vrcp.pop %v2417
    %v2449 = vrcp.pop %v2419
    %v2450 = vrcp.pop %v2421
    %v2451 = vrcp.pop %v2423
    %v2452 = vrcp.pop %v2425
    %v2453 = vrcp.pop %v2427
    %v2454 = vrcp.pop %v2429
    %v2455 = vrcp.pop %v2431
    %v2456 = vrcp.pop %v2433
    %v2457 = vrcp.pop %v2435
    %v2458 = vrcp.pop %v2437
    %v2459 = vrcp.pop %v2439
    %v2460 = vrcp.pop %v2441
    %v2461 = vrcp.pop %v2443
    %v2462 = vrcp.pop %v2445
    %v2463 = vrcp.pop %v2447
    %v2464 = vmul.f32 %v2385, %v2448
    %v2465 = vmul.f32 %v2387, %v2449
    %v2466 = vmul.f32 %v2389, %v2450
    %v2467 = vmul.f32 %v2391, %v2451
    %v2468 = vmul.f32 %v2393, %v2452
    %v2469 = vmul.f32 %v2395, %v2453
    %v2470 = vmul.f32 %v2397, %v2454
    %v2471 = vmul.f32 %v2399, %v2455
    %v2472 = vmul.f32 %v2401, %v2456
    %v2473 = vmul.f32 %v2403, %v2457
    %v2474 = vmul.f32 %v2405, %v2458
    %v2475 = vmul.f32 %v2407, %v2459
    %v2476 = vmul.f32 %v2409, %v2460
    %v2477 = vmul.f32 %v2411, %v2461
    %v2478 = vmul.f32 %v2413, %v2462
    %v2479 = vmul.f32 %v2415, %v2463
    %v2480 = vpack.c.bf16 %v2465, %v2464
    %v2481 = vpack.c.bf16 %v2467, %v2466
    %v2482 = vpack.c.bf16 %v2469, %v2468
    %v2483 = vpack.c.bf16 %v2471, %v2470
    %v2484 = vpack.c.bf16 %v2473, %v2472
    %v2485 = vpack.c.bf16 %v2475, %v2474
    %v2486 = vpack.c.bf16 %v2477, %v2476
    %v2487 = vpack.c.bf16 %v2479, %v2478
    %2488 = vrot.lane.b32.xlu0 %v1207, 32
    %v2489 = vpop.permute.xlu0 %2488
    %2490 = vrot.lane.b32.xlu0 %v1208, 32
    %v2491 = vpop.permute.xlu0 %2490
    %2492 = vrot.lane.b32.xlu0 %v1209, 32
    %v2493 = vpop.permute.xlu0 %2492
    %2494 = vrot.lane.b32.xlu0 %v1210, 32
    %v2495 = vpop.permute.xlu0 %2494
    %2496 = vrot.lane.b32.xlu0 %v1211, 32
    %v2497 = vpop.permute.xlu0 %2496
    %2498 = vrot.lane.b32.xlu0 %v1212, 32
    %v2499 = vpop.permute.xlu0 %2498
    %2500 = vrot.lane.b32.xlu0 %v1213, 32
    %v2501 = vpop.permute.xlu0 %2500
    %2502 = vrot.lane.b32.xlu0 %v1214, 32
    %v2503 = vpop.permute.xlu0 %2502
    %2512 = vmatpush.bf16.msra.mxu0 %v2503
    %2513 = vmatpush.bf16.msra.mxu0 %v2501
    %2514 = vmatpush.bf16.msra.mxu0 %v2499
    %2515 = vmatpush.bf16.msra.mxu0 %v2497
    %2516 = vmatpush.bf16.msra.mxu0 %v2495
    %2517 = vmatpush.bf16.msra.mxu0 %v2493
    %2518 = vmatpush.bf16.msra.mxu0 %v2491
    %2519 = vmatpush.bf16.msra.mxu0 %v2489
    %2520 = vmatmul.bf16.gmra.mxu0 %v2480
    %v2521 = vpop.f32.mrf.mxu0
    %v2522 = vadd.f32 0.0, %v2521
    %v2523 = vpop.f32.mrf.mxu0
    %v2524 = vadd.f32 0.0, %v2523
    %2525 = vmatmul.bf16.gmra.mxu0 %v2481
    %v2526 = vpop.f32.mrf.mxu0
    %v2527 = vadd.f32 0.0, %v2526
    %v2528 = vpop.f32.mrf.mxu0
    %v2529 = vadd.f32 0.0, %v2528
    %2530 = vmatmul.bf16.gmra.mxu0 %v2482
    %v2531 = vpop.f32.mrf.mxu0
    %v2532 = vadd.f32 0.0, %v2531
    %v2533 = vpop.f32.mrf.mxu0
    %v2534 = vadd.f32 0.0, %v2533
    %2535 = vmatmul.bf16.gmra.mxu0 %v2483
    %v2536 = vpop.f32.mrf.mxu0
    %v2537 = vadd.f32 0.0, %v2536
    %v2538 = vpop.f32.mrf.mxu0
    %v2539 = vadd.f32 0.0, %v2538
    %2540 = vmatmul.bf16.gmra.mxu0 %v2484
    %v2541 = vpop.f32.mrf.mxu0
    %v2542 = vadd.f32 0.0, %v2541
    %v2543 = vpop.f32.mrf.mxu0
    %v2544 = vadd.f32 0.0, %v2543
    %2545 = vmatmul.bf16.gmra.mxu0 %v2485
    %v2546 = vpop.f32.mrf.mxu0
    %v2547 = vadd.f32 0.0, %v2546
    %v2548 = vpop.f32.mrf.mxu0
    %v2549 = vadd.f32 0.0, %v2548
    %2550 = vmatmul.bf16.gmra.mxu0 %v2486
    %v2551 = vpop.f32.mrf.mxu0
    %v2552 = vadd.f32 0.0, %v2551
    %v2553 = vpop.f32.mrf.mxu0
    %v2554 = vadd.f32 0.0, %v2553
    %2555 = vmatmul.bf16.gmra.mxu0 %v2487
    %v2556 = vpop.f32.mrf.mxu0
    %v2557 = vadd.f32 0.0, %v2556
    %v2558 = vpop.f32.mrf.mxu0
    %v2559 = vadd.f32 0.0, %v2558
    %2560 = vdwg.mxu0
    %v2561 = vpack.c.bf16 %v2522, %v2522
    %v2562 = vpack.c.bf16 %v2524, %v2524
    %v2563 = vpack.c.bf16 %v2527, %v2527
    %v2564 = vpack.c.bf16 %v2529, %v2529
    %v2565 = vpack.c.bf16 %v2532, %v2532
    %v2566 = vpack.c.bf16 %v2534, %v2534
    %v2567 = vpack.c.bf16 %v2537, %v2537
    %v2568 = vpack.c.bf16 %v2539, %v2539
    %v2569 = vpack.c.bf16 %v2542, %v2542
    %v2570 = vpack.c.bf16 %v2544, %v2544
    %v2571 = vpack.c.bf16 %v2547, %v2547
    %v2572 = vpack.c.bf16 %v2549, %v2549
    %v2573 = vpack.c.bf16 %v2552, %v2552
    %v2574 = vpack.c.bf16 %v2554, %v2554
    %v2575 = vpack.c.bf16 %v2557, %v2557
    %v2576 = vpack.c.bf16 %v2559, %v2559
    %2593 = vrot.lane.b32.xlu0 %v2561, 96
    %v2594 = vpop.permute.xlu0 %2593
    %2595 = vrot.lane.b32.xlu0 %v2562, 96
    %v2596 = vpop.permute.xlu0 %2595
    %2597 = vrot.lane.b32.xlu0 %v2563, 96
    %v2598 = vpop.permute.xlu0 %2597
    %2599 = vrot.lane.b32.xlu0 %v2564, 96
    %v2600 = vpop.permute.xlu0 %2599
    %2601 = vrot.lane.b32.xlu0 %v2565, 96
    %v2602 = vpop.permute.xlu0 %2601
    %2603 = vrot.lane.b32.xlu0 %v2566, 96
    %v2604 = vpop.permute.xlu0 %2603
    %2605 = vrot.lane.b32.xlu0 %v2567, 96
    %v2606 = vpop.permute.xlu0 %2605
    %2607 = vrot.lane.b32.xlu0 %v2568, 96
    %v2608 = vpop.permute.xlu0 %2607
    %2609 = vrot.lane.b32.xlu0 %v2569, 96
    %v2610 = vpop.permute.xlu0 %2609
    %2611 = vrot.lane.b32.xlu0 %v2570, 96
    %v2612 = vpop.permute.xlu0 %2611
    %2613 = vrot.lane.b32.xlu0 %v2571, 96
    %v2614 = vpop.permute.xlu0 %2613
    %2615 = vrot.lane.b32.xlu0 %v2572, 96
    %v2616 = vpop.permute.xlu0 %2615
    %2617 = vrot.lane.b32.xlu0 %v2573, 96
    %v2618 = vpop.permute.xlu0 %2617
    %2619 = vrot.lane.b32.xlu0 %v2574, 96
    %v2620 = vpop.permute.xlu0 %2619
    %2621 = vrot.lane.b32.xlu0 %v2575, 96
    %v2622 = vpop.permute.xlu0 %2621
    %2623 = vrot.lane.b32.xlu0 %v2576, 96
    %v2624 = vpop.permute.xlu0 %2623
    %vm2641 = vcmask 1044224
    %2642 = vst.msk [vmem:[#allocation2] sm:$0xf] %vm2641, %v2594
    %2643 = vst.msk [vmem:[#allocation2 + $0x4] sm:$0xf] %vm2641, %v2596
    %2644 = vst.msk [vmem:[#allocation2 + $0x8] sm:$0xf] %vm2641, %v2598
    %2645 = vst.msk [vmem:[#allocation2 + $0xc] sm:$0xf] %vm2641, %v2600
    %2646 = vst.msk [vmem:[#allocation2 + $0x10] sm:$0xf] %vm2641, %v2602
    %2647 = vst.msk [vmem:[#allocation2 + $0x14] sm:$0xf] %vm2641, %v2604
    %2648 = vst.msk [vmem:[#allocation2 + $0x18] sm:$0xf] %vm2641, %v2606
    %2649 = vst.msk [vmem:[#allocation2 + $0x1c] sm:$0xf] %vm2641, %v2608
    %2650 = vst.msk [vmem:[#allocation2 + $0x20] sm:$0xf] %vm2641, %v2610
    %2651 = vst.msk [vmem:[#allocation2 + $0x24] sm:$0xf] %vm2641, %v2612
    %2652 = vst.msk [vmem:[#allocation2 + $0x28] sm:$0xf] %vm2641, %v2614
    %2653 = vst.msk [vmem:[#allocation2 + $0x2c] sm:$0xf] %vm2641, %v2616
    %2654 = vst.msk [vmem:[#allocation2 + $0x30] sm:$0xf] %vm2641, %v2618
    %2655 = vst.msk [vmem:[#allocation2 + $0x34] sm:$0xf] %vm2641, %v2620
    %2656 = vst.msk [vmem:[#allocation2 + $0x38] sm:$0xf] %vm2641, %v2622
    %2657 = vst.msk [vmem:[#allocation2 + $0x3c] sm:$0xf] %vm2641, %v2624
    %v2658 = vld [vmem:[#allocation2] sm:$0xf]
    %v2659 = vld [vmem:[#allocation2 + $0x4] sm:$0xf]
    %v2660 = vld [vmem:[#allocation2 + $0x8] sm:$0xf]
    %v2661 = vld [vmem:[#allocation2 + $0xc] sm:$0xf]
    %v2662 = vld [vmem:[#allocation2 + $0x10] sm:$0xf]
    %v2663 = vld [vmem:[#allocation2 + $0x14] sm:$0xf]
    %v2664 = vld [vmem:[#allocation2 + $0x18] sm:$0xf]
    %v2665 = vld [vmem:[#allocation2 + $0x1c] sm:$0xf]
    %v2666 = vld [vmem:[#allocation2 + $0x20] sm:$0xf]
    %v2667 = vld [vmem:[#allocation2 + $0x24] sm:$0xf]
    %v2668 = vld [vmem:[#allocation2 + $0x28] sm:$0xf]
    %v2669 = vld [vmem:[#allocation2 + $0x2c] sm:$0xf]
    %v2670 = vld [vmem:[#allocation2 + $0x30] sm:$0xf]
    %v2671 = vld [vmem:[#allocation2 + $0x34] sm:$0xf]
    %v2672 = vld [vmem:[#allocation2 + $0x38] sm:$0xf]
    %v2673 = vld [vmem:[#allocation2 + $0x3c] sm:$0xf]
    %v2674 = vld [vmem:[%s5] sm:$0xf]
    %v2675 = vld [vmem:[%s5 + $0x4] sm:$0xf]
    %v2676 = vld [vmem:[%s5 + $0x8] sm:$0xf]
    %v2677 = vld [vmem:[%s5 + $0xc] sm:$0xf]
    %v2678 = vld [vmem:[%s5 + $0x10] sm:$0xf]
    %v2679 = vld [vmem:[%s5 + $0x14] sm:$0xf]
    %v2680 = vld [vmem:[%s5 + $0x18] sm:$0xf]
    %v2681 = vld [vmem:[%s5 + $0x1c] sm:$0xf]
    %v2682 = vld [vmem:[%s5 + $0x20] sm:$0xf]
    %v2683 = vld [vmem:[%s5 + $0x24] sm:$0xf]
    %v2684 = vld [vmem:[%s5 + $0x28] sm:$0xf]
    %v2685 = vld [vmem:[%s5 + $0x2c] sm:$0xf]
    %v2686 = vld [vmem:[%s5 + $0x30] sm:$0xf]
    %v2687 = vld [vmem:[%s5 + $0x34] sm:$0xf]
    %v2688 = vld [vmem:[%s5 + $0x38] sm:$0xf]
    %v2689 = vld [vmem:[%s5 + $0x3c] sm:$0xf]
    %v2690 = vld [vmem:[%s6] sm:$0x1]
    %v2692 = vperm.slane %v2690, 0
    %v2710 = vunpack.c.l.b16 %v2658
    %v2711 = vunpack.c.l.b16 %v2659
    %v2712 = vunpack.c.l.b16 %v2660
    %v2713 = vunpack.c.l.b16 %v2661
    %v2714 = vunpack.c.l.b16 %v2662
    %v2715 = vunpack.c.l.b16 %v2663
    %v2716 = vunpack.c.l.b16 %v2664
    %v2717 = vunpack.c.l.b16 %v2665
    %v2718 = vunpack.c.l.b16 %v2666
    %v2719 = vunpack.c.l.b16 %v2667
    %v2720 = vunpack.c.l.b16 %v2668
    %v2721 = vunpack.c.l.b16 %v2669
    %v2722 = vunpack.c.l.b16 %v2670
    %v2723 = vunpack.c.l.b16 %v2671
    %v2724 = vunpack.c.l.b16 %v2672
    %v2725 = vunpack.c.l.b16 %v2673
    %v2726 = vpack.c.b16 %v2711, %v2710
    %v2727 = vpack.c.b16 %v2713, %v2712
    %v2728 = vpack.c.b16 %v2715, %v2714
    %v2729 = vpack.c.b16 %v2717, %v2716
    %v2730 = vpack.c.b16 %v2719, %v2718
    %v2731 = vpack.c.b16 %v2721, %v2720
    %v2732 = vpack.c.b16 %v2723, %v2722
    %v2733 = vpack.c.b16 %v2725, %v2724
    %v2758 = vunpack.c.l.b16 %v2674
    %v2759 = vunpack.c.l.b16 %v2675
    %v2760 = vunpack.c.l.b16 %v2676
    %v2761 = vunpack.c.l.b16 %v2677
    %v2762 = vunpack.c.l.b16 %v2678
    %v2763 = vunpack.c.l.b16 %v2679
    %v2764 = vunpack.c.l.b16 %v2680
    %v2765 = vunpack.c.l.b16 %v2681
    %v2766 = vunpack.c.l.b16 %v2682
    %v2767 = vunpack.c.l.b16 %v2683
    %v2768 = vunpack.c.l.b16 %v2684
    %v2769 = vunpack.c.l.b16 %v2685
    %v2770 = vunpack.c.l.b16 %v2686
    %v2771 = vunpack.c.l.b16 %v2687
    %v2772 = vunpack.c.l.b16 %v2688
    %v2773 = vunpack.c.l.b16 %v2689
    %v2774 = vpack.c.b16 %v2759, %v2758
    %v2775 = vpack.c.b16 %v2761, %v2760
    %v2776 = vpack.c.b16 %v2763, %v2762
    %v2777 = vpack.c.b16 %v2765, %v2764
    %v2778 = vpack.c.b16 %v2767, %v2766
    %v2779 = vpack.c.b16 %v2769, %v2768
    %v2780 = vpack.c.b16 %v2771, %v2770
    %v2781 = vpack.c.b16 %v2773, %v2772
    %2790 = vmatpush.bf16.msra.mxu0 %v2781
    %2791 = vmatpush.bf16.msra.mxu0 %v2780
    %2792 = vmatpush.bf16.msra.mxu0 %v2779
    %2793 = vmatpush.bf16.msra.mxu0 %v2778
    %2794 = vmatpush.bf16.msra.mxu0 %v2777
    %2795 = vmatpush.bf16.msra.mxu0 %v2776
    %2796 = vmatpush.bf16.msra.mxu0 %v2775
    %2797 = vmatpush.bf16.msra.mxu0 %v2774
    %2798 = vmatmul.bf16.gmra.mxu0 %v2726
    %v2799 = vpop.f32.mrf.mxu0
    %v2800 = vadd.f32 %v2692, %v2799
    %v2801 = vpop.f32.mrf.mxu0
    %v2802 = vadd.f32 %v2692, %v2801
    %2803 = vmatmul.bf16.gmra.mxu0 %v2727
    %v2804 = vpop.f32.mrf.mxu0
    %v2805 = vadd.f32 %v2692, %v2804
    %v2806 = vpop.f32.mrf.mxu0
    %v2807 = vadd.f32 %v2692, %v2806
    %2808 = vmatmul.bf16.gmra.mxu0 %v2728
    %v2809 = vpop.f32.mrf.mxu0
    %v2810 = vadd.f32 %v2692, %v2809
    %v2811 = vpop.f32.mrf.mxu0
    %v2812 = vadd.f32 %v2692, %v2811
    %2813 = vmatmul.bf16.gmra.mxu0 %v2729
    %v2814 = vpop.f32.mrf.mxu0
    %v2815 = vadd.f32 %v2692, %v2814
    %v2816 = vpop.f32.mrf.mxu0
    %v2817 = vadd.f32 %v2692, %v2816
    %2818 = vmatmul.bf16.gmra.mxu0 %v2730
    %v2819 = vpop.f32.mrf.mxu0
    %v2820 = vadd.f32 %v2692, %v2819
    %v2821 = vpop.f32.mrf.mxu0
    %v2822 = vadd.f32 %v2692, %v2821
    %2823 = vmatmul.bf16.gmra.mxu0 %v2731
    %v2824 = vpop.f32.mrf.mxu0
    %v2825 = vadd.f32 %v2692, %v2824
    %v2826 = vpop.f32.mrf.mxu0
    %v2827 = vadd.f32 %v2692, %v2826
    %2828 = vmatmul.bf16.gmra.mxu0 %v2732
    %v2829 = vpop.f32.mrf.mxu0
    %v2830 = vadd.f32 %v2692, %v2829
    %v2831 = vpop.f32.mrf.mxu0
    %v2832 = vadd.f32 %v2692, %v2831
    %2833 = vmatmul.bf16.gmra.mxu0 %v2733
    %v2834 = vpop.f32.mrf.mxu0
    %v2835 = vadd.f32 %v2692, %v2834
    %v2836 = vpop.f32.mrf.mxu0
    %v2837 = vadd.f32 %v2692, %v2836
    %2838 = vdwg.mxu0
    %v2839 = vld [vmem:[%s7] sm:$0x1]
    %v2840 = vld [vmem:[%s8] sm:$0x1]
    %2841 = vadd.xlane.f32.xlu0 %v2800
    %v2842 = vpop.xlane.xlu0 %2841
    %2843 = vadd.xlane.f32.xlu0 %v2802
    %v2844 = vpop.xlane.xlu0 %2843
    %2845 = vadd.xlane.f32.xlu0 %v2805
    %v2846 = vpop.xlane.xlu0 %2845
    %2847 = vadd.xlane.f32.xlu0 %v2807
    %v2848 = vpop.xlane.xlu0 %2847
    %2849 = vadd.xlane.f32.xlu0 %v2810
    %v2850 = vpop.xlane.xlu0 %2849
    %2851 = vadd.xlane.f32.xlu0 %v2812
    %v2852 = vpop.xlane.xlu0 %2851
    %2853 = vadd.xlane.f32.xlu0 %v2815
    %v2854 = vpop.xlane.xlu0 %2853
    %2855 = vadd.xlane.f32.xlu0 %v2817
    %v2856 = vpop.xlane.xlu0 %2855
    %2857 = vadd.xlane.f32.xlu0 %v2820
    %v2858 = vpop.xlane.xlu0 %2857
    %2859 = vadd.xlane.f32.xlu0 %v2822
    %v2860 = vpop.xlane.xlu0 %2859
    %2861 = vadd.xlane.f32.xlu0 %v2825
    %v2862 = vpop.xlane.xlu0 %2861
    %2863 = vadd.xlane.f32.xlu0 %v2827
    %v2864 = vpop.xlane.xlu0 %2863
    %2865 = vadd.xlane.f32.xlu0 %v2830
    %v2866 = vpop.xlane.xlu0 %2865
    %2867 = vadd.xlane.f32.xlu0 %v2832
    %v2868 = vpop.xlane.xlu0 %2867
    %2869 = vadd.xlane.f32.xlu0 %v2835
    %v2870 = vpop.xlane.xlu0 %2869
    %2871 = vadd.xlane.f32.xlu0 %v2837
    %v2872 = vpop.xlane.xlu0 %2871
    %v2873 = vmul.f32 %v2842, %v155
    %v2874 = vmul.f32 %v2844, %v155
    %v2875 = vmul.f32 %v2846, %v155
    %v2876 = vmul.f32 %v2848, %v155
    %v2877 = vmul.f32 %v2850, %v155
    %v2878 = vmul.f32 %v2852, %v155
    %v2879 = vmul.f32 %v2854, %v155
    %v2880 = vmul.f32 %v2856, %v155
    %v2881 = vmul.f32 %v2858, %v155
    %v2882 = vmul.f32 %v2860, %v155
    %v2883 = vmul.f32 %v2862, %v155
    %v2884 = vmul.f32 %v2864, %v155
    %v2885 = vmul.f32 %v2866, %v155
    %v2886 = vmul.f32 %v2868, %v155
    %v2887 = vmul.f32 %v2870, %v155
    %v2888 = vmul.f32 %v2872, %v155
    %v2889 = vmul.f32 %v2800, %v2800
    %v2890 = vmul.f32 %v2802, %v2802
    %v2891 = vmul.f32 %v2805, %v2805
    %v2892 = vmul.f32 %v2807, %v2807
    %v2893 = vmul.f32 %v2810, %v2810
    %v2894 = vmul.f32 %v2812, %v2812
    %v2895 = vmul.f32 %v2815, %v2815
    %v2896 = vmul.f32 %v2817, %v2817
    %v2897 = vmul.f32 %v2820, %v2820
    %v2898 = vmul.f32 %v2822, %v2822
    %v2899 = vmul.f32 %v2825, %v2825
    %v2900 = vmul.f32 %v2827, %v2827
    %v2901 = vmul.f32 %v2830, %v2830
    %v2902 = vmul.f32 %v2832, %v2832
    %v2903 = vmul.f32 %v2835, %v2835
    %v2904 = vmul.f32 %v2837, %v2837
    %2905 = vadd.xlane.f32.xlu0 %v2889
    %v2906 = vpop.xlane.xlu0 %2905
    %2907 = vadd.xlane.f32.xlu0 %v2890
    %v2908 = vpop.xlane.xlu0 %2907
    %2909 = vadd.xlane.f32.xlu0 %v2891
    %v2910 = vpop.xlane.xlu0 %2909
    %2911 = vadd.xlane.f32.xlu0 %v2892
    %v2912 = vpop.xlane.xlu0 %2911
    %2913 = vadd.xlane.f32.xlu0 %v2893
    %v2914 = vpop.xlane.xlu0 %2913
    %2915 = vadd.xlane.f32.xlu0 %v2894
    %v2916 = vpop.xlane.xlu0 %2915
    %2917 = vadd.xlane.f32.xlu0 %v2895
    %v2918 = vpop.xlane.xlu0 %2917
    %2919 = vadd.xlane.f32.xlu0 %v2896
    %v2920 = vpop.xlane.xlu0 %2919
    %2921 = vadd.xlane.f32.xlu0 %v2897
    %v2922 = vpop.xlane.xlu0 %2921
    %2923 = vadd.xlane.f32.xlu0 %v2898
    %v2924 = vpop.xlane.xlu0 %2923
    %2925 = vadd.xlane.f32.xlu0 %v2899
    %v2926 = vpop.xlane.xlu0 %2925
    %2927 = vadd.xlane.f32.xlu0 %v2900
    %v2928 = vpop.xlane.xlu0 %2927
    %2929 = vadd.xlane.f32.xlu0 %v2901
    %v2930 = vpop.xlane.xlu0 %2929
    %2931 = vadd.xlane.f32.xlu0 %v2902
    %v2932 = vpop.xlane.xlu0 %2931
    %2933 = vadd.xlane.f32.xlu0 %v2903
    %v2934 = vpop.xlane.xlu0 %2933
    %2935 = vadd.xlane.f32.xlu0 %v2904
    %v2936 = vpop.xlane.xlu0 %2935
    %v2937 = vmul.f32 %v2906, %v155
    %v2938 = vmul.f32 %v2908, %v155
    %v2939 = vmul.f32 %v2910, %v155
    %v2940 = vmul.f32 %v2912, %v155
    %v2941 = vmul.f32 %v2914, %v155
    %v2942 = vmul.f32 %v2916, %v155
    %v2943 = vmul.f32 %v2918, %v155
    %v2944 = vmul.f32 %v2920, %v155
    %v2945 = vmul.f32 %v2922, %v155
    %v2946 = vmul.f32 %v2924, %v155
    %v2947 = vmul.f32 %v2926, %v155
    %v2948 = vmul.f32 %v2928, %v155
    %v2949 = vmul.f32 %v2930, %v155
    %v2950 = vmul.f32 %v2932, %v155
    %v2951 = vmul.f32 %v2934, %v155
    %v2952 = vmul.f32 %v2936, %v155
    %v2953 = vmul.f32 %v2873, %v2873
    %v2954 = vmul.f32 %v2874, %v2874
    %v2955 = vmul.f32 %v2875, %v2875
    %v2956 = vmul.f32 %v2876, %v2876
    %v2957 = vmul.f32 %v2877, %v2877
    %v2958 = vmul.f32 %v2878, %v2878
    %v2959 = vmul.f32 %v2879, %v2879
    %v2960 = vmul.f32 %v2880, %v2880
    %v2961 = vmul.f32 %v2881, %v2881
    %v2962 = vmul.f32 %v2882, %v2882
    %v2963 = vmul.f32 %v2883, %v2883
    %v2964 = vmul.f32 %v2884, %v2884
    %v2965 = vmul.f32 %v2885, %v2885
    %v2966 = vmul.f32 %v2886, %v2886
    %v2967 = vmul.f32 %v2887, %v2887
    %v2968 = vmul.f32 %v2888, %v2888
    %v2969 = vsub.f32 %v2937, %v2953
    %v2970 = vsub.f32 %v2938, %v2954
    %v2971 = vsub.f32 %v2939, %v2955
    %v2972 = vsub.f32 %v2940, %v2956
    %v2973 = vsub.f32 %v2941, %v2957
    %v2974 = vsub.f32 %v2942, %v2958
    %v2975 = vsub.f32 %v2943, %v2959
    %v2976 = vsub.f32 %v2944, %v2960
    %v2977 = vsub.f32 %v2945, %v2961
    %v2978 = vsub.f32 %v2946, %v2962
    %v2979 = vsub.f32 %v2947, %v2963
    %v2980 = vsub.f32 %v2948, %v2964
    %v2981 = vsub.f32 %v2949, %v2965
    %v2982 = vsub.f32 %v2950, %v2966
    %v2983 = vsub.f32 %v2951, %v2967
    %v2984 = vsub.f32 %v2952, %v2968
    %v2985 = vsub.f32 %v2800, %v2873
    %v2986 = vsub.f32 %v2802, %v2874
    %v2987 = vsub.f32 %v2805, %v2875
    %v2988 = vsub.f32 %v2807, %v2876
    %v2989 = vsub.f32 %v2810, %v2877
    %v2990 = vsub.f32 %v2812, %v2878
    %v2991 = vsub.f32 %v2815, %v2879
    %v2992 = vsub.f32 %v2817, %v2880
    %v2993 = vsub.f32 %v2820, %v2881
    %v2994 = vsub.f32 %v2822, %v2882
    %v2995 = vsub.f32 %v2825, %v2883
    %v2996 = vsub.f32 %v2827, %v2884
    %v2997 = vsub.f32 %v2830, %v2885
    %v2998 = vsub.f32 %v2832, %v2886
    %v2999 = vsub.f32 %v2835, %v2887
    %v3000 = vsub.f32 %v2837, %v2888
    %v3001 = vadd.f32 %v2969, 1e-05
    %v3002 = vadd.f32 %v2970, 1e-05
    %v3003 = vadd.f32 %v2971, 1e-05
    %v3004 = vadd.f32 %v2972, 1e-05
    %v3005 = vadd.f32 %v2973, 1e-05
    %v3006 = vadd.f32 %v2974, 1e-05
    %v3007 = vadd.f32 %v2975, 1e-05
    %v3008 = vadd.f32 %v2976, 1e-05
    %v3009 = vadd.f32 %v2977, 1e-05
    %v3010 = vadd.f32 %v2978, 1e-05
    %v3011 = vadd.f32 %v2979, 1e-05
    %v3012 = vadd.f32 %v2980, 1e-05
    %v3013 = vadd.f32 %v2981, 1e-05
    %v3014 = vadd.f32 %v2982, 1e-05
    %v3015 = vadd.f32 %v2983, 1e-05
    %v3016 = vadd.f32 %v2984, 1e-05
    %v3017 = vrsqrt.pop %v3001
    %v3018 = vmul.f32 %v3017, %v3001
    %v3019 = vmul.f32 %v3018, %v3017
    %v3020 = vmul.f32 0.5, %v3019
    %v3021 = vsub.f32 1.5, %v3020
    %v3022 = vmul.f32 %v3017, %v3021
    %vm3023 = vweird.f32 %v3001
    %vm3024 = vweird.f32 %v3017
    %vm3025 = vmor %vm3023, %vm3024
    %v3026 = vsel %vm3025, %v3017, %v3022
    %v3027 = vrsqrt.pop %v3002
    %v3028 = vmul.f32 %v3027, %v3002
    %v3029 = vmul.f32 %v3028, %v3027
    %v3030 = vmul.f32 0.5, %v3029
    %v3031 = vsub.f32 1.5, %v3030
    %v3032 = vmul.f32 %v3027, %v3031
    %vm3033 = vweird.f32 %v3002
    %vm3034 = vweird.f32 %v3027
    %vm3035 = vmor %vm3033, %vm3034
    %v3036 = vsel %vm3035, %v3027, %v3032
    %v3037 = vrsqrt.pop %v3003
    %v3038 = vmul.f32 %v3037, %v3003
    %v3039 = vmul.f32 %v3038, %v3037
    %v3040 = vmul.f32 0.5, %v3039
    %v3041 = vsub.f32 1.5, %v3040
    %v3042 = vmul.f32 %v3037, %v3041
    %vm3043 = vweird.f32 %v3003
    %vm3044 = vweird.f32 %v3037
    %vm3045 = vmor %vm3043, %vm3044
    %v3046 = vsel %vm3045, %v3037, %v3042
    %v3047 = vrsqrt.pop %v3004
    %v3048 = vmul.f32 %v3047, %v3004
    %v3049 = vmul.f32 %v3048, %v3047
    %v3050 = vmul.f32 0.5, %v3049
    %v3051 = vsub.f32 1.5, %v3050
    %v3052 = vmul.f32 %v3047, %v3051
    %vm3053 = vweird.f32 %v3004
    %vm3054 = vweird.f32 %v3047
    %vm3055 = vmor %vm3053, %vm3054
    %v3056 = vsel %vm3055, %v3047, %v3052
    %v3057 = vrsqrt.pop %v3005
    %v3058 = vmul.f32 %v3057, %v3005
    %v3059 = vmul.f32 %v3058, %v3057
    %v3060 = vmul.f32 0.5, %v3059
    %v3061 = vsub.f32 1.5, %v3060
    %v3062 = vmul.f32 %v3057, %v3061
    %vm3063 = vweird.f32 %v3005
    %vm3064 = vweird.f32 %v3057
    %vm3065 = vmor %vm3063, %vm3064
    %v3066 = vsel %vm3065, %v3057, %v3062
    %v3067 = vrsqrt.pop %v3006
    %v3068 = vmul.f32 %v3067, %v3006
    %v3069 = vmul.f32 %v3068, %v3067
    %v3070 = vmul.f32 0.5, %v3069
    %v3071 = vsub.f32 1.5, %v3070
    %v3072 = vmul.f32 %v3067, %v3071
    %vm3073 = vweird.f32 %v3006
    %vm3074 = vweird.f32 %v3067
    %vm3075 = vmor %vm3073, %vm3074
    %v3076 = vsel %vm3075, %v3067, %v3072
    %v3077 = vrsqrt.pop %v3007
    %v3078 = vmul.f32 %v3077, %v3007
    %v3079 = vmul.f32 %v3078, %v3077
    %v3080 = vmul.f32 0.5, %v3079
    %v3081 = vsub.f32 1.5, %v3080
    %v3082 = vmul.f32 %v3077, %v3081
    %vm3083 = vweird.f32 %v3007
    %vm3084 = vweird.f32 %v3077
    %vm3085 = vmor %vm3083, %vm3084
    %v3086 = vsel %vm3085, %v3077, %v3082
    %v3087 = vrsqrt.pop %v3008
    %v3088 = vmul.f32 %v3087, %v3008
    %v3089 = vmul.f32 %v3088, %v3087
    %v3090 = vmul.f32 0.5, %v3089
    %v3091 = vsub.f32 1.5, %v3090
    %v3092 = vmul.f32 %v3087, %v3091
    %vm3093 = vweird.f32 %v3008
    %vm3094 = vweird.f32 %v3087
    %vm3095 = vmor %vm3093, %vm3094
    %v3096 = vsel %vm3095, %v3087, %v3092
    %v3097 = vrsqrt.pop %v3009
    %v3098 = vmul.f32 %v3097, %v3009
    %v3099 = vmul.f32 %v3098, %v3097
    %v3100 = vmul.f32 0.5, %v3099
    %v3101 = vsub.f32 1.5, %v3100
    %v3102 = vmul.f32 %v3097, %v3101
    %vm3103 = vweird.f32 %v3009
    %vm3104 = vweird.f32 %v3097
    %vm3105 = vmor %vm3103, %vm3104
    %v3106 = vsel %vm3105, %v3097, %v3102
    %v3107 = vrsqrt.pop %v3010
    %v3108 = vmul.f32 %v3107, %v3010
    %v3109 = vmul.f32 %v3108, %v3107
    %v3110 = vmul.f32 0.5, %v3109
    %v3111 = vsub.f32 1.5, %v3110
    %v3112 = vmul.f32 %v3107, %v3111
    %vm3113 = vweird.f32 %v3010
    %vm3114 = vweird.f32 %v3107
    %vm3115 = vmor %vm3113, %vm3114
    %v3116 = vsel %vm3115, %v3107, %v3112
    %v3117 = vrsqrt.pop %v3011
    %v3118 = vmul.f32 %v3117, %v3011
    %v3119 = vmul.f32 %v3118, %v3117
    %v3120 = vmul.f32 0.5, %v3119
    %v3121 = vsub.f32 1.5, %v3120
    %v3122 = vmul.f32 %v3117, %v3121
    %vm3123 = vweird.f32 %v3011
    %vm3124 = vweird.f32 %v3117
    %vm3125 = vmor %vm3123, %vm3124
    %v3126 = vsel %vm3125, %v3117, %v3122
    %v3127 = vrsqrt.pop %v3012
    %v3128 = vmul.f32 %v3127, %v3012
    %v3129 = vmul.f32 %v3128, %v3127
    %v3130 = vmul.f32 0.5, %v3129
    %v3131 = vsub.f32 1.5, %v3130
    %v3132 = vmul.f32 %v3127, %v3131
    %vm3133 = vweird.f32 %v3012
    %vm3134 = vweird.f32 %v3127
    %vm3135 = vmor %vm3133, %vm3134
    %v3136 = vsel %vm3135, %v3127, %v3132
    %v3137 = vrsqrt.pop %v3013
    %v3138 = vmul.f32 %v3137, %v3013
    %v3139 = vmul.f32 %v3138, %v3137
    %v3140 = vmul.f32 0.5, %v3139
    %v3141 = vsub.f32 1.5, %v3140
    %v3142 = vmul.f32 %v3137, %v3141
    %vm3143 = vweird.f32 %v3013
    %vm3144 = vweird.f32 %v3137
    %vm3145 = vmor %vm3143, %vm3144
    %v3146 = vsel %vm3145, %v3137, %v3142
    %v3147 = vrsqrt.pop %v3014
    %v3148 = vmul.f32 %v3147, %v3014
    %v3149 = vmul.f32 %v3148, %v3147
    %v3150 = vmul.f32 0.5, %v3149
    %v3151 = vsub.f32 1.5, %v3150
    %v3152 = vmul.f32 %v3147, %v3151
    %vm3153 = vweird.f32 %v3014
    %vm3154 = vweird.f32 %v3147
    %vm3155 = vmor %vm3153, %vm3154
    %v3156 = vsel %vm3155, %v3147, %v3152
    %v3157 = vrsqrt.pop %v3015
    %v3158 = vmul.f32 %v3157, %v3015
    %v3159 = vmul.f32 %v3158, %v3157
    %v3160 = vmul.f32 0.5, %v3159
    %v3161 = vsub.f32 1.5, %v3160
    %v3162 = vmul.f32 %v3157, %v3161
    %vm3163 = vweird.f32 %v3015
    %vm3164 = vweird.f32 %v3157
    %vm3165 = vmor %vm3163, %vm3164
    %v3166 = vsel %vm3165, %v3157, %v3162
    %v3167 = vrsqrt.pop %v3016
    %v3168 = vmul.f32 %v3167, %v3016
    %v3169 = vmul.f32 %v3168, %v3167
    %v3170 = vmul.f32 0.5, %v3169
    %v3171 = vsub.f32 1.5, %v3170
    %v3172 = vmul.f32 %v3167, %v3171
    %vm3173 = vweird.f32 %v3016
    %vm3174 = vweird.f32 %v3167
    %vm3175 = vmor %vm3173, %vm3174
    %v3176 = vsel %vm3175, %v3167, %v3172
    %v3177 = vmul.f32 %v2985, %v3026
    %v3178 = vmul.f32 %v2986, %v3036
    %v3179 = vmul.f32 %v2987, %v3046
    %v3180 = vmul.f32 %v2988, %v3056
    %v3181 = vmul.f32 %v2989, %v3066
    %v3182 = vmul.f32 %v2990, %v3076
    %v3183 = vmul.f32 %v2991, %v3086
    %v3184 = vmul.f32 %v2992, %v3096
    %v3185 = vmul.f32 %v2993, %v3106
    %v3186 = vmul.f32 %v2994, %v3116
    %v3187 = vmul.f32 %v2995, %v3126
    %v3188 = vmul.f32 %v2996, %v3136
    %v3189 = vmul.f32 %v2997, %v3146
    %v3190 = vmul.f32 %v2998, %v3156
    %v3191 = vmul.f32 %v2999, %v3166
    %v3192 = vmul.f32 %v3000, %v3176
    %v3194 = vperm.slane %v2839, 0
    %v3196 = vmul.f32 %v3177, %v3194
    %v3197 = vmul.f32 %v3178, %v3194
    %v3198 = vmul.f32 %v3179, %v3194
    %v3199 = vmul.f32 %v3180, %v3194
    %v3200 = vmul.f32 %v3181, %v3194
    %v3201 = vmul.f32 %v3182, %v3194
    %v3202 = vmul.f32 %v3183, %v3194
    %v3203 = vmul.f32 %v3184, %v3194
    %v3204 = vmul.f32 %v3185, %v3194
    %v3205 = vmul.f32 %v3186, %v3194
    %v3206 = vmul.f32 %v3187, %v3194
    %v3207 = vmul.f32 %v3188, %v3194
    %v3208 = vmul.f32 %v3189, %v3194
    %v3209 = vmul.f32 %v3190, %v3194
    %v3210 = vmul.f32 %v3191, %v3194
    %v3211 = vmul.f32 %v3192, %v3194
    %v3213 = vperm.slane %v2840, 0
    %v3215 = vadd.f32 %v3196, %v3213
    %v3216 = vadd.f32 %v3197, %v3213
    %v3217 = vadd.f32 %v3198, %v3213
    %v3218 = vadd.f32 %v3199, %v3213
    %v3219 = vadd.f32 %v3200, %v3213
    %v3220 = vadd.f32 %v3201, %v3213
    %v3221 = vadd.f32 %v3202, %v3213
    %v3222 = vadd.f32 %v3203, %v3213
    %v3223 = vadd.f32 %v3204, %v3213
    %v3224 = vadd.f32 %v3205, %v3213
    %v3225 = vadd.f32 %v3206, %v3213
    %v3226 = vadd.f32 %v3207, %v3213
    %v3227 = vadd.f32 %v3208, %v3213
    %v3228 = vadd.f32 %v3209, %v3213
    %v3229 = vadd.f32 %v3210, %v3213
    %v3230 = vadd.f32 %v3211, %v3213
    %v3231 = vpack.c.bf16 %v3216, %v3215
    %v3232 = vpack.c.bf16 %v3218, %v3217
    %v3233 = vpack.c.bf16 %v3220, %v3219
    %v3234 = vpack.c.bf16 %v3222, %v3221
    %v3235 = vpack.c.bf16 %v3224, %v3223
    %v3236 = vpack.c.bf16 %v3226, %v3225
    %v3237 = vpack.c.bf16 %v3228, %v3227
    %v3238 = vpack.c.bf16 %v3230, %v3229
    %v3239 = vld [vmem:[%s9] sm:$0xff]
    %v3240 = vld [vmem:[%s9 + $0x8] sm:$0xff]
    %v3241 = vld [vmem:[%s9 + $0x10] sm:$0xff]
    %v3242 = vld [vmem:[%s9 + $0x18] sm:$0xff]
    %v3243 = vld [vmem:[%s9 + $0x20] sm:$0xff]
    %v3244 = vld [vmem:[%s9 + $0x28] sm:$0xff]
    %v3245 = vld [vmem:[%s9 + $0x30] sm:$0xff]
    %v3246 = vld [vmem:[%s9 + $0x38] sm:$0xff]
    %v3247 = vld [vmem:[%s9 + $0x40] sm:$0xff]
    %v3248 = vld [vmem:[%s9 + $0x48] sm:$0xff]
    %v3249 = vld [vmem:[%s9 + $0x50] sm:$0xff]
    %v3250 = vld [vmem:[%s9 + $0x58] sm:$0xff]
    %v3251 = vld [vmem:[%s9 + $0x60] sm:$0xff]
    %v3252 = vld [vmem:[%s9 + $0x68] sm:$0xff]
    %v3253 = vld [vmem:[%s9 + $0x70] sm:$0xff]
    %v3254 = vld [vmem:[%s9 + $0x78] sm:$0xff]
    %v3255 = vld [vmem:[%s9 + $0x80] sm:$0xff]
    %v3256 = vld [vmem:[%s9 + $0x88] sm:$0xff]
    %v3257 = vld [vmem:[%s9 + $0x90] sm:$0xff]
    %v3258 = vld [vmem:[%s9 + $0x98] sm:$0xff]
    %v3259 = vld [vmem:[%s9 + $0xa0] sm:$0xff]
    %v3260 = vld [vmem:[%s9 + $0xa8] sm:$0xff]
    %v3261 = vld [vmem:[%s9 + $0xb0] sm:$0xff]
    %v3262 = vld [vmem:[%s9 + $0xb8] sm:$0xff]
    %v3263 = vld [vmem:[%s9 + $0xc0] sm:$0xff]
    %v3264 = vld [vmem:[%s9 + $0xc8] sm:$0xff]
    %v3265 = vld [vmem:[%s9 + $0xd0] sm:$0xff]
    %v3266 = vld [vmem:[%s9 + $0xd8] sm:$0xff]
    %v3267 = vld [vmem:[%s9 + $0xe0] sm:$0xff]
    %v3268 = vld [vmem:[%s9 + $0xe8] sm:$0xff]
    %v3269 = vld [vmem:[%s9 + $0xf0] sm:$0xff]
    %v3270 = vld [vmem:[%s9 + $0xf8] sm:$0xff]
    %v3271 = vld [vmem:[%s10] sm:$0xf]
    %v3273 = vperm.slane %v3271, 0
    %v3274 = vperm.slane %v3271, 1
    %v3275 = vperm.slane %v3271, 2
    %v3276 = vperm.slane %v3271, 3
    %v3313 = vunpack.c.l.b16 %v3239
    %v3314 = vunpack.c.h.b16 %v3239
    %v3315 = vunpack.c.l.b16 %v3240
    %v3316 = vunpack.c.h.b16 %v3240
    %v3317 = vunpack.c.l.b16 %v3241
    %v3318 = vunpack.c.h.b16 %v3241
    %v3319 = vunpack.c.l.b16 %v3242
    %v3320 = vunpack.c.h.b16 %v3242
    %v3321 = vunpack.c.l.b16 %v3243
    %v3322 = vunpack.c.h.b16 %v3243
    %v3323 = vunpack.c.l.b16 %v3244
    %v3324 = vunpack.c.h.b16 %v3244
    %v3325 = vunpack.c.l.b16 %v3245
    %v3326 = vunpack.c.h.b16 %v3245
    %v3327 = vunpack.c.l.b16 %v3246
    %v3328 = vunpack.c.h.b16 %v3246
    %v3329 = vunpack.c.l.b16 %v3247
    %v3330 = vunpack.c.h.b16 %v3247
    %v3331 = vunpack.c.l.b16 %v3248
    %v3332 = vunpack.c.h.b16 %v3248
    %v3333 = vunpack.c.l.b16 %v3249
    %v3334 = vunpack.c.h.b16 %v3249
    %v3335 = vunpack.c.l.b16 %v3250
    %v3336 = vunpack.c.h.b16 %v3250
    %v3337 = vunpack.c.l.b16 %v3251
    %v3338 = vunpack.c.h.b16 %v3251
    %v3339 = vunpack.c.l.b16 %v3252
    %v3340 = vunpack.c.h.b16 %v3252
    %v3341 = vunpack.c.l.b16 %v3253
    %v3342 = vunpack.c.h.b16 %v3253
    %v3343 = vunpack.c.l.b16 %v3254
    %v3344 = vunpack.c.h.b16 %v3254
    %v3345 = vunpack.c.l.b16 %v3255
    %v3346 = vunpack.c.h.b16 %v3255
    %v3347 = vunpack.c.l.b16 %v3256
    %v3348 = vunpack.c.h.b16 %v3256
    %v3349 = vunpack.c.l.b16 %v3257
    %v3350 = vunpack.c.h.b16 %v3257
    %v3351 = vunpack.c.l.b16 %v3258
    %v3352 = vunpack.c.h.b16 %v3258
    %v3353 = vunpack.c.l.b16 %v3259
    %v3354 = vunpack.c.h.b16 %v3259
    %v3355 = vunpack.c.l.b16 %v3260
    %v3356 = vunpack.c.h.b16 %v3260
    %v3357 = vunpack.c.l.b16 %v3261
    %v3358 = vunpack.c.h.b16 %v3261
    %v3359 = vunpack.c.l.b16 %v3262
    %v3360 = vunpack.c.h.b16 %v3262
    %v3361 = vunpack.c.l.b16 %v3263
    %v3362 = vunpack.c.h.b16 %v3263
    %v3363 = vunpack.c.l.b16 %v3264
    %v3364 = vunpack.c.h.b16 %v3264
    %v3365 = vunpack.c.l.b16 %v3265
    %v3366 = vunpack.c.h.b16 %v3265
    %v3367 = vunpack.c.l.b16 %v3266
    %v3368 = vunpack.c.h.b16 %v3266
    %v3369 = vunpack.c.l.b16 %v3267
    %v3370 = vunpack.c.h.b16 %v3267
    %v3371 = vunpack.c.l.b16 %v3268
    %v3372 = vunpack.c.h.b16 %v3268
    %v3373 = vunpack.c.l.b16 %v3269
    %v3374 = vunpack.c.h.b16 %v3269
    %v3375 = vunpack.c.l.b16 %v3270
    %v3376 = vunpack.c.h.b16 %v3270
    %v3377 = vpack.c.b16 %v3317, %v3313
    %v3378 = vpack.c.b16 %v3318, %v3314
    %v3379 = vpack.c.b16 %v3319, %v3315
    %v3380 = vpack.c.b16 %v3320, %v3316
    %v3381 = vpack.c.b16 %v3325, %v3321
    %v3382 = vpack.c.b16 %v3326, %v3322
    %v3383 = vpack.c.b16 %v3327, %v3323
    %v3384 = vpack.c.b16 %v3328, %v3324
    %v3385 = vpack.c.b16 %v3333, %v3329
    %v3386 = vpack.c.b16 %v3334, %v3330
    %v3387 = vpack.c.b16 %v3335, %v3331
    %v3388 = vpack.c.b16 %v3336, %v3332
    %v3389 = vpack.c.b16 %v3341, %v3337
    %v3390 = vpack.c.b16 %v3342, %v3338
    %v3391 = vpack.c.b16 %v3343, %v3339
    %v3392 = vpack.c.b16 %v3344, %v3340
    %v3393 = vpack.c.b16 %v3349, %v3345
    %v3394 = vpack.c.b16 %v3350, %v3346
    %v3395 = vpack.c.b16 %v3351, %v3347
    %v3396 = vpack.c.b16 %v3352, %v3348
    %v3397 = vpack.c.b16 %v3357, %v3353
    %v3398 = vpack.c.b16 %v3358, %v3354
    %v3399 = vpack.c.b16 %v3359, %v3355
    %v3400 = vpack.c.b16 %v3360, %v3356
    %v3401 = vpack.c.b16 %v3365, %v3361
    %v3402 = vpack.c.b16 %v3366, %v3362
    %v3403 = vpack.c.b16 %v3367, %v3363
    %v3404 = vpack.c.b16 %v3368, %v3364
    %v3405 = vpack.c.b16 %v3373, %v3369
    %v3406 = vpack.c.b16 %v3374, %v3370
    %v3407 = vpack.c.b16 %v3375, %v3371
    %v3408 = vpack.c.b16 %v3376, %v3372
    %3441 = vmatpush.bf16.msra.mxu0 %v3405
    %3442 = vmatpush.bf16.msra.mxu0 %v3401
    %3443 = vmatpush.bf16.msra.mxu0 %v3397
    %3444 = vmatpush.bf16.msra.mxu0 %v3393
    %3445 = vmatpush.bf16.msra.mxu0 %v3389
    %3446 = vmatpush.bf16.msra.mxu0 %v3385
    %3447 = vmatpush.bf16.msra.mxu0 %v3381
    %3448 = vmatpush.bf16.msra.mxu0 %v3377
    %3449 = vmatmul.bf16.gmra.mxu0 %v3231
    %v3450 = vpop.f32.mrf.mxu0
    %v3451 = vadd.f32 %v3273, %v3450
    %v3452 = vpop.f32.mrf.mxu0
    %v3453 = vadd.f32 %v3273, %v3452
    %3454 = vmatmul.bf16.gmra.mxu0 %v3232
    %v3455 = vpop.f32.mrf.mxu0
    %v3456 = vadd.f32 %v3273, %v3455
    %v3457 = vpop.f32.mrf.mxu0
    %v3458 = vadd.f32 %v3273, %v3457
    %3459 = vmatmul.bf16.gmra.mxu0 %v3233
    %v3460 = vpop.f32.mrf.mxu0
    %v3461 = vadd.f32 %v3273, %v3460
    %v3462 = vpop.f32.mrf.mxu0
    %v3463 = vadd.f32 %v3273, %v3462
    %3464 = vmatmul.bf16.gmra.mxu0 %v3234
    %v3465 = vpop.f32.mrf.mxu0
    %v3466 = vadd.f32 %v3273, %v3465
    %v3467 = vpop.f32.mrf.mxu0
    %v3468 = vadd.f32 %v3273, %v3467
    %3469 = vmatmul.bf16.gmra.mxu0 %v3235
    %v3470 = vpop.f32.mrf.mxu0
    %v3471 = vadd.f32 %v3273, %v3470
    %v3472 = vpop.f32.mrf.mxu0
    %v3473 = vadd.f32 %v3273, %v3472
    %3474 = vmatmul.bf16.gmra.mxu0 %v3236
    %v3475 = vpop.f32.mrf.mxu0
    %v3476 = vadd.f32 %v3273, %v3475
    %v3477 = vpop.f32.mrf.mxu0
    %v3478 = vadd.f32 %v3273, %v3477
    %3479 = vmatmul.bf16.gmra.mxu0 %v3237
    %v3480 = vpop.f32.mrf.mxu0
    %v3481 = vadd.f32 %v3273, %v3480
    %v3482 = vpop.f32.mrf.mxu0
    %v3483 = vadd.f32 %v3273, %v3482
    %3484 = vmatmul.bf16.gmra.mxu0 %v3238
    %v3485 = vpop.f32.mrf.mxu0
    %v3486 = vadd.f32 %v3273, %v3485
    %v3487 = vpop.f32.mrf.mxu0
    %v3488 = vadd.f32 %v3273, %v3487
    %3489 = vdwg.mxu0
    %3490 = vmatpush.bf16.msra.mxu0 %v3406
    %3491 = vmatpush.bf16.msra.mxu0 %v3402
    %3492 = vmatpush.bf16.msra.mxu0 %v3398
    %3493 = vmatpush.bf16.msra.mxu0 %v3394
    %3494 = vmatpush.bf16.msra.mxu0 %v3390
    %3495 = vmatpush.bf16.msra.mxu0 %v3386
    %3496 = vmatpush.bf16.msra.mxu0 %v3382
    %3497 = vmatpush.bf16.msra.mxu0 %v3378
    %3498 = vmatmul.bf16.gmra.mxu0 %v3231
    %v3499 = vpop.f32.mrf.mxu0
    %v3500 = vadd.f32 %v3274, %v3499
    %v3501 = vpop.f32.mrf.mxu0
    %v3502 = vadd.f32 %v3274, %v3501
    %3503 = vmatmul.bf16.gmra.mxu0 %v3232
    %v3504 = vpop.f32.mrf.mxu0
    %v3505 = vadd.f32 %v3274, %v3504
    %v3506 = vpop.f32.mrf.mxu0
    %v3507 = vadd.f32 %v3274, %v3506
    %3508 = vmatmul.bf16.gmra.mxu0 %v3233
    %v3509 = vpop.f32.mrf.mxu0
    %v3510 = vadd.f32 %v3274, %v3509
    %v3511 = vpop.f32.mrf.mxu0
    %v3512 = vadd.f32 %v3274, %v3511
    %3513 = vmatmul.bf16.gmra.mxu0 %v3234
    %v3514 = vpop.f32.mrf.mxu0
    %v3515 = vadd.f32 %v3274, %v3514
    %v3516 = vpop.f32.mrf.mxu0
    %v3517 = vadd.f32 %v3274, %v3516
    %3518 = vmatmul.bf16.gmra.mxu0 %v3235
    %v3519 = vpop.f32.mrf.mxu0
    %v3520 = vadd.f32 %v3274, %v3519
    %v3521 = vpop.f32.mrf.mxu0
    %v3522 = vadd.f32 %v3274, %v3521
    %3523 = vmatmul.bf16.gmra.mxu0 %v3236
    %v3524 = vpop.f32.mrf.mxu0
    %v3525 = vadd.f32 %v3274, %v3524
    %v3526 = vpop.f32.mrf.mxu0
    %v3527 = vadd.f32 %v3274, %v3526
    %3528 = vmatmul.bf16.gmra.mxu0 %v3237
    %v3529 = vpop.f32.mrf.mxu0
    %v3530 = vadd.f32 %v3274, %v3529
    %v3531 = vpop.f32.mrf.mxu0
    %v3532 = vadd.f32 %v3274, %v3531
    %3533 = vmatmul.bf16.gmra.mxu0 %v3238
    %v3534 = vpop.f32.mrf.mxu0
    %v3535 = vadd.f32 %v3274, %v3534
    %v3536 = vpop.f32.mrf.mxu0
    %v3537 = vadd.f32 %v3274, %v3536
    %3538 = vdwg.mxu0
    %3539 = vmatpush.bf16.msra.mxu0 %v3407
    %3540 = vmatpush.bf16.msra.mxu0 %v3403
    %3541 = vmatpush.bf16.msra.mxu0 %v3399
    %3542 = vmatpush.bf16.msra.mxu0 %v3395
    %3543 = vmatpush.bf16.msra.mxu0 %v3391
    %3544 = vmatpush.bf16.msra.mxu0 %v3387
    %3545 = vmatpush.bf16.msra.mxu0 %v3383
    %3546 = vmatpush.bf16.msra.mxu0 %v3379
    %3547 = vmatmul.bf16.gmra.mxu0 %v3231
    %v3548 = vpop.f32.mrf.mxu0
    %v3549 = vadd.f32 %v3275, %v3548
    %v3550 = vpop.f32.mrf.mxu0
    %v3551 = vadd.f32 %v3275, %v3550
    %3552 = vmatmul.bf16.gmra.mxu0 %v3232
    %v3553 = vpop.f32.mrf.mxu0
    %v3554 = vadd.f32 %v3275, %v3553
    %v3555 = vpop.f32.mrf.mxu0
    %v3556 = vadd.f32 %v3275, %v3555
    %3557 = vmatmul.bf16.gmra.mxu0 %v3233
    %v3558 = vpop.f32.mrf.mxu0
    %v3559 = vadd.f32 %v3275, %v3558
    %v3560 = vpop.f32.mrf.mxu0
    %v3561 = vadd.f32 %v3275, %v3560
    %3562 = vmatmul.bf16.gmra.mxu0 %v3234
    %v3563 = vpop.f32.mrf.mxu0
    %v3564 = vadd.f32 %v3275, %v3563
    %v3565 = vpop.f32.mrf.mxu0
    %v3566 = vadd.f32 %v3275, %v3565
    %3567 = vmatmul.bf16.gmra.mxu0 %v3235
    %v3568 = vpop.f32.mrf.mxu0
    %v3569 = vadd.f32 %v3275, %v3568
    %v3570 = vpop.f32.mrf.mxu0
    %v3571 = vadd.f32 %v3275, %v3570
    %3572 = vmatmul.bf16.gmra.mxu0 %v3236
    %v3573 = vpop.f32.mrf.mxu0
    %v3574 = vadd.f32 %v3275, %v3573
    %v3575 = vpop.f32.mrf.mxu0
    %v3576 = vadd.f32 %v3275, %v3575
    %3577 = vmatmul.bf16.gmra.mxu0 %v3237
    %v3578 = vpop.f32.mrf.mxu0
    %v3579 = vadd.f32 %v3275, %v3578
    %v3580 = vpop.f32.mrf.mxu0
    %v3581 = vadd.f32 %v3275, %v3580
    %3582 = vmatmul.bf16.gmra.mxu0 %v3238
    %v3583 = vpop.f32.mrf.mxu0
    %v3584 = vadd.f32 %v3275, %v3583
    %v3585 = vpop.f32.mrf.mxu0
    %v3586 = vadd.f32 %v3275, %v3585
    %3587 = vdwg.mxu0
    %3588 = vmatpush.bf16.msra.mxu0 %v3408
    %3589 = vmatpush.bf16.msra.mxu0 %v3404
    %3590 = vmatpush.bf16.msra.mxu0 %v3400
    %3591 = vmatpush.bf16.msra.mxu0 %v3396
    %3592 = vmatpush.bf16.msra.mxu0 %v3392
    %3593 = vmatpush.bf16.msra.mxu0 %v3388
    %3594 = vmatpush.bf16.msra.mxu0 %v3384
    %3595 = vmatpush.bf16.msra.mxu0 %v3380
    %3596 = vmatmul.bf16.gmra.mxu0 %v3231
    %v3597 = vpop.f32.mrf.mxu0
    %v3598 = vadd.f32 %v3276, %v3597
    %v3599 = vpop.f32.mrf.mxu0
    %v3600 = vadd.f32 %v3276, %v3599
    %3601 = vmatmul.bf16.gmra.mxu0 %v3232
    %v3602 = vpop.f32.mrf.mxu0
    %v3603 = vadd.f32 %v3276, %v3602
    %v3604 = vpop.f32.mrf.mxu0
    %v3605 = vadd.f32 %v3276, %v3604
    %3606 = vmatmul.bf16.gmra.mxu0 %v3233
    %v3607 = vpop.f32.mrf.mxu0
    %v3608 = vadd.f32 %v3276, %v3607
    %v3609 = vpop.f32.mrf.mxu0
    %v3610 = vadd.f32 %v3276, %v3609
    %3611 = vmatmul.bf16.gmra.mxu0 %v3234
    %v3612 = vpop.f32.mrf.mxu0
    %v3613 = vadd.f32 %v3276, %v3612
    %v3614 = vpop.f32.mrf.mxu0
    %v3615 = vadd.f32 %v3276, %v3614
    %3616 = vmatmul.bf16.gmra.mxu0 %v3235
    %v3617 = vpop.f32.mrf.mxu0
    %v3618 = vadd.f32 %v3276, %v3617
    %v3619 = vpop.f32.mrf.mxu0
    %v3620 = vadd.f32 %v3276, %v3619
    %3621 = vmatmul.bf16.gmra.mxu0 %v3236
    %v3622 = vpop.f32.mrf.mxu0
    %v3623 = vadd.f32 %v3276, %v3622
    %v3624 = vpop.f32.mrf.mxu0
    %v3625 = vadd.f32 %v3276, %v3624
    %3626 = vmatmul.bf16.gmra.mxu0 %v3237
    %v3627 = vpop.f32.mrf.mxu0
    %v3628 = vadd.f32 %v3276, %v3627
    %v3629 = vpop.f32.mrf.mxu0
    %v3630 = vadd.f32 %v3276, %v3629
    %3631 = vmatmul.bf16.gmra.mxu0 %v3238
    %v3632 = vpop.f32.mrf.mxu0
    %v3633 = vadd.f32 %v3276, %v3632
    %v3634 = vpop.f32.mrf.mxu0
    %v3635 = vadd.f32 %v3276, %v3634
    %3636 = vdwg.mxu0
    %v3637 = vmax.f32 %v3451, 0.0
    %v3638 = vmax.f32 %v3500, 0.0
    %v3639 = vmax.f32 %v3549, 0.0
    %v3640 = vmax.f32 %v3598, 0.0
    %v3641 = vmax.f32 %v3453, 0.0
    %v3642 = vmax.f32 %v3502, 0.0
    %v3643 = vmax.f32 %v3551, 0.0
    %v3644 = vmax.f32 %v3600, 0.0
    %v3645 = vmax.f32 %v3456, 0.0
    %v3646 = vmax.f32 %v3505, 0.0
    %v3647 = vmax.f32 %v3554, 0.0
    %v3648 = vmax.f32 %v3603, 0.0
    %v3649 = vmax.f32 %v3458, 0.0
    %v3650 = vmax.f32 %v3507, 0.0
    %v3651 = vmax.f32 %v3556, 0.0
    %v3652 = vmax.f32 %v3605, 0.0
    %v3653 = vmax.f32 %v3461, 0.0
    %v3654 = vmax.f32 %v3510, 0.0
    %v3655 = vmax.f32 %v3559, 0.0
    %v3656 = vmax.f32 %v3608, 0.0
    %v3657 = vmax.f32 %v3463, 0.0
    %v3658 = vmax.f32 %v3512, 0.0
    %v3659 = vmax.f32 %v3561, 0.0
    %v3660 = vmax.f32 %v3610, 0.0
    %v3661 = vmax.f32 %v3466, 0.0
    %v3662 = vmax.f32 %v3515, 0.0
    %v3663 = vmax.f32 %v3564, 0.0
    %v3664 = vmax.f32 %v3613, 0.0
    %v3665 = vmax.f32 %v3468, 0.0
    %v3666 = vmax.f32 %v3517, 0.0
    %v3667 = vmax.f32 %v3566, 0.0
    %v3668 = vmax.f32 %v3615, 0.0
    %v3669 = vmax.f32 %v3471, 0.0
    %v3670 = vmax.f32 %v3520, 0.0
    %v3671 = vmax.f32 %v3569, 0.0
    %v3672 = vmax.f32 %v3618, 0.0
    %v3673 = vmax.f32 %v3473, 0.0
    %v3674 = vmax.f32 %v3522, 0.0
    %v3675 = vmax.f32 %v3571, 0.0
    %v3676 = vmax.f32 %v3620, 0.0
    %v3677 = vmax.f32 %v3476, 0.0
    %v3678 = vmax.f32 %v3525, 0.0
    %v3679 = vmax.f32 %v3574, 0.0
    %v3680 = vmax.f32 %v3623, 0.0
    %v3681 = vmax.f32 %v3478, 0.0
    %v3682 = vmax.f32 %v3527, 0.0
    %v3683 = vmax.f32 %v3576, 0.0
    %v3684 = vmax.f32 %v3625, 0.0
    %v3685 = vmax.f32 %v3481, 0.0
    %v3686 = vmax.f32 %v3530, 0.0
    %v3687 = vmax.f32 %v3579, 0.0
    %v3688 = vmax.f32 %v3628, 0.0
    %v3689 = vmax.f32 %v3483, 0.0
    %v3690 = vmax.f32 %v3532, 0.0
    %v3691 = vmax.f32 %v3581, 0.0
    %v3692 = vmax.f32 %v3630, 0.0
    %v3693 = vmax.f32 %v3486, 0.0
    %v3694 = vmax.f32 %v3535, 0.0
    %v3695 = vmax.f32 %v3584, 0.0
    %v3696 = vmax.f32 %v3633, 0.0
    %v3697 = vmax.f32 %v3488, 0.0
    %v3698 = vmax.f32 %v3537, 0.0
    %v3699 = vmax.f32 %v3586, 0.0
    %v3700 = vmax.f32 %v3635, 0.0
    %v3701 = vpack.c.bf16 %v3641, %v3637
    %v3702 = vpack.c.bf16 %v3642, %v3638
    %v3703 = vpack.c.bf16 %v3643, %v3639
    %v3704 = vpack.c.bf16 %v3644, %v3640
    %v3705 = vpack.c.bf16 %v3649, %v3645
    %v3706 = vpack.c.bf16 %v3650, %v3646
    %v3707 = vpack.c.bf16 %v3651, %v3647
    %v3708 = vpack.c.bf16 %v3652, %v3648
    %v3709 = vpack.c.bf16 %v3657, %v3653
    %v3710 = vpack.c.bf16 %v3658, %v3654
    %v3711 = vpack.c.bf16 %v3659, %v3655
    %v3712 = vpack.c.bf16 %v3660, %v3656
    %v3713 = vpack.c.bf16 %v3665, %v3661
    %v3714 = vpack.c.bf16 %v3666, %v3662
    %v3715 = vpack.c.bf16 %v3667, %v3663
    %v3716 = vpack.c.bf16 %v3668, %v3664
    %v3717 = vpack.c.bf16 %v3673, %v3669
    %v3718 = vpack.c.bf16 %v3674, %v3670
    %v3719 = vpack.c.bf16 %v3675, %v3671
    %v3720 = vpack.c.bf16 %v3676, %v3672
    %v3721 = vpack.c.bf16 %v3681, %v3677
    %v3722 = vpack.c.bf16 %v3682, %v3678
    %v3723 = vpack.c.bf16 %v3683, %v3679
    %v3724 = vpack.c.bf16 %v3684, %v3680
    %v3725 = vpack.c.bf16 %v3689, %v3685
    %v3726 = vpack.c.bf16 %v3690, %v3686
    %v3727 = vpack.c.bf16 %v3691, %v3687
    %v3728 = vpack.c.bf16 %v3692, %v3688
    %v3729 = vpack.c.bf16 %v3697, %v3693
    %v3730 = vpack.c.bf16 %v3698, %v3694
    %v3731 = vpack.c.bf16 %v3699, %v3695
    %v3732 = vpack.c.bf16 %v3700, %v3696
    %v3733 = vld [vmem:[%s11] sm:$0xf]
    %v3734 = vld [vmem:[%s11 + $0x4] sm:$0xf]
    %v3735 = vld [vmem:[%s11 + $0x8] sm:$0xf]
    %v3736 = vld [vmem:[%s11 + $0xc] sm:$0xf]
    %v3737 = vld [vmem:[%s11 + $0x10] sm:$0xf]
    %v3738 = vld [vmem:[%s11 + $0x14] sm:$0xf]
    %v3739 = vld [vmem:[%s11 + $0x18] sm:$0xf]
    %v3740 = vld [vmem:[%s11 + $0x1c] sm:$0xf]
    %v3741 = vld [vmem:[%s11 + $0x20] sm:$0xf]
    %v3742 = vld [vmem:[%s11 + $0x24] sm:$0xf]
    %v3743 = vld [vmem:[%s11 + $0x28] sm:$0xf]
    %v3744 = vld [vmem:[%s11 + $0x2c] sm:$0xf]
    %v3745 = vld [vmem:[%s11 + $0x30] sm:$0xf]
    %v3746 = vld [vmem:[%s11 + $0x34] sm:$0xf]
    %v3747 = vld [vmem:[%s11 + $0x38] sm:$0xf]
    %v3748 = vld [vmem:[%s11 + $0x3c] sm:$0xf]
    %v3749 = vld [vmem:[%s11 + $0x40] sm:$0xf]
    %v3750 = vld [vmem:[%s11 + $0x44] sm:$0xf]
    %v3751 = vld [vmem:[%s11 + $0x48] sm:$0xf]
    %v3752 = vld [vmem:[%s11 + $0x4c] sm:$0xf]
    %v3753 = vld [vmem:[%s11 + $0x50] sm:$0xf]
    %v3754 = vld [vmem:[%s11 + $0x54] sm:$0xf]
    %v3755 = vld [vmem:[%s11 + $0x58] sm:$0xf]
    %v3756 = vld [vmem:[%s11 + $0x5c] sm:$0xf]
    %v3757 = vld [vmem:[%s11 + $0x60] sm:$0xf]
    %v3758 = vld [vmem:[%s11 + $0x64] sm:$0xf]
    %v3759 = vld [vmem:[%s11 + $0x68] sm:$0xf]
    %v3760 = vld [vmem:[%s11 + $0x6c] sm:$0xf]
    %v3761 = vld [vmem:[%s11 + $0x70] sm:$0xf]
    %v3762 = vld [vmem:[%s11 + $0x74] sm:$0xf]
    %v3763 = vld [vmem:[%s11 + $0x78] sm:$0xf]
    %v3764 = vld [vmem:[%s11 + $0x7c] sm:$0xf]
    %v3765 = vld [vmem:[%s11 + $0x80] sm:$0xf]
    %v3766 = vld [vmem:[%s11 + $0x84] sm:$0xf]
    %v3767 = vld [vmem:[%s11 + $0x88] sm:$0xf]
    %v3768 = vld [vmem:[%s11 + $0x8c] sm:$0xf]
    %v3769 = vld [vmem:[%s11 + $0x90] sm:$0xf]
    %v3770 = vld [vmem:[%s11 + $0x94] sm:$0xf]
    %v3771 = vld [vmem:[%s11 + $0x98] sm:$0xf]
    %v3772 = vld [vmem:[%s11 + $0x9c] sm:$0xf]
    %v3773 = vld [vmem:[%s11 + $0xa0] sm:$0xf]
    %v3774 = vld [vmem:[%s11 + $0xa4] sm:$0xf]
    %v3775 = vld [vmem:[%s11 + $0xa8] sm:$0xf]
    %v3776 = vld [vmem:[%s11 + $0xac] sm:$0xf]
    %v3777 = vld [vmem:[%s11 + $0xb0] sm:$0xf]
    %v3778 = vld [vmem:[%s11 + $0xb4] sm:$0xf]
    %v3779 = vld [vmem:[%s11 + $0xb8] sm:$0xf]
    %v3780 = vld [vmem:[%s11 + $0xbc] sm:$0xf]
    %v3781 = vld [vmem:[%s11 + $0xc0] sm:$0xf]
    %v3782 = vld [vmem:[%s11 + $0xc4] sm:$0xf]
    %v3783 = vld [vmem:[%s11 + $0xc8] sm:$0xf]
    %v3784 = vld [vmem:[%s11 + $0xcc] sm:$0xf]
    %v3785 = vld [vmem:[%s11 + $0xd0] sm:$0xf]
    %v3786 = vld [vmem:[%s11 + $0xd4] sm:$0xf]
    %v3787 = vld [vmem:[%s11 + $0xd8] sm:$0xf]
    %v3788 = vld [vmem:[%s11 + $0xdc] sm:$0xf]
    %v3789 = vld [vmem:[%s11 + $0xe0] sm:$0xf]
    %v3790 = vld [vmem:[%s11 + $0xe4] sm:$0xf]
    %v3791 = vld [vmem:[%s11 + $0xe8] sm:$0xf]
    %v3792 = vld [vmem:[%s11 + $0xec] sm:$0xf]
    %v3793 = vld [vmem:[%s11 + $0xf0] sm:$0xf]
    %v3794 = vld [vmem:[%s11 + $0xf4] sm:$0xf]
    %v3795 = vld [vmem:[%s11 + $0xf8] sm:$0xf]
    %v3796 = vld [vmem:[%s11 + $0xfc] sm:$0xf]
    %v3797 = vld [vmem:[#allocation6] sm:$0x1]
    %v3799 = vperm.slane %v3797, 0
    %v3865 = vunpack.c.l.b16 %v3733
    %v3866 = vunpack.c.l.b16 %v3734
    %v3867 = vunpack.c.l.b16 %v3735
    %v3868 = vunpack.c.l.b16 %v3736
    %v3869 = vunpack.c.l.b16 %v3737
    %v3870 = vunpack.c.l.b16 %v3738
    %v3871 = vunpack.c.l.b16 %v3739
    %v3872 = vunpack.c.l.b16 %v3740
    %v3873 = vunpack.c.l.b16 %v3741
    %v3874 = vunpack.c.l.b16 %v3742
    %v3875 = vunpack.c.l.b16 %v3743
    %v3876 = vunpack.c.l.b16 %v3744
    %v3877 = vunpack.c.l.b16 %v3745
    %v3878 = vunpack.c.l.b16 %v3746
    %v3879 = vunpack.c.l.b16 %v3747
    %v3880 = vunpack.c.l.b16 %v3748
    %v3881 = vunpack.c.l.b16 %v3749
    %v3882 = vunpack.c.l.b16 %v3750
    %v3883 = vunpack.c.l.b16 %v3751
    %v3884 = vunpack.c.l.b16 %v3752
    %v3885 = vunpack.c.l.b16 %v3753
    %v3886 = vunpack.c.l.b16 %v3754
    %v3887 = vunpack.c.l.b16 %v3755
    %v3888 = vunpack.c.l.b16 %v3756
    %v3889 = vunpack.c.l.b16 %v3757
    %v3890 = vunpack.c.l.b16 %v3758
    %v3891 = vunpack.c.l.b16 %v3759
    %v3892 = vunpack.c.l.b16 %v3760
    %v3893 = vunpack.c.l.b16 %v3761
    %v3894 = vunpack.c.l.b16 %v3762
    %v3895 = vunpack.c.l.b16 %v3763
    %v3896 = vunpack.c.l.b16 %v3764
    %v3897 = vunpack.c.l.b16 %v3765
    %v3898 = vunpack.c.l.b16 %v3766
    %v3899 = vunpack.c.l.b16 %v3767
    %v3900 = vunpack.c.l.b16 %v3768
    %v3901 = vunpack.c.l.b16 %v3769
    %v3902 = vunpack.c.l.b16 %v3770
    %v3903 = vunpack.c.l.b16 %v3771
    %v3904 = vunpack.c.l.b16 %v3772
    %v3905 = vunpack.c.l.b16 %v3773
    %v3906 = vunpack.c.l.b16 %v3774
    %v3907 = vunpack.c.l.b16 %v3775
    %v3908 = vunpack.c.l.b16 %v3776
    %v3909 = vunpack.c.l.b16 %v3777
    %v3910 = vunpack.c.l.b16 %v3778
    %v3911 = vunpack.c.l.b16 %v3779
    %v3912 = vunpack.c.l.b16 %v3780
    %v3913 = vunpack.c.l.b16 %v3781
    %v3914 = vunpack.c.l.b16 %v3782
    %v3915 = vunpack.c.l.b16 %v3783
    %v3916 = vunpack.c.l.b16 %v3784
    %v3917 = vunpack.c.l.b16 %v3785
    %v3918 = vunpack.c.l.b16 %v3786
    %v3919 = vunpack.c.l.b16 %v3787
    %v3920 = vunpack.c.l.b16 %v3788
    %v3921 = vunpack.c.l.b16 %v3789
    %v3922 = vunpack.c.l.b16 %v3790
    %v3923 = vunpack.c.l.b16 %v3791
    %v3924 = vunpack.c.l.b16 %v3792
    %v3925 = vunpack.c.l.b16 %v3793
    %v3926 = vunpack.c.l.b16 %v3794
    %v3927 = vunpack.c.l.b16 %v3795
    %v3928 = vunpack.c.l.b16 %v3796
    %v3929 = vpack.c.b16 %v3866, %v3865
    %v3930 = vpack.c.b16 %v3868, %v3867
    %v3931 = vpack.c.b16 %v3870, %v3869
    %v3932 = vpack.c.b16 %v3872, %v3871
    %v3933 = vpack.c.b16 %v3874, %v3873
    %v3934 = vpack.c.b16 %v3876, %v3875
    %v3935 = vpack.c.b16 %v3878, %v3877
    %v3936 = vpack.c.b16 %v3880, %v3879
    %v3937 = vpack.c.b16 %v3882, %v3881
    %v3938 = vpack.c.b16 %v3884, %v3883
    %v3939 = vpack.c.b16 %v3886, %v3885
    %v3940 = vpack.c.b16 %v3888, %v3887
    %v3941 = vpack.c.b16 %v3890, %v3889
    %v3942 = vpack.c.b16 %v3892, %v3891
    %v3943 = vpack.c.b16 %v3894, %v3893
    %v3944 = vpack.c.b16 %v3896, %v3895
    %v3945 = vpack.c.b16 %v3898, %v3897
    %v3946 = vpack.c.b16 %v3900, %v3899
    %v3947 = vpack.c.b16 %v3902, %v3901
    %v3948 = vpack.c.b16 %v3904, %v3903
    %v3949 = vpack.c.b16 %v3906, %v3905
    %v3950 = vpack.c.b16 %v3908, %v3907
    %v3951 = vpack.c.b16 %v3910, %v3909
    %v3952 = vpack.c.b16 %v3912, %v3911
    %v3953 = vpack.c.b16 %v3914, %v3913
    %v3954 = vpack.c.b16 %v3916, %v3915
    %v3955 = vpack.c.b16 %v3918, %v3917
    %v3956 = vpack.c.b16 %v3920, %v3919
    %v3957 = vpack.c.b16 %v3922, %v3921
    %v3958 = vpack.c.b16 %v3924, %v3923
    %v3959 = vpack.c.b16 %v3926, %v3925
    %v3960 = vpack.c.b16 %v3928, %v3927
    %3993 = vmatpush.bf16.msra.mxu0 %v3936
    %3994 = vmatpush.bf16.msra.mxu0 %v3935
    %3995 = vmatpush.bf16.msra.mxu0 %v3934
    %3996 = vmatpush.bf16.msra.mxu0 %v3933
    %3997 = vmatpush.bf16.msra.mxu0 %v3932
    %3998 = vmatpush.bf16.msra.mxu0 %v3931
    %3999 = vmatpush.bf16.msra.mxu0 %v3930
    %4000 = vmatpush.bf16.msra.mxu0 %v3929
    %4001 = vmatmul.bf16.gmra.mxu0 %v3701
    %v4002 = vpop.f32.mrf.mxu0
    %v4003 = vadd.f32 %v3799, %v4002
    %v4004 = vpop.f32.mrf.mxu0
    %v4005 = vadd.f32 %v3799, %v4004
    %4006 = vmatmul.bf16.gmra.mxu0 %v3705
    %v4007 = vpop.f32.mrf.mxu0
    %v4008 = vadd.f32 %v3799, %v4007
    %v4009 = vpop.f32.mrf.mxu0
    %v4010 = vadd.f32 %v3799, %v4009
    %4011 = vmatmul.bf16.gmra.mxu0 %v3709
    %v4012 = vpop.f32.mrf.mxu0
    %v4013 = vadd.f32 %v3799, %v4012
    %v4014 = vpop.f32.mrf.mxu0
    %v4015 = vadd.f32 %v3799, %v4014
    %4016 = vmatmul.bf16.gmra.mxu0 %v3713
    %v4017 = vpop.f32.mrf.mxu0
    %v4018 = vadd.f32 %v3799, %v4017
    %v4019 = vpop.f32.mrf.mxu0
    %v4020 = vadd.f32 %v3799, %v4019
    %4021 = vmatmul.bf16.gmra.mxu0 %v3717
    %v4022 = vpop.f32.mrf.mxu0
    %v4023 = vadd.f32 %v3799, %v4022
    %v4024 = vpop.f32.mrf.mxu0
    %v4025 = vadd.f32 %v3799, %v4024
    %4026 = vmatmul.bf16.gmra.mxu0 %v3721
    %v4027 = vpop.f32.mrf.mxu0
    %v4028 = vadd.f32 %v3799, %v4027
    %v4029 = vpop.f32.mrf.mxu0
    %v4030 = vadd.f32 %v3799, %v4029
    %4031 = vmatmul.bf16.gmra.mxu0 %v3725
    %v4032 = vpop.f32.mrf.mxu0
    %v4033 = vadd.f32 %v3799, %v4032
    %v4034 = vpop.f32.mrf.mxu0
    %v4035 = vadd.f32 %v3799, %v4034
    %4036 = vmatmul.bf16.gmra.mxu0 %v3729
    %v4037 = vpop.f32.mrf.mxu0
    %v4038 = vadd.f32 %v3799, %v4037
    %v4039 = vpop.f32.mrf.mxu0
    %v4040 = vadd.f32 %v3799, %v4039
    %4041 = vdwg.mxu0
    %4042 = vmatpush.bf16.msra.mxu0 %v3944
    %4043 = vmatpush.bf16.msra.mxu0 %v3943
    %4044 = vmatpush.bf16.msra.mxu0 %v3942
    %4045 = vmatpush.bf16.msra.mxu0 %v3941
    %4046 = vmatpush.bf16.msra.mxu0 %v3940
    %4047 = vmatpush.bf16.msra.mxu0 %v3939
    %4048 = vmatpush.bf16.msra.mxu0 %v3938
    %4049 = vmatpush.bf16.msra.mxu0 %v3937
    %4050 = vmatmul.bf16.gmra.mxu0 %v3702
    %v4051 = vpop.f32.mrf.mxu0
    %v4052 = vadd.f32 %v4003, %v4051
    %v4053 = vpop.f32.mrf.mxu0
    %v4054 = vadd.f32 %v4005, %v4053
    %4055 = vmatmul.bf16.gmra.mxu0 %v3706
    %v4056 = vpop.f32.mrf.mxu0
    %v4057 = vadd.f32 %v4008, %v4056
    %v4058 = vpop.f32.mrf.mxu0
    %v4059 = vadd.f32 %v4010, %v4058
    %4060 = vmatmul.bf16.gmra.mxu0 %v3710
    %v4061 = vpop.f32.mrf.mxu0
    %v4062 = vadd.f32 %v4013, %v4061
    %v4063 = vpop.f32.mrf.mxu0
    %v4064 = vadd.f32 %v4015, %v4063
    %4065 = vmatmul.bf16.gmra.mxu0 %v3714
    %v4066 = vpop.f32.mrf.mxu0
    %v4067 = vadd.f32 %v4018, %v4066
    %v4068 = vpop.f32.mrf.mxu0
    %v4069 = vadd.f32 %v4020, %v4068
    %4070 = vmatmul.bf16.gmra.mxu0 %v3718
    %v4071 = vpop.f32.mrf.mxu0
    %v4072 = vadd.f32 %v4023, %v4071
    %v4073 = vpop.f32.mrf.mxu0
    %v4074 = vadd.f32 %v4025, %v4073
    %4075 = vmatmul.bf16.gmra.mxu0 %v3722
    %v4076 = vpop.f32.mrf.mxu0
    %v4077 = vadd.f32 %v4028, %v4076
    %v4078 = vpop.f32.mrf.mxu0
    %v4079 = vadd.f32 %v4030, %v4078
    %4080 = vmatmul.bf16.gmra.mxu0 %v3726
    %v4081 = vpop.f32.mrf.mxu0
    %v4082 = vadd.f32 %v4033, %v4081
    %v4083 = vpop.f32.mrf.mxu0
    %v4084 = vadd.f32 %v4035, %v4083
    %4085 = vmatmul.bf16.gmra.mxu0 %v3730
    %v4086 = vpop.f32.mrf.mxu0
    %v4087 = vadd.f32 %v4038, %v4086
    %v4088 = vpop.f32.mrf.mxu0
    %v4089 = vadd.f32 %v4040, %v4088
    %4090 = vdwg.mxu0
    %4091 = vmatpush.bf16.msra.mxu0 %v3952
    %4092 = vmatpush.bf16.msra.mxu0 %v3951
    %4093 = vmatpush.bf16.msra.mxu0 %v3950
    %4094 = vmatpush.bf16.msra.mxu0 %v3949
    %4095 = vmatpush.bf16.msra.mxu0 %v3948
    %4096 = vmatpush.bf16.msra.mxu0 %v3947
    %4097 = vmatpush.bf16.msra.mxu0 %v3946
    %4098 = vmatpush.bf16.msra.mxu0 %v3945
    %4099 = vmatmul.bf16.gmra.mxu0 %v3703
    %v4100 = vpop.f32.mrf.mxu0
    %v4101 = vadd.f32 %v4052, %v4100
    %v4102 = vpop.f32.mrf.mxu0
    %v4103 = vadd.f32 %v4054, %v4102
    %4104 = vmatmul.bf16.gmra.mxu0 %v3707
    %v4105 = vpop.f32.mrf.mxu0
    %v4106 = vadd.f32 %v4057, %v4105
    %v4107 = vpop.f32.mrf.mxu0
    %v4108 = vadd.f32 %v4059, %v4107
    %4109 = vmatmul.bf16.gmra.mxu0 %v3711
    %v4110 = vpop.f32.mrf.mxu0
    %v4111 = vadd.f32 %v4062, %v4110
    %v4112 = vpop.f32.mrf.mxu0
    %v4113 = vadd.f32 %v4064, %v4112
    %4114 = vmatmul.bf16.gmra.mxu0 %v3715
    %v4115 = vpop.f32.mrf.mxu0
    %v4116 = vadd.f32 %v4067, %v4115
    %v4117 = vpop.f32.mrf.mxu0
    %v4118 = vadd.f32 %v4069, %v4117
    %4119 = vmatmul.bf16.gmra.mxu0 %v3719
    %v4120 = vpop.f32.mrf.mxu0
    %v4121 = vadd.f32 %v4072, %v4120
    %v4122 = vpop.f32.mrf.mxu0
    %v4123 = vadd.f32 %v4074, %v4122
    %4124 = vmatmul.bf16.gmra.mxu0 %v3723
    %v4125 = vpop.f32.mrf.mxu0
    %v4126 = vadd.f32 %v4077, %v4125
    %v4127 = vpop.f32.mrf.mxu0
    %v4128 = vadd.f32 %v4079, %v4127
    %4129 = vmatmul.bf16.gmra.mxu0 %v3727
    %v4130 = vpop.f32.mrf.mxu0
    %v4131 = vadd.f32 %v4082, %v4130
    %v4132 = vpop.f32.mrf.mxu0
    %v4133 = vadd.f32 %v4084, %v4132
    %4134 = vmatmul.bf16.gmra.mxu0 %v3731
    %v4135 = vpop.f32.mrf.mxu0
    %v4136 = vadd.f32 %v4087, %v4135
    %v4137 = vpop.f32.mrf.mxu0
    %v4138 = vadd.f32 %v4089, %v4137
    %4139 = vdwg.mxu0
    %4140 = vmatpush.bf16.msra.mxu0 %v3960
    %4141 = vmatpush.bf16.msra.mxu0 %v3959
    %4142 = vmatpush.bf16.msra.mxu0 %v3958
    %4143 = vmatpush.bf16.msra.mxu0 %v3957
    %4144 = vmatpush.bf16.msra.mxu0 %v3956
    %4145 = vmatpush.bf16.msra.mxu0 %v3955
    %4146 = vmatpush.bf16.msra.mxu0 %v3954
    %4147 = vmatpush.bf16.msra.mxu0 %v3953
    %4148 = vmatmul.bf16.gmra.mxu0 %v3704
    %v4149 = vpop.f32.mrf.mxu0
    %v4150 = vadd.f32 %v4101, %v4149
    %v4151 = vpop.f32.mrf.mxu0
    %v4152 = vadd.f32 %v4103, %v4151
    %4153 = vmatmul.bf16.gmra.mxu0 %v3708
    %v4154 = vpop.f32.mrf.mxu0
    %v4155 = vadd.f32 %v4106, %v4154
    %v4156 = vpop.f32.mrf.mxu0
    %v4157 = vadd.f32 %v4108, %v4156
    %4158 = vmatmul.bf16.gmra.mxu0 %v3712
    %v4159 = vpop.f32.mrf.mxu0
    %v4160 = vadd.f32 %v4111, %v4159
    %v4161 = vpop.f32.mrf.mxu0
    %v4162 = vadd.f32 %v4113, %v4161
    %4163 = vmatmul.bf16.gmra.mxu0 %v3716
    %v4164 = vpop.f32.mrf.mxu0
    %v4165 = vadd.f32 %v4116, %v4164
    %v4166 = vpop.f32.mrf.mxu0
    %v4167 = vadd.f32 %v4118, %v4166
    %4168 = vmatmul.bf16.gmra.mxu0 %v3720
    %v4169 = vpop.f32.mrf.mxu0
    %v4170 = vadd.f32 %v4121, %v4169
    %v4171 = vpop.f32.mrf.mxu0
    %v4172 = vadd.f32 %v4123, %v4171
    %4173 = vmatmul.bf16.gmra.mxu0 %v3724
    %v4174 = vpop.f32.mrf.mxu0
    %v4175 = vadd.f32 %v4126, %v4174
    %v4176 = vpop.f32.mrf.mxu0
    %v4177 = vadd.f32 %v4128, %v4176
    %4178 = vmatmul.bf16.gmra.mxu0 %v3728
    %v4179 = vpop.f32.mrf.mxu0
    %v4180 = vadd.f32 %v4131, %v4179
    %v4181 = vpop.f32.mrf.mxu0
    %v4182 = vadd.f32 %v4133, %v4181
    %4183 = vmatmul.bf16.gmra.mxu0 %v3732
    %v4184 = vpop.f32.mrf.mxu0
    %v4185 = vadd.f32 %v4136, %v4184
    %v4186 = vpop.f32.mrf.mxu0
    %v4187 = vadd.f32 %v4138, %v4186
    %4188 = vdwg.mxu0
    %s4189 = scalar_lea.vmem %s2, 1
    %v4190 = vld [vmem:[%s4189] sm:$0x1]
    %s4191 = scalar_lea.vmem %s3, 1
    %v4192 = vld [vmem:[%s4191] sm:$0x1]
    %4193 = vadd.xlane.f32.xlu0 %v4150
    %v4194 = vpop.xlane.xlu0 %4193
    %4195 = vadd.xlane.f32.xlu0 %v4152
    %v4196 = vpop.xlane.xlu0 %4195
    %4197 = vadd.xlane.f32.xlu0 %v4155
    %v4198 = vpop.xlane.xlu0 %4197
    %4199 = vadd.xlane.f32.xlu0 %v4157
    %v4200 = vpop.xlane.xlu0 %4199
    %4201 = vadd.xlane.f32.xlu0 %v4160
    %v4202 = vpop.xlane.xlu0 %4201
    %4203 = vadd.xlane.f32.xlu0 %v4162
    %v4204 = vpop.xlane.xlu0 %4203
    %4205 = vadd.xlane.f32.xlu0 %v4165
    %v4206 = vpop.xlane.xlu0 %4205
    %4207 = vadd.xlane.f32.xlu0 %v4167
    %v4208 = vpop.xlane.xlu0 %4207
    %4209 = vadd.xlane.f32.xlu0 %v4170
    %v4210 = vpop.xlane.xlu0 %4209
    %4211 = vadd.xlane.f32.xlu0 %v4172
    %v4212 = vpop.xlane.xlu0 %4211
    %4213 = vadd.xlane.f32.xlu0 %v4175
    %v4214 = vpop.xlane.xlu0 %4213
    %4215 = vadd.xlane.f32.xlu0 %v4177
    %v4216 = vpop.xlane.xlu0 %4215
    %4217 = vadd.xlane.f32.xlu0 %v4180
    %v4218 = vpop.xlane.xlu0 %4217
    %4219 = vadd.xlane.f32.xlu0 %v4182
    %v4220 = vpop.xlane.xlu0 %4219
    %4221 = vadd.xlane.f32.xlu0 %v4185
    %v4222 = vpop.xlane.xlu0 %4221
    %4223 = vadd.xlane.f32.xlu0 %v4187
    %v4224 = vpop.xlane.xlu0 %4223
    %v4225 = vmul.f32 %v4194, %v155
    %v4226 = vmul.f32 %v4196, %v155
    %v4227 = vmul.f32 %v4198, %v155
    %v4228 = vmul.f32 %v4200, %v155
    %v4229 = vmul.f32 %v4202, %v155
    %v4230 = vmul.f32 %v4204, %v155
    %v4231 = vmul.f32 %v4206, %v155
    %v4232 = vmul.f32 %v4208, %v155
    %v4233 = vmul.f32 %v4210, %v155
    %v4234 = vmul.f32 %v4212, %v155
    %v4235 = vmul.f32 %v4214, %v155
    %v4236 = vmul.f32 %v4216, %v155
    %v4237 = vmul.f32 %v4218, %v155
    %v4238 = vmul.f32 %v4220, %v155
    %v4239 = vmul.f32 %v4222, %v155
    %v4240 = vmul.f32 %v4224, %v155
    %v4241 = vmul.f32 %v4150, %v4150
    %v4242 = vmul.f32 %v4152, %v4152
    %v4243 = vmul.f32 %v4155, %v4155
    %v4244 = vmul.f32 %v4157, %v4157
    %v4245 = vmul.f32 %v4160, %v4160
    %v4246 = vmul.f32 %v4162, %v4162
    %v4247 = vmul.f32 %v4165, %v4165
    %v4248 = vmul.f32 %v4167, %v4167
    %v4249 = vmul.f32 %v4170, %v4170
    %v4250 = vmul.f32 %v4172, %v4172
    %v4251 = vmul.f32 %v4175, %v4175
    %v4252 = vmul.f32 %v4177, %v4177
    %v4253 = vmul.f32 %v4180, %v4180
    %v4254 = vmul.f32 %v4182, %v4182
    %v4255 = vmul.f32 %v4185, %v4185
    %v4256 = vmul.f32 %v4187, %v4187
    %4257 = vadd.xlane.f32.xlu0 %v4241
    %v4258 = vpop.xlane.xlu0 %4257
    %4259 = vadd.xlane.f32.xlu0 %v4242
    %v4260 = vpop.xlane.xlu0 %4259
    %4261 = vadd.xlane.f32.xlu0 %v4243
    %v4262 = vpop.xlane.xlu0 %4261
    %4263 = vadd.xlane.f32.xlu0 %v4244
    %v4264 = vpop.xlane.xlu0 %4263
    %4265 = vadd.xlane.f32.xlu0 %v4245
    %v4266 = vpop.xlane.xlu0 %4265
    %4267 = vadd.xlane.f32.xlu0 %v4246
    %v4268 = vpop.xlane.xlu0 %4267
    %4269 = vadd.xlane.f32.xlu0 %v4247
    %v4270 = vpop.xlane.xlu0 %4269
    %4271 = vadd.xlane.f32.xlu0 %v4248
    %v4272 = vpop.xlane.xlu0 %4271
    %4273 = vadd.xlane.f32.xlu0 %v4249
    %v4274 = vpop.xlane.xlu0 %4273
    %4275 = vadd.xlane.f32.xlu0 %v4250
    %v4276 = vpop.xlane.xlu0 %4275
    %4277 = vadd.xlane.f32.xlu0 %v4251
    %v4278 = vpop.xlane.xlu0 %4277
    %4279 = vadd.xlane.f32.xlu0 %v4252
    %v4280 = vpop.xlane.xlu0 %4279
    %4281 = vadd.xlane.f32.xlu0 %v4253
    %v4282 = vpop.xlane.xlu0 %4281
    %4283 = vadd.xlane.f32.xlu0 %v4254
    %v4284 = vpop.xlane.xlu0 %4283
    %4285 = vadd.xlane.f32.xlu0 %v4255
    %v4286 = vpop.xlane.xlu0 %4285
    %4287 = vadd.xlane.f32.xlu0 %v4256
    %v4288 = vpop.xlane.xlu0 %4287
    %v4289 = vmul.f32 %v4258, %v155
    %v4290 = vmul.f32 %v4260, %v155
    %v4291 = vmul.f32 %v4262, %v155
    %v4292 = vmul.f32 %v4264, %v155
    %v4293 = vmul.f32 %v4266, %v155
    %v4294 = vmul.f32 %v4268, %v155
    %v4295 = vmul.f32 %v4270, %v155
    %v4296 = vmul.f32 %v4272, %v155
    %v4297 = vmul.f32 %v4274, %v155
    %v4298 = vmul.f32 %v4276, %v155
    %v4299 = vmul.f32 %v4278, %v155
    %v4300 = vmul.f32 %v4280, %v155
    %v4301 = vmul.f32 %v4282, %v155
    %v4302 = vmul.f32 %v4284, %v155
    %v4303 = vmul.f32 %v4286, %v155
    %v4304 = vmul.f32 %v4288, %v155
    %v4305 = vmul.f32 %v4225, %v4225
    %v4306 = vmul.f32 %v4226, %v4226
    %v4307 = vmul.f32 %v4227, %v4227
    %v4308 = vmul.f32 %v4228, %v4228
    %v4309 = vmul.f32 %v4229, %v4229
    %v4310 = vmul.f32 %v4230, %v4230
    %v4311 = vmul.f32 %v4231, %v4231
    %v4312 = vmul.f32 %v4232, %v4232
    %v4313 = vmul.f32 %v4233, %v4233
    %v4314 = vmul.f32 %v4234, %v4234
    %v4315 = vmul.f32 %v4235, %v4235
    %v4316 = vmul.f32 %v4236, %v4236
    %v4317 = vmul.f32 %v4237, %v4237
    %v4318 = vmul.f32 %v4238, %v4238
    %v4319 = vmul.f32 %v4239, %v4239
    %v4320 = vmul.f32 %v4240, %v4240
    %v4321 = vsub.f32 %v4289, %v4305
    %v4322 = vsub.f32 %v4290, %v4306
    %v4323 = vsub.f32 %v4291, %v4307
    %v4324 = vsub.f32 %v4292, %v4308
    %v4325 = vsub.f32 %v4293, %v4309
    %v4326 = vsub.f32 %v4294, %v4310
    %v4327 = vsub.f32 %v4295, %v4311
    %v4328 = vsub.f32 %v4296, %v4312
    %v4329 = vsub.f32 %v4297, %v4313
    %v4330 = vsub.f32 %v4298, %v4314
    %v4331 = vsub.f32 %v4299, %v4315
    %v4332 = vsub.f32 %v4300, %v4316
    %v4333 = vsub.f32 %v4301, %v4317
    %v4334 = vsub.f32 %v4302, %v4318
    %v4335 = vsub.f32 %v4303, %v4319
    %v4336 = vsub.f32 %v4304, %v4320
    %v4337 = vsub.f32 %v4150, %v4225
    %v4338 = vsub.f32 %v4152, %v4226
    %v4339 = vsub.f32 %v4155, %v4227
    %v4340 = vsub.f32 %v4157, %v4228
    %v4341 = vsub.f32 %v4160, %v4229
    %v4342 = vsub.f32 %v4162, %v4230
    %v4343 = vsub.f32 %v4165, %v4231
    %v4344 = vsub.f32 %v4167, %v4232
    %v4345 = vsub.f32 %v4170, %v4233
    %v4346 = vsub.f32 %v4172, %v4234
    %v4347 = vsub.f32 %v4175, %v4235
    %v4348 = vsub.f32 %v4177, %v4236
    %v4349 = vsub.f32 %v4180, %v4237
    %v4350 = vsub.f32 %v4182, %v4238
    %v4351 = vsub.f32 %v4185, %v4239
    %v4352 = vsub.f32 %v4187, %v4240
    %v4353 = vadd.f32 %v4321, 1e-05
    %v4354 = vadd.f32 %v4322, 1e-05
    %v4355 = vadd.f32 %v4323, 1e-05
    %v4356 = vadd.f32 %v4324, 1e-05
    %v4357 = vadd.f32 %v4325, 1e-05
    %v4358 = vadd.f32 %v4326, 1e-05
    %v4359 = vadd.f32 %v4327, 1e-05
    %v4360 = vadd.f32 %v4328, 1e-05
    %v4361 = vadd.f32 %v4329, 1e-05
    %v4362 = vadd.f32 %v4330, 1e-05
    %v4363 = vadd.f32 %v4331, 1e-05
    %v4364 = vadd.f32 %v4332, 1e-05
    %v4365 = vadd.f32 %v4333, 1e-05
    %v4366 = vadd.f32 %v4334, 1e-05
    %v4367 = vadd.f32 %v4335, 1e-05
    %v4368 = vadd.f32 %v4336, 1e-05
    %v4369 = vrsqrt.pop %v4353
    %v4370 = vmul.f32 %v4369, %v4353
    %v4371 = vmul.f32 %v4370, %v4369
    %v4372 = vmul.f32 0.5, %v4371
    %v4373 = vsub.f32 1.5, %v4372
    %v4374 = vmul.f32 %v4369, %v4373
    %vm4375 = vweird.f32 %v4353
    %vm4376 = vweird.f32 %v4369
    %vm4377 = vmor %vm4375, %vm4376
    %v4378 = vsel %vm4377, %v4369, %v4374
    %v4379 = vrsqrt.pop %v4354
    %v4380 = vmul.f32 %v4379, %v4354
    %v4381 = vmul.f32 %v4380, %v4379
    %v4382 = vmul.f32 0.5, %v4381
    %v4383 = vsub.f32 1.5, %v4382
    %v4384 = vmul.f32 %v4379, %v4383
    %vm4385 = vweird.f32 %v4354
    %vm4386 = vweird.f32 %v4379
    %vm4387 = vmor %vm4385, %vm4386
    %v4388 = vsel %vm4387, %v4379, %v4384
    %v4389 = vrsqrt.pop %v4355
    %v4390 = vmul.f32 %v4389, %v4355
    %v4391 = vmul.f32 %v4390, %v4389
    %v4392 = vmul.f32 0.5, %v4391
    %v4393 = vsub.f32 1.5, %v4392
    %v4394 = vmul.f32 %v4389, %v4393
    %vm4395 = vweird.f32 %v4355
    %vm4396 = vweird.f32 %v4389
    %vm4397 = vmor %vm4395, %vm4396
    %v4398 = vsel %vm4397, %v4389, %v4394
    %v4399 = vrsqrt.pop %v4356
    %v4400 = vmul.f32 %v4399, %v4356
    %v4401 = vmul.f32 %v4400, %v4399
    %v4402 = vmul.f32 0.5, %v4401
    %v4403 = vsub.f32 1.5, %v4402
    %v4404 = vmul.f32 %v4399, %v4403
    %vm4405 = vweird.f32 %v4356
    %vm4406 = vweird.f32 %v4399
    %vm4407 = vmor %vm4405, %vm4406
    %v4408 = vsel %vm4407, %v4399, %v4404
    %v4409 = vrsqrt.pop %v4357
    %v4410 = vmul.f32 %v4409, %v4357
    %v4411 = vmul.f32 %v4410, %v4409
    %v4412 = vmul.f32 0.5, %v4411
    %v4413 = vsub.f32 1.5, %v4412
    %v4414 = vmul.f32 %v4409, %v4413
    %vm4415 = vweird.f32 %v4357
    %vm4416 = vweird.f32 %v4409
    %vm4417 = vmor %vm4415, %vm4416
    %v4418 = vsel %vm4417, %v4409, %v4414
    %v4419 = vrsqrt.pop %v4358
    %v4420 = vmul.f32 %v4419, %v4358
    %v4421 = vmul.f32 %v4420, %v4419
    %v4422 = vmul.f32 0.5, %v4421
    %v4423 = vsub.f32 1.5, %v4422
    %v4424 = vmul.f32 %v4419, %v4423
    %vm4425 = vweird.f32 %v4358
    %vm4426 = vweird.f32 %v4419
    %vm4427 = vmor %vm4425, %vm4426
    %v4428 = vsel %vm4427, %v4419, %v4424
    %v4429 = vrsqrt.pop %v4359
    %v4430 = vmul.f32 %v4429, %v4359
    %v4431 = vmul.f32 %v4430, %v4429
    %v4432 = vmul.f32 0.5, %v4431
    %v4433 = vsub.f32 1.5, %v4432
    %v4434 = vmul.f32 %v4429, %v4433
    %vm4435 = vweird.f32 %v4359
    %vm4436 = vweird.f32 %v4429
    %vm4437 = vmor %vm4435, %vm4436
    %v4438 = vsel %vm4437, %v4429, %v4434
    %v4439 = vrsqrt.pop %v4360
    %v4440 = vmul.f32 %v4439, %v4360
    %v4441 = vmul.f32 %v4440, %v4439
    %v4442 = vmul.f32 0.5, %v4441
    %v4443 = vsub.f32 1.5, %v4442
    %v4444 = vmul.f32 %v4439, %v4443
    %vm4445 = vweird.f32 %v4360
    %vm4446 = vweird.f32 %v4439
    %vm4447 = vmor %vm4445, %vm4446
    %v4448 = vsel %vm4447, %v4439, %v4444
    %v4449 = vrsqrt.pop %v4361
    %v4450 = vmul.f32 %v4449, %v4361
    %v4451 = vmul.f32 %v4450, %v4449
    %v4452 = vmul.f32 0.5, %v4451
    %v4453 = vsub.f32 1.5, %v4452
    %v4454 = vmul.f32 %v4449, %v4453
    %vm4455 = vweird.f32 %v4361
    %vm4456 = vweird.f32 %v4449
    %vm4457 = vmor %vm4455, %vm4456
    %v4458 = vsel %vm4457, %v4449, %v4454
    %v4459 = vrsqrt.pop %v4362
    %v4460 = vmul.f32 %v4459, %v4362
    %v4461 = vmul.f32 %v4460, %v4459
    %v4462 = vmul.f32 0.5, %v4461
    %v4463 = vsub.f32 1.5, %v4462
    %v4464 = vmul.f32 %v4459, %v4463
    %vm4465 = vweird.f32 %v4362
    %vm4466 = vweird.f32 %v4459
    %vm4467 = vmor %vm4465, %vm4466
    %v4468 = vsel %vm4467, %v4459, %v4464
    %v4469 = vrsqrt.pop %v4363
    %v4470 = vmul.f32 %v4469, %v4363
    %v4471 = vmul.f32 %v4470, %v4469
    %v4472 = vmul.f32 0.5, %v4471
    %v4473 = vsub.f32 1.5, %v4472
    %v4474 = vmul.f32 %v4469, %v4473
    %vm4475 = vweird.f32 %v4363
    %vm4476 = vweird.f32 %v4469
    %vm4477 = vmor %vm4475, %vm4476
    %v4478 = vsel %vm4477, %v4469, %v4474
    %v4479 = vrsqrt.pop %v4364
    %v4480 = vmul.f32 %v4479, %v4364
    %v4481 = vmul.f32 %v4480, %v4479
    %v4482 = vmul.f32 0.5, %v4481
    %v4483 = vsub.f32 1.5, %v4482
    %v4484 = vmul.f32 %v4479, %v4483
    %vm4485 = vweird.f32 %v4364
    %vm4486 = vweird.f32 %v4479
    %vm4487 = vmor %vm4485, %vm4486
    %v4488 = vsel %vm4487, %v4479, %v4484
    %v4489 = vrsqrt.pop %v4365
    %v4490 = vmul.f32 %v4489, %v4365
    %v4491 = vmul.f32 %v4490, %v4489
    %v4492 = vmul.f32 0.5, %v4491
    %v4493 = vsub.f32 1.5, %v4492
    %v4494 = vmul.f32 %v4489, %v4493
    %vm4495 = vweird.f32 %v4365
    %vm4496 = vweird.f32 %v4489
    %vm4497 = vmor %vm4495, %vm4496
    %v4498 = vsel %vm4497, %v4489, %v4494
    %v4499 = vrsqrt.pop %v4366
    %v4500 = vmul.f32 %v4499, %v4366
    %v4501 = vmul.f32 %v4500, %v4499
    %v4502 = vmul.f32 0.5, %v4501
    %v4503 = vsub.f32 1.5, %v4502
    %v4504 = vmul.f32 %v4499, %v4503
    %vm4505 = vweird.f32 %v4366
    %vm4506 = vweird.f32 %v4499
    %vm4507 = vmor %vm4505, %vm4506
    %v4508 = vsel %vm4507, %v4499, %v4504
    %v4509 = vrsqrt.pop %v4367
    %v4510 = vmul.f32 %v4509, %v4367
    %v4511 = vmul.f32 %v4510, %v4509
    %v4512 = vmul.f32 0.5, %v4511
    %v4513 = vsub.f32 1.5, %v4512
    %v4514 = vmul.f32 %v4509, %v4513
    %vm4515 = vweird.f32 %v4367
    %vm4516 = vweird.f32 %v4509
    %vm4517 = vmor %vm4515, %vm4516
    %v4518 = vsel %vm4517, %v4509, %v4514
    %v4519 = vrsqrt.pop %v4368
    %v4520 = vmul.f32 %v4519, %v4368
    %v4521 = vmul.f32 %v4520, %v4519
    %v4522 = vmul.f32 0.5, %v4521
    %v4523 = vsub.f32 1.5, %v4522
    %v4524 = vmul.f32 %v4519, %v4523
    %vm4525 = vweird.f32 %v4368
    %vm4526 = vweird.f32 %v4519
    %vm4527 = vmor %vm4525, %vm4526
    %v4528 = vsel %vm4527, %v4519, %v4524
    %v4529 = vmul.f32 %v4337, %v4378
    %v4530 = vmul.f32 %v4338, %v4388
    %v4531 = vmul.f32 %v4339, %v4398
    %v4532 = vmul.f32 %v4340, %v4408
    %v4533 = vmul.f32 %v4341, %v4418
    %v4534 = vmul.f32 %v4342, %v4428
    %v4535 = vmul.f32 %v4343, %v4438
    %v4536 = vmul.f32 %v4344, %v4448
    %v4537 = vmul.f32 %v4345, %v4458
    %v4538 = vmul.f32 %v4346, %v4468
    %v4539 = vmul.f32 %v4347, %v4478
    %v4540 = vmul.f32 %v4348, %v4488
    %v4541 = vmul.f32 %v4349, %v4498
    %v4542 = vmul.f32 %v4350, %v4508
    %v4543 = vmul.f32 %v4351, %v4518
    %v4544 = vmul.f32 %v4352, %v4528
    %v4546 = vperm.slane %v4190, 0
    %v4548 = vmul.f32 %v4529, %v4546
    %v4549 = vmul.f32 %v4530, %v4546
    %v4550 = vmul.f32 %v4531, %v4546
    %v4551 = vmul.f32 %v4532, %v4546
    %v4552 = vmul.f32 %v4533, %v4546
    %v4553 = vmul.f32 %v4534, %v4546
    %v4554 = vmul.f32 %v4535, %v4546
    %v4555 = vmul.f32 %v4536, %v4546
    %v4556 = vmul.f32 %v4537, %v4546
    %v4557 = vmul.f32 %v4538, %v4546
    %v4558 = vmul.f32 %v4539, %v4546
    %v4559 = vmul.f32 %v4540, %v4546
    %v4560 = vmul.f32 %v4541, %v4546
    %v4561 = vmul.f32 %v4542, %v4546
    %v4562 = vmul.f32 %v4543, %v4546
    %v4563 = vmul.f32 %v4544, %v4546
    %v4565 = vperm.slane %v4192, 0
    %v4567 = vadd.f32 %v4548, %v4565
    %v4568 = vadd.f32 %v4549, %v4565
    %v4569 = vadd.f32 %v4550, %v4565
    %v4570 = vadd.f32 %v4551, %v4565
    %v4571 = vadd.f32 %v4552, %v4565
    %v4572 = vadd.f32 %v4553, %v4565
    %v4573 = vadd.f32 %v4554, %v4565
    %v4574 = vadd.f32 %v4555, %v4565
    %v4575 = vadd.f32 %v4556, %v4565
    %v4576 = vadd.f32 %v4557, %v4565
    %v4577 = vadd.f32 %v4558, %v4565
    %v4578 = vadd.f32 %v4559, %v4565
    %v4579 = vadd.f32 %v4560, %v4565
    %v4580 = vadd.f32 %v4561, %v4565
    %v4581 = vadd.f32 %v4562, %v4565
    %v4582 = vadd.f32 %v4563, %v4565
    %v4583 = vpack.c.bf16 %v4568, %v4567
    %v4584 = vpack.c.bf16 %v4570, %v4569
    %v4585 = vpack.c.bf16 %v4572, %v4571
    %v4586 = vpack.c.bf16 %v4574, %v4573
    %v4587 = vpack.c.bf16 %v4576, %v4575
    %v4588 = vpack.c.bf16 %v4578, %v4577
    %v4589 = vpack.c.bf16 %v4580, %v4579
    %v4590 = vpack.c.bf16 %v4582, %v4581
    %s4591 = scalar_lea.vmem [#allocation3], 192
    %v4592 = vld [vmem:[%s4591] sm:$0xff]
    %v4593 = vld [vmem:[%s4591 + $0x8] sm:$0xf]
    %v4594 = vld [vmem:[%s4591 + $0xc] sm:$0xff]
    %v4595 = vld [vmem:[%s4591 + $0x14] sm:$0xf]
    %v4596 = vld [vmem:[%s4591 + $0x18] sm:$0xff]
    %v4597 = vld [vmem:[%s4591 + $0x20] sm:$0xf]
    %v4598 = vld [vmem:[%s4591 + $0x24] sm:$0xff]
    %v4599 = vld [vmem:[%s4591 + $0x2c] sm:$0xf]
    %v4600 = vld [vmem:[%s4591 + $0x30] sm:$0xff]
    %v4601 = vld [vmem:[%s4591 + $0x38] sm:$0xf]
    %v4602 = vld [vmem:[%s4591 + $0x3c] sm:$0xff]
    %v4603 = vld [vmem:[%s4591 + $0x44] sm:$0xf]
    %v4604 = vld [vmem:[%s4591 + $0x48] sm:$0xff]
    %v4605 = vld [vmem:[%s4591 + $0x50] sm:$0xf]
    %v4606 = vld [vmem:[%s4591 + $0x54] sm:$0xff]
    %v4607 = vld [vmem:[%s4591 + $0x5c] sm:$0xf]
    %v4608 = vld [vmem:[%s4591 + $0x60] sm:$0xff]
    %v4609 = vld [vmem:[%s4591 + $0x68] sm:$0xf]
    %v4610 = vld [vmem:[%s4591 + $0x6c] sm:$0xff]
    %v4611 = vld [vmem:[%s4591 + $0x74] sm:$0xf]
    %v4612 = vld [vmem:[%s4591 + $0x78] sm:$0xff]
    %v4613 = vld [vmem:[%s4591 + $0x80] sm:$0xf]
    %v4614 = vld [vmem:[%s4591 + $0x84] sm:$0xff]
    %v4615 = vld [vmem:[%s4591 + $0x8c] sm:$0xf]
    %v4616 = vld [vmem:[%s4591 + $0x90] sm:$0xff]
    %v4617 = vld [vmem:[%s4591 + $0x98] sm:$0xf]
    %v4618 = vld [vmem:[%s4591 + $0x9c] sm:$0xff]
    %v4619 = vld [vmem:[%s4591 + $0xa4] sm:$0xf]
    %v4620 = vld [vmem:[%s4591 + $0xa8] sm:$0xff]
    %v4621 = vld [vmem:[%s4591 + $0xb0] sm:$0xf]
    %v4622 = vld [vmem:[%s4591 + $0xb4] sm:$0xff]
    %v4623 = vld [vmem:[%s4591 + $0xbc] sm:$0xf]
    %v4656 = vunpack.c.l.b16 %v4592
    %v4657 = vunpack.c.h.b16 %v4592
    %v4658 = vunpack.c.l.b16 %v4593
    %v4659 = vunpack.c.l.b16 %v4594
    %v4660 = vunpack.c.h.b16 %v4594
    %v4661 = vunpack.c.l.b16 %v4595
    %v4662 = vunpack.c.l.b16 %v4596
    %v4663 = vunpack.c.h.b16 %v4596
    %v4664 = vunpack.c.l.b16 %v4597
    %v4665 = vunpack.c.l.b16 %v4598
    %v4666 = vunpack.c.h.b16 %v4598
    %v4667 = vunpack.c.l.b16 %v4599
    %v4668 = vunpack.c.l.b16 %v4600
    %v4669 = vunpack.c.h.b16 %v4600
    %v4670 = vunpack.c.l.b16 %v4601
    %v4671 = vunpack.c.l.b16 %v4602
    %v4672 = vunpack.c.h.b16 %v4602
    %v4673 = vunpack.c.l.b16 %v4603
    %v4674 = vunpack.c.l.b16 %v4604
    %v4675 = vunpack.c.h.b16 %v4604
    %v4676 = vunpack.c.l.b16 %v4605
    %v4677 = vunpack.c.l.b16 %v4606
    %v4678 = vunpack.c.h.b16 %v4606
    %v4679 = vunpack.c.l.b16 %v4607
    %v4680 = vunpack.c.l.b16 %v4608
    %v4681 = vunpack.c.h.b16 %v4608
    %v4682 = vunpack.c.l.b16 %v4609
    %v4683 = vunpack.c.l.b16 %v4610
    %v4684 = vunpack.c.h.b16 %v4610
    %v4685 = vunpack.c.l.b16 %v4611
    %v4686 = vunpack.c.l.b16 %v4612
    %v4687 = vunpack.c.h.b16 %v4612
    %v4688 = vunpack.c.l.b16 %v4613
    %v4689 = vunpack.c.l.b16 %v4614
    %v4690 = vunpack.c.h.b16 %v4614
    %v4691 = vunpack.c.l.b16 %v4615
    %v4692 = vunpack.c.l.b16 %v4616
    %v4693 = vunpack.c.h.b16 %v4616
    %v4694 = vunpack.c.l.b16 %v4617
    %v4695 = vunpack.c.l.b16 %v4618
    %v4696 = vunpack.c.h.b16 %v4618
    %v4697 = vunpack.c.l.b16 %v4619
    %v4698 = vunpack.c.l.b16 %v4620
    %v4699 = vunpack.c.h.b16 %v4620
    %v4700 = vunpack.c.l.b16 %v4621
    %v4701 = vunpack.c.l.b16 %v4622
    %v4702 = vunpack.c.h.b16 %v4622
    %v4703 = vunpack.c.l.b16 %v4623
    %v4704 = vpack.c.b16 %v4659, %v4656
    %v4705 = vpack.c.b16 %v4660, %v4657
    %v4706 = vpack.c.b16 %v4661, %v4658
    %v4707 = vpack.c.b16 %v4665, %v4662
    %v4708 = vpack.c.b16 %v4666, %v4663
    %v4709 = vpack.c.b16 %v4667, %v4664
    %v4710 = vpack.c.b16 %v4671, %v4668
    %v4711 = vpack.c.b16 %v4672, %v4669
    %v4712 = vpack.c.b16 %v4673, %v4670
    %v4713 = vpack.c.b16 %v4677, %v4674
    %v4714 = vpack.c.b16 %v4678, %v4675
    %v4715 = vpack.c.b16 %v4679, %v4676
    %v4716 = vpack.c.b16 %v4683, %v4680
    %v4717 = vpack.c.b16 %v4684, %v4681
    %v4718 = vpack.c.b16 %v4685, %v4682
    %v4719 = vpack.c.b16 %v4689, %v4686
    %v4720 = vpack.c.b16 %v4690, %v4687
    %v4721 = vpack.c.b16 %v4691, %v4688
    %v4722 = vpack.c.b16 %v4695, %v4692
    %v4723 = vpack.c.b16 %v4696, %v4693
    %v4724 = vpack.c.b16 %v4697, %v4694
    %v4725 = vpack.c.b16 %v4701, %v4698
    %v4726 = vpack.c.b16 %v4702, %v4699
    %v4727 = vpack.c.b16 %v4703, %v4700
    %4752 = vmatpush.bf16.msra.mxu0 %v4725
    %4753 = vmatpush.bf16.msra.mxu0 %v4722
    %4754 = vmatpush.bf16.msra.mxu0 %v4719
    %4755 = vmatpush.bf16.msra.mxu0 %v4716
    %4756 = vmatpush.bf16.msra.mxu0 %v4713
    %4757 = vmatpush.bf16.msra.mxu0 %v4710
    %4758 = vmatpush.bf16.msra.mxu0 %v4707
    %4759 = vmatpush.bf16.msra.mxu0 %v4704
    %4760 = vmatmul.bf16.gmra.mxu0 %v4583
    %v4761 = vpop.f32.mrf.mxu0
    %v4762 = vadd.f32 0.0, %v4761
    %v4763 = vpop.f32.mrf.mxu0
    %v4764 = vadd.f32 0.0, %v4763
    %4765 = vmatmul.bf16.gmra.mxu0 %v4584
    %v4766 = vpop.f32.mrf.mxu0
    %v4767 = vadd.f32 0.0, %v4766
    %v4768 = vpop.f32.mrf.mxu0
    %v4769 = vadd.f32 0.0, %v4768
    %4770 = vmatmul.bf16.gmra.mxu0 %v4585
    %v4771 = vpop.f32.mrf.mxu0
    %v4772 = vadd.f32 0.0, %v4771
    %v4773 = vpop.f32.mrf.mxu0
    %v4774 = vadd.f32 0.0, %v4773
    %4775 = vmatmul.bf16.gmra.mxu0 %v4586
    %v4776 = vpop.f32.mrf.mxu0
    %v4777 = vadd.f32 0.0, %v4776
    %v4778 = vpop.f32.mrf.mxu0
    %v4779 = vadd.f32 0.0, %v4778
    %4780 = vmatmul.bf16.gmra.mxu0 %v4587
    %v4781 = vpop.f32.mrf.mxu0
    %v4782 = vadd.f32 0.0, %v4781
    %v4783 = vpop.f32.mrf.mxu0
    %v4784 = vadd.f32 0.0, %v4783
    %4785 = vmatmul.bf16.gmra.mxu0 %v4588
    %v4786 = vpop.f32.mrf.mxu0
    %v4787 = vadd.f32 0.0, %v4786
    %v4788 = vpop.f32.mrf.mxu0
    %v4789 = vadd.f32 0.0, %v4788
    %4790 = vmatmul.bf16.gmra.mxu0 %v4589
    %v4791 = vpop.f32.mrf.mxu0
    %v4792 = vadd.f32 0.0, %v4791
    %v4793 = vpop.f32.mrf.mxu0
    %v4794 = vadd.f32 0.0, %v4793
    %4795 = vmatmul.bf16.gmra.mxu0 %v4590
    %v4796 = vpop.f32.mrf.mxu0
    %v4797 = vadd.f32 0.0, %v4796
    %v4798 = vpop.f32.mrf.mxu0
    %v4799 = vadd.f32 0.0, %v4798
    %4800 = vdwg.mxu0
    %4801 = vmatpush.bf16.msra.mxu0 %v4726
    %4802 = vmatpush.bf16.msra.mxu0 %v4723
    %4803 = vmatpush.bf16.msra.mxu0 %v4720
    %4804 = vmatpush.bf16.msra.mxu0 %v4717
    %4805 = vmatpush.bf16.msra.mxu0 %v4714
    %4806 = vmatpush.bf16.msra.mxu0 %v4711
    %4807 = vmatpush.bf16.msra.mxu0 %v4708
    %4808 = vmatpush.bf16.msra.mxu0 %v4705
    %4809 = vmatmul.bf16.gmra.mxu0 %v4583
    %v4810 = vpop.f32.mrf.mxu0
    %v4811 = vadd.f32 0.0, %v4810
    %v4812 = vpop.f32.mrf.mxu0
    %v4813 = vadd.f32 0.0, %v4812
    %4814 = vmatmul.bf16.gmra.mxu0 %v4584
    %v4815 = vpop.f32.mrf.mxu0
    %v4816 = vadd.f32 0.0, %v4815
    %v4817 = vpop.f32.mrf.mxu0
    %v4818 = vadd.f32 0.0, %v4817
    %4819 = vmatmul.bf16.gmra.mxu0 %v4585
    %v4820 = vpop.f32.mrf.mxu0
    %v4821 = vadd.f32 0.0, %v4820
    %v4822 = vpop.f32.mrf.mxu0
    %v4823 = vadd.f32 0.0, %v4822
    %4824 = vmatmul.bf16.gmra.mxu0 %v4586
    %v4825 = vpop.f32.mrf.mxu0
    %v4826 = vadd.f32 0.0, %v4825
    %v4827 = vpop.f32.mrf.mxu0
    %v4828 = vadd.f32 0.0, %v4827
    %4829 = vmatmul.bf16.gmra.mxu0 %v4587
    %v4830 = vpop.f32.mrf.mxu0
    %v4831 = vadd.f32 0.0, %v4830
    %v4832 = vpop.f32.mrf.mxu0
    %v4833 = vadd.f32 0.0, %v4832
    %4834 = vmatmul.bf16.gmra.mxu0 %v4588
    %v4835 = vpop.f32.mrf.mxu0
    %v4836 = vadd.f32 0.0, %v4835
    %v4837 = vpop.f32.mrf.mxu0
    %v4838 = vadd.f32 0.0, %v4837
    %4839 = vmatmul.bf16.gmra.mxu0 %v4589
    %v4840 = vpop.f32.mrf.mxu0
    %v4841 = vadd.f32 0.0, %v4840
    %v4842 = vpop.f32.mrf.mxu0
    %v4843 = vadd.f32 0.0, %v4842
    %4844 = vmatmul.bf16.gmra.mxu0 %v4590
    %v4845 = vpop.f32.mrf.mxu0
    %v4846 = vadd.f32 0.0, %v4845
    %v4847 = vpop.f32.mrf.mxu0
    %v4848 = vadd.f32 0.0, %v4847
    %4849 = vdwg.mxu0
    %4850 = vmatpush.bf16.msra.mxu0 %v4727
    %4851 = vmatpush.bf16.msra.mxu0 %v4724
    %4852 = vmatpush.bf16.msra.mxu0 %v4721
    %4853 = vmatpush.bf16.msra.mxu0 %v4718
    %4854 = vmatpush.bf16.msra.mxu0 %v4715
    %4855 = vmatpush.bf16.msra.mxu0 %v4712
    %4856 = vmatpush.bf16.msra.mxu0 %v4709
    %4857 = vmatpush.bf16.msra.mxu0 %v4706
    %4858 = vmatmul.bf16.gmra.mxu0 %v4583
    %v4859 = vpop.f32.mrf.mxu0
    %v4860 = vadd.f32 0.0, %v4859
    %v4861 = vpop.f32.mrf.mxu0
    %v4862 = vadd.f32 0.0, %v4861
    %4863 = vmatmul.bf16.gmra.mxu0 %v4584
    %v4864 = vpop.f32.mrf.mxu0
    %v4865 = vadd.f32 0.0, %v4864
    %v4866 = vpop.f32.mrf.mxu0
    %v4867 = vadd.f32 0.0, %v4866
    %4868 = vmatmul.bf16.gmra.mxu0 %v4585
    %v4869 = vpop.f32.mrf.mxu0
    %v4870 = vadd.f32 0.0, %v4869
    %v4871 = vpop.f32.mrf.mxu0
    %v4872 = vadd.f32 0.0, %v4871
    %4873 = vmatmul.bf16.gmra.mxu0 %v4586
    %v4874 = vpop.f32.mrf.mxu0
    %v4875 = vadd.f32 0.0, %v4874
    %v4876 = vpop.f32.mrf.mxu0
    %v4877 = vadd.f32 0.0, %v4876
    %4878 = vmatmul.bf16.gmra.mxu0 %v4587
    %v4879 = vpop.f32.mrf.mxu0
    %v4880 = vadd.f32 0.0, %v4879
    %v4881 = vpop.f32.mrf.mxu0
    %v4882 = vadd.f32 0.0, %v4881
    %4883 = vmatmul.bf16.gmra.mxu0 %v4588
    %v4884 = vpop.f32.mrf.mxu0
    %v4885 = vadd.f32 0.0, %v4884
    %v4886 = vpop.f32.mrf.mxu0
    %v4887 = vadd.f32 0.0, %v4886
    %4888 = vmatmul.bf16.gmra.mxu0 %v4589
    %v4889 = vpop.f32.mrf.mxu0
    %v4890 = vadd.f32 0.0, %v4889
    %v4891 = vpop.f32.mrf.mxu0
    %v4892 = vadd.f32 0.0, %v4891
    %4893 = vmatmul.bf16.gmra.mxu0 %v4590
    %v4894 = vpop.f32.mrf.mxu0
    %v4895 = vadd.f32 0.0, %v4894
    %v4896 = vpop.f32.mrf.mxu0
    %v4897 = vadd.f32 0.0, %v4896
    %4898 = vdwg.mxu0
    %v4899 = vpack.c.bf16 %v4811, %v4762
    %v4900 = vpack.c.bf16 %v4860, %v4860
    %v4901 = vpack.c.bf16 %v4813, %v4764
    %v4902 = vpack.c.bf16 %v4862, %v4862
    %v4903 = vpack.c.bf16 %v4816, %v4767
    %v4904 = vpack.c.bf16 %v4865, %v4865
    %v4905 = vpack.c.bf16 %v4818, %v4769
    %v4906 = vpack.c.bf16 %v4867, %v4867
    %v4907 = vpack.c.bf16 %v4821, %v4772
    %v4908 = vpack.c.bf16 %v4870, %v4870
    %v4909 = vpack.c.bf16 %v4823, %v4774
    %v4910 = vpack.c.bf16 %v4872, %v4872
    %v4911 = vpack.c.bf16 %v4826, %v4777
    %v4912 = vpack.c.bf16 %v4875, %v4875
    %v4913 = vpack.c.bf16 %v4828, %v4779
    %v4914 = vpack.c.bf16 %v4877, %v4877
    %v4915 = vpack.c.bf16 %v4831, %v4782
    %v4916 = vpack.c.bf16 %v4880, %v4880
    %v4917 = vpack.c.bf16 %v4833, %v4784
    %v4918 = vpack.c.bf16 %v4882, %v4882
    %v4919 = vpack.c.bf16 %v4836, %v4787
    %v4920 = vpack.c.bf16 %v4885, %v4885
    %v4921 = vpack.c.bf16 %v4838, %v4789
    %v4922 = vpack.c.bf16 %v4887, %v4887
    %v4923 = vpack.c.bf16 %v4841, %v4792
    %v4924 = vpack.c.bf16 %v4890, %v4890
    %v4925 = vpack.c.bf16 %v4843, %v4794
    %v4926 = vpack.c.bf16 %v4892, %v4892
    %v4927 = vpack.c.bf16 %v4846, %v4797
    %v4928 = vpack.c.bf16 %v4895, %v4895
    %v4929 = vpack.c.bf16 %v4848, %v4799
    %v4930 = vpack.c.bf16 %v4897, %v4897
    %v4947 = vunpack.c.l.b16 %v4899
    %v4948 = vunpack.c.l.b16 %v4901
    %v4949 = vunpack.c.l.b16 %v4903
    %v4950 = vunpack.c.l.b16 %v4905
    %v4951 = vunpack.c.l.b16 %v4907
    %v4952 = vunpack.c.l.b16 %v4909
    %v4953 = vunpack.c.l.b16 %v4911
    %v4954 = vunpack.c.l.b16 %v4913
    %v4955 = vunpack.c.l.b16 %v4915
    %v4956 = vunpack.c.l.b16 %v4917
    %v4957 = vunpack.c.l.b16 %v4919
    %v4958 = vunpack.c.l.b16 %v4921
    %v4959 = vunpack.c.l.b16 %v4923
    %v4960 = vunpack.c.l.b16 %v4925
    %v4961 = vunpack.c.l.b16 %v4927
    %v4962 = vunpack.c.l.b16 %v4929
    %v4963 = vpack.c.b16 %v4948, %v4947
    %v4964 = vpack.c.b16 %v4950, %v4949
    %v4965 = vpack.c.b16 %v4952, %v4951
    %v4966 = vpack.c.b16 %v4954, %v4953
    %v4967 = vpack.c.b16 %v4956, %v4955
    %v4968 = vpack.c.b16 %v4958, %v4957
    %v4969 = vpack.c.b16 %v4960, %v4959
    %v4970 = vpack.c.b16 %v4962, %v4961
    %v4971 = vunpack.c.h.b16 %v4899
    %v4972 = vunpack.c.h.b16 %v4901
    %v4973 = vunpack.c.h.b16 %v4903
    %v4974 = vunpack.c.h.b16 %v4905
    %v4975 = vunpack.c.h.b16 %v4907
    %v4976 = vunpack.c.h.b16 %v4909
    %v4977 = vunpack.c.h.b16 %v4911
    %v4978 = vunpack.c.h.b16 %v4913
    %v4979 = vunpack.c.h.b16 %v4915
    %v4980 = vunpack.c.h.b16 %v4917
    %v4981 = vunpack.c.h.b16 %v4919
    %v4982 = vunpack.c.h.b16 %v4921
    %v4983 = vunpack.c.h.b16 %v4923
    %v4984 = vunpack.c.h.b16 %v4925
    %v4985 = vunpack.c.h.b16 %v4927
    %v4986 = vunpack.c.h.b16 %v4929
    %v4987 = vpack.c.b16 %v4972, %v4971
    %v4988 = vpack.c.b16 %v4974, %v4973
    %v4989 = vpack.c.b16 %v4976, %v4975
    %v4990 = vpack.c.b16 %v4978, %v4977
    %v4991 = vpack.c.b16 %v4980, %v4979
    %v4992 = vpack.c.b16 %v4982, %v4981
    %v4993 = vpack.c.b16 %v4984, %v4983
    %v4994 = vpack.c.b16 %v4986, %v4985
    %v4996 = vsel %vm925, %v4963, 0
    %v4999 = vsel %vm925, %v4964, 0
    %v5002 = vsel %vm925, %v4965, 0
    %v5005 = vsel %vm925, %v4966, 0
    %v5008 = vsel %vm925, %v4967, 0
    %v5011 = vsel %vm925, %v4968, 0
    %v5014 = vsel %vm925, %v4969, 0
    %v5017 = vsel %vm925, %v4970, 0
    %v5020 = vsel %vm925, %v4987, 0
    %v5023 = vsel %vm925, %v4988, 0
    %v5026 = vsel %vm925, %v4989, 0
    %v5029 = vsel %vm925, %v4990, 0
    %v5032 = vsel %vm925, %v4991, 0
    %v5035 = vsel %vm925, %v4992, 0
    %v5038 = vsel %vm925, %v4993, 0
    %v5041 = vsel %vm925, %v4994, 0
    %5043 = vmatpush.bf16.xpose.msra.mxu0 %v5041
    %5044 = vmatpush.bf16.xpose.msra.mxu0 %v5038
    %5045 = vmatpush.bf16.xpose.msra.mxu0 %v5035
    %5046 = vmatpush.bf16.xpose.msra.mxu0 %v5032
    %5047 = vmatpush.bf16.xpose.msra.mxu0 %v5029
    %5048 = vmatpush.bf16.xpose.msra.mxu0 %v5026
    %5049 = vmatpush.bf16.xpose.msra.mxu0 %v5023
    %5050 = vmatpush.bf16.xpose.msra.mxu0 %v5020
    %5051 = vmatmul.bf16.gmra.mxu0 %v4996
    %v5052 = vpop.f32.mrf.mxu0
    %v5053 = vadd.f32 %v99, %v5052
    %v5054 = vpop.f32.mrf.mxu0
    %v5055 = vadd.f32 %v100, %v5054
    %5056 = vmatmul.bf16.gmra.mxu0 %v4999
    %v5057 = vpop.f32.mrf.mxu0
    %v5058 = vadd.f32 %v101, %v5057
    %v5059 = vpop.f32.mrf.mxu0
    %v5060 = vadd.f32 %v102, %v5059
    %5061 = vmatmul.bf16.gmra.mxu0 %v5002
    %v5062 = vpop.f32.mrf.mxu0
    %v5063 = vadd.f32 %v103, %v5062
    %v5064 = vpop.f32.mrf.mxu0
    %v5065 = vadd.f32 %v104, %v5064
    %5066 = vmatmul.bf16.gmra.mxu0 %v5005
    %v5067 = vpop.f32.mrf.mxu0
    %v5068 = vadd.f32 %v105, %v5067
    %v5069 = vpop.f32.mrf.mxu0
    %v5070 = vadd.f32 %v106, %v5069
    %5071 = vmatmul.bf16.gmra.mxu0 %v5008
    %v5072 = vpop.f32.mrf.mxu0
    %v5073 = vadd.f32 %v107, %v5072
    %v5074 = vpop.f32.mrf.mxu0
    %v5075 = vadd.f32 %v108, %v5074
    %5076 = vmatmul.bf16.gmra.mxu0 %v5011
    %v5077 = vpop.f32.mrf.mxu0
    %v5078 = vadd.f32 %v109, %v5077
    %v5079 = vpop.f32.mrf.mxu0
    %v5080 = vadd.f32 %v110, %v5079
    %5081 = vmatmul.bf16.gmra.mxu0 %v5014
    %v5082 = vpop.f32.mrf.mxu0
    %v5083 = vadd.f32 %v111, %v5082
    %v5084 = vpop.f32.mrf.mxu0
    %v5085 = vadd.f32 %v112, %v5084
    %5086 = vmatmul.bf16.gmra.mxu0 %v5017
    %v5087 = vpop.f32.mrf.mxu0
    %v5088 = vadd.f32 %v113, %v5087
    %v5089 = vpop.f32.mrf.mxu0
    %v5090 = vadd.f32 %v114, %v5089
    %5091 = vdwg.mxu0
    %5092 = vmax.xlane.f32.xlu0 %v5053
    %v5093 = vpop.xlane.xlu0 %5092
    %5094 = vmax.xlane.f32.xlu0 %v5055
    %v5095 = vpop.xlane.xlu0 %5094
    %5096 = vmax.xlane.f32.xlu0 %v5058
    %v5097 = vpop.xlane.xlu0 %5096
    %5098 = vmax.xlane.f32.xlu0 %v5060
    %v5099 = vpop.xlane.xlu0 %5098
    %5100 = vmax.xlane.f32.xlu0 %v5063
    %v5101 = vpop.xlane.xlu0 %5100
    %5102 = vmax.xlane.f32.xlu0 %v5065
    %v5103 = vpop.xlane.xlu0 %5102
    %5104 = vmax.xlane.f32.xlu0 %v5068
    %v5105 = vpop.xlane.xlu0 %5104
    %5106 = vmax.xlane.f32.xlu0 %v5070
    %v5107 = vpop.xlane.xlu0 %5106
    %5108 = vmax.xlane.f32.xlu0 %v5073
    %v5109 = vpop.xlane.xlu0 %5108
    %5110 = vmax.xlane.f32.xlu0 %v5075
    %v5111 = vpop.xlane.xlu0 %5110
    %5112 = vmax.xlane.f32.xlu0 %v5078
    %v5113 = vpop.xlane.xlu0 %5112
    %5114 = vmax.xlane.f32.xlu0 %v5080
    %v5115 = vpop.xlane.xlu0 %5114
    %5116 = vmax.xlane.f32.xlu0 %v5083
    %v5117 = vpop.xlane.xlu0 %5116
    %5118 = vmax.xlane.f32.xlu0 %v5085
    %v5119 = vpop.xlane.xlu0 %5118
    %5120 = vmax.xlane.f32.xlu0 %v5088
    %v5121 = vpop.xlane.xlu0 %5120
    %5122 = vmax.xlane.f32.xlu0 %v5090
    %v5123 = vpop.xlane.xlu0 %5122
    %v5124 = vsub.f32 %v5053, %v5093
    %v5125 = vsub.f32 %v5055, %v5095
    %v5126 = vsub.f32 %v5058, %v5097
    %v5127 = vsub.f32 %v5060, %v5099
    %v5128 = vsub.f32 %v5063, %v5101
    %v5129 = vsub.f32 %v5065, %v5103
    %v5130 = vsub.f32 %v5068, %v5105
    %v5131 = vsub.f32 %v5070, %v5107
    %v5132 = vsub.f32 %v5073, %v5109
    %v5133 = vsub.f32 %v5075, %v5111
    %v5134 = vsub.f32 %v5078, %v5113
    %v5135 = vsub.f32 %v5080, %v5115
    %v5136 = vsub.f32 %v5083, %v5117
    %v5137 = vsub.f32 %v5085, %v5119
    %v5138 = vsub.f32 %v5088, %v5121
    %v5139 = vsub.f32 %v5090, %v5123
    %v5140 = vmul.f32 %v5124, 1.442695
    %v5141 = vpow.pop %v5140
    %v5142 = vmul.f32 %v5125, 1.442695
    %v5143 = vpow.pop %v5142
    %v5144 = vmul.f32 %v5126, 1.442695
    %v5145 = vpow.pop %v5144
    %v5146 = vmul.f32 %v5127, 1.442695
    %v5147 = vpow.pop %v5146
    %v5148 = vmul.f32 %v5128, 1.442695
    %v5149 = vpow.pop %v5148
    %v5150 = vmul.f32 %v5129, 1.442695
    %v5151 = vpow.pop %v5150
    %v5152 = vmul.f32 %v5130, 1.442695
    %v5153 = vpow.pop %v5152
    %v5154 = vmul.f32 %v5131, 1.442695
    %v5155 = vpow.pop %v5154
    %v5156 = vmul.f32 %v5132, 1.442695
    %v5157 = vpow.pop %v5156
    %v5158 = vmul.f32 %v5133, 1.442695
    %v5159 = vpow.pop %v5158
    %v5160 = vmul.f32 %v5134, 1.442695
    %v5161 = vpow.pop %v5160
    %v5162 = vmul.f32 %v5135, 1.442695
    %v5163 = vpow.pop %v5162
    %v5164 = vmul.f32 %v5136, 1.442695
    %v5165 = vpow.pop %v5164
    %v5166 = vmul.f32 %v5137, 1.442695
    %v5167 = vpow.pop %v5166
    %v5168 = vmul.f32 %v5138, 1.442695
    %v5169 = vpow.pop %v5168
    %v5170 = vmul.f32 %v5139, 1.442695
    %v5171 = vpow.pop %v5170
    %5172 = vadd.xlane.f32.xlu0 %v5141
    %v5173 = vpop.xlane.xlu0 %5172
    %5174 = vadd.xlane.f32.xlu0 %v5143
    %v5175 = vpop.xlane.xlu0 %5174
    %5176 = vadd.xlane.f32.xlu0 %v5145
    %v5177 = vpop.xlane.xlu0 %5176
    %5178 = vadd.xlane.f32.xlu0 %v5147
    %v5179 = vpop.xlane.xlu0 %5178
    %5180 = vadd.xlane.f32.xlu0 %v5149
    %v5181 = vpop.xlane.xlu0 %5180
    %5182 = vadd.xlane.f32.xlu0 %v5151
    %v5183 = vpop.xlane.xlu0 %5182
    %5184 = vadd.xlane.f32.xlu0 %v5153
    %v5185 = vpop.xlane.xlu0 %5184
    %5186 = vadd.xlane.f32.xlu0 %v5155
    %v5187 = vpop.xlane.xlu0 %5186
    %5188 = vadd.xlane.f32.xlu0 %v5157
    %v5189 = vpop.xlane.xlu0 %5188
    %5190 = vadd.xlane.f32.xlu0 %v5159
    %v5191 = vpop.xlane.xlu0 %5190
    %5192 = vadd.xlane.f32.xlu0 %v5161
    %v5193 = vpop.xlane.xlu0 %5192
    %5194 = vadd.xlane.f32.xlu0 %v5163
    %v5195 = vpop.xlane.xlu0 %5194
    %5196 = vadd.xlane.f32.xlu0 %v5165
    %v5197 = vpop.xlane.xlu0 %5196
    %5198 = vadd.xlane.f32.xlu0 %v5167
    %v5199 = vpop.xlane.xlu0 %5198
    %5200 = vadd.xlane.f32.xlu0 %v5169
    %v5201 = vpop.xlane.xlu0 %5200
    %5202 = vadd.xlane.f32.xlu0 %v5171
    %v5203 = vpop.xlane.xlu0 %5202
    %v5204 = vrcp.pop %v5173
    %v5205 = vrcp.pop %v5175
    %v5206 = vrcp.pop %v5177
    %v5207 = vrcp.pop %v5179
    %v5208 = vrcp.pop %v5181
    %v5209 = vrcp.pop %v5183
    %v5210 = vrcp.pop %v5185
    %v5211 = vrcp.pop %v5187
    %v5212 = vrcp.pop %v5189
    %v5213 = vrcp.pop %v5191
    %v5214 = vrcp.pop %v5193
    %v5215 = vrcp.pop %v5195
    %v5216 = vrcp.pop %v5197
    %v5217 = vrcp.pop %v5199
    %v5218 = vrcp.pop %v5201
    %v5219 = vrcp.pop %v5203
    %v5220 = vmul.f32 %v5141, %v5204
    %v5221 = vmul.f32 %v5143, %v5205
    %v5222 = vmul.f32 %v5145, %v5206
    %v5223 = vmul.f32 %v5147, %v5207
    %v5224 = vmul.f32 %v5149, %v5208
    %v5225 = vmul.f32 %v5151, %v5209
    %v5226 = vmul.f32 %v5153, %v5210
    %v5227 = vmul.f32 %v5155, %v5211
    %v5228 = vmul.f32 %v5157, %v5212
    %v5229 = vmul.f32 %v5159, %v5213
    %v5230 = vmul.f32 %v5161, %v5214
    %v5231 = vmul.f32 %v5163, %v5215
    %v5232 = vmul.f32 %v5165, %v5216
    %v5233 = vmul.f32 %v5167, %v5217
    %v5234 = vmul.f32 %v5169, %v5218
    %v5235 = vmul.f32 %v5171, %v5219
    %v5236 = vpack.c.bf16 %v5221, %v5220
    %v5237 = vpack.c.bf16 %v5223, %v5222
    %v5238 = vpack.c.bf16 %v5225, %v5224
    %v5239 = vpack.c.bf16 %v5227, %v5226
    %v5240 = vpack.c.bf16 %v5229, %v5228
    %v5241 = vpack.c.bf16 %v5231, %v5230
    %v5242 = vpack.c.bf16 %v5233, %v5232
    %v5243 = vpack.c.bf16 %v5235, %v5234
    %v5260 = vunpack.c.l.b16 %v4900
    %v5261 = vunpack.c.l.b16 %v4902
    %v5262 = vunpack.c.l.b16 %v4904
    %v5263 = vunpack.c.l.b16 %v4906
    %v5264 = vunpack.c.l.b16 %v4908
    %v5265 = vunpack.c.l.b16 %v4910
    %v5266 = vunpack.c.l.b16 %v4912
    %v5267 = vunpack.c.l.b16 %v4914
    %v5268 = vunpack.c.l.b16 %v4916
    %v5269 = vunpack.c.l.b16 %v4918
    %v5270 = vunpack.c.l.b16 %v4920
    %v5271 = vunpack.c.l.b16 %v4922
    %v5272 = vunpack.c.l.b16 %v4924
    %v5273 = vunpack.c.l.b16 %v4926
    %v5274 = vunpack.c.l.b16 %v4928
    %v5275 = vunpack.c.l.b16 %v4930
    %v5276 = vpack.c.b16 %v5261, %v5260
    %v5277 = vpack.c.b16 %v5263, %v5262
    %v5278 = vpack.c.b16 %v5265, %v5264
    %v5279 = vpack.c.b16 %v5267, %v5266
    %v5280 = vpack.c.b16 %v5269, %v5268
    %v5281 = vpack.c.b16 %v5271, %v5270
    %v5282 = vpack.c.b16 %v5273, %v5272
    %v5283 = vpack.c.b16 %v5275, %v5274
    %5292 = vmatpush.bf16.msra.mxu0 %v5283
    %5293 = vmatpush.bf16.msra.mxu0 %v5282
    %5294 = vmatpush.bf16.msra.mxu0 %v5281
    %5295 = vmatpush.bf16.msra.mxu0 %v5280
    %5296 = vmatpush.bf16.msra.mxu0 %v5279
    %5297 = vmatpush.bf16.msra.mxu0 %v5278
    %5298 = vmatpush.bf16.msra.mxu0 %v5277
    %5299 = vmatpush.bf16.msra.mxu0 %v5276
    %5300 = vmatmul.bf16.gmra.mxu0 %v5236
    %v5301 = vpop.f32.mrf.mxu0
    %v5302 = vadd.f32 0.0, %v5301
    %v5303 = vpop.f32.mrf.mxu0
    %v5304 = vadd.f32 0.0, %v5303
    %5305 = vmatmul.bf16.gmra.mxu0 %v5237
    %v5306 = vpop.f32.mrf.mxu0
    %v5307 = vadd.f32 0.0, %v5306
    %v5308 = vpop.f32.mrf.mxu0
    %v5309 = vadd.f32 0.0, %v5308
    %5310 = vmatmul.bf16.gmra.mxu0 %v5238
    %v5311 = vpop.f32.mrf.mxu0
    %v5312 = vadd.f32 0.0, %v5311
    %v5313 = vpop.f32.mrf.mxu0
    %v5314 = vadd.f32 0.0, %v5313
    %5315 = vmatmul.bf16.gmra.mxu0 %v5239
    %v5316 = vpop.f32.mrf.mxu0
    %v5317 = vadd.f32 0.0, %v5316
    %v5318 = vpop.f32.mrf.mxu0
    %v5319 = vadd.f32 0.0, %v5318
    %5320 = vmatmul.bf16.gmra.mxu0 %v5240
    %v5321 = vpop.f32.mrf.mxu0
    %v5322 = vadd.f32 0.0, %v5321
    %v5323 = vpop.f32.mrf.mxu0
    %v5324 = vadd.f32 0.0, %v5323
    %5325 = vmatmul.bf16.gmra.mxu0 %v5241
    %v5326 = vpop.f32.mrf.mxu0
    %v5327 = vadd.f32 0.0, %v5326
    %v5328 = vpop.f32.mrf.mxu0
    %v5329 = vadd.f32 0.0, %v5328
    %5330 = vmatmul.bf16.gmra.mxu0 %v5242
    %v5331 = vpop.f32.mrf.mxu0
    %v5332 = vadd.f32 0.0, %v5331
    %v5333 = vpop.f32.mrf.mxu0
    %v5334 = vadd.f32 0.0, %v5333
    %5335 = vmatmul.bf16.gmra.mxu0 %v5243
    %v5336 = vpop.f32.mrf.mxu0
    %v5337 = vadd.f32 0.0, %v5336
    %v5338 = vpop.f32.mrf.mxu0
    %v5339 = vadd.f32 0.0, %v5338
    %5340 = vdwg.mxu0
    %v5341 = vpack.c.bf16 %v5302, %v5302
    %v5342 = vpack.c.bf16 %v5304, %v5304
    %v5343 = vpack.c.bf16 %v5307, %v5307
    %v5344 = vpack.c.bf16 %v5309, %v5309
    %v5345 = vpack.c.bf16 %v5312, %v5312
    %v5346 = vpack.c.bf16 %v5314, %v5314
    %v5347 = vpack.c.bf16 %v5317, %v5317
    %v5348 = vpack.c.bf16 %v5319, %v5319
    %v5349 = vpack.c.bf16 %v5322, %v5322
    %v5350 = vpack.c.bf16 %v5324, %v5324
    %v5351 = vpack.c.bf16 %v5327, %v5327
    %v5352 = vpack.c.bf16 %v5329, %v5329
    %v5353 = vpack.c.bf16 %v5332, %v5332
    %v5354 = vpack.c.bf16 %v5334, %v5334
    %v5355 = vpack.c.bf16 %v5337, %v5337
    %v5356 = vpack.c.bf16 %v5339, %v5339
    %5357 = vst.msk [vmem:[#allocation2] sm:$0xf] %vm1288, %v5341
    %5358 = vst.msk [vmem:[#allocation2 + $0x4] sm:$0xf] %vm1288, %v5342
    %5359 = vst.msk [vmem:[#allocation2 + $0x8] sm:$0xf] %vm1288, %v5343
    %5360 = vst.msk [vmem:[#allocation2 + $0xc] sm:$0xf] %vm1288, %v5344
    %5361 = vst.msk [vmem:[#allocation2 + $0x10] sm:$0xf] %vm1288, %v5345
    %5362 = vst.msk [vmem:[#allocation2 + $0x14] sm:$0xf] %vm1288, %v5346
    %5363 = vst.msk [vmem:[#allocation2 + $0x18] sm:$0xf] %vm1288, %v5347
    %5364 = vst.msk [vmem:[#allocation2 + $0x1c] sm:$0xf] %vm1288, %v5348
    %5365 = vst.msk [vmem:[#allocation2 + $0x20] sm:$0xf] %vm1288, %v5349
    %5366 = vst.msk [vmem:[#allocation2 + $0x24] sm:$0xf] %vm1288, %v5350
    %5367 = vst.msk [vmem:[#allocation2 + $0x28] sm:$0xf] %vm1288, %v5351
    %5368 = vst.msk [vmem:[#allocation2 + $0x2c] sm:$0xf] %vm1288, %v5352
    %5369 = vst.msk [vmem:[#allocation2 + $0x30] sm:$0xf] %vm1288, %v5353
    %5370 = vst.msk [vmem:[#allocation2 + $0x34] sm:$0xf] %vm1288, %v5354
    %5371 = vst.msk [vmem:[#allocation2 + $0x38] sm:$0xf] %vm1288, %v5355
    %5372 = vst.msk [vmem:[#allocation2 + $0x3c] sm:$0xf] %vm1288, %v5356
    %5373 = vrot.lane.b32.xlu0 %v4963, 96
    %v5374 = vpop.permute.xlu0 %5373
    %5375 = vrot.lane.b32.xlu0 %v4964, 96
    %v5376 = vpop.permute.xlu0 %5375
    %5377 = vrot.lane.b32.xlu0 %v4965, 96
    %v5378 = vpop.permute.xlu0 %5377
    %5379 = vrot.lane.b32.xlu0 %v4966, 96
    %v5380 = vpop.permute.xlu0 %5379
    %5381 = vrot.lane.b32.xlu0 %v4967, 96
    %v5382 = vpop.permute.xlu0 %5381
    %5383 = vrot.lane.b32.xlu0 %v4968, 96
    %v5384 = vpop.permute.xlu0 %5383
    %5385 = vrot.lane.b32.xlu0 %v4969, 96
    %v5386 = vpop.permute.xlu0 %5385
    %5387 = vrot.lane.b32.xlu0 %v4970, 96
    %v5388 = vpop.permute.xlu0 %5387
    %5389 = vrot.lane.b32.xlu0 %v4987, 96
    %v5390 = vpop.permute.xlu0 %5389
    %5391 = vrot.lane.b32.xlu0 %v4988, 96
    %v5392 = vpop.permute.xlu0 %5391
    %5393 = vrot.lane.b32.xlu0 %v4989, 96
    %v5394 = vpop.permute.xlu0 %5393
    %5395 = vrot.lane.b32.xlu0 %v4990, 96
    %v5396 = vpop.permute.xlu0 %5395
    %5397 = vrot.lane.b32.xlu0 %v4991, 96
    %v5398 = vpop.permute.xlu0 %5397
    %5399 = vrot.lane.b32.xlu0 %v4992, 96
    %v5400 = vpop.permute.xlu0 %5399
    %5401 = vrot.lane.b32.xlu0 %v4993, 96
    %v5402 = vpop.permute.xlu0 %5401
    %5403 = vrot.lane.b32.xlu0 %v4994, 96
    %v5404 = vpop.permute.xlu0 %5403
    %v5406 = vsel %vm925, %v5374, 0
    %v5409 = vsel %vm925, %v5376, 0
    %v5412 = vsel %vm925, %v5378, 0
    %v5415 = vsel %vm925, %v5380, 0
    %v5418 = vsel %vm925, %v5382, 0
    %v5421 = vsel %vm925, %v5384, 0
    %v5424 = vsel %vm925, %v5386, 0
    %v5427 = vsel %vm925, %v5388, 0
    %v5430 = vsel %vm925, %v5390, 0
    %v5433 = vsel %vm925, %v5392, 0
    %v5436 = vsel %vm925, %v5394, 0
    %v5439 = vsel %vm925, %v5396, 0
    %v5442 = vsel %vm925, %v5398, 0
    %v5445 = vsel %vm925, %v5400, 0
    %v5448 = vsel %vm925, %v5402, 0
    %v5451 = vsel %vm925, %v5404, 0
    %5453 = vmatpush.bf16.xpose.msra.mxu0 %v5451
    %5454 = vmatpush.bf16.xpose.msra.mxu0 %v5448
    %5455 = vmatpush.bf16.xpose.msra.mxu0 %v5445
    %5456 = vmatpush.bf16.xpose.msra.mxu0 %v5442
    %5457 = vmatpush.bf16.xpose.msra.mxu0 %v5439
    %5458 = vmatpush.bf16.xpose.msra.mxu0 %v5436
    %5459 = vmatpush.bf16.xpose.msra.mxu0 %v5433
    %5460 = vmatpush.bf16.xpose.msra.mxu0 %v5430
    %5461 = vmatmul.bf16.gmra.mxu0 %v5406
    %v5462 = vpop.f32.mrf.mxu0
    %v5463 = vadd.f32 %v99, %v5462
    %v5464 = vpop.f32.mrf.mxu0
    %v5465 = vadd.f32 %v100, %v5464
    %5466 = vmatmul.bf16.gmra.mxu0 %v5409
    %v5467 = vpop.f32.mrf.mxu0
    %v5468 = vadd.f32 %v101, %v5467
    %v5469 = vpop.f32.mrf.mxu0
    %v5470 = vadd.f32 %v102, %v5469
    %5471 = vmatmul.bf16.gmra.mxu0 %v5412
    %v5472 = vpop.f32.mrf.mxu0
    %v5473 = vadd.f32 %v103, %v5472
    %v5474 = vpop.f32.mrf.mxu0
    %v5475 = vadd.f32 %v104, %v5474
    %5476 = vmatmul.bf16.gmra.mxu0 %v5415
    %v5477 = vpop.f32.mrf.mxu0
    %v5478 = vadd.f32 %v105, %v5477
    %v5479 = vpop.f32.mrf.mxu0
    %v5480 = vadd.f32 %v106, %v5479
    %5481 = vmatmul.bf16.gmra.mxu0 %v5418
    %v5482 = vpop.f32.mrf.mxu0
    %v5483 = vadd.f32 %v107, %v5482
    %v5484 = vpop.f32.mrf.mxu0
    %v5485 = vadd.f32 %v108, %v5484
    %5486 = vmatmul.bf16.gmra.mxu0 %v5421
    %v5487 = vpop.f32.mrf.mxu0
    %v5488 = vadd.f32 %v109, %v5487
    %v5489 = vpop.f32.mrf.mxu0
    %v5490 = vadd.f32 %v110, %v5489
    %5491 = vmatmul.bf16.gmra.mxu0 %v5424
    %v5492 = vpop.f32.mrf.mxu0
    %v5493 = vadd.f32 %v111, %v5492
    %v5494 = vpop.f32.mrf.mxu0
    %v5495 = vadd.f32 %v112, %v5494
    %5496 = vmatmul.bf16.gmra.mxu0 %v5427
    %v5497 = vpop.f32.mrf.mxu0
    %v5498 = vadd.f32 %v113, %v5497
    %v5499 = vpop.f32.mrf.mxu0
    %v5500 = vadd.f32 %v114, %v5499
    %5501 = vdwg.mxu0
    %5502 = vmax.xlane.f32.xlu0 %v5463
    %v5503 = vpop.xlane.xlu0 %5502
    %5504 = vmax.xlane.f32.xlu0 %v5465
    %v5505 = vpop.xlane.xlu0 %5504
    %5506 = vmax.xlane.f32.xlu0 %v5468
    %v5507 = vpop.xlane.xlu0 %5506
    %5508 = vmax.xlane.f32.xlu0 %v5470
    %v5509 = vpop.xlane.xlu0 %5508
    %5510 = vmax.xlane.f32.xlu0 %v5473
    %v5511 = vpop.xlane.xlu0 %5510
    %5512 = vmax.xlane.f32.xlu0 %v5475
    %v5513 = vpop.xlane.xlu0 %5512
    %5514 = vmax.xlane.f32.xlu0 %v5478
    %v5515 = vpop.xlane.xlu0 %5514
    %5516 = vmax.xlane.f32.xlu0 %v5480
    %v5517 = vpop.xlane.xlu0 %5516
    %5518 = vmax.xlane.f32.xlu0 %v5483
    %v5519 = vpop.xlane.xlu0 %5518
    %5520 = vmax.xlane.f32.xlu0 %v5485
    %v5521 = vpop.xlane.xlu0 %5520
    %5522 = vmax.xlane.f32.xlu0 %v5488
    %v5523 = vpop.xlane.xlu0 %5522
    %5524 = vmax.xlane.f32.xlu0 %v5490
    %v5525 = vpop.xlane.xlu0 %5524
    %5526 = vmax.xlane.f32.xlu0 %v5493
    %v5527 = vpop.xlane.xlu0 %5526
    %5528 = vmax.xlane.f32.xlu0 %v5495
    %v5529 = vpop.xlane.xlu0 %5528
    %5530 = vmax.xlane.f32.xlu0 %v5498
    %v5531 = vpop.xlane.xlu0 %5530
    %5532 = vmax.xlane.f32.xlu0 %v5500
    %v5533 = vpop.xlane.xlu0 %5532
    %v5534 = vsub.f32 %v5463, %v5503
    %v5535 = vsub.f32 %v5465, %v5505
    %v5536 = vsub.f32 %v5468, %v5507
    %v5537 = vsub.f32 %v5470, %v5509
    %v5538 = vsub.f32 %v5473, %v5511
    %v5539 = vsub.f32 %v5475, %v5513
    %v5540 = vsub.f32 %v5478, %v5515
    %v5541 = vsub.f32 %v5480, %v5517
    %v5542 = vsub.f32 %v5483, %v5519
    %v5543 = vsub.f32 %v5485, %v5521
    %v5544 = vsub.f32 %v5488, %v5523
    %v5545 = vsub.f32 %v5490, %v5525
    %v5546 = vsub.f32 %v5493, %v5527
    %v5547 = vsub.f32 %v5495, %v5529
    %v5548 = vsub.f32 %v5498, %v5531
    %v5549 = vsub.f32 %v5500, %v5533
    %v5550 = vmul.f32 %v5534, 1.442695
    %v5551 = vpow.pop %v5550
    %v5552 = vmul.f32 %v5535, 1.442695
    %v5553 = vpow.pop %v5552
    %v5554 = vmul.f32 %v5536, 1.442695
    %v5555 = vpow.pop %v5554
    %v5556 = vmul.f32 %v5537, 1.442695
    %v5557 = vpow.pop %v5556
    %v5558 = vmul.f32 %v5538, 1.442695
    %v5559 = vpow.pop %v5558
    %v5560 = vmul.f32 %v5539, 1.442695
    %v5561 = vpow.pop %v5560
    %v5562 = vmul.f32 %v5540, 1.442695
    %v5563 = vpow.pop %v5562
    %v5564 = vmul.f32 %v5541, 1.442695
    %v5565 = vpow.pop %v5564
    %v5566 = vmul.f32 %v5542, 1.442695
    %v5567 = vpow.pop %v5566
    %v5568 = vmul.f32 %v5543, 1.442695
    %v5569 = vpow.pop %v5568
    %v5570 = vmul.f32 %v5544, 1.442695
    %v5571 = vpow.pop %v5570
    %v5572 = vmul.f32 %v5545, 1.442695
    %v5573 = vpow.pop %v5572
    %v5574 = vmul.f32 %v5546, 1.442695
    %v5575 = vpow.pop %v5574
    %v5576 = vmul.f32 %v5547, 1.442695
    %v5577 = vpow.pop %v5576
    %v5578 = vmul.f32 %v5548, 1.442695
    %v5579 = vpow.pop %v5578
    %v5580 = vmul.f32 %v5549, 1.442695
    %v5581 = vpow.pop %v5580
    %5582 = vadd.xlane.f32.xlu0 %v5551
    %v5583 = vpop.xlane.xlu0 %5582
    %5584 = vadd.xlane.f32.xlu0 %v5553
    %v5585 = vpop.xlane.xlu0 %5584
    %5586 = vadd.xlane.f32.xlu0 %v5555
    %v5587 = vpop.xlane.xlu0 %5586
    %5588 = vadd.xlane.f32.xlu0 %v5557
    %v5589 = vpop.xlane.xlu0 %5588
    %5590 = vadd.xlane.f32.xlu0 %v5559
    %v5591 = vpop.xlane.xlu0 %5590
    %5592 = vadd.xlane.f32.xlu0 %v5561
    %v5593 = vpop.xlane.xlu0 %5592
    %5594 = vadd.xlane.f32.xlu0 %v5563
    %v5595 = vpop.xlane.xlu0 %5594
    %5596 = vadd.xlane.f32.xlu0 %v5565
    %v5597 = vpop.xlane.xlu0 %5596
    %5598 = vadd.xlane.f32.xlu0 %v5567
    %v5599 = vpop.xlane.xlu0 %5598
    %5600 = vadd.xlane.f32.xlu0 %v5569
    %v5601 = vpop.xlane.xlu0 %5600
    %5602 = vadd.xlane.f32.xlu0 %v5571
    %v5603 = vpop.xlane.xlu0 %5602
    %5604 = vadd.xlane.f32.xlu0 %v5573
    %v5605 = vpop.xlane.xlu0 %5604
    %5606 = vadd.xlane.f32.xlu0 %v5575
    %v5607 = vpop.xlane.xlu0 %5606
    %5608 = vadd.xlane.f32.xlu0 %v5577
    %v5609 = vpop.xlane.xlu0 %5608
    %5610 = vadd.xlane.f32.xlu0 %v5579
    %v5611 = vpop.xlane.xlu0 %5610
    %5612 = vadd.xlane.f32.xlu0 %v5581
    %v5613 = vpop.xlane.xlu0 %5612
    %v5614 = vrcp.pop %v5583
    %v5615 = vrcp.pop %v5585
    %v5616 = vrcp.pop %v5587
    %v5617 = vrcp.pop %v5589
    %v5618 = vrcp.pop %v5591
    %v5619 = vrcp.pop %v5593
    %v5620 = vrcp.pop %v5595
    %v5621 = vrcp.pop %v5597
    %v5622 = vrcp.pop %v5599
    %v5623 = vrcp.pop %v5601
    %v5624 = vrcp.pop %v5603
    %v5625 = vrcp.pop %v5605
    %v5626 = vrcp.pop %v5607
    %v5627 = vrcp.pop %v5609
    %v5628 = vrcp.pop %v5611
    %v5629 = vrcp.pop %v5613
    %v5630 = vmul.f32 %v5551, %v5614
    %v5631 = vmul.f32 %v5553, %v5615
    %v5632 = vmul.f32 %v5555, %v5616
    %v5633 = vmul.f32 %v5557, %v5617
    %v5634 = vmul.f32 %v5559, %v5618
    %v5635 = vmul.f32 %v5561, %v5619
    %v5636 = vmul.f32 %v5563, %v5620
    %v5637 = vmul.f32 %v5565, %v5621
    %v5638 = vmul.f32 %v5567, %v5622
    %v5639 = vmul.f32 %v5569, %v5623
    %v5640 = vmul.f32 %v5571, %v5624
    %v5641 = vmul.f32 %v5573, %v5625
    %v5642 = vmul.f32 %v5575, %v5626
    %v5643 = vmul.f32 %v5577, %v5627
    %v5644 = vmul.f32 %v5579, %v5628
    %v5645 = vmul.f32 %v5581, %v5629
    %v5646 = vpack.c.bf16 %v5631, %v5630
    %v5647 = vpack.c.bf16 %v5633, %v5632
    %v5648 = vpack.c.bf16 %v5635, %v5634
    %v5649 = vpack.c.bf16 %v5637, %v5636
    %v5650 = vpack.c.bf16 %v5639, %v5638
    %v5651 = vpack.c.bf16 %v5641, %v5640
    %v5652 = vpack.c.bf16 %v5643, %v5642
    %v5653 = vpack.c.bf16 %v5645, %v5644
    %5654 = vrot.lane.b32.xlu0 %v5276, 96
    %v5655 = vpop.permute.xlu0 %5654
    %5656 = vrot.lane.b32.xlu0 %v5277, 96
    %v5657 = vpop.permute.xlu0 %5656
    %5658 = vrot.lane.b32.xlu0 %v5278, 96
    %v5659 = vpop.permute.xlu0 %5658
    %5660 = vrot.lane.b32.xlu0 %v5279, 96
    %v5661 = vpop.permute.xlu0 %5660
    %5662 = vrot.lane.b32.xlu0 %v5280, 96
    %v5663 = vpop.permute.xlu0 %5662
    %5664 = vrot.lane.b32.xlu0 %v5281, 96
    %v5665 = vpop.permute.xlu0 %5664
    %5666 = vrot.lane.b32.xlu0 %v5282, 96
    %v5667 = vpop.permute.xlu0 %5666
    %5668 = vrot.lane.b32.xlu0 %v5283, 96
    %v5669 = vpop.permute.xlu0 %5668
    %5678 = vmatpush.bf16.msra.mxu0 %v5669
    %5679 = vmatpush.bf16.msra.mxu0 %v5667
    %5680 = vmatpush.bf16.msra.mxu0 %v5665
    %5681 = vmatpush.bf16.msra.mxu0 %v5663
    %5682 = vmatpush.bf16.msra.mxu0 %v5661
    %5683 = vmatpush.bf16.msra.mxu0 %v5659
    %5684 = vmatpush.bf16.msra.mxu0 %v5657
    %5685 = vmatpush.bf16.msra.mxu0 %v5655
    %5686 = vmatmul.bf16.gmra.mxu0 %v5646
    %v5687 = vpop.f32.mrf.mxu0
    %v5688 = vadd.f32 0.0, %v5687
    %v5689 = vpop.f32.mrf.mxu0
    %v5690 = vadd.f32 0.0, %v5689
    %5691 = vmatmul.bf16.gmra.mxu0 %v5647
    %v5692 = vpop.f32.mrf.mxu0
    %v5693 = vadd.f32 0.0, %v5692
    %v5694 = vpop.f32.mrf.mxu0
    %v5695 = vadd.f32 0.0, %v5694
    %5696 = vmatmul.bf16.gmra.mxu0 %v5648
    %v5697 = vpop.f32.mrf.mxu0
    %v5698 = vadd.f32 0.0, %v5697
    %v5699 = vpop.f32.mrf.mxu0
    %v5700 = vadd.f32 0.0, %v5699
    %5701 = vmatmul.bf16.gmra.mxu0 %v5649
    %v5702 = vpop.f32.mrf.mxu0
    %v5703 = vadd.f32 0.0, %v5702
    %v5704 = vpop.f32.mrf.mxu0
    %v5705 = vadd.f32 0.0, %v5704
    %5706 = vmatmul.bf16.gmra.mxu0 %v5650
    %v5707 = vpop.f32.mrf.mxu0
    %v5708 = vadd.f32 0.0, %v5707
    %v5709 = vpop.f32.mrf.mxu0
    %v5710 = vadd.f32 0.0, %v5709
    %5711 = vmatmul.bf16.gmra.mxu0 %v5651
    %v5712 = vpop.f32.mrf.mxu0
    %v5713 = vadd.f32 0.0, %v5712
    %v5714 = vpop.f32.mrf.mxu0
    %v5715 = vadd.f32 0.0, %v5714
    %5716 = vmatmul.bf16.gmra.mxu0 %v5652
    %v5717 = vpop.f32.mrf.mxu0
    %v5718 = vadd.f32 0.0, %v5717
    %v5719 = vpop.f32.mrf.mxu0
    %v5720 = vadd.f32 0.0, %v5719
    %5721 = vmatmul.bf16.gmra.mxu0 %v5653
    %v5722 = vpop.f32.mrf.mxu0
    %v5723 = vadd.f32 0.0, %v5722
    %v5724 = vpop.f32.mrf.mxu0
    %v5725 = vadd.f32 0.0, %v5724
    %5726 = vdwg.mxu0
    %v5727 = vpack.c.bf16 %v5688, %v5688
    %v5728 = vpack.c.bf16 %v5690, %v5690
    %v5729 = vpack.c.bf16 %v5693, %v5693
    %v5730 = vpack.c.bf16 %v5695, %v5695
    %v5731 = vpack.c.bf16 %v5698, %v5698
    %v5732 = vpack.c.bf16 %v5700, %v5700
    %v5733 = vpack.c.bf16 %v5703, %v5703
    %v5734 = vpack.c.bf16 %v5705, %v5705
    %v5735 = vpack.c.bf16 %v5708, %v5708
    %v5736 = vpack.c.bf16 %v5710, %v5710
    %v5737 = vpack.c.bf16 %v5713, %v5713
    %v5738 = vpack.c.bf16 %v5715, %v5715
    %v5739 = vpack.c.bf16 %v5718, %v5718
    %v5740 = vpack.c.bf16 %v5720, %v5720
    %v5741 = vpack.c.bf16 %v5723, %v5723
    %v5742 = vpack.c.bf16 %v5725, %v5725
    %5759 = vrot.lane.b32.xlu0 %v5727, 32
    %v5760 = vpop.permute.xlu0 %5759
    %5761 = vrot.lane.b32.xlu0 %v5728, 32
    %v5762 = vpop.permute.xlu0 %5761
    %5763 = vrot.lane.b32.xlu0 %v5729, 32
    %v5764 = vpop.permute.xlu0 %5763
    %5765 = vrot.lane.b32.xlu0 %v5730, 32
    %v5766 = vpop.permute.xlu0 %5765
    %5767 = vrot.lane.b32.xlu0 %v5731, 32
    %v5768 = vpop.permute.xlu0 %5767
    %5769 = vrot.lane.b32.xlu0 %v5732, 32
    %v5770 = vpop.permute.xlu0 %5769
    %5771 = vrot.lane.b32.xlu0 %v5733, 32
    %v5772 = vpop.permute.xlu0 %5771
    %5773 = vrot.lane.b32.xlu0 %v5734, 32
    %v5774 = vpop.permute.xlu0 %5773
    %5775 = vrot.lane.b32.xlu0 %v5735, 32
    %v5776 = vpop.permute.xlu0 %5775
    %5777 = vrot.lane.b32.xlu0 %v5736, 32
    %v5778 = vpop.permute.xlu0 %5777
    %5779 = vrot.lane.b32.xlu0 %v5737, 32
    %v5780 = vpop.permute.xlu0 %5779
    %5781 = vrot.lane.b32.xlu0 %v5738, 32
    %v5782 = vpop.permute.xlu0 %5781
    %5783 = vrot.lane.b32.xlu0 %v5739, 32
    %v5784 = vpop.permute.xlu0 %5783
    %5785 = vrot.lane.b32.xlu0 %v5740, 32
    %v5786 = vpop.permute.xlu0 %5785
    %5787 = vrot.lane.b32.xlu0 %v5741, 32
    %v5788 = vpop.permute.xlu0 %5787
    %5789 = vrot.lane.b32.xlu0 %v5742, 32
    %v5790 = vpop.permute.xlu0 %5789
    %5807 = vst.msk [vmem:[#allocation2] sm:$0xf] %vm1739, %v5760
    %5808 = vst.msk [vmem:[#allocation2 + $0x4] sm:$0xf] %vm1739, %v5762
    %5809 = vst.msk [vmem:[#allocation2 + $0x8] sm:$0xf] %vm1739, %v5764
    %5810 = vst.msk [vmem:[#allocation2 + $0xc] sm:$0xf] %vm1739, %v5766
    %5811 = vst.msk [vmem:[#allocation2 + $0x10] sm:$0xf] %vm1739, %v5768
    %5812 = vst.msk [vmem:[#allocation2 + $0x14] sm:$0xf] %vm1739, %v5770
    %5813 = vst.msk [vmem:[#allocation2 + $0x18] sm:$0xf] %vm1739, %v5772
    %5814 = vst.msk [vmem:[#allocation2 + $0x1c] sm:$0xf] %vm1739, %v5774
    %5815 = vst.msk [vmem:[#allocation2 + $0x20] sm:$0xf] %vm1739, %v5776
    %5816 = vst.msk [vmem:[#allocation2 + $0x24] sm:$0xf] %vm1739, %v5778
    %5817 = vst.msk [vmem:[#allocation2 + $0x28] sm:$0xf] %vm1739, %v5780
    %5818 = vst.msk [vmem:[#allocation2 + $0x2c] sm:$0xf] %vm1739, %v5782
    %5819 = vst.msk [vmem:[#allocation2 + $0x30] sm:$0xf] %vm1739, %v5784
    %5820 = vst.msk [vmem:[#allocation2 + $0x34] sm:$0xf] %vm1739, %v5786
    %5821 = vst.msk [vmem:[#allocation2 + $0x38] sm:$0xf] %vm1739, %v5788
    %5822 = vst.msk [vmem:[#allocation2 + $0x3c] sm:$0xf] %vm1739, %v5790
    %5823 = vrot.lane.b32.xlu0 %v4963, 64
    %v5824 = vpop.permute.xlu0 %5823
    %5825 = vrot.lane.b32.xlu0 %v4964, 64
    %v5826 = vpop.permute.xlu0 %5825
    %5827 = vrot.lane.b32.xlu0 %v4965, 64
    %v5828 = vpop.permute.xlu0 %5827
    %5829 = vrot.lane.b32.xlu0 %v4966, 64
    %v5830 = vpop.permute.xlu0 %5829
    %5831 = vrot.lane.b32.xlu0 %v4967, 64
    %v5832 = vpop.permute.xlu0 %5831
    %5833 = vrot.lane.b32.xlu0 %v4968, 64
    %v5834 = vpop.permute.xlu0 %5833
    %5835 = vrot.lane.b32.xlu0 %v4969, 64
    %v5836 = vpop.permute.xlu0 %5835
    %5837 = vrot.lane.b32.xlu0 %v4970, 64
    %v5838 = vpop.permute.xlu0 %5837
    %5839 = vrot.lane.b32.xlu0 %v4987, 64
    %v5840 = vpop.permute.xlu0 %5839
    %5841 = vrot.lane.b32.xlu0 %v4988, 64
    %v5842 = vpop.permute.xlu0 %5841
    %5843 = vrot.lane.b32.xlu0 %v4989, 64
    %v5844 = vpop.permute.xlu0 %5843
    %5845 = vrot.lane.b32.xlu0 %v4990, 64
    %v5846 = vpop.permute.xlu0 %5845
    %5847 = vrot.lane.b32.xlu0 %v4991, 64
    %v5848 = vpop.permute.xlu0 %5847
    %5849 = vrot.lane.b32.xlu0 %v4992, 64
    %v5850 = vpop.permute.xlu0 %5849
    %5851 = vrot.lane.b32.xlu0 %v4993, 64
    %v5852 = vpop.permute.xlu0 %5851
    %5853 = vrot.lane.b32.xlu0 %v4994, 64
    %v5854 = vpop.permute.xlu0 %5853
    %v5856 = vsel %vm925, %v5824, 0
    %v5859 = vsel %vm925, %v5826, 0
    %v5862 = vsel %vm925, %v5828, 0
    %v5865 = vsel %vm925, %v5830, 0
    %v5868 = vsel %vm925, %v5832, 0
    %v5871 = vsel %vm925, %v5834, 0
    %v5874 = vsel %vm925, %v5836, 0
    %v5877 = vsel %vm925, %v5838, 0
    %v5880 = vsel %vm925, %v5840, 0
    %v5883 = vsel %vm925, %v5842, 0
    %v5886 = vsel %vm925, %v5844, 0
    %v5889 = vsel %vm925, %v5846, 0
    %v5892 = vsel %vm925, %v5848, 0
    %v5895 = vsel %vm925, %v5850, 0
    %v5898 = vsel %vm925, %v5852, 0
    %v5901 = vsel %vm925, %v5854, 0
    %5903 = vmatpush.bf16.xpose.msra.mxu0 %v5901
    %5904 = vmatpush.bf16.xpose.msra.mxu0 %v5898
    %5905 = vmatpush.bf16.xpose.msra.mxu0 %v5895
    %5906 = vmatpush.bf16.xpose.msra.mxu0 %v5892
    %5907 = vmatpush.bf16.xpose.msra.mxu0 %v5889
    %5908 = vmatpush.bf16.xpose.msra.mxu0 %v5886
    %5909 = vmatpush.bf16.xpose.msra.mxu0 %v5883
    %5910 = vmatpush.bf16.xpose.msra.mxu0 %v5880
    %5911 = vmatmul.bf16.gmra.mxu0 %v5856
    %v5912 = vpop.f32.mrf.mxu0
    %v5913 = vadd.f32 %v99, %v5912
    %v5914 = vpop.f32.mrf.mxu0
    %v5915 = vadd.f32 %v100, %v5914
    %5916 = vmatmul.bf16.gmra.mxu0 %v5859
    %v5917 = vpop.f32.mrf.mxu0
    %v5918 = vadd.f32 %v101, %v5917
    %v5919 = vpop.f32.mrf.mxu0
    %v5920 = vadd.f32 %v102, %v5919
    %5921 = vmatmul.bf16.gmra.mxu0 %v5862
    %v5922 = vpop.f32.mrf.mxu0
    %v5923 = vadd.f32 %v103, %v5922
    %v5924 = vpop.f32.mrf.mxu0
    %v5925 = vadd.f32 %v104, %v5924
    %5926 = vmatmul.bf16.gmra.mxu0 %v5865
    %v5927 = vpop.f32.mrf.mxu0
    %v5928 = vadd.f32 %v105, %v5927
    %v5929 = vpop.f32.mrf.mxu0
    %v5930 = vadd.f32 %v106, %v5929
    %5931 = vmatmul.bf16.gmra.mxu0 %v5868
    %v5932 = vpop.f32.mrf.mxu0
    %v5933 = vadd.f32 %v107, %v5932
    %v5934 = vpop.f32.mrf.mxu0
    %v5935 = vadd.f32 %v108, %v5934
    %5936 = vmatmul.bf16.gmra.mxu0 %v5871
    %v5937 = vpop.f32.mrf.mxu0
    %v5938 = vadd.f32 %v109, %v5937
    %v5939 = vpop.f32.mrf.mxu0
    %v5940 = vadd.f32 %v110, %v5939
    %5941 = vmatmul.bf16.gmra.mxu0 %v5874
    %v5942 = vpop.f32.mrf.mxu0
    %v5943 = vadd.f32 %v111, %v5942
    %v5944 = vpop.f32.mrf.mxu0
    %v5945 = vadd.f32 %v112, %v5944
    %5946 = vmatmul.bf16.gmra.mxu0 %v5877
    %v5947 = vpop.f32.mrf.mxu0
    %v5948 = vadd.f32 %v113, %v5947
    %v5949 = vpop.f32.mrf.mxu0
    %v5950 = vadd.f32 %v114, %v5949
    %5951 = vdwg.mxu0
    %5952 = vmax.xlane.f32.xlu0 %v5913
    %v5953 = vpop.xlane.xlu0 %5952
    %5954 = vmax.xlane.f32.xlu0 %v5915
    %v5955 = vpop.xlane.xlu0 %5954
    %5956 = vmax.xlane.f32.xlu0 %v5918
    %v5957 = vpop.xlane.xlu0 %5956
    %5958 = vmax.xlane.f32.xlu0 %v5920
    %v5959 = vpop.xlane.xlu0 %5958
    %5960 = vmax.xlane.f32.xlu0 %v5923
    %v5961 = vpop.xlane.xlu0 %5960
    %5962 = vmax.xlane.f32.xlu0 %v5925
    %v5963 = vpop.xlane.xlu0 %5962
    %5964 = vmax.xlane.f32.xlu0 %v5928
    %v5965 = vpop.xlane.xlu0 %5964
    %5966 = vmax.xlane.f32.xlu0 %v5930
    %v5967 = vpop.xlane.xlu0 %5966
    %5968 = vmax.xlane.f32.xlu0 %v5933
    %v5969 = vpop.xlane.xlu0 %5968
    %5970 = vmax.xlane.f32.xlu0 %v5935
    %v5971 = vpop.xlane.xlu0 %5970
    %5972 = vmax.xlane.f32.xlu0 %v5938
    %v5973 = vpop.xlane.xlu0 %5972
    %5974 = vmax.xlane.f32.xlu0 %v5940
    %v5975 = vpop.xlane.xlu0 %5974
    %5976 = vmax.xlane.f32.xlu0 %v5943
    %v5977 = vpop.xlane.xlu0 %5976
    %5978 = vmax.xlane.f32.xlu0 %v5945
    %v5979 = vpop.xlane.xlu0 %5978
    %5980 = vmax.xlane.f32.xlu0 %v5948
    %v5981 = vpop.xlane.xlu0 %5980
    %5982 = vmax.xlane.f32.xlu0 %v5950
    %v5983 = vpop.xlane.xlu0 %5982
    %v5984 = vsub.f32 %v5913, %v5953
    %v5985 = vsub.f32 %v5915, %v5955
    %v5986 = vsub.f32 %v5918, %v5957
    %v5987 = vsub.f32 %v5920, %v5959
    %v5988 = vsub.f32 %v5923, %v5961
    %v5989 = vsub.f32 %v5925, %v5963
    %v5990 = vsub.f32 %v5928, %v5965
    %v5991 = vsub.f32 %v5930, %v5967
    %v5992 = vsub.f32 %v5933, %v5969
    %v5993 = vsub.f32 %v5935, %v5971
    %v5994 = vsub.f32 %v5938, %v5973
    %v5995 = vsub.f32 %v5940, %v5975
    %v5996 = vsub.f32 %v5943, %v5977
    %v5997 = vsub.f32 %v5945, %v5979
    %v5998 = vsub.f32 %v5948, %v5981
    %v5999 = vsub.f32 %v5950, %v5983
    %v6000 = vmul.f32 %v5984, 1.442695
    %v6001 = vpow.pop %v6000
    %v6002 = vmul.f32 %v5985, 1.442695
    %v6003 = vpow.pop %v6002
    %v6004 = vmul.f32 %v5986, 1.442695
    %v6005 = vpow.pop %v6004
    %v6006 = vmul.f32 %v5987, 1.442695
    %v6007 = vpow.pop %v6006
    %v6008 = vmul.f32 %v5988, 1.442695
    %v6009 = vpow.pop %v6008
    %v6010 = vmul.f32 %v5989, 1.442695
    %v6011 = vpow.pop %v6010
    %v6012 = vmul.f32 %v5990, 1.442695
    %v6013 = vpow.pop %v6012
    %v6014 = vmul.f32 %v5991, 1.442695
    %v6015 = vpow.pop %v6014
    %v6016 = vmul.f32 %v5992, 1.442695
    %v6017 = vpow.pop %v6016
    %v6018 = vmul.f32 %v5993, 1.442695
    %v6019 = vpow.pop %v6018
    %v6020 = vmul.f32 %v5994, 1.442695
    %v6021 = vpow.pop %v6020
    %v6022 = vmul.f32 %v5995, 1.442695
    %v6023 = vpow.pop %v6022
    %v6024 = vmul.f32 %v5996, 1.442695
    %v6025 = vpow.pop %v6024
    %v6026 = vmul.f32 %v5997, 1.442695
    %v6027 = vpow.pop %v6026
    %v6028 = vmul.f32 %v5998, 1.442695
    %v6029 = vpow.pop %v6028
    %v6030 = vmul.f32 %v5999, 1.442695
    %v6031 = vpow.pop %v6030
    %6032 = vadd.xlane.f32.xlu0 %v6001
    %v6033 = vpop.xlane.xlu0 %6032
    %6034 = vadd.xlane.f32.xlu0 %v6003
    %v6035 = vpop.xlane.xlu0 %6034
    %6036 = vadd.xlane.f32.xlu0 %v6005
    %v6037 = vpop.xlane.xlu0 %6036
    %6038 = vadd.xlane.f32.xlu0 %v6007
    %v6039 = vpop.xlane.xlu0 %6038
    %6040 = vadd.xlane.f32.xlu0 %v6009
    %v6041 = vpop.xlane.xlu0 %6040
    %6042 = vadd.xlane.f32.xlu0 %v6011
    %v6043 = vpop.xlane.xlu0 %6042
    %6044 = vadd.xlane.f32.xlu0 %v6013
    %v6045 = vpop.xlane.xlu0 %6044
    %6046 = vadd.xlane.f32.xlu0 %v6015
    %v6047 = vpop.xlane.xlu0 %6046
    %6048 = vadd.xlane.f32.xlu0 %v6017
    %v6049 = vpop.xlane.xlu0 %6048
    %6050 = vadd.xlane.f32.xlu0 %v6019
    %v6051 = vpop.xlane.xlu0 %6050
    %6052 = vadd.xlane.f32.xlu0 %v6021
    %v6053 = vpop.xlane.xlu0 %6052
    %6054 = vadd.xlane.f32.xlu0 %v6023
    %v6055 = vpop.xlane.xlu0 %6054
    %6056 = vadd.xlane.f32.xlu0 %v6025
    %v6057 = vpop.xlane.xlu0 %6056
    %6058 = vadd.xlane.f32.xlu0 %v6027
    %v6059 = vpop.xlane.xlu0 %6058
    %6060 = vadd.xlane.f32.xlu0 %v6029
    %v6061 = vpop.xlane.xlu0 %6060
    %6062 = vadd.xlane.f32.xlu0 %v6031
    %v6063 = vpop.xlane.xlu0 %6062
    %v6064 = vrcp.pop %v6033
    %v6065 = vrcp.pop %v6035
    %v6066 = vrcp.pop %v6037
    %v6067 = vrcp.pop %v6039
    %v6068 = vrcp.pop %v6041
    %v6069 = vrcp.pop %v6043
    %v6070 = vrcp.pop %v6045
    %v6071 = vrcp.pop %v6047
    %v6072 = vrcp.pop %v6049
    %v6073 = vrcp.pop %v6051
    %v6074 = vrcp.pop %v6053
    %v6075 = vrcp.pop %v6055
    %v6076 = vrcp.pop %v6057
    %v6077 = vrcp.pop %v6059
    %v6078 = vrcp.pop %v6061
    %v6079 = vrcp.pop %v6063
    %v6080 = vmul.f32 %v6001, %v6064
    %v6081 = vmul.f32 %v6003, %v6065
    %v6082 = vmul.f32 %v6005, %v6066
    %v6083 = vmul.f32 %v6007, %v6067
    %v6084 = vmul.f32 %v6009, %v6068
    %v6085 = vmul.f32 %v6011, %v6069
    %v6086 = vmul.f32 %v6013, %v6070
    %v6087 = vmul.f32 %v6015, %v6071
    %v6088 = vmul.f32 %v6017, %v6072
    %v6089 = vmul.f32 %v6019, %v6073
    %v6090 = vmul.f32 %v6021, %v6074
    %v6091 = vmul.f32 %v6023, %v6075
    %v6092 = vmul.f32 %v6025, %v6076
    %v6093 = vmul.f32 %v6027, %v6077
    %v6094 = vmul.f32 %v6029, %v6078
    %v6095 = vmul.f32 %v6031, %v6079
    %v6096 = vpack.c.bf16 %v6081, %v6080
    %v6097 = vpack.c.bf16 %v6083, %v6082
    %v6098 = vpack.c.bf16 %v6085, %v6084
    %v6099 = vpack.c.bf16 %v6087, %v6086
    %v6100 = vpack.c.bf16 %v6089, %v6088
    %v6101 = vpack.c.bf16 %v6091, %v6090
    %v6102 = vpack.c.bf16 %v6093, %v6092
    %v6103 = vpack.c.bf16 %v6095, %v6094
    %6104 = vrot.lane.b32.xlu0 %v5276, 64
    %v6105 = vpop.permute.xlu0 %6104
    %6106 = vrot.lane.b32.xlu0 %v5277, 64
    %v6107 = vpop.permute.xlu0 %6106
    %6108 = vrot.lane.b32.xlu0 %v5278, 64
    %v6109 = vpop.permute.xlu0 %6108
    %6110 = vrot.lane.b32.xlu0 %v5279, 64
    %v6111 = vpop.permute.xlu0 %6110
    %6112 = vrot.lane.b32.xlu0 %v5280, 64
    %v6113 = vpop.permute.xlu0 %6112
    %6114 = vrot.lane.b32.xlu0 %v5281, 64
    %v6115 = vpop.permute.xlu0 %6114
    %6116 = vrot.lane.b32.xlu0 %v5282, 64
    %v6117 = vpop.permute.xlu0 %6116
    %6118 = vrot.lane.b32.xlu0 %v5283, 64
    %v6119 = vpop.permute.xlu0 %6118
    %6128 = vmatpush.bf16.msra.mxu0 %v6119
    %6129 = vmatpush.bf16.msra.mxu0 %v6117
    %6130 = vmatpush.bf16.msra.mxu0 %v6115
    %6131 = vmatpush.bf16.msra.mxu0 %v6113
    %6132 = vmatpush.bf16.msra.mxu0 %v6111
    %6133 = vmatpush.bf16.msra.mxu0 %v6109
    %6134 = vmatpush.bf16.msra.mxu0 %v6107
    %6135 = vmatpush.bf16.msra.mxu0 %v6105
    %6136 = vmatmul.bf16.gmra.mxu0 %v6096
    %v6137 = vpop.f32.mrf.mxu0
    %v6138 = vadd.f32 0.0, %v6137
    %v6139 = vpop.f32.mrf.mxu0
    %v6140 = vadd.f32 0.0, %v6139
    %6141 = vmatmul.bf16.gmra.mxu0 %v6097
    %v6142 = vpop.f32.mrf.mxu0
    %v6143 = vadd.f32 0.0, %v6142
    %v6144 = vpop.f32.mrf.mxu0
    %v6145 = vadd.f32 0.0, %v6144
    %6146 = vmatmul.bf16.gmra.mxu0 %v6098
    %v6147 = vpop.f32.mrf.mxu0
    %v6148 = vadd.f32 0.0, %v6147
    %v6149 = vpop.f32.mrf.mxu0
    %v6150 = vadd.f32 0.0, %v6149
    %6151 = vmatmul.bf16.gmra.mxu0 %v6099
    %v6152 = vpop.f32.mrf.mxu0
    %v6153 = vadd.f32 0.0, %v6152
    %v6154 = vpop.f32.mrf.mxu0
    %v6155 = vadd.f32 0.0, %v6154
    %6156 = vmatmul.bf16.gmra.mxu0 %v6100
    %v6157 = vpop.f32.mrf.mxu0
    %v6158 = vadd.f32 0.0, %v6157
    %v6159 = vpop.f32.mrf.mxu0
    %v6160 = vadd.f32 0.0, %v6159
    %6161 = vmatmul.bf16.gmra.mxu0 %v6101
    %v6162 = vpop.f32.mrf.mxu0
    %v6163 = vadd.f32 0.0, %v6162
    %v6164 = vpop.f32.mrf.mxu0
    %v6165 = vadd.f32 0.0, %v6164
    %6166 = vmatmul.bf16.gmra.mxu0 %v6102
    %v6167 = vpop.f32.mrf.mxu0
    %v6168 = vadd.f32 0.0, %v6167
    %v6169 = vpop.f32.mrf.mxu0
    %v6170 = vadd.f32 0.0, %v6169
    %6171 = vmatmul.bf16.gmra.mxu0 %v6103
    %v6172 = vpop.f32.mrf.mxu0
    %v6173 = vadd.f32 0.0, %v6172
    %v6174 = vpop.f32.mrf.mxu0
    %v6175 = vadd.f32 0.0, %v6174
    %6176 = vdwg.mxu0
    %v6177 = vpack.c.bf16 %v6138, %v6138
    %v6178 = vpack.c.bf16 %v6140, %v6140
    %v6179 = vpack.c.bf16 %v6143, %v6143
    %v6180 = vpack.c.bf16 %v6145, %v6145
    %v6181 = vpack.c.bf16 %v6148, %v6148
    %v6182 = vpack.c.bf16 %v6150, %v6150
    %v6183 = vpack.c.bf16 %v6153, %v6153
    %v6184 = vpack.c.bf16 %v6155, %v6155
    %v6185 = vpack.c.bf16 %v6158, %v6158
    %v6186 = vpack.c.bf16 %v6160, %v6160
    %v6187 = vpack.c.bf16 %v6163, %v6163
    %v6188 = vpack.c.bf16 %v6165, %v6165
    %v6189 = vpack.c.bf16 %v6168, %v6168
    %v6190 = vpack.c.bf16 %v6170, %v6170
    %v6191 = vpack.c.bf16 %v6173, %v6173
    %v6192 = vpack.c.bf16 %v6175, %v6175
    %6209 = vrot.lane.b32.xlu0 %v6177, 64
    %v6210 = vpop.permute.xlu0 %6209
    %6211 = vrot.lane.b32.xlu0 %v6178, 64
    %v6212 = vpop.permute.xlu0 %6211
    %6213 = vrot.lane.b32.xlu0 %v6179, 64
    %v6214 = vpop.permute.xlu0 %6213
    %6215 = vrot.lane.b32.xlu0 %v6180, 64
    %v6216 = vpop.permute.xlu0 %6215
    %6217 = vrot.lane.b32.xlu0 %v6181, 64
    %v6218 = vpop.permute.xlu0 %6217
    %6219 = vrot.lane.b32.xlu0 %v6182, 64
    %v6220 = vpop.permute.xlu0 %6219
    %6221 = vrot.lane.b32.xlu0 %v6183, 64
    %v6222 = vpop.permute.xlu0 %6221
    %6223 = vrot.lane.b32.xlu0 %v6184, 64
    %v6224 = vpop.permute.xlu0 %6223
    %6225 = vrot.lane.b32.xlu0 %v6185, 64
    %v6226 = vpop.permute.xlu0 %6225
    %6227 = vrot.lane.b32.xlu0 %v6186, 64
    %v6228 = vpop.permute.xlu0 %6227
    %6229 = vrot.lane.b32.xlu0 %v6187, 64
    %v6230 = vpop.permute.xlu0 %6229
    %6231 = vrot.lane.b32.xlu0 %v6188, 64
    %v6232 = vpop.permute.xlu0 %6231
    %6233 = vrot.lane.b32.xlu0 %v6189, 64
    %v6234 = vpop.permute.xlu0 %6233
    %6235 = vrot.lane.b32.xlu0 %v6190, 64
    %v6236 = vpop.permute.xlu0 %6235
    %6237 = vrot.lane.b32.xlu0 %v6191, 64
    %v6238 = vpop.permute.xlu0 %6237
    %6239 = vrot.lane.b32.xlu0 %v6192, 64
    %v6240 = vpop.permute.xlu0 %6239
    %6257 = vst.msk [vmem:[#allocation2] sm:$0xf] %vm2190, %v6210
    %6258 = vst.msk [vmem:[#allocation2 + $0x4] sm:$0xf] %vm2190, %v6212
    %6259 = vst.msk [vmem:[#allocation2 + $0x8] sm:$0xf] %vm2190, %v6214
    %6260 = vst.msk [vmem:[#allocation2 + $0xc] sm:$0xf] %vm2190, %v6216
    %6261 = vst.msk [vmem:[#allocation2 + $0x10] sm:$0xf] %vm2190, %v6218
    %6262 = vst.msk [vmem:[#allocation2 + $0x14] sm:$0xf] %vm2190, %v6220
    %6263 = vst.msk [vmem:[#allocation2 + $0x18] sm:$0xf] %vm2190, %v6222
    %6264 = vst.msk [vmem:[#allocation2 + $0x1c] sm:$0xf] %vm2190, %v6224
    %6265 = vst.msk [vmem:[#allocation2 + $0x20] sm:$0xf] %vm2190, %v6226
    %6266 = vst.msk [vmem:[#allocation2 + $0x24] sm:$0xf] %vm2190, %v6228
    %6267 = vst.msk [vmem:[#allocation2 + $0x28] sm:$0xf] %vm2190, %v6230
    %6268 = vst.msk [vmem:[#allocation2 + $0x2c] sm:$0xf] %vm2190, %v6232
    %6269 = vst.msk [vmem:[#allocation2 + $0x30] sm:$0xf] %vm2190, %v6234
    %6270 = vst.msk [vmem:[#allocation2 + $0x34] sm:$0xf] %vm2190, %v6236
    %6271 = vst.msk [vmem:[#allocation2 + $0x38] sm:$0xf] %vm2190, %v6238
    %6272 = vst.msk [vmem:[#allocation2 + $0x3c] sm:$0xf] %vm2190, %v6240
    %6273 = vrot.lane.b32.xlu0 %v4963, 32
    %v6274 = vpop.permute.xlu0 %6273
    %6275 = vrot.lane.b32.xlu0 %v4964, 32
    %v6276 = vpop.permute.xlu0 %6275
    %6277 = vrot.lane.b32.xlu0 %v4965, 32
    %v6278 = vpop.permute.xlu0 %6277
    %6279 = vrot.lane.b32.xlu0 %v4966, 32
    %v6280 = vpop.permute.xlu0 %6279
    %6281 = vrot.lane.b32.xlu0 %v4967, 32
    %v6282 = vpop.permute.xlu0 %6281
    %6283 = vrot.lane.b32.xlu0 %v4968, 32
    %v6284 = vpop.permute.xlu0 %6283
    %6285 = vrot.lane.b32.xlu0 %v4969, 32
    %v6286 = vpop.permute.xlu0 %6285
    %6287 = vrot.lane.b32.xlu0 %v4970, 32
    %v6288 = vpop.permute.xlu0 %6287
    %6289 = vrot.lane.b32.xlu0 %v4987, 32
    %v6290 = vpop.permute.xlu0 %6289
    %6291 = vrot.lane.b32.xlu0 %v4988, 32
    %v6292 = vpop.permute.xlu0 %6291
    %6293 = vrot.lane.b32.xlu0 %v4989, 32
    %v6294 = vpop.permute.xlu0 %6293
    %6295 = vrot.lane.b32.xlu0 %v4990, 32
    %v6296 = vpop.permute.xlu0 %6295
    %6297 = vrot.lane.b32.xlu0 %v4991, 32
    %v6298 = vpop.permute.xlu0 %6297
    %6299 = vrot.lane.b32.xlu0 %v4992, 32
    %v6300 = vpop.permute.xlu0 %6299
    %6301 = vrot.lane.b32.xlu0 %v4993, 32
    %v6302 = vpop.permute.xlu0 %6301
    %6303 = vrot.lane.b32.xlu0 %v4994, 32
    %v6304 = vpop.permute.xlu0 %6303
    %v6306 = vsel %vm925, %v6274, 0
    %v6309 = vsel %vm925, %v6276, 0
    %v6312 = vsel %vm925, %v6278, 0
    %v6315 = vsel %vm925, %v6280, 0
    %v6318 = vsel %vm925, %v6282, 0
    %v6321 = vsel %vm925, %v6284, 0
    %v6324 = vsel %vm925, %v6286, 0
    %v6327 = vsel %vm925, %v6288, 0
    %v6330 = vsel %vm925, %v6290, 0
    %v6333 = vsel %vm925, %v6292, 0
    %v6336 = vsel %vm925, %v6294, 0
    %v6339 = vsel %vm925, %v6296, 0
    %v6342 = vsel %vm925, %v6298, 0
    %v6345 = vsel %vm925, %v6300, 0
    %v6348 = vsel %vm925, %v6302, 0
    %v6351 = vsel %vm925, %v6304, 0
    %6353 = vmatpush.bf16.xpose.msra.mxu0 %v6351
    %6354 = vmatpush.bf16.xpose.msra.mxu0 %v6348
    %6355 = vmatpush.bf16.xpose.msra.mxu0 %v6345
    %6356 = vmatpush.bf16.xpose.msra.mxu0 %v6342
    %6357 = vmatpush.bf16.xpose.msra.mxu0 %v6339
    %6358 = vmatpush.bf16.xpose.msra.mxu0 %v6336
    %6359 = vmatpush.bf16.xpose.msra.mxu0 %v6333
    %6360 = vmatpush.bf16.xpose.msra.mxu0 %v6330
    %6361 = vmatmul.bf16.gmra.mxu0 %v6306
    %v6362 = vpop.f32.mrf.mxu0
    %v6363 = vadd.f32 %v99, %v6362
    %v6364 = vpop.f32.mrf.mxu0
    %v6365 = vadd.f32 %v100, %v6364
    %6366 = vmatmul.bf16.gmra.mxu0 %v6309
    %v6367 = vpop.f32.mrf.mxu0
    %v6368 = vadd.f32 %v101, %v6367
    %v6369 = vpop.f32.mrf.mxu0
    %v6370 = vadd.f32 %v102, %v6369
    %6371 = vmatmul.bf16.gmra.mxu0 %v6312
    %v6372 = vpop.f32.mrf.mxu0
    %v6373 = vadd.f32 %v103, %v6372
    %v6374 = vpop.f32.mrf.mxu0
    %v6375 = vadd.f32 %v104, %v6374
    %6376 = vmatmul.bf16.gmra.mxu0 %v6315
    %v6377 = vpop.f32.mrf.mxu0
    %v6378 = vadd.f32 %v105, %v6377
    %v6379 = vpop.f32.mrf.mxu0
    %v6380 = vadd.f32 %v106, %v6379
    %6381 = vmatmul.bf16.gmra.mxu0 %v6318
    %v6382 = vpop.f32.mrf.mxu0
    %v6383 = vadd.f32 %v107, %v6382
    %v6384 = vpop.f32.mrf.mxu0
    %v6385 = vadd.f32 %v108, %v6384
    %6386 = vmatmul.bf16.gmra.mxu0 %v6321
    %v6387 = vpop.f32.mrf.mxu0
    %v6388 = vadd.f32 %v109, %v6387
    %v6389 = vpop.f32.mrf.mxu0
    %v6390 = vadd.f32 %v110, %v6389
    %6391 = vmatmul.bf16.gmra.mxu0 %v6324
    %v6392 = vpop.f32.mrf.mxu0
    %v6393 = vadd.f32 %v111, %v6392
    %v6394 = vpop.f32.mrf.mxu0
    %v6395 = vadd.f32 %v112, %v6394
    %6396 = vmatmul.bf16.gmra.mxu0 %v6327
    %v6397 = vpop.f32.mrf.mxu0
    %v6398 = vadd.f32 %v113, %v6397
    %v6399 = vpop.f32.mrf.mxu0
    %v6400 = vadd.f32 %v114, %v6399
    %6401 = vdwg.mxu0
    %6402 = vmax.xlane.f32.xlu0 %v6363
    %v6403 = vpop.xlane.xlu0 %6402
    %6404 = vmax.xlane.f32.xlu0 %v6365
    %v6405 = vpop.xlane.xlu0 %6404
    %6406 = vmax.xlane.f32.xlu0 %v6368
    %v6407 = vpop.xlane.xlu0 %6406
    %6408 = vmax.xlane.f32.xlu0 %v6370
    %v6409 = vpop.xlane.xlu0 %6408
    %6410 = vmax.xlane.f32.xlu0 %v6373
    %v6411 = vpop.xlane.xlu0 %6410
    %6412 = vmax.xlane.f32.xlu0 %v6375
    %v6413 = vpop.xlane.xlu0 %6412
    %6414 = vmax.xlane.f32.xlu0 %v6378
    %v6415 = vpop.xlane.xlu0 %6414
    %6416 = vmax.xlane.f32.xlu0 %v6380
    %v6417 = vpop.xlane.xlu0 %6416
    %6418 = vmax.xlane.f32.xlu0 %v6383
    %v6419 = vpop.xlane.xlu0 %6418
    %6420 = vmax.xlane.f32.xlu0 %v6385
    %v6421 = vpop.xlane.xlu0 %6420
    %6422 = vmax.xlane.f32.xlu0 %v6388
    %v6423 = vpop.xlane.xlu0 %6422
    %6424 = vmax.xlane.f32.xlu0 %v6390
    %v6425 = vpop.xlane.xlu0 %6424
    %6426 = vmax.xlane.f32.xlu0 %v6393
    %v6427 = vpop.xlane.xlu0 %6426
    %6428 = vmax.xlane.f32.xlu0 %v6395
    %v6429 = vpop.xlane.xlu0 %6428
    %6430 = vmax.xlane.f32.xlu0 %v6398
    %v6431 = vpop.xlane.xlu0 %6430
    %6432 = vmax.xlane.f32.xlu0 %v6400
    %v6433 = vpop.xlane.xlu0 %6432
    %v6434 = vsub.f32 %v6363, %v6403
    %v6435 = vsub.f32 %v6365, %v6405
    %v6436 = vsub.f32 %v6368, %v6407
    %v6437 = vsub.f32 %v6370, %v6409
    %v6438 = vsub.f32 %v6373, %v6411
    %v6439 = vsub.f32 %v6375, %v6413
    %v6440 = vsub.f32 %v6378, %v6415
    %v6441 = vsub.f32 %v6380, %v6417
    %v6442 = vsub.f32 %v6383, %v6419
    %v6443 = vsub.f32 %v6385, %v6421
    %v6444 = vsub.f32 %v6388, %v6423
    %v6445 = vsub.f32 %v6390, %v6425
    %v6446 = vsub.f32 %v6393, %v6427
    %v6447 = vsub.f32 %v6395, %v6429
    %v6448 = vsub.f32 %v6398, %v6431
    %v6449 = vsub.f32 %v6400, %v6433
    %v6450 = vmul.f32 %v6434, 1.442695
    %v6451 = vpow.pop %v6450
    %v6452 = vmul.f32 %v6435, 1.442695
    %v6453 = vpow.pop %v6452
    %v6454 = vmul.f32 %v6436, 1.442695
    %v6455 = vpow.pop %v6454
    %v6456 = vmul.f32 %v6437, 1.442695
    %v6457 = vpow.pop %v6456
    %v6458 = vmul.f32 %v6438, 1.442695
    %v6459 = vpow.pop %v6458
    %v6460 = vmul.f32 %v6439, 1.442695
    %v6461 = vpow.pop %v6460
    %v6462 = vmul.f32 %v6440, 1.442695
    %v6463 = vpow.pop %v6462
    %v6464 = vmul.f32 %v6441, 1.442695
    %v6465 = vpow.pop %v6464
    %v6466 = vmul.f32 %v6442, 1.442695
    %v6467 = vpow.pop %v6466
    %v6468 = vmul.f32 %v6443, 1.442695
    %v6469 = vpow.pop %v6468
    %v6470 = vmul.f32 %v6444, 1.442695
    %v6471 = vpow.pop %v6470
    %v6472 = vmul.f32 %v6445, 1.442695
    %v6473 = vpow.pop %v6472
    %v6474 = vmul.f32 %v6446, 1.442695
    %v6475 = vpow.pop %v6474
    %v6476 = vmul.f32 %v6447, 1.442695
    %v6477 = vpow.pop %v6476
    %v6478 = vmul.f32 %v6448, 1.442695
    %v6479 = vpow.pop %v6478
    %v6480 = vmul.f32 %v6449, 1.442695
    %v6481 = vpow.pop %v6480
    %6482 = vadd.xlane.f32.xlu0 %v6451
    %v6483 = vpop.xlane.xlu0 %6482
    %6484 = vadd.xlane.f32.xlu0 %v6453
    %v6485 = vpop.xlane.xlu0 %6484
    %6486 = vadd.xlane.f32.xlu0 %v6455
    %v6487 = vpop.xlane.xlu0 %6486
    %6488 = vadd.xlane.f32.xlu0 %v6457
    %v6489 = vpop.xlane.xlu0 %6488
    %6490 = vadd.xlane.f32.xlu0 %v6459
    %v6491 = vpop.xlane.xlu0 %6490
    %6492 = vadd.xlane.f32.xlu0 %v6461
    %v6493 = vpop.xlane.xlu0 %6492
    %6494 = vadd.xlane.f32.xlu0 %v6463
    %v6495 = vpop.xlane.xlu0 %6494
    %6496 = vadd.xlane.f32.xlu0 %v6465
    %v6497 = vpop.xlane.xlu0 %6496
    %6498 = vadd.xlane.f32.xlu0 %v6467
    %v6499 = vpop.xlane.xlu0 %6498
    %6500 = vadd.xlane.f32.xlu0 %v6469
    %v6501 = vpop.xlane.xlu0 %6500
    %6502 = vadd.xlane.f32.xlu0 %v6471
    %v6503 = vpop.xlane.xlu0 %6502
    %6504 = vadd.xlane.f32.xlu0 %v6473
    %v6505 = vpop.xlane.xlu0 %6504
    %6506 = vadd.xlane.f32.xlu0 %v6475
    %v6507 = vpop.xlane.xlu0 %6506
    %6508 = vadd.xlane.f32.xlu0 %v6477
    %v6509 = vpop.xlane.xlu0 %6508
    %6510 = vadd.xlane.f32.xlu0 %v6479
    %v6511 = vpop.xlane.xlu0 %6510
    %6512 = vadd.xlane.f32.xlu0 %v6481
    %v6513 = vpop.xlane.xlu0 %6512
    %v6514 = vrcp.pop %v6483
    %v6515 = vrcp.pop %v6485
    %v6516 = vrcp.pop %v6487
    %v6517 = vrcp.pop %v6489
    %v6518 = vrcp.pop %v6491
    %v6519 = vrcp.pop %v6493
    %v6520 = vrcp.pop %v6495
    %v6521 = vrcp.pop %v6497
    %v6522 = vrcp.pop %v6499
    %v6523 = vrcp.pop %v6501
    %v6524 = vrcp.pop %v6503
    %v6525 = vrcp.pop %v6505
    %v6526 = vrcp.pop %v6507
    %v6527 = vrcp.pop %v6509
    %v6528 = vrcp.pop %v6511
    %v6529 = vrcp.pop %v6513
    %v6530 = vmul.f32 %v6451, %v6514
    %v6531 = vmul.f32 %v6453, %v6515
    %v6532 = vmul.f32 %v6455, %v6516
    %v6533 = vmul.f32 %v6457, %v6517
    %v6534 = vmul.f32 %v6459, %v6518
    %v6535 = vmul.f32 %v6461, %v6519
    %v6536 = vmul.f32 %v6463, %v6520
    %v6537 = vmul.f32 %v6465, %v6521
    %v6538 = vmul.f32 %v6467, %v6522
    %v6539 = vmul.f32 %v6469, %v6523
    %v6540 = vmul.f32 %v6471, %v6524
    %v6541 = vmul.f32 %v6473, %v6525
    %v6542 = vmul.f32 %v6475, %v6526
    %v6543 = vmul.f32 %v6477, %v6527
    %v6544 = vmul.f32 %v6479, %v6528
    %v6545 = vmul.f32 %v6481, %v6529
    %v6546 = vpack.c.bf16 %v6531, %v6530
    %v6547 = vpack.c.bf16 %v6533, %v6532
    %v6548 = vpack.c.bf16 %v6535, %v6534
    %v6549 = vpack.c.bf16 %v6537, %v6536
    %v6550 = vpack.c.bf16 %v6539, %v6538
    %v6551 = vpack.c.bf16 %v6541, %v6540
    %v6552 = vpack.c.bf16 %v6543, %v6542
    %v6553 = vpack.c.bf16 %v6545, %v6544
    %6554 = vrot.lane.b32.xlu0 %v5276, 32
    %v6555 = vpop.permute.xlu0 %6554
    %6556 = vrot.lane.b32.xlu0 %v5277, 32
    %v6557 = vpop.permute.xlu0 %6556
    %6558 = vrot.lane.b32.xlu0 %v5278, 32
    %v6559 = vpop.permute.xlu0 %6558
    %6560 = vrot.lane.b32.xlu0 %v5279, 32
    %v6561 = vpop.permute.xlu0 %6560
    %6562 = vrot.lane.b32.xlu0 %v5280, 32
    %v6563 = vpop.permute.xlu0 %6562
    %6564 = vrot.lane.b32.xlu0 %v5281, 32
    %v6565 = vpop.permute.xlu0 %6564
    %6566 = vrot.lane.b32.xlu0 %v5282, 32
    %v6567 = vpop.permute.xlu0 %6566
    %6568 = vrot.lane.b32.xlu0 %v5283, 32
    %v6569 = vpop.permute.xlu0 %6568
    %6578 = vmatpush.bf16.msra.mxu0 %v6569
    %6579 = vmatpush.bf16.msra.mxu0 %v6567
    %6580 = vmatpush.bf16.msra.mxu0 %v6565
    %6581 = vmatpush.bf16.msra.mxu0 %v6563
    %6582 = vmatpush.bf16.msra.mxu0 %v6561
    %6583 = vmatpush.bf16.msra.mxu0 %v6559
    %6584 = vmatpush.bf16.msra.mxu0 %v6557
    %6585 = vmatpush.bf16.msra.mxu0 %v6555
    %6586 = vmatmul.bf16.gmra.mxu0 %v6546
    %v6587 = vpop.f32.mrf.mxu0
    %v6588 = vadd.f32 0.0, %v6587
    %v6589 = vpop.f32.mrf.mxu0
    %v6590 = vadd.f32 0.0, %v6589
    %6591 = vmatmul.bf16.gmra.mxu0 %v6547
    %v6592 = vpop.f32.mrf.mxu0
    %v6593 = vadd.f32 0.0, %v6592
    %v6594 = vpop.f32.mrf.mxu0
    %v6595 = vadd.f32 0.0, %v6594
    %6596 = vmatmul.bf16.gmra.mxu0 %v6548
    %v6597 = vpop.f32.mrf.mxu0
    %v6598 = vadd.f32 0.0, %v6597
    %v6599 = vpop.f32.mrf.mxu0
    %v6600 = vadd.f32 0.0, %v6599
    %6601 = vmatmul.bf16.gmra.mxu0 %v6549
    %v6602 = vpop.f32.mrf.mxu0
    %v6603 = vadd.f32 0.0, %v6602
    %v6604 = vpop.f32.mrf.mxu0
    %v6605 = vadd.f32 0.0, %v6604
    %6606 = vmatmul.bf16.gmra.mxu0 %v6550
    %v6607 = vpop.f32.mrf.mxu0
    %v6608 = vadd.f32 0.0, %v6607
    %v6609 = vpop.f32.mrf.mxu0
    %v6610 = vadd.f32 0.0, %v6609
    %6611 = vmatmul.bf16.gmra.mxu0 %v6551
    %v6612 = vpop.f32.mrf.mxu0
    %v6613 = vadd.f32 0.0, %v6612
    %v6614 = vpop.f32.mrf.mxu0
    %v6615 = vadd.f32 0.0, %v6614
    %6616 = vmatmul.bf16.gmra.mxu0 %v6552
    %v6617 = vpop.f32.mrf.mxu0
    %v6618 = vadd.f32 0.0, %v6617
    %v6619 = vpop.f32.mrf.mxu0
    %v6620 = vadd.f32 0.0, %v6619
    %6621 = vmatmul.bf16.gmra.mxu0 %v6553
    %v6622 = vpop.f32.mrf.mxu0
    %v6623 = vadd.f32 0.0, %v6622
    %v6624 = vpop.f32.mrf.mxu0
    %v6625 = vadd.f32 0.0, %v6624
    %6626 = vdwg.mxu0
    %v6627 = vpack.c.bf16 %v6588, %v6588
    %v6628 = vpack.c.bf16 %v6590, %v6590
    %v6629 = vpack.c.bf16 %v6593, %v6593
    %v6630 = vpack.c.bf16 %v6595, %v6595
    %v6631 = vpack.c.bf16 %v6598, %v6598
    %v6632 = vpack.c.bf16 %v6600, %v6600
    %v6633 = vpack.c.bf16 %v6603, %v6603
    %v6634 = vpack.c.bf16 %v6605, %v6605
    %v6635 = vpack.c.bf16 %v6608, %v6608
    %v6636 = vpack.c.bf16 %v6610, %v6610
    %v6637 = vpack.c.bf16 %v6613, %v6613
    %v6638 = vpack.c.bf16 %v6615, %v6615
    %v6639 = vpack.c.bf16 %v6618, %v6618
    %v6640 = vpack.c.bf16 %v6620, %v6620
    %v6641 = vpack.c.bf16 %v6623, %v6623
    %v6642 = vpack.c.bf16 %v6625, %v6625
    %6659 = vrot.lane.b32.xlu0 %v6627, 96
    %v6660 = vpop.permute.xlu0 %6659
    %6661 = vrot.lane.b32.xlu0 %v6628, 96
    %v6662 = vpop.permute.xlu0 %6661
    %6663 = vrot.lane.b32.xlu0 %v6629, 96
    %v6664 = vpop.permute.xlu0 %6663
    %6665 = vrot.lane.b32.xlu0 %v6630, 96
    %v6666 = vpop.permute.xlu0 %6665
    %6667 = vrot.lane.b32.xlu0 %v6631, 96
    %v6668 = vpop.permute.xlu0 %6667
    %6669 = vrot.lane.b32.xlu0 %v6632, 96
    %v6670 = vpop.permute.xlu0 %6669
    %6671 = vrot.lane.b32.xlu0 %v6633, 96
    %v6672 = vpop.permute.xlu0 %6671
    %6673 = vrot.lane.b32.xlu0 %v6634, 96
    %v6674 = vpop.permute.xlu0 %6673
    %6675 = vrot.lane.b32.xlu0 %v6635, 96
    %v6676 = vpop.permute.xlu0 %6675
    %6677 = vrot.lane.b32.xlu0 %v6636, 96
    %v6678 = vpop.permute.xlu0 %6677
    %6679 = vrot.lane.b32.xlu0 %v6637, 96
    %v6680 = vpop.permute.xlu0 %6679
    %6681 = vrot.lane.b32.xlu0 %v6638, 96
    %v6682 = vpop.permute.xlu0 %6681
    %6683 = vrot.lane.b32.xlu0 %v6639, 96
    %v6684 = vpop.permute.xlu0 %6683
    %6685 = vrot.lane.b32.xlu0 %v6640, 96
    %v6686 = vpop.permute.xlu0 %6685
    %6687 = vrot.lane.b32.xlu0 %v6641, 96
    %v6688 = vpop.permute.xlu0 %6687
    %6689 = vrot.lane.b32.xlu0 %v6642, 96
    %v6690 = vpop.permute.xlu0 %6689
    %6707 = vst.msk [vmem:[#allocation2] sm:$0xf] %vm2641, %v6660
    %6708 = vst.msk [vmem:[#allocation2 + $0x4] sm:$0xf] %vm2641, %v6662
    %6709 = vst.msk [vmem:[#allocation2 + $0x8] sm:$0xf] %vm2641, %v6664
    %6710 = vst.msk [vmem:[#allocation2 + $0xc] sm:$0xf] %vm2641, %v6666
    %6711 = vst.msk [vmem:[#allocation2 + $0x10] sm:$0xf] %vm2641, %v6668
    %6712 = vst.msk [vmem:[#allocation2 + $0x14] sm:$0xf] %vm2641, %v6670
    %6713 = vst.msk [vmem:[#allocation2 + $0x18] sm:$0xf] %vm2641, %v6672
    %6714 = vst.msk [vmem:[#allocation2 + $0x1c] sm:$0xf] %vm2641, %v6674
    %6715 = vst.msk [vmem:[#allocation2 + $0x20] sm:$0xf] %vm2641, %v6676
    %6716 = vst.msk [vmem:[#allocation2 + $0x24] sm:$0xf] %vm2641, %v6678
    %6717 = vst.msk [vmem:[#allocation2 + $0x28] sm:$0xf] %vm2641, %v6680
    %6718 = vst.msk [vmem:[#allocation2 + $0x2c] sm:$0xf] %vm2641, %v6682
    %6719 = vst.msk [vmem:[#allocation2 + $0x30] sm:$0xf] %vm2641, %v6684
    %6720 = vst.msk [vmem:[#allocation2 + $0x34] sm:$0xf] %vm2641, %v6686
    %6721 = vst.msk [vmem:[#allocation2 + $0x38] sm:$0xf] %vm2641, %v6688
    %6722 = vst.msk [vmem:[#allocation2 + $0x3c] sm:$0xf] %vm2641, %v6690
    %v6723 = vld [vmem:[#allocation2] sm:$0xf]
    %v6724 = vld [vmem:[#allocation2 + $0x4] sm:$0xf]
    %v6725 = vld [vmem:[#allocation2 + $0x8] sm:$0xf]
    %v6726 = vld [vmem:[#allocation2 + $0xc] sm:$0xf]
    %v6727 = vld [vmem:[#allocation2 + $0x10] sm:$0xf]
    %v6728 = vld [vmem:[#allocation2 + $0x14] sm:$0xf]
    %v6729 = vld [vmem:[#allocation2 + $0x18] sm:$0xf]
    %v6730 = vld [vmem:[#allocation2 + $0x1c] sm:$0xf]
    %v6731 = vld [vmem:[#allocation2 + $0x20] sm:$0xf]
    %v6732 = vld [vmem:[#allocation2 + $0x24] sm:$0xf]
    %v6733 = vld [vmem:[#allocation2 + $0x28] sm:$0xf]
    %v6734 = vld [vmem:[#allocation2 + $0x2c] sm:$0xf]
    %v6735 = vld [vmem:[#allocation2 + $0x30] sm:$0xf]
    %v6736 = vld [vmem:[#allocation2 + $0x34] sm:$0xf]
    %v6737 = vld [vmem:[#allocation2 + $0x38] sm:$0xf]
    %v6738 = vld [vmem:[#allocation2 + $0x3c] sm:$0xf]
    %s6739 = scalar_lea.vmem %s5, 64
    %v6740 = vld [vmem:[%s6739] sm:$0xf]
    %v6741 = vld [vmem:[%s6739 + $0x4] sm:$0xf]
    %v6742 = vld [vmem:[%s6739 + $0x8] sm:$0xf]
    %v6743 = vld [vmem:[%s6739 + $0xc] sm:$0xf]
    %v6744 = vld [vmem:[%s6739 + $0x10] sm:$0xf]
    %v6745 = vld [vmem:[%s6739 + $0x14] sm:$0xf]
    %v6746 = vld [vmem:[%s6739 + $0x18] sm:$0xf]
    %v6747 = vld [vmem:[%s6739 + $0x1c] sm:$0xf]
    %v6748 = vld [vmem:[%s6739 + $0x20] sm:$0xf]
    %v6749 = vld [vmem:[%s6739 + $0x24] sm:$0xf]
    %v6750 = vld [vmem:[%s6739 + $0x28] sm:$0xf]
    %v6751 = vld [vmem:[%s6739 + $0x2c] sm:$0xf]
    %v6752 = vld [vmem:[%s6739 + $0x30] sm:$0xf]
    %v6753 = vld [vmem:[%s6739 + $0x34] sm:$0xf]
    %v6754 = vld [vmem:[%s6739 + $0x38] sm:$0xf]
    %v6755 = vld [vmem:[%s6739 + $0x3c] sm:$0xf]
    %s6756 = scalar_lea.vmem %s6, 1
    %v6757 = vld [vmem:[%s6756] sm:$0x1]
    %v6759 = vperm.slane %v6757, 0
    %v6777 = vunpack.c.l.b16 %v6723
    %v6778 = vunpack.c.l.b16 %v6724
    %v6779 = vunpack.c.l.b16 %v6725
    %v6780 = vunpack.c.l.b16 %v6726
    %v6781 = vunpack.c.l.b16 %v6727
    %v6782 = vunpack.c.l.b16 %v6728
    %v6783 = vunpack.c.l.b16 %v6729
    %v6784 = vunpack.c.l.b16 %v6730
    %v6785 = vunpack.c.l.b16 %v6731
    %v6786 = vunpack.c.l.b16 %v6732
    %v6787 = vunpack.c.l.b16 %v6733
    %v6788 = vunpack.c.l.b16 %v6734
    %v6789 = vunpack.c.l.b16 %v6735
    %v6790 = vunpack.c.l.b16 %v6736
    %v6791 = vunpack.c.l.b16 %v6737
    %v6792 = vunpack.c.l.b16 %v6738
    %v6793 = vpack.c.b16 %v6778, %v6777
    %v6794 = vpack.c.b16 %v6780, %v6779
    %v6795 = vpack.c.b16 %v6782, %v6781
    %v6796 = vpack.c.b16 %v6784, %v6783
    %v6797 = vpack.c.b16 %v6786, %v6785
    %v6798 = vpack.c.b16 %v6788, %v6787
    %v6799 = vpack.c.b16 %v6790, %v6789
    %v6800 = vpack.c.b16 %v6792, %v6791
    %v6825 = vunpack.c.l.b16 %v6740
    %v6826 = vunpack.c.l.b16 %v6741
    %v6827 = vunpack.c.l.b16 %v6742
    %v6828 = vunpack.c.l.b16 %v6743
    %v6829 = vunpack.c.l.b16 %v6744
    %v6830 = vunpack.c.l.b16 %v6745
    %v6831 = vunpack.c.l.b16 %v6746
    %v6832 = vunpack.c.l.b16 %v6747
    %v6833 = vunpack.c.l.b16 %v6748
    %v6834 = vunpack.c.l.b16 %v6749
    %v6835 = vunpack.c.l.b16 %v6750
    %v6836 = vunpack.c.l.b16 %v6751
    %v6837 = vunpack.c.l.b16 %v6752
    %v6838 = vunpack.c.l.b16 %v6753
    %v6839 = vunpack.c.l.b16 %v6754
    %v6840 = vunpack.c.l.b16 %v6755
    %v6841 = vpack.c.b16 %v6826, %v6825
    %v6842 = vpack.c.b16 %v6828, %v6827
    %v6843 = vpack.c.b16 %v6830, %v6829
    %v6844 = vpack.c.b16 %v6832, %v6831
    %v6845 = vpack.c.b16 %v6834, %v6833
    %v6846 = vpack.c.b16 %v6836, %v6835
    %v6847 = vpack.c.b16 %v6838, %v6837
    %v6848 = vpack.c.b16 %v6840, %v6839
    %6857 = vmatpush.bf16.msra.mxu0 %v6848
    %6858 = vmatpush.bf16.msra.mxu0 %v6847
    %6859 = vmatpush.bf16.msra.mxu0 %v6846
    %6860 = vmatpush.bf16.msra.mxu0 %v6845
    %6861 = vmatpush.bf16.msra.mxu0 %v6844
    %6862 = vmatpush.bf16.msra.mxu0 %v6843
    %6863 = vmatpush.bf16.msra.mxu0 %v6842
    %6864 = vmatpush.bf16.msra.mxu0 %v6841
    %6865 = vmatmul.bf16.gmra.mxu0 %v6793
    %v6866 = vpop.f32.mrf.mxu0
    %v6867 = vadd.f32 %v6759, %v6866
    %v6868 = vpop.f32.mrf.mxu0
    %v6869 = vadd.f32 %v6759, %v6868
    %6870 = vmatmul.bf16.gmra.mxu0 %v6794
    %v6871 = vpop.f32.mrf.mxu0
    %v6872 = vadd.f32 %v6759, %v6871
    %v6873 = vpop.f32.mrf.mxu0
    %v6874 = vadd.f32 %v6759, %v6873
    %6875 = vmatmul.bf16.gmra.mxu0 %v6795
    %v6876 = vpop.f32.mrf.mxu0
    %v6877 = vadd.f32 %v6759, %v6876
    %v6878 = vpop.f32.mrf.mxu0
    %v6879 = vadd.f32 %v6759, %v6878
    %6880 = vmatmul.bf16.gmra.mxu0 %v6796
    %v6881 = vpop.f32.mrf.mxu0
    %v6882 = vadd.f32 %v6759, %v6881
    %v6883 = vpop.f32.mrf.mxu0
    %v6884 = vadd.f32 %v6759, %v6883
    %6885 = vmatmul.bf16.gmra.mxu0 %v6797
    %v6886 = vpop.f32.mrf.mxu0
    %v6887 = vadd.f32 %v6759, %v6886
    %v6888 = vpop.f32.mrf.mxu0
    %v6889 = vadd.f32 %v6759, %v6888
    %6890 = vmatmul.bf16.gmra.mxu0 %v6798
    %v6891 = vpop.f32.mrf.mxu0
    %v6892 = vadd.f32 %v6759, %v6891
    %v6893 = vpop.f32.mrf.mxu0
    %v6894 = vadd.f32 %v6759, %v6893
    %6895 = vmatmul.bf16.gmra.mxu0 %v6799
    %v6896 = vpop.f32.mrf.mxu0
    %v6897 = vadd.f32 %v6759, %v6896
    %v6898 = vpop.f32.mrf.mxu0
    %v6899 = vadd.f32 %v6759, %v6898
    %6900 = vmatmul.bf16.gmra.mxu0 %v6800
    %v6901 = vpop.f32.mrf.mxu0
    %v6902 = vadd.f32 %v6759, %v6901
    %v6903 = vpop.f32.mrf.mxu0
    %v6904 = vadd.f32 %v6759, %v6903
    %6905 = vdwg.mxu0
    %s6906 = scalar_lea.vmem %s7, 1
    %v6907 = vld [vmem:[%s6906] sm:$0x1]
    %s6908 = scalar_lea.vmem %s8, 1
    %v6909 = vld [vmem:[%s6908] sm:$0x1]
    %6910 = vadd.xlane.f32.xlu0 %v6867
    %v6911 = vpop.xlane.xlu0 %6910
    %6912 = vadd.xlane.f32.xlu0 %v6869
    %v6913 = vpop.xlane.xlu0 %6912
    %6914 = vadd.xlane.f32.xlu0 %v6872
    %v6915 = vpop.xlane.xlu0 %6914
    %6916 = vadd.xlane.f32.xlu0 %v6874
    %v6917 = vpop.xlane.xlu0 %6916
    %6918 = vadd.xlane.f32.xlu0 %v6877
    %v6919 = vpop.xlane.xlu0 %6918
    %6920 = vadd.xlane.f32.xlu0 %v6879
    %v6921 = vpop.xlane.xlu0 %6920
    %6922 = vadd.xlane.f32.xlu0 %v6882
    %v6923 = vpop.xlane.xlu0 %6922
    %6924 = vadd.xlane.f32.xlu0 %v6884
    %v6925 = vpop.xlane.xlu0 %6924
    %6926 = vadd.xlane.f32.xlu0 %v6887
    %v6927 = vpop.xlane.xlu0 %6926
    %6928 = vadd.xlane.f32.xlu0 %v6889
    %v6929 = vpop.xlane.xlu0 %6928
    %6930 = vadd.xlane.f32.xlu0 %v6892
    %v6931 = vpop.xlane.xlu0 %6930
    %6932 = vadd.xlane.f32.xlu0 %v6894
    %v6933 = vpop.xlane.xlu0 %6932
    %6934 = vadd.xlane.f32.xlu0 %v6897
    %v6935 = vpop.xlane.xlu0 %6934
    %6936 = vadd.xlane.f32.xlu0 %v6899
    %v6937 = vpop.xlane.xlu0 %6936
    %6938 = vadd.xlane.f32.xlu0 %v6902
    %v6939 = vpop.xlane.xlu0 %6938
    %6940 = vadd.xlane.f32.xlu0 %v6904
    %v6941 = vpop.xlane.xlu0 %6940
    %v6942 = vmul.f32 %v6911, %v155
    %v6943 = vmul.f32 %v6913, %v155
    %v6944 = vmul.f32 %v6915, %v155
    %v6945 = vmul.f32 %v6917, %v155
    %v6946 = vmul.f32 %v6919, %v155
    %v6947 = vmul.f32 %v6921, %v155
    %v6948 = vmul.f32 %v6923, %v155
    %v6949 = vmul.f32 %v6925, %v155
    %v6950 = vmul.f32 %v6927, %v155
    %v6951 = vmul.f32 %v6929, %v155
    %v6952 = vmul.f32 %v6931, %v155
    %v6953 = vmul.f32 %v6933, %v155
    %v6954 = vmul.f32 %v6935, %v155
    %v6955 = vmul.f32 %v6937, %v155
    %v6956 = vmul.f32 %v6939, %v155
    %v6957 = vmul.f32 %v6941, %v155
    %v6958 = vmul.f32 %v6867, %v6867
    %v6959 = vmul.f32 %v6869, %v6869
    %v6960 = vmul.f32 %v6872, %v6872
    %v6961 = vmul.f32 %v6874, %v6874
    %v6962 = vmul.f32 %v6877, %v6877
    %v6963 = vmul.f32 %v6879, %v6879
    %v6964 = vmul.f32 %v6882, %v6882
    %v6965 = vmul.f32 %v6884, %v6884
    %v6966 = vmul.f32 %v6887, %v6887
    %v6967 = vmul.f32 %v6889, %v6889
    %v6968 = vmul.f32 %v6892, %v6892
    %v6969 = vmul.f32 %v6894, %v6894
    %v6970 = vmul.f32 %v6897, %v6897
    %v6971 = vmul.f32 %v6899, %v6899
    %v6972 = vmul.f32 %v6902, %v6902
    %v6973 = vmul.f32 %v6904, %v6904
    %6974 = vadd.xlane.f32.xlu0 %v6958
    %v6975 = vpop.xlane.xlu0 %6974
    %6976 = vadd.xlane.f32.xlu0 %v6959
    %v6977 = vpop.xlane.xlu0 %6976
    %6978 = vadd.xlane.f32.xlu0 %v6960
    %v6979 = vpop.xlane.xlu0 %6978
    %6980 = vadd.xlane.f32.xlu0 %v6961
    %v6981 = vpop.xlane.xlu0 %6980
    %6982 = vadd.xlane.f32.xlu0 %v6962
    %v6983 = vpop.xlane.xlu0 %6982
    %6984 = vadd.xlane.f32.xlu0 %v6963
    %v6985 = vpop.xlane.xlu0 %6984
    %6986 = vadd.xlane.f32.xlu0 %v6964
    %v6987 = vpop.xlane.xlu0 %6986
    %6988 = vadd.xlane.f32.xlu0 %v6965
    %v6989 = vpop.xlane.xlu0 %6988
    %6990 = vadd.xlane.f32.xlu0 %v6966
    %v6991 = vpop.xlane.xlu0 %6990
    %6992 = vadd.xlane.f32.xlu0 %v6967
    %v6993 = vpop.xlane.xlu0 %6992
    %6994 = vadd.xlane.f32.xlu0 %v6968
    %v6995 = vpop.xlane.xlu0 %6994
    %6996 = vadd.xlane.f32.xlu0 %v6969
    %v6997 = vpop.xlane.xlu0 %6996
    %6998 = vadd.xlane.f32.xlu0 %v6970
    %v6999 = vpop.xlane.xlu0 %6998
    %7000 = vadd.xlane.f32.xlu0 %v6971
    %v7001 = vpop.xlane.xlu0 %7000
    %7002 = vadd.xlane.f32.xlu0 %v6972
    %v7003 = vpop.xlane.xlu0 %7002
    %7004 = vadd.xlane.f32.xlu0 %v6973
    %v7005 = vpop.xlane.xlu0 %7004
    %v7006 = vmul.f32 %v6975, %v155
    %v7007 = vmul.f32 %v6977, %v155
    %v7008 = vmul.f32 %v6979, %v155
    %v7009 = vmul.f32 %v6981, %v155
    %v7010 = vmul.f32 %v6983, %v155
    %v7011 = vmul.f32 %v6985, %v155
    %v7012 = vmul.f32 %v6987, %v155
    %v7013 = vmul.f32 %v6989, %v155
    %v7014 = vmul.f32 %v6991, %v155
    %v7015 = vmul.f32 %v6993, %v155
    %v7016 = vmul.f32 %v6995, %v155
    %v7017 = vmul.f32 %v6997, %v155
    %v7018 = vmul.f32 %v6999, %v155
    %v7019 = vmul.f32 %v7001, %v155
    %v7020 = vmul.f32 %v7003, %v155
    %v7021 = vmul.f32 %v7005, %v155
    %v7022 = vmul.f32 %v6942, %v6942
    %v7023 = vmul.f32 %v6943, %v6943
    %v7024 = vmul.f32 %v6944, %v6944
    %v7025 = vmul.f32 %v6945, %v6945
    %v7026 = vmul.f32 %v6946, %v6946
    %v7027 = vmul.f32 %v6947, %v6947
    %v7028 = vmul.f32 %v6948, %v6948
    %v7029 = vmul.f32 %v6949, %v6949
    %v7030 = vmul.f32 %v6950, %v6950
    %v7031 = vmul.f32 %v6951, %v6951
    %v7032 = vmul.f32 %v6952, %v6952
    %v7033 = vmul.f32 %v6953, %v6953
    %v7034 = vmul.f32 %v6954, %v6954
    %v7035 = vmul.f32 %v6955, %v6955
    %v7036 = vmul.f32 %v6956, %v6956
    %v7037 = vmul.f32 %v6957, %v6957
    %v7038 = vsub.f32 %v7006, %v7022
    %v7039 = vsub.f32 %v7007, %v7023
    %v7040 = vsub.f32 %v7008, %v7024
    %v7041 = vsub.f32 %v7009, %v7025
    %v7042 = vsub.f32 %v7010, %v7026
    %v7043 = vsub.f32 %v7011, %v7027
    %v7044 = vsub.f32 %v7012, %v7028
    %v7045 = vsub.f32 %v7013, %v7029
    %v7046 = vsub.f32 %v7014, %v7030
    %v7047 = vsub.f32 %v7015, %v7031
    %v7048 = vsub.f32 %v7016, %v7032
    %v7049 = vsub.f32 %v7017, %v7033
    %v7050 = vsub.f32 %v7018, %v7034
    %v7051 = vsub.f32 %v7019, %v7035
    %v7052 = vsub.f32 %v7020, %v7036
    %v7053 = vsub.f32 %v7021, %v7037
    %v7054 = vsub.f32 %v6867, %v6942
    %v7055 = vsub.f32 %v6869, %v6943
    %v7056 = vsub.f32 %v6872, %v6944
    %v7057 = vsub.f32 %v6874, %v6945
    %v7058 = vsub.f32 %v6877, %v6946
    %v7059 = vsub.f32 %v6879, %v6947
    %v7060 = vsub.f32 %v6882, %v6948
    %v7061 = vsub.f32 %v6884, %v6949
    %v7062 = vsub.f32 %v6887, %v6950
    %v7063 = vsub.f32 %v6889, %v6951
    %v7064 = vsub.f32 %v6892, %v6952
    %v7065 = vsub.f32 %v6894, %v6953
    %v7066 = vsub.f32 %v6897, %v6954
    %v7067 = vsub.f32 %v6899, %v6955
    %v7068 = vsub.f32 %v6902, %v6956
    %v7069 = vsub.f32 %v6904, %v6957
    %v7070 = vadd.f32 %v7038, 1e-05
    %v7071 = vadd.f32 %v7039, 1e-05
    %v7072 = vadd.f32 %v7040, 1e-05
    %v7073 = vadd.f32 %v7041, 1e-05
    %v7074 = vadd.f32 %v7042, 1e-05
    %v7075 = vadd.f32 %v7043, 1e-05
    %v7076 = vadd.f32 %v7044, 1e-05
    %v7077 = vadd.f32 %v7045, 1e-05
    %v7078 = vadd.f32 %v7046, 1e-05
    %v7079 = vadd.f32 %v7047, 1e-05
    %v7080 = vadd.f32 %v7048, 1e-05
    %v7081 = vadd.f32 %v7049, 1e-05
    %v7082 = vadd.f32 %v7050, 1e-05
    %v7083 = vadd.f32 %v7051, 1e-05
    %v7084 = vadd.f32 %v7052, 1e-05
    %v7085 = vadd.f32 %v7053, 1e-05
    %v7086 = vrsqrt.pop %v7070
    %v7087 = vmul.f32 %v7086, %v7070
    %v7088 = vmul.f32 %v7087, %v7086
    %v7089 = vmul.f32 0.5, %v7088
    %v7090 = vsub.f32 1.5, %v7089
    %v7091 = vmul.f32 %v7086, %v7090
    %vm7092 = vweird.f32 %v7070
    %vm7093 = vweird.f32 %v7086
    %vm7094 = vmor %vm7092, %vm7093
    %v7095 = vsel %vm7094, %v7086, %v7091
    %v7096 = vrsqrt.pop %v7071
    %v7097 = vmul.f32 %v7096, %v7071
    %v7098 = vmul.f32 %v7097, %v7096
    %v7099 = vmul.f32 0.5, %v7098
    %v7100 = vsub.f32 1.5, %v7099
    %v7101 = vmul.f32 %v7096, %v7100
    %vm7102 = vweird.f32 %v7071
    %vm7103 = vweird.f32 %v7096
    %vm7104 = vmor %vm7102, %vm7103
    %v7105 = vsel %vm7104, %v7096, %v7101
    %v7106 = vrsqrt.pop %v7072
    %v7107 = vmul.f32 %v7106, %v7072
    %v7108 = vmul.f32 %v7107, %v7106
    %v7109 = vmul.f32 0.5, %v7108
    %v7110 = vsub.f32 1.5, %v7109
    %v7111 = vmul.f32 %v7106, %v7110
    %vm7112 = vweird.f32 %v7072
    %vm7113 = vweird.f32 %v7106
    %vm7114 = vmor %vm7112, %vm7113
    %v7115 = vsel %vm7114, %v7106, %v7111
    %v7116 = vrsqrt.pop %v7073
    %v7117 = vmul.f32 %v7116, %v7073
    %v7118 = vmul.f32 %v7117, %v7116
    %v7119 = vmul.f32 0.5, %v7118
    %v7120 = vsub.f32 1.5, %v7119
    %v7121 = vmul.f32 %v7116, %v7120
    %vm7122 = vweird.f32 %v7073
    %vm7123 = vweird.f32 %v7116
    %vm7124 = vmor %vm7122, %vm7123
    %v7125 = vsel %vm7124, %v7116, %v7121
    %v7126 = vrsqrt.pop %v7074
    %v7127 = vmul.f32 %v7126, %v7074
    %v7128 = vmul.f32 %v7127, %v7126
    %v7129 = vmul.f32 0.5, %v7128
    %v7130 = vsub.f32 1.5, %v7129
    %v7131 = vmul.f32 %v7126, %v7130
    %vm7132 = vweird.f32 %v7074
    %vm7133 = vweird.f32 %v7126
    %vm7134 = vmor %vm7132, %vm7133
    %v7135 = vsel %vm7134, %v7126, %v7131
    %v7136 = vrsqrt.pop %v7075
    %v7137 = vmul.f32 %v7136, %v7075
    %v7138 = vmul.f32 %v7137, %v7136
    %v7139 = vmul.f32 0.5, %v7138
    %v7140 = vsub.f32 1.5, %v7139
    %v7141 = vmul.f32 %v7136, %v7140
    %vm7142 = vweird.f32 %v7075
    %vm7143 = vweird.f32 %v7136
    %vm7144 = vmor %vm7142, %vm7143
    %v7145 = vsel %vm7144, %v7136, %v7141
    %v7146 = vrsqrt.pop %v7076
    %v7147 = vmul.f32 %v7146, %v7076
    %v7148 = vmul.f32 %v7147, %v7146
    %v7149 = vmul.f32 0.5, %v7148
    %v7150 = vsub.f32 1.5, %v7149
    %v7151 = vmul.f32 %v7146, %v7150
    %vm7152 = vweird.f32 %v7076
    %vm7153 = vweird.f32 %v7146
    %vm7154 = vmor %vm7152, %vm7153
    %v7155 = vsel %vm7154, %v7146, %v7151
    %v7156 = vrsqrt.pop %v7077
    %v7157 = vmul.f32 %v7156, %v7077
    %v7158 = vmul.f32 %v7157, %v7156
    %v7159 = vmul.f32 0.5, %v7158
    %v7160 = vsub.f32 1.5, %v7159
    %v7161 = vmul.f32 %v7156, %v7160
    %vm7162 = vweird.f32 %v7077
    %vm7163 = vweird.f32 %v7156
    %vm7164 = vmor %vm7162, %vm7163
    %v7165 = vsel %vm7164, %v7156, %v7161
    %v7166 = vrsqrt.pop %v7078
    %v7167 = vmul.f32 %v7166, %v7078
    %v7168 = vmul.f32 %v7167, %v7166
    %v7169 = vmul.f32 0.5, %v7168
    %v7170 = vsub.f32 1.5, %v7169
    %v7171 = vmul.f32 %v7166, %v7170
    %vm7172 = vweird.f32 %v7078
    %vm7173 = vweird.f32 %v7166
    %vm7174 = vmor %vm7172, %vm7173
    %v7175 = vsel %vm7174, %v7166, %v7171
    %v7176 = vrsqrt.pop %v7079
    %v7177 = vmul.f32 %v7176, %v7079
    %v7178 = vmul.f32 %v7177, %v7176
    %v7179 = vmul.f32 0.5, %v7178
    %v7180 = vsub.f32 1.5, %v7179
    %v7181 = vmul.f32 %v7176, %v7180
    %vm7182 = vweird.f32 %v7079
    %vm7183 = vweird.f32 %v7176
    %vm7184 = vmor %vm7182, %vm7183
    %v7185 = vsel %vm7184, %v7176, %v7181
    %v7186 = vrsqrt.pop %v7080
    %v7187 = vmul.f32 %v7186, %v7080
    %v7188 = vmul.f32 %v7187, %v7186
    %v7189 = vmul.f32 0.5, %v7188
    %v7190 = vsub.f32 1.5, %v7189
    %v7191 = vmul.f32 %v7186, %v7190
    %vm7192 = vweird.f32 %v7080
    %vm7193 = vweird.f32 %v7186
    %vm7194 = vmor %vm7192, %vm7193
    %v7195 = vsel %vm7194, %v7186, %v7191
    %v7196 = vrsqrt.pop %v7081
    %v7197 = vmul.f32 %v7196, %v7081
    %v7198 = vmul.f32 %v7197, %v7196
    %v7199 = vmul.f32 0.5, %v7198
    %v7200 = vsub.f32 1.5, %v7199
    %v7201 = vmul.f32 %v7196, %v7200
    %vm7202 = vweird.f32 %v7081
    %vm7203 = vweird.f32 %v7196
    %vm7204 = vmor %vm7202, %vm7203
    %v7205 = vsel %vm7204, %v7196, %v7201
    %v7206 = vrsqrt.pop %v7082
    %v7207 = vmul.f32 %v7206, %v7082
    %v7208 = vmul.f32 %v7207, %v7206
    %v7209 = vmul.f32 0.5, %v7208
    %v7210 = vsub.f32 1.5, %v7209
    %v7211 = vmul.f32 %v7206, %v7210
    %vm7212 = vweird.f32 %v7082
    %vm7213 = vweird.f32 %v7206
    %vm7214 = vmor %vm7212, %vm7213
    %v7215 = vsel %vm7214, %v7206, %v7211
    %v7216 = vrsqrt.pop %v7083
    %v7217 = vmul.f32 %v7216, %v7083
    %v7218 = vmul.f32 %v7217, %v7216
    %v7219 = vmul.f32 0.5, %v7218
    %v7220 = vsub.f32 1.5, %v7219
    %v7221 = vmul.f32 %v7216, %v7220
    %vm7222 = vweird.f32 %v7083
    %vm7223 = vweird.f32 %v7216
    %vm7224 = vmor %vm7222, %vm7223
    %v7225 = vsel %vm7224, %v7216, %v7221
    %v7226 = vrsqrt.pop %v7084
    %v7227 = vmul.f32 %v7226, %v7084
    %v7228 = vmul.f32 %v7227, %v7226
    %v7229 = vmul.f32 0.5, %v7228
    %v7230 = vsub.f32 1.5, %v7229
    %v7231 = vmul.f32 %v7226, %v7230
    %vm7232 = vweird.f32 %v7084
    %vm7233 = vweird.f32 %v7226
    %vm7234 = vmor %vm7232, %vm7233
    %v7235 = vsel %vm7234, %v7226, %v7231
    %v7236 = vrsqrt.pop %v7085
    %v7237 = vmul.f32 %v7236, %v7085
    %v7238 = vmul.f32 %v7237, %v7236
    %v7239 = vmul.f32 0.5, %v7238
    %v7240 = vsub.f32 1.5, %v7239
    %v7241 = vmul.f32 %v7236, %v7240
    %vm7242 = vweird.f32 %v7085
    %vm7243 = vweird.f32 %v7236
    %vm7244 = vmor %vm7242, %vm7243
    %v7245 = vsel %vm7244, %v7236, %v7241
    %v7246 = vmul.f32 %v7054, %v7095
    %v7247 = vmul.f32 %v7055, %v7105
    %v7248 = vmul.f32 %v7056, %v7115
    %v7249 = vmul.f32 %v7057, %v7125
    %v7250 = vmul.f32 %v7058, %v7135
    %v7251 = vmul.f32 %v7059, %v7145
    %v7252 = vmul.f32 %v7060, %v7155
    %v7253 = vmul.f32 %v7061, %v7165
    %v7254 = vmul.f32 %v7062, %v7175
    %v7255 = vmul.f32 %v7063, %v7185
    %v7256 = vmul.f32 %v7064, %v7195
    %v7257 = vmul.f32 %v7065, %v7205
    %v7258 = vmul.f32 %v7066, %v7215
    %v7259 = vmul.f32 %v7067, %v7225
    %v7260 = vmul.f32 %v7068, %v7235
    %v7261 = vmul.f32 %v7069, %v7245
    %v7263 = vperm.slane %v6907, 0
    %v7265 = vmul.f32 %v7246, %v7263
    %v7266 = vmul.f32 %v7247, %v7263
    %v7267 = vmul.f32 %v7248, %v7263
    %v7268 = vmul.f32 %v7249, %v7263
    %v7269 = vmul.f32 %v7250, %v7263
    %v7270 = vmul.f32 %v7251, %v7263
    %v7271 = vmul.f32 %v7252, %v7263
    %v7272 = vmul.f32 %v7253, %v7263
    %v7273 = vmul.f32 %v7254, %v7263
    %v7274 = vmul.f32 %v7255, %v7263
    %v7275 = vmul.f32 %v7256, %v7263
    %v7276 = vmul.f32 %v7257, %v7263
    %v7277 = vmul.f32 %v7258, %v7263
    %v7278 = vmul.f32 %v7259, %v7263
    %v7279 = vmul.f32 %v7260, %v7263
    %v7280 = vmul.f32 %v7261, %v7263
    %v7282 = vperm.slane %v6909, 0
    %v7284 = vadd.f32 %v7265, %v7282
    %v7285 = vadd.f32 %v7266, %v7282
    %v7286 = vadd.f32 %v7267, %v7282
    %v7287 = vadd.f32 %v7268, %v7282
    %v7288 = vadd.f32 %v7269, %v7282
    %v7289 = vadd.f32 %v7270, %v7282
    %v7290 = vadd.f32 %v7271, %v7282
    %v7291 = vadd.f32 %v7272, %v7282
    %v7292 = vadd.f32 %v7273, %v7282
    %v7293 = vadd.f32 %v7274, %v7282
    %v7294 = vadd.f32 %v7275, %v7282
    %v7295 = vadd.f32 %v7276, %v7282
    %v7296 = vadd.f32 %v7277, %v7282
    %v7297 = vadd.f32 %v7278, %v7282
    %v7298 = vadd.f32 %v7279, %v7282
    %v7299 = vadd.f32 %v7280, %v7282
    %v7300 = vpack.c.bf16 %v7285, %v7284
    %v7301 = vpack.c.bf16 %v7287, %v7286
    %v7302 = vpack.c.bf16 %v7289, %v7288
    %v7303 = vpack.c.bf16 %v7291, %v7290
    %v7304 = vpack.c.bf16 %v7293, %v7292
    %v7305 = vpack.c.bf16 %v7295, %v7294
    %v7306 = vpack.c.bf16 %v7297, %v7296
    %v7307 = vpack.c.bf16 %v7299, %v7298
    %s7308 = scalar_lea.vmem %s9, 256
    %v7309 = vld [vmem:[%s7308] sm:$0xff]
    %v7310 = vld [vmem:[%s7308 + $0x8] sm:$0xff]
    %v7311 = vld [vmem:[%s7308 + $0x10] sm:$0xff]
    %v7312 = vld [vmem:[%s7308 + $0x18] sm:$0xff]
    %v7313 = vld [vmem:[%s7308 + $0x20] sm:$0xff]
    %v7314 = vld [vmem:[%s7308 + $0x28] sm:$0xff]
    %v7315 = vld [vmem:[%s7308 + $0x30] sm:$0xff]
    %v7316 = vld [vmem:[%s7308 + $0x38] sm:$0xff]
    %v7317 = vld [vmem:[%s7308 + $0x40] sm:$0xff]
    %v7318 = vld [vmem:[%s7308 + $0x48] sm:$0xff]
    %v7319 = vld [vmem:[%s7308 + $0x50] sm:$0xff]
    %v7320 = vld [vmem:[%s7308 + $0x58] sm:$0xff]
    %v7321 = vld [vmem:[%s7308 + $0x60] sm:$0xff]
    %v7322 = vld [vmem:[%s7308 + $0x68] sm:$0xff]
    %v7323 = vld [vmem:[%s7308 + $0x70] sm:$0xff]
    %v7324 = vld [vmem:[%s7308 + $0x78] sm:$0xff]
    %v7325 = vld [vmem:[%s7308 + $0x80] sm:$0xff]
    %v7326 = vld [vmem:[%s7308 + $0x88] sm:$0xff]
    %v7327 = vld [vmem:[%s7308 + $0x90] sm:$0xff]
    %v7328 = vld [vmem:[%s7308 + $0x98] sm:$0xff]
    %v7329 = vld [vmem:[%s7308 + $0xa0] sm:$0xff]
    %v7330 = vld [vmem:[%s7308 + $0xa8] sm:$0xff]
    %v7331 = vld [vmem:[%s7308 + $0xb0] sm:$0xff]
    %v7332 = vld [vmem:[%s7308 + $0xb8] sm:$0xff]
    %v7333 = vld [vmem:[%s7308 + $0xc0] sm:$0xff]
    %v7334 = vld [vmem:[%s7308 + $0xc8] sm:$0xff]
    %v7335 = vld [vmem:[%s7308 + $0xd0] sm:$0xff]
    %v7336 = vld [vmem:[%s7308 + $0xd8] sm:$0xff]
    %v7337 = vld [vmem:[%s7308 + $0xe0] sm:$0xff]
    %v7338 = vld [vmem:[%s7308 + $0xe8] sm:$0xff]
    %v7339 = vld [vmem:[%s7308 + $0xf0] sm:$0xff]
    %v7340 = vld [vmem:[%s7308 + $0xf8] sm:$0xff]
    %s7341 = scalar_lea.vmem %s10, 4
    %v7342 = vld [vmem:[%s7341] sm:$0xf]
    %v7344 = vperm.slane %v7342, 0
    %v7345 = vperm.slane %v7342, 1
    %v7346 = vperm.slane %v7342, 2
    %v7347 = vperm.slane %v7342, 3
    %v7384 = vunpack.c.l.b16 %v7309
    %v7385 = vunpack.c.h.b16 %v7309
    %v7386 = vunpack.c.l.b16 %v7310
    %v7387 = vunpack.c.h.b16 %v7310
    %v7388 = vunpack.c.l.b16 %v7311
    %v7389 = vunpack.c.h.b16 %v7311
    %v7390 = vunpack.c.l.b16 %v7312
    %v7391 = vunpack.c.h.b16 %v7312
    %v7392 = vunpack.c.l.b16 %v7313
    %v7393 = vunpack.c.h.b16 %v7313
    %v7394 = vunpack.c.l.b16 %v7314
    %v7395 = vunpack.c.h.b16 %v7314
    %v7396 = vunpack.c.l.b16 %v7315
    %v7397 = vunpack.c.h.b16 %v7315
    %v7398 = vunpack.c.l.b16 %v7316
    %v7399 = vunpack.c.h.b16 %v7316
    %v7400 = vunpack.c.l.b16 %v7317
    %v7401 = vunpack.c.h.b16 %v7317
    %v7402 = vunpack.c.l.b16 %v7318
    %v7403 = vunpack.c.h.b16 %v7318
    %v7404 = vunpack.c.l.b16 %v7319
    %v7405 = vunpack.c.h.b16 %v7319
    %v7406 = vunpack.c.l.b16 %v7320
    %v7407 = vunpack.c.h.b16 %v7320
    %v7408 = vunpack.c.l.b16 %v7321
    %v7409 = vunpack.c.h.b16 %v7321
    %v7410 = vunpack.c.l.b16 %v7322
    %v7411 = vunpack.c.h.b16 %v7322
    %v7412 = vunpack.c.l.b16 %v7323
    %v7413 = vunpack.c.h.b16 %v7323
    %v7414 = vunpack.c.l.b16 %v7324
    %v7415 = vunpack.c.h.b16 %v7324
    %v7416 = vunpack.c.l.b16 %v7325
    %v7417 = vunpack.c.h.b16 %v7325
    %v7418 = vunpack.c.l.b16 %v7326
    %v7419 = vunpack.c.h.b16 %v7326
    %v7420 = vunpack.c.l.b16 %v7327
    %v7421 = vunpack.c.h.b16 %v7327
    %v7422 = vunpack.c.l.b16 %v7328
    %v7423 = vunpack.c.h.b16 %v7328
    %v7424 = vunpack.c.l.b16 %v7329
    %v7425 = vunpack.c.h.b16 %v7329
    %v7426 = vunpack.c.l.b16 %v7330
    %v7427 = vunpack.c.h.b16 %v7330
    %v7428 = vunpack.c.l.b16 %v7331
    %v7429 = vunpack.c.h.b16 %v7331
    %v7430 = vunpack.c.l.b16 %v7332
    %v7431 = vunpack.c.h.b16 %v7332
    %v7432 = vunpack.c.l.b16 %v7333
    %v7433 = vunpack.c.h.b16 %v7333
    %v7434 = vunpack.c.l.b16 %v7334
    %v7435 = vunpack.c.h.b16 %v7334
    %v7436 = vunpack.c.l.b16 %v7335
    %v7437 = vunpack.c.h.b16 %v7335
    %v7438 = vunpack.c.l.b16 %v7336
    %v7439 = vunpack.c.h.b16 %v7336
    %v7440 = vunpack.c.l.b16 %v7337
    %v7441 = vunpack.c.h.b16 %v7337
    %v7442 = vunpack.c.l.b16 %v7338
    %v7443 = vunpack.c.h.b16 %v7338
    %v7444 = vunpack.c.l.b16 %v7339
    %v7445 = vunpack.c.h.b16 %v7339
    %v7446 = vunpack.c.l.b16 %v7340
    %v7447 = vunpack.c.h.b16 %v7340
    %v7448 = vpack.c.b16 %v7388, %v7384
    %v7449 = vpack.c.b16 %v7389, %v7385
    %v7450 = vpack.c.b16 %v7390, %v7386
    %v7451 = vpack.c.b16 %v7391, %v7387
    %v7452 = vpack.c.b16 %v7396, %v7392
    %v7453 = vpack.c.b16 %v7397, %v7393
    %v7454 = vpack.c.b16 %v7398, %v7394
    %v7455 = vpack.c.b16 %v7399, %v7395
    %v7456 = vpack.c.b16 %v7404, %v7400
    %v7457 = vpack.c.b16 %v7405, %v7401
    %v7458 = vpack.c.b16 %v7406, %v7402
    %v7459 = vpack.c.b16 %v7407, %v7403
    %v7460 = vpack.c.b16 %v7412, %v7408
    %v7461 = vpack.c.b16 %v7413, %v7409
    %v7462 = vpack.c.b16 %v7414, %v7410
    %v7463 = vpack.c.b16 %v7415, %v7411
    %v7464 = vpack.c.b16 %v7420, %v7416
    %v7465 = vpack.c.b16 %v7421, %v7417
    %v7466 = vpack.c.b16 %v7422, %v7418
    %v7467 = vpack.c.b16 %v7423, %v7419
    %v7468 = vpack.c.b16 %v7428, %v7424
    %v7469 = vpack.c.b16 %v7429, %v7425
    %v7470 = vpack.c.b16 %v7430, %v7426
    %v7471 = vpack.c.b16 %v7431, %v7427
    %v7472 = vpack.c.b16 %v7436, %v7432
    %v7473 = vpack.c.b16 %v7437, %v7433
    %v7474 = vpack.c.b16 %v7438, %v7434
    %v7475 = vpack.c.b16 %v7439, %v7435
    %v7476 = vpack.c.b16 %v7444, %v7440
    %v7477 = vpack.c.b16 %v7445, %v7441
    %v7478 = vpack.c.b16 %v7446, %v7442
    %v7479 = vpack.c.b16 %v7447, %v7443
    %7512 = vmatpush.bf16.msra.mxu0 %v7476
    %7513 = vmatpush.bf16.msra.mxu0 %v7472
    %7514 = vmatpush.bf16.msra.mxu0 %v7468
    %7515 = vmatpush.bf16.msra.mxu0 %v7464
    %7516 = vmatpush.bf16.msra.mxu0 %v7460
    %7517 = vmatpush.bf16.msra.mxu0 %v7456
    %7518 = vmatpush.bf16.msra.mxu0 %v7452
    %7519 = vmatpush.bf16.msra.mxu0 %v7448
    %7520 = vmatmul.bf16.gmra.mxu0 %v7300
    %v7521 = vpop.f32.mrf.mxu0
    %v7522 = vadd.f32 %v7344, %v7521
    %v7523 = vpop.f32.mrf.mxu0
    %v7524 = vadd.f32 %v7344, %v7523
    %7525 = vmatmul.bf16.gmra.mxu0 %v7301
    %v7526 = vpop.f32.mrf.mxu0
    %v7527 = vadd.f32 %v7344, %v7526
    %v7528 = vpop.f32.mrf.mxu0
    %v7529 = vadd.f32 %v7344, %v7528
    %7530 = vmatmul.bf16.gmra.mxu0 %v7302
    %v7531 = vpop.f32.mrf.mxu0
    %v7532 = vadd.f32 %v7344, %v7531
    %v7533 = vpop.f32.mrf.mxu0
    %v7534 = vadd.f32 %v7344, %v7533
    %7535 = vmatmul.bf16.gmra.mxu0 %v7303
    %v7536 = vpop.f32.mrf.mxu0
    %v7537 = vadd.f32 %v7344, %v7536
    %v7538 = vpop.f32.mrf.mxu0
    %v7539 = vadd.f32 %v7344, %v7538
    %7540 = vmatmul.bf16.gmra.mxu0 %v7304
    %v7541 = vpop.f32.mrf.mxu0
    %v7542 = vadd.f32 %v7344, %v7541
    %v7543 = vpop.f32.mrf.mxu0
    %v7544 = vadd.f32 %v7344, %v7543
    %7545 = vmatmul.bf16.gmra.mxu0 %v7305
    %v7546 = vpop.f32.mrf.mxu0
    %v7547 = vadd.f32 %v7344, %v7546
    %v7548 = vpop.f32.mrf.mxu0
    %v7549 = vadd.f32 %v7344, %v7548
    %7550 = vmatmul.bf16.gmra.mxu0 %v7306
    %v7551 = vpop.f32.mrf.mxu0
    %v7552 = vadd.f32 %v7344, %v7551
    %v7553 = vpop.f32.mrf.mxu0
    %v7554 = vadd.f32 %v7344, %v7553
    %7555 = vmatmul.bf16.gmra.mxu0 %v7307
    %v7556 = vpop.f32.mrf.mxu0
    %v7557 = vadd.f32 %v7344, %v7556
    %v7558 = vpop.f32.mrf.mxu0
    %v7559 = vadd.f32 %v7344, %v7558
    %7560 = vdwg.mxu0
    %7561 = vmatpush.bf16.msra.mxu0 %v7477
    %7562 = vmatpush.bf16.msra.mxu0 %v7473
    %7563 = vmatpush.bf16.msra.mxu0 %v7469
    %7564 = vmatpush.bf16.msra.mxu0 %v7465
    %7565 = vmatpush.bf16.msra.mxu0 %v7461
    %7566 = vmatpush.bf16.msra.mxu0 %v7457
    %7567 = vmatpush.bf16.msra.mxu0 %v7453
    %7568 = vmatpush.bf16.msra.mxu0 %v7449
    %7569 = vmatmul.bf16.gmra.mxu0 %v7300
    %v7570 = vpop.f32.mrf.mxu0
    %v7571 = vadd.f32 %v7345, %v7570
    %v7572 = vpop.f32.mrf.mxu0
    %v7573 = vadd.f32 %v7345, %v7572
    %7574 = vmatmul.bf16.gmra.mxu0 %v7301
    %v7575 = vpop.f32.mrf.mxu0
    %v7576 = vadd.f32 %v7345, %v7575
    %v7577 = vpop.f32.mrf.mxu0
    %v7578 = vadd.f32 %v7345, %v7577
    %7579 = vmatmul.bf16.gmra.mxu0 %v7302
    %v7580 = vpop.f32.mrf.mxu0
    %v7581 = vadd.f32 %v7345, %v7580
    %v7582 = vpop.f32.mrf.mxu0
    %v7583 = vadd.f32 %v7345, %v7582
    %7584 = vmatmul.bf16.gmra.mxu0 %v7303
    %v7585 = vpop.f32.mrf.mxu0
    %v7586 = vadd.f32 %v7345, %v7585
    %v7587 = vpop.f32.mrf.mxu0
    %v7588 = vadd.f32 %v7345, %v7587
    %7589 = vmatmul.bf16.gmra.mxu0 %v7304
    %v7590 = vpop.f32.mrf.mxu0
    %v7591 = vadd.f32 %v7345, %v7590
    %v7592 = vpop.f32.mrf.mxu0
    %v7593 = vadd.f32 %v7345, %v7592
    %7594 = vmatmul.bf16.gmra.mxu0 %v7305
    %v7595 = vpop.f32.mrf.mxu0
    %v7596 = vadd.f32 %v7345, %v7595
    %v7597 = vpop.f32.mrf.mxu0
    %v7598 = vadd.f32 %v7345, %v7597
    %7599 = vmatmul.bf16.gmra.mxu0 %v7306
    %v7600 = vpop.f32.mrf.mxu0
    %v7601 = vadd.f32 %v7345, %v7600
    %v7602 = vpop.f32.mrf.mxu0
    %v7603 = vadd.f32 %v7345, %v7602
    %7604 = vmatmul.bf16.gmra.mxu0 %v7307
    %v7605 = vpop.f32.mrf.mxu0
    %v7606 = vadd.f32 %v7345, %v7605
    %v7607 = vpop.f32.mrf.mxu0
    %v7608 = vadd.f32 %v7345, %v7607
    %7609 = vdwg.mxu0
    %7610 = vmatpush.bf16.msra.mxu0 %v7478
    %7611 = vmatpush.bf16.msra.mxu0 %v7474
    %7612 = vmatpush.bf16.msra.mxu0 %v7470
    %7613 = vmatpush.bf16.msra.mxu0 %v7466
    %7614 = vmatpush.bf16.msra.mxu0 %v7462
    %7615 = vmatpush.bf16.msra.mxu0 %v7458
    %7616 = vmatpush.bf16.msra.mxu0 %v7454
    %7617 = vmatpush.bf16.msra.mxu0 %v7450
    %7618 = vmatmul.bf16.gmra.mxu0 %v7300
    %v7619 = vpop.f32.mrf.mxu0
    %v7620 = vadd.f32 %v7346, %v7619
    %v7621 = vpop.f32.mrf.mxu0
    %v7622 = vadd.f32 %v7346, %v7621
    %7623 = vmatmul.bf16.gmra.mxu0 %v7301
    %v7624 = vpop.f32.mrf.mxu0
    %v7625 = vadd.f32 %v7346, %v7624
    %v7626 = vpop.f32.mrf.mxu0
    %v7627 = vadd.f32 %v7346, %v7626
    %7628 = vmatmul.bf16.gmra.mxu0 %v7302
    %v7629 = vpop.f32.mrf.mxu0
    %v7630 = vadd.f32 %v7346, %v7629
    %v7631 = vpop.f32.mrf.mxu0
    %v7632 = vadd.f32 %v7346, %v7631
    %7633 = vmatmul.bf16.gmra.mxu0 %v7303
    %v7634 = vpop.f32.mrf.mxu0
    %v7635 = vadd.f32 %v7346, %v7634
    %v7636 = vpop.f32.mrf.mxu0
    %v7637 = vadd.f32 %v7346, %v7636
    %7638 = vmatmul.bf16.gmra.mxu0 %v7304
    %v7639 = vpop.f32.mrf.mxu0
    %v7640 = vadd.f32 %v7346, %v7639
    %v7641 = vpop.f32.mrf.mxu0
    %v7642 = vadd.f32 %v7346, %v7641
    %7643 = vmatmul.bf16.gmra.mxu0 %v7305
    %v7644 = vpop.f32.mrf.mxu0
    %v7645 = vadd.f32 %v7346, %v7644
    %v7646 = vpop.f32.mrf.mxu0
    %v7647 = vadd.f32 %v7346, %v7646
    %7648 = vmatmul.bf16.gmra.mxu0 %v7306
    %v7649 = vpop.f32.mrf.mxu0
    %v7650 = vadd.f32 %v7346, %v7649
    %v7651 = vpop.f32.mrf.mxu0
    %v7652 = vadd.f32 %v7346, %v7651
    %7653 = vmatmul.bf16.gmra.mxu0 %v7307
    %v7654 = vpop.f32.mrf.mxu0
    %v7655 = vadd.f32 %v7346, %v7654
    %v7656 = vpop.f32.mrf.mxu0
    %v7657 = vadd.f32 %v7346, %v7656
    %7658 = vdwg.mxu0
    %7659 = vmatpush.bf16.msra.mxu0 %v7479
    %7660 = vmatpush.bf16.msra.mxu0 %v7475
    %7661 = vmatpush.bf16.msra.mxu0 %v7471
    %7662 = vmatpush.bf16.msra.mxu0 %v7467
    %7663 = vmatpush.bf16.msra.mxu0 %v7463
    %7664 = vmatpush.bf16.msra.mxu0 %v7459
    %7665 = vmatpush.bf16.msra.mxu0 %v7455
    %7666 = vmatpush.bf16.msra.mxu0 %v7451
    %7667 = vmatmul.bf16.gmra.mxu0 %v7300
    %v7668 = vpop.f32.mrf.mxu0
    %v7669 = vadd.f32 %v7347, %v7668
    %v7670 = vpop.f32.mrf.mxu0
    %v7671 = vadd.f32 %v7347, %v7670
    %7672 = vmatmul.bf16.gmra.mxu0 %v7301
    %v7673 = vpop.f32.mrf.mxu0
    %v7674 = vadd.f32 %v7347, %v7673
    %v7675 = vpop.f32.mrf.mxu0
    %v7676 = vadd.f32 %v7347, %v7675
    %7677 = vmatmul.bf16.gmra.mxu0 %v7302
    %v7678 = vpop.f32.mrf.mxu0
    %v7679 = vadd.f32 %v7347, %v7678
    %v7680 = vpop.f32.mrf.mxu0
    %v7681 = vadd.f32 %v7347, %v7680
    %7682 = vmatmul.bf16.gmra.mxu0 %v7303
    %v7683 = vpop.f32.mrf.mxu0
    %v7684 = vadd.f32 %v7347, %v7683
    %v7685 = vpop.f32.mrf.mxu0
    %v7686 = vadd.f32 %v7347, %v7685
    %7687 = vmatmul.bf16.gmra.mxu0 %v7304
    %v7688 = vpop.f32.mrf.mxu0
    %v7689 = vadd.f32 %v7347, %v7688
    %v7690 = vpop.f32.mrf.mxu0
    %v7691 = vadd.f32 %v7347, %v7690
    %7692 = vmatmul.bf16.gmra.mxu0 %v7305
    %v7693 = vpop.f32.mrf.mxu0
    %v7694 = vadd.f32 %v7347, %v7693
    %v7695 = vpop.f32.mrf.mxu0
    %v7696 = vadd.f32 %v7347, %v7695
    %7697 = vmatmul.bf16.gmra.mxu0 %v7306
    %v7698 = vpop.f32.mrf.mxu0
    %v7699 = vadd.f32 %v7347, %v7698
    %v7700 = vpop.f32.mrf.mxu0
    %v7701 = vadd.f32 %v7347, %v7700
    %7702 = vmatmul.bf16.gmra.mxu0 %v7307
    %v7703 = vpop.f32.mrf.mxu0
    %v7704 = vadd.f32 %v7347, %v7703
    %v7705 = vpop.f32.mrf.mxu0
    %v7706 = vadd.f32 %v7347, %v7705
    %7707 = vdwg.mxu0
    %v7708 = vmax.f32 %v7522, 0.0
    %v7709 = vmax.f32 %v7571, 0.0
    %v7710 = vmax.f32 %v7620, 0.0
    %v7711 = vmax.f32 %v7669, 0.0
    %v7712 = vmax.f32 %v7524, 0.0
    %v7713 = vmax.f32 %v7573, 0.0
    %v7714 = vmax.f32 %v7622, 0.0
    %v7715 = vmax.f32 %v7671, 0.0
    %v7716 = vmax.f32 %v7527, 0.0
    %v7717 = vmax.f32 %v7576, 0.0
    %v7718 = vmax.f32 %v7625, 0.0
    %v7719 = vmax.f32 %v7674, 0.0
    %v7720 = vmax.f32 %v7529, 0.0
    %v7721 = vmax.f32 %v7578, 0.0
    %v7722 = vmax.f32 %v7627, 0.0
    %v7723 = vmax.f32 %v7676, 0.0
    %v7724 = vmax.f32 %v7532, 0.0
    %v7725 = vmax.f32 %v7581, 0.0
    %v7726 = vmax.f32 %v7630, 0.0
    %v7727 = vmax.f32 %v7679, 0.0
    %v7728 = vmax.f32 %v7534, 0.0
    %v7729 = vmax.f32 %v7583, 0.0
    %v7730 = vmax.f32 %v7632, 0.0
    %v7731 = vmax.f32 %v7681, 0.0
    %v7732 = vmax.f32 %v7537, 0.0
    %v7733 = vmax.f32 %v7586, 0.0
    %v7734 = vmax.f32 %v7635, 0.0
    %v7735 = vmax.f32 %v7684, 0.0
    %v7736 = vmax.f32 %v7539, 0.0
    %v7737 = vmax.f32 %v7588, 0.0
    %v7738 = vmax.f32 %v7637, 0.0
    %v7739 = vmax.f32 %v7686, 0.0
    %v7740 = vmax.f32 %v7542, 0.0
    %v7741 = vmax.f32 %v7591, 0.0
    %v7742 = vmax.f32 %v7640, 0.0
    %v7743 = vmax.f32 %v7689, 0.0
    %v7744 = vmax.f32 %v7544, 0.0
    %v7745 = vmax.f32 %v7593, 0.0
    %v7746 = vmax.f32 %v7642, 0.0
    %v7747 = vmax.f32 %v7691, 0.0
    %v7748 = vmax.f32 %v7547, 0.0
    %v7749 = vmax.f32 %v7596, 0.0
    %v7750 = vmax.f32 %v7645, 0.0
    %v7751 = vmax.f32 %v7694, 0.0
    %v7752 = vmax.f32 %v7549, 0.0
    %v7753 = vmax.f32 %v7598, 0.0
    %v7754 = vmax.f32 %v7647, 0.0
    %v7755 = vmax.f32 %v7696, 0.0
    %v7756 = vmax.f32 %v7552, 0.0
    %v7757 = vmax.f32 %v7601, 0.0
    %v7758 = vmax.f32 %v7650, 0.0
    %v7759 = vmax.f32 %v7699, 0.0
    %v7760 = vmax.f32 %v7554, 0.0
    %v7761 = vmax.f32 %v7603, 0.0
    %v7762 = vmax.f32 %v7652, 0.0
    %v7763 = vmax.f32 %v7701, 0.0
    %v7764 = vmax.f32 %v7557, 0.0
    %v7765 = vmax.f32 %v7606, 0.0
    %v7766 = vmax.f32 %v7655, 0.0
    %v7767 = vmax.f32 %v7704, 0.0
    %v7768 = vmax.f32 %v7559, 0.0
    %v7769 = vmax.f32 %v7608, 0.0
    %v7770 = vmax.f32 %v7657, 0.0
    %v7771 = vmax.f32 %v7706, 0.0
    %v7772 = vpack.c.bf16 %v7712, %v7708
    %v7773 = vpack.c.bf16 %v7713, %v7709
    %v7774 = vpack.c.bf16 %v7714, %v7710
    %v7775 = vpack.c.bf16 %v7715, %v7711
    %v7776 = vpack.c.bf16 %v7720, %v7716
    %v7777 = vpack.c.bf16 %v7721, %v7717
    %v7778 = vpack.c.bf16 %v7722, %v7718
    %v7779 = vpack.c.bf16 %v7723, %v7719
    %v7780 = vpack.c.bf16 %v7728, %v7724
    %v7781 = vpack.c.bf16 %v7729, %v7725
    %v7782 = vpack.c.bf16 %v7730, %v7726
    %v7783 = vpack.c.bf16 %v7731, %v7727
    %v7784 = vpack.c.bf16 %v7736, %v7732
    %v7785 = vpack.c.bf16 %v7737, %v7733
    %v7786 = vpack.c.bf16 %v7738, %v7734
    %v7787 = vpack.c.bf16 %v7739, %v7735
    %v7788 = vpack.c.bf16 %v7744, %v7740
    %v7789 = vpack.c.bf16 %v7745, %v7741
    %v7790 = vpack.c.bf16 %v7746, %v7742
    %v7791 = vpack.c.bf16 %v7747, %v7743
    %v7792 = vpack.c.bf16 %v7752, %v7748
    %v7793 = vpack.c.bf16 %v7753, %v7749
    %v7794 = vpack.c.bf16 %v7754, %v7750
    %v7795 = vpack.c.bf16 %v7755, %v7751
    %v7796 = vpack.c.bf16 %v7760, %v7756
    %v7797 = vpack.c.bf16 %v7761, %v7757
    %v7798 = vpack.c.bf16 %v7762, %v7758
    %v7799 = vpack.c.bf16 %v7763, %v7759
    %v7800 = vpack.c.bf16 %v7768, %v7764
    %v7801 = vpack.c.bf16 %v7769, %v7765
    %v7802 = vpack.c.bf16 %v7770, %v7766
    %v7803 = vpack.c.bf16 %v7771, %v7767
    %s7804 = scalar_lea.vmem %s11, 256
    %v7805 = vld [vmem:[%s7804] sm:$0xf]
    %v7806 = vld [vmem:[%s7804 + $0x4] sm:$0xf]
    %v7807 = vld [vmem:[%s7804 + $0x8] sm:$0xf]
    %v7808 = vld [vmem:[%s7804 + $0xc] sm:$0xf]
    %v7809 = vld [vmem:[%s7804 + $0x10] sm:$0xf]
    %v7810 = vld [vmem:[%s7804 + $0x14] sm:$0xf]
    %v7811 = vld [vmem:[%s7804 + $0x18] sm:$0xf]
    %v7812 = vld [vmem:[%s7804 + $0x1c] sm:$0xf]
    %v7813 = vld [vmem:[%s7804 + $0x20] sm:$0xf]
    %v7814 = vld [vmem:[%s7804 + $0x24] sm:$0xf]
    %v7815 = vld [vmem:[%s7804 + $0x28] sm:$0xf]
    %v7816 = vld [vmem:[%s7804 + $0x2c] sm:$0xf]
    %v7817 = vld [vmem:[%s7804 + $0x30] sm:$0xf]
    %v7818 = vld [vmem:[%s7804 + $0x34] sm:$0xf]
    %v7819 = vld [vmem:[%s7804 + $0x38] sm:$0xf]
    %v7820 = vld [vmem:[%s7804 + $0x3c] sm:$0xf]
    %v7821 = vld [vmem:[%s7804 + $0x40] sm:$0xf]
    %v7822 = vld [vmem:[%s7804 + $0x44] sm:$0xf]
    %v7823 = vld [vmem:[%s7804 + $0x48] sm:$0xf]
    %v7824 = vld [vmem:[%s7804 + $0x4c] sm:$0xf]
    %v7825 = vld [vmem:[%s7804 + $0x50] sm:$0xf]
    %v7826 = vld [vmem:[%s7804 + $0x54] sm:$0xf]
    %v7827 = vld [vmem:[%s7804 + $0x58] sm:$0xf]
    %v7828 = vld [vmem:[%s7804 + $0x5c] sm:$0xf]
    %v7829 = vld [vmem:[%s7804 + $0x60] sm:$0xf]
    %v7830 = vld [vmem:[%s7804 + $0x64] sm:$0xf]
    %v7831 = vld [vmem:[%s7804 + $0x68] sm:$0xf]
    %v7832 = vld [vmem:[%s7804 + $0x6c] sm:$0xf]
    %v7833 = vld [vmem:[%s7804 + $0x70] sm:$0xf]
    %v7834 = vld [vmem:[%s7804 + $0x74] sm:$0xf]
    %v7835 = vld [vmem:[%s7804 + $0x78] sm:$0xf]
    %v7836 = vld [vmem:[%s7804 + $0x7c] sm:$0xf]
    %v7837 = vld [vmem:[%s7804 + $0x80] sm:$0xf]
    %v7838 = vld [vmem:[%s7804 + $0x84] sm:$0xf]
    %v7839 = vld [vmem:[%s7804 + $0x88] sm:$0xf]
    %v7840 = vld [vmem:[%s7804 + $0x8c] sm:$0xf]
    %v7841 = vld [vmem:[%s7804 + $0x90] sm:$0xf]
    %v7842 = vld [vmem:[%s7804 + $0x94] sm:$0xf]
    %v7843 = vld [vmem:[%s7804 + $0x98] sm:$0xf]
    %v7844 = vld [vmem:[%s7804 + $0x9c] sm:$0xf]
    %v7845 = vld [vmem:[%s7804 + $0xa0] sm:$0xf]
    %v7846 = vld [vmem:[%s7804 + $0xa4] sm:$0xf]
    %v7847 = vld [vmem:[%s7804 + $0xa8] sm:$0xf]
    %v7848 = vld [vmem:[%s7804 + $0xac] sm:$0xf]
    %v7849 = vld [vmem:[%s7804 + $0xb0] sm:$0xf]
    %v7850 = vld [vmem:[%s7804 + $0xb4] sm:$0xf]
    %v7851 = vld [vmem:[%s7804 + $0xb8] sm:$0xf]
    %v7852 = vld [vmem:[%s7804 + $0xbc] sm:$0xf]
    %v7853 = vld [vmem:[%s7804 + $0xc0] sm:$0xf]
    %v7854 = vld [vmem:[%s7804 + $0xc4] sm:$0xf]
    %v7855 = vld [vmem:[%s7804 + $0xc8] sm:$0xf]
    %v7856 = vld [vmem:[%s7804 + $0xcc] sm:$0xf]
    %v7857 = vld [vmem:[%s7804 + $0xd0] sm:$0xf]
    %v7858 = vld [vmem:[%s7804 + $0xd4] sm:$0xf]
    %v7859 = vld [vmem:[%s7804 + $0xd8] sm:$0xf]
    %v7860 = vld [vmem:[%s7804 + $0xdc] sm:$0xf]
    %v7861 = vld [vmem:[%s7804 + $0xe0] sm:$0xf]
    %v7862 = vld [vmem:[%s7804 + $0xe4] sm:$0xf]
    %v7863 = vld [vmem:[%s7804 + $0xe8] sm:$0xf]
    %v7864 = vld [vmem:[%s7804 + $0xec] sm:$0xf]
    %v7865 = vld [vmem:[%s7804 + $0xf0] sm:$0xf]
    %v7866 = vld [vmem:[%s7804 + $0xf4] sm:$0xf]
    %v7867 = vld [vmem:[%s7804 + $0xf8] sm:$0xf]
    %v7868 = vld [vmem:[%s7804 + $0xfc] sm:$0xf]
    %s7869 = scalar_lea.vmem [#allocation6], 1
    %v7870 = vld [vmem:[%s7869] sm:$0x1]
    %v7872 = vperm.slane %v7870, 0
    %v7938 = vunpack.c.l.b16 %v7805
    %v7939 = vunpack.c.l.b16 %v7806
    %v7940 = vunpack.c.l.b16 %v7807
    %v7941 = vunpack.c.l.b16 %v7808
    %v7942 = vunpack.c.l.b16 %v7809
    %v7943 = vunpack.c.l.b16 %v7810
    %v7944 = vunpack.c.l.b16 %v7811
    %v7945 = vunpack.c.l.b16 %v7812
    %v7946 = vunpack.c.l.b16 %v7813
    %v7947 = vunpack.c.l.b16 %v7814
    %v7948 = vunpack.c.l.b16 %v7815
    %v7949 = vunpack.c.l.b16 %v7816
    %v7950 = vunpack.c.l.b16 %v7817
    %v7951 = vunpack.c.l.b16 %v7818
    %v7952 = vunpack.c.l.b16 %v7819
    %v7953 = vunpack.c.l.b16 %v7820
    %v7954 = vunpack.c.l.b16 %v7821
    %v7955 = vunpack.c.l.b16 %v7822
    %v7956 = vunpack.c.l.b16 %v7823
    %v7957 = vunpack.c.l.b16 %v7824
    %v7958 = vunpack.c.l.b16 %v7825
    %v7959 = vunpack.c.l.b16 %v7826
    %v7960 = vunpack.c.l.b16 %v7827
    %v7961 = vunpack.c.l.b16 %v7828
    %v7962 = vunpack.c.l.b16 %v7829
    %v7963 = vunpack.c.l.b16 %v7830
    %v7964 = vunpack.c.l.b16 %v7831
    %v7965 = vunpack.c.l.b16 %v7832
    %v7966 = vunpack.c.l.b16 %v7833
    %v7967 = vunpack.c.l.b16 %v7834
    %v7968 = vunpack.c.l.b16 %v7835
    %v7969 = vunpack.c.l.b16 %v7836
    %v7970 = vunpack.c.l.b16 %v7837
    %v7971 = vunpack.c.l.b16 %v7838
    %v7972 = vunpack.c.l.b16 %v7839
    %v7973 = vunpack.c.l.b16 %v7840
    %v7974 = vunpack.c.l.b16 %v7841
    %v7975 = vunpack.c.l.b16 %v7842
    %v7976 = vunpack.c.l.b16 %v7843
    %v7977 = vunpack.c.l.b16 %v7844
    %v7978 = vunpack.c.l.b16 %v7845
    %v7979 = vunpack.c.l.b16 %v7846
    %v7980 = vunpack.c.l.b16 %v7847
    %v7981 = vunpack.c.l.b16 %v7848
    %v7982 = vunpack.c.l.b16 %v7849
    %v7983 = vunpack.c.l.b16 %v7850
    %v7984 = vunpack.c.l.b16 %v7851
    %v7985 = vunpack.c.l.b16 %v7852
    %v7986 = vunpack.c.l.b16 %v7853
    %v7987 = vunpack.c.l.b16 %v7854
    %v7988 = vunpack.c.l.b16 %v7855
    %v7989 = vunpack.c.l.b16 %v7856
    %v7990 = vunpack.c.l.b16 %v7857
    %v7991 = vunpack.c.l.b16 %v7858
    %v7992 = vunpack.c.l.b16 %v7859
    %v7993 = vunpack.c.l.b16 %v7860
    %v7994 = vunpack.c.l.b16 %v7861
    %v7995 = vunpack.c.l.b16 %v7862
    %v7996 = vunpack.c.l.b16 %v7863
    %v7997 = vunpack.c.l.b16 %v7864
    %v7998 = vunpack.c.l.b16 %v7865
    %v7999 = vunpack.c.l.b16 %v7866
    %v8000 = vunpack.c.l.b16 %v7867
    %v8001 = vunpack.c.l.b16 %v7868
    %v8002 = vpack.c.b16 %v7939, %v7938
    %v8003 = vpack.c.b16 %v7941, %v7940
    %v8004 = vpack.c.b16 %v7943, %v7942
    %v8005 = vpack.c.b16 %v7945, %v7944
    %v8006 = vpack.c.b16 %v7947, %v7946
    %v8007 = vpack.c.b16 %v7949, %v7948
    %v8008 = vpack.c.b16 %v7951, %v7950
    %v8009 = vpack.c.b16 %v7953, %v7952
    %v8010 = vpack.c.b16 %v7955, %v7954
    %v8011 = vpack.c.b16 %v7957, %v7956
    %v8012 = vpack.c.b16 %v7959, %v7958
    %v8013 = vpack.c.b16 %v7961, %v7960
    %v8014 = vpack.c.b16 %v7963, %v7962
    %v8015 = vpack.c.b16 %v7965, %v7964
    %v8016 = vpack.c.b16 %v7967, %v7966
    %v8017 = vpack.c.b16 %v7969, %v7968
    %v8018 = vpack.c.b16 %v7971, %v7970
    %v8019 = vpack.c.b16 %v7973, %v7972
    %v8020 = vpack.c.b16 %v7975, %v7974
    %v8021 = vpack.c.b16 %v7977, %v7976
    %v8022 = vpack.c.b16 %v7979, %v7978
    %v8023 = vpack.c.b16 %v7981, %v7980
    %v8024 = vpack.c.b16 %v7983, %v7982
    %v8025 = vpack.c.b16 %v7985, %v7984
    %v8026 = vpack.c.b16 %v7987, %v7986
    %v8027 = vpack.c.b16 %v7989, %v7988
    %v8028 = vpack.c.b16 %v7991, %v7990
    %v8029 = vpack.c.b16 %v7993, %v7992
    %v8030 = vpack.c.b16 %v7995, %v7994
    %v8031 = vpack.c.b16 %v7997, %v7996
    %v8032 = vpack.c.b16 %v7999, %v7998
    %v8033 = vpack.c.b16 %v8001, %v8000
    %8066 = vmatpush.bf16.msra.mxu0 %v8009
    %8067 = vmatpush.bf16.msra.mxu0 %v8008
    %8068 = vmatpush.bf16.msra.mxu0 %v8007
    %8069 = vmatpush.bf16.msra.mxu0 %v8006
    %8070 = vmatpush.bf16.msra.mxu0 %v8005
    %8071 = vmatpush.bf16.msra.mxu0 %v8004
    %8072 = vmatpush.bf16.msra.mxu0 %v8003
    %8073 = vmatpush.bf16.msra.mxu0 %v8002
    %8074 = vmatmul.bf16.gmra.mxu0 %v7772
    %v8075 = vpop.f32.mrf.mxu0
    %v8076 = vadd.f32 %v7872, %v8075
    %v8077 = vpop.f32.mrf.mxu0
    %v8078 = vadd.f32 %v7872, %v8077
    %8079 = vmatmul.bf16.gmra.mxu0 %v7776
    %v8080 = vpop.f32.mrf.mxu0
    %v8081 = vadd.f32 %v7872, %v8080
    %v8082 = vpop.f32.mrf.mxu0
    %v8083 = vadd.f32 %v7872, %v8082
    %8084 = vmatmul.bf16.gmra.mxu0 %v7780
    %v8085 = vpop.f32.mrf.mxu0
    %v8086 = vadd.f32 %v7872, %v8085
    %v8087 = vpop.f32.mrf.mxu0
    %v8088 = vadd.f32 %v7872, %v8087
    %8089 = vmatmul.bf16.gmra.mxu0 %v7784
    %v8090 = vpop.f32.mrf.mxu0
    %v8091 = vadd.f32 %v7872, %v8090
    %v8092 = vpop.f32.mrf.mxu0
    %v8093 = vadd.f32 %v7872, %v8092
    %8094 = vmatmul.bf16.gmra.mxu0 %v7788
    %v8095 = vpop.f32.mrf.mxu0
    %v8096 = vadd.f32 %v7872, %v8095
    %v8097 = vpop.f32.mrf.mxu0
    %v8098 = vadd.f32 %v7872, %v8097
    %8099 = vmatmul.bf16.gmra.mxu0 %v7792
    %v8100 = vpop.f32.mrf.mxu0
    %v8101 = vadd.f32 %v7872, %v8100
    %v8102 = vpop.f32.mrf.mxu0
    %v8103 = vadd.f32 %v7872, %v8102
    %8104 = vmatmul.bf16.gmra.mxu0 %v7796
    %v8105 = vpop.f32.mrf.mxu0
    %v8106 = vadd.f32 %v7872, %v8105
    %v8107 = vpop.f32.mrf.mxu0
    %v8108 = vadd.f32 %v7872, %v8107
    %8109 = vmatmul.bf16.gmra.mxu0 %v7800
    %v8110 = vpop.f32.mrf.mxu0
    %v8111 = vadd.f32 %v7872, %v8110
    %v8112 = vpop.f32.mrf.mxu0
    %v8113 = vadd.f32 %v7872, %v8112
    %8114 = vdwg.mxu0
    %8115 = vmatpush.bf16.msra.mxu0 %v8017
    %8116 = vmatpush.bf16.msra.mxu0 %v8016
    %8117 = vmatpush.bf16.msra.mxu0 %v8015
    %8118 = vmatpush.bf16.msra.mxu0 %v8014
    %8119 = vmatpush.bf16.msra.mxu0 %v8013
    %8120 = vmatpush.bf16.msra.mxu0 %v8012
    %8121 = vmatpush.bf16.msra.mxu0 %v8011
    %8122 = vmatpush.bf16.msra.mxu0 %v8010
    %8123 = vmatmul.bf16.gmra.mxu0 %v7773
    %v8124 = vpop.f32.mrf.mxu0
    %v8125 = vadd.f32 %v8076, %v8124
    %v8126 = vpop.f32.mrf.mxu0
    %v8127 = vadd.f32 %v8078, %v8126
    %8128 = vmatmul.bf16.gmra.mxu0 %v7777
    %v8129 = vpop.f32.mrf.mxu0
    %v8130 = vadd.f32 %v8081, %v8129
    %v8131 = vpop.f32.mrf.mxu0
    %v8132 = vadd.f32 %v8083, %v8131
    %8133 = vmatmul.bf16.gmra.mxu0 %v7781
    %v8134 = vpop.f32.mrf.mxu0
    %v8135 = vadd.f32 %v8086, %v8134
    %v8136 = vpop.f32.mrf.mxu0
    %v8137 = vadd.f32 %v8088, %v8136
    %8138 = vmatmul.bf16.gmra.mxu0 %v7785
    %v8139 = vpop.f32.mrf.mxu0
    %v8140 = vadd.f32 %v8091, %v8139
    %v8141 = vpop.f32.mrf.mxu0
    %v8142 = vadd.f32 %v8093, %v8141
    %8143 = vmatmul.bf16.gmra.mxu0 %v7789
    %v8144 = vpop.f32.mrf.mxu0
    %v8145 = vadd.f32 %v8096, %v8144
    %v8146 = vpop.f32.mrf.mxu0
    %v8147 = vadd.f32 %v8098, %v8146
    %8148 = vmatmul.bf16.gmra.mxu0 %v7793
    %v8149 = vpop.f32.mrf.mxu0
    %v8150 = vadd.f32 %v8101, %v8149
    %v8151 = vpop.f32.mrf.mxu0
    %v8152 = vadd.f32 %v8103, %v8151
    %8153 = vmatmul.bf16.gmra.mxu0 %v7797
    %v8154 = vpop.f32.mrf.mxu0
    %v8155 = vadd.f32 %v8106, %v8154
    %v8156 = vpop.f32.mrf.mxu0
    %v8157 = vadd.f32 %v8108, %v8156
    %8158 = vmatmul.bf16.gmra.mxu0 %v7801
    %v8159 = vpop.f32.mrf.mxu0
    %v8160 = vadd.f32 %v8111, %v8159
    %v8161 = vpop.f32.mrf.mxu0
    %v8162 = vadd.f32 %v8113, %v8161
    %8163 = vdwg.mxu0
    %8164 = vmatpush.bf16.msra.mxu0 %v8025
    %8165 = vmatpush.bf16.msra.mxu0 %v8024
    %8166 = vmatpush.bf16.msra.mxu0 %v8023
    %8167 = vmatpush.bf16.msra.mxu0 %v8022
    %8168 = vmatpush.bf16.msra.mxu0 %v8021
    %8169 = vmatpush.bf16.msra.mxu0 %v8020
    %8170 = vmatpush.bf16.msra.mxu0 %v8019
    %8171 = vmatpush.bf16.msra.mxu0 %v8018
    %8172 = vmatmul.bf16.gmra.mxu0 %v7774
    %v8173 = vpop.f32.mrf.mxu0
    %v8174 = vadd.f32 %v8125, %v8173
    %v8175 = vpop.f32.mrf.mxu0
    %v8176 = vadd.f32 %v8127, %v8175
    %8177 = vmatmul.bf16.gmra.mxu0 %v7778
    %v8178 = vpop.f32.mrf.mxu0
    %v8179 = vadd.f32 %v8130, %v8178
    %v8180 = vpop.f32.mrf.mxu0
    %v8181 = vadd.f32 %v8132, %v8180
    %8182 = vmatmul.bf16.gmra.mxu0 %v7782
    %v8183 = vpop.f32.mrf.mxu0
    %v8184 = vadd.f32 %v8135, %v8183
    %v8185 = vpop.f32.mrf.mxu0
    %v8186 = vadd.f32 %v8137, %v8185
    %8187 = vmatmul.bf16.gmra.mxu0 %v7786
    %v8188 = vpop.f32.mrf.mxu0
    %v8189 = vadd.f32 %v8140, %v8188
    %v8190 = vpop.f32.mrf.mxu0
    %v8191 = vadd.f32 %v8142, %v8190
    %8192 = vmatmul.bf16.gmra.mxu0 %v7790
    %v8193 = vpop.f32.mrf.mxu0
    %v8194 = vadd.f32 %v8145, %v8193
    %v8195 = vpop.f32.mrf.mxu0
    %v8196 = vadd.f32 %v8147, %v8195
    %8197 = vmatmul.bf16.gmra.mxu0 %v7794
    %v8198 = vpop.f32.mrf.mxu0
    %v8199 = vadd.f32 %v8150, %v8198
    %v8200 = vpop.f32.mrf.mxu0
    %v8201 = vadd.f32 %v8152, %v8200
    %8202 = vmatmul.bf16.gmra.mxu0 %v7798
    %v8203 = vpop.f32.mrf.mxu0
    %v8204 = vadd.f32 %v8155, %v8203
    %v8205 = vpop.f32.mrf.mxu0
    %v8206 = vadd.f32 %v8157, %v8205
    %8207 = vmatmul.bf16.gmra.mxu0 %v7802
    %v8208 = vpop.f32.mrf.mxu0
    %v8209 = vadd.f32 %v8160, %v8208
    %v8210 = vpop.f32.mrf.mxu0
    %v8211 = vadd.f32 %v8162, %v8210
    %8212 = vdwg.mxu0
    %8213 = vmatpush.bf16.msra.mxu0 %v8033
    %8214 = vmatpush.bf16.msra.mxu0 %v8032
    %8215 = vmatpush.bf16.msra.mxu0 %v8031
    %8216 = vmatpush.bf16.msra.mxu0 %v8030
    %8217 = vmatpush.bf16.msra.mxu0 %v8029
    %8218 = vmatpush.bf16.msra.mxu0 %v8028
    %8219 = vmatpush.bf16.msra.mxu0 %v8027
    %8220 = vmatpush.bf16.msra.mxu0 %v8026
    %8221 = vmatmul.bf16.gmra.mxu0 %v7775
    %v8222 = vpop.f32.mrf.mxu0
    %v8223 = vadd.f32 %v8174, %v8222
    %v8224 = vpop.f32.mrf.mxu0
    %v8225 = vadd.f32 %v8176, %v8224
    %8226 = vmatmul.bf16.gmra.mxu0 %v7779
    %v8227 = vpop.f32.mrf.mxu0
    %v8228 = vadd.f32 %v8179, %v8227
    %v8229 = vpop.f32.mrf.mxu0
    %v8230 = vadd.f32 %v8181, %v8229
    %8231 = vmatmul.bf16.gmra.mxu0 %v7783
    %v8232 = vpop.f32.mrf.mxu0
    %v8233 = vadd.f32 %v8184, %v8232
    %v8234 = vpop.f32.mrf.mxu0
    %v8235 = vadd.f32 %v8186, %v8234
    %8236 = vmatmul.bf16.gmra.mxu0 %v7787
    %v8237 = vpop.f32.mrf.mxu0
    %v8238 = vadd.f32 %v8189, %v8237
    %v8239 = vpop.f32.mrf.mxu0
    %v8240 = vadd.f32 %v8191, %v8239
    %8241 = vmatmul.bf16.gmra.mxu0 %v7791
    %v8242 = vpop.f32.mrf.mxu0
    %v8243 = vadd.f32 %v8194, %v8242
    %v8244 = vpop.f32.mrf.mxu0
    %v8245 = vadd.f32 %v8196, %v8244
    %8246 = vmatmul.bf16.gmra.mxu0 %v7795
    %v8247 = vpop.f32.mrf.mxu0
    %v8248 = vadd.f32 %v8199, %v8247
    %v8249 = vpop.f32.mrf.mxu0
    %v8250 = vadd.f32 %v8201, %v8249
    %8251 = vmatmul.bf16.gmra.mxu0 %v7799
    %v8252 = vpop.f32.mrf.mxu0
    %v8253 = vadd.f32 %v8204, %v8252
    %v8254 = vpop.f32.mrf.mxu0
    %v8255 = vadd.f32 %v8206, %v8254
    %8256 = vmatmul.bf16.gmra.mxu0 %v7803
    %v8257 = vpop.f32.mrf.mxu0
    %v8258 = vadd.f32 %v8209, %v8257
    %v8259 = vpop.f32.mrf.mxu0
    %v8260 = vadd.f32 %v8211, %v8259
    %8261 = vdwg.mxu0
    %s8262 = scalar_lea.vmem %s2, 2
    %v8263 = vld [vmem:[%s8262] sm:$0x1]
    %s8264 = scalar_lea.vmem %s3, 2
    %v8265 = vld [vmem:[%s8264] sm:$0x1]
    %8266 = vadd.xlane.f32.xlu0 %v8223
    %v8267 = vpop.xlane.xlu0 %8266
    %8268 = vadd.xlane.f32.xlu0 %v8225
    %v8269 = vpop.xlane.xlu0 %8268
    %8270 = vadd.xlane.f32.xlu0 %v8228
    %v8271 = vpop.xlane.xlu0 %8270
    %8272 = vadd.xlane.f32.xlu0 %v8230
    %v8273 = vpop.xlane.xlu0 %8272
    %8274 = vadd.xlane.f32.xlu0 %v8233
    %v8275 = vpop.xlane.xlu0 %8274
    %8276 = vadd.xlane.f32.xlu0 %v8235
    %v8277 = vpop.xlane.xlu0 %8276
    %8278 = vadd.xlane.f32.xlu0 %v8238
    %v8279 = vpop.xlane.xlu0 %8278
    %8280 = vadd.xlane.f32.xlu0 %v8240
    %v8281 = vpop.xlane.xlu0 %8280
    %8282 = vadd.xlane.f32.xlu0 %v8243
    %v8283 = vpop.xlane.xlu0 %8282
    %8284 = vadd.xlane.f32.xlu0 %v8245
    %v8285 = vpop.xlane.xlu0 %8284
    %8286 = vadd.xlane.f32.xlu0 %v8248
    %v8287 = vpop.xlane.xlu0 %8286
    %8288 = vadd.xlane.f32.xlu0 %v8250
    %v8289 = vpop.xlane.xlu0 %8288
    %8290 = vadd.xlane.f32.xlu0 %v8253
    %v8291 = vpop.xlane.xlu0 %8290
    %8292 = vadd.xlane.f32.xlu0 %v8255
    %v8293 = vpop.xlane.xlu0 %8292
    %8294 = vadd.xlane.f32.xlu0 %v8258
    %v8295 = vpop.xlane.xlu0 %8294
    %8296 = vadd.xlane.f32.xlu0 %v8260
    %v8297 = vpop.xlane.xlu0 %8296
    %v8298 = vmul.f32 %v8267, %v155
    %v8299 = vmul.f32 %v8269, %v155
    %v8300 = vmul.f32 %v8271, %v155
    %v8301 = vmul.f32 %v8273, %v155
    %v8302 = vmul.f32 %v8275, %v155
    %v8303 = vmul.f32 %v8277, %v155
    %v8304 = vmul.f32 %v8279, %v155
    %v8305 = vmul.f32 %v8281, %v155
    %v8306 = vmul.f32 %v8283, %v155
    %v8307 = vmul.f32 %v8285, %v155
    %v8308 = vmul.f32 %v8287, %v155
    %v8309 = vmul.f32 %v8289, %v155
    %v8310 = vmul.f32 %v8291, %v155
    %v8311 = vmul.f32 %v8293, %v155
    %v8312 = vmul.f32 %v8295, %v155
    %v8313 = vmul.f32 %v8297, %v155
    %v8314 = vmul.f32 %v8223, %v8223
    %v8315 = vmul.f32 %v8225, %v8225
    %v8316 = vmul.f32 %v8228, %v8228
    %v8317 = vmul.f32 %v8230, %v8230
    %v8318 = vmul.f32 %v8233, %v8233
    %v8319 = vmul.f32 %v8235, %v8235
    %v8320 = vmul.f32 %v8238, %v8238
    %v8321 = vmul.f32 %v8240, %v8240
    %v8322 = vmul.f32 %v8243, %v8243
    %v8323 = vmul.f32 %v8245, %v8245
    %v8324 = vmul.f32 %v8248, %v8248
    %v8325 = vmul.f32 %v8250, %v8250
    %v8326 = vmul.f32 %v8253, %v8253
    %v8327 = vmul.f32 %v8255, %v8255
    %v8328 = vmul.f32 %v8258, %v8258
    %v8329 = vmul.f32 %v8260, %v8260
    %8330 = vadd.xlane.f32.xlu0 %v8314
    %v8331 = vpop.xlane.xlu0 %8330
    %8332 = vadd.xlane.f32.xlu0 %v8315
    %v8333 = vpop.xlane.xlu0 %8332
    %8334 = vadd.xlane.f32.xlu0 %v8316
    %v8335 = vpop.xlane.xlu0 %8334
    %8336 = vadd.xlane.f32.xlu0 %v8317
    %v8337 = vpop.xlane.xlu0 %8336
    %8338 = vadd.xlane.f32.xlu0 %v8318
    %v8339 = vpop.xlane.xlu0 %8338
    %8340 = vadd.xlane.f32.xlu0 %v8319
    %v8341 = vpop.xlane.xlu0 %8340
    %8342 = vadd.xlane.f32.xlu0 %v8320
    %v8343 = vpop.xlane.xlu0 %8342
    %8344 = vadd.xlane.f32.xlu0 %v8321
    %v8345 = vpop.xlane.xlu0 %8344
    %8346 = vadd.xlane.f32.xlu0 %v8322
    %v8347 = vpop.xlane.xlu0 %8346
    %8348 = vadd.xlane.f32.xlu0 %v8323
    %v8349 = vpop.xlane.xlu0 %8348
    %8350 = vadd.xlane.f32.xlu0 %v8324
    %v8351 = vpop.xlane.xlu0 %8350
    %8352 = vadd.xlane.f32.xlu0 %v8325
    %v8353 = vpop.xlane.xlu0 %8352
    %8354 = vadd.xlane.f32.xlu0 %v8326
    %v8355 = vpop.xlane.xlu0 %8354
    %8356 = vadd.xlane.f32.xlu0 %v8327
    %v8357 = vpop.xlane.xlu0 %8356
    %8358 = vadd.xlane.f32.xlu0 %v8328
    %v8359 = vpop.xlane.xlu0 %8358
    %8360 = vadd.xlane.f32.xlu0 %v8329
    %v8361 = vpop.xlane.xlu0 %8360
    %v8362 = vmul.f32 %v8331, %v155
    %v8363 = vmul.f32 %v8333, %v155
    %v8364 = vmul.f32 %v8335, %v155
    %v8365 = vmul.f32 %v8337, %v155
    %v8366 = vmul.f32 %v8339, %v155
    %v8367 = vmul.f32 %v8341, %v155
    %v8368 = vmul.f32 %v8343, %v155
    %v8369 = vmul.f32 %v8345, %v155
    %v8370 = vmul.f32 %v8347, %v155
    %v8371 = vmul.f32 %v8349, %v155
    %v8372 = vmul.f32 %v8351, %v155
    %v8373 = vmul.f32 %v8353, %v155
    %v8374 = vmul.f32 %v8355, %v155
    %v8375 = vmul.f32 %v8357, %v155
    %v8376 = vmul.f32 %v8359, %v155
    %v8377 = vmul.f32 %v8361, %v155
    %v8378 = vmul.f32 %v8298, %v8298
    %v8379 = vmul.f32 %v8299, %v8299
    %v8380 = vmul.f32 %v8300, %v8300
    %v8381 = vmul.f32 %v8301, %v8301
    %v8382 = vmul.f32 %v8302, %v8302
    %v8383 = vmul.f32 %v8303, %v8303
    %v8384 = vmul.f32 %v8304, %v8304
    %v8385 = vmul.f32 %v8305, %v8305
    %v8386 = vmul.f32 %v8306, %v8306
    %v8387 = vmul.f32 %v8307, %v8307
    %v8388 = vmul.f32 %v8308, %v8308
    %v8389 = vmul.f32 %v8309, %v8309
    %v8390 = vmul.f32 %v8310, %v8310
    %v8391 = vmul.f32 %v8311, %v8311
    %v8392 = vmul.f32 %v8312, %v8312
    %v8393 = vmul.f32 %v8313, %v8313
    %v8394 = vsub.f32 %v8362, %v8378
    %v8395 = vsub.f32 %v8363, %v8379
    %v8396 = vsub.f32 %v8364, %v8380
    %v8397 = vsub.f32 %v8365, %v8381
    %v8398 = vsub.f32 %v8366, %v8382
    %v8399 = vsub.f32 %v8367, %v8383
    %v8400 = vsub.f32 %v8368, %v8384
    %v8401 = vsub.f32 %v8369, %v8385
    %v8402 = vsub.f32 %v8370, %v8386
    %v8403 = vsub.f32 %v8371, %v8387
    %v8404 = vsub.f32 %v8372, %v8388
    %v8405 = vsub.f32 %v8373, %v8389
    %v8406 = vsub.f32 %v8374, %v8390
    %v8407 = vsub.f32 %v8375, %v8391
    %v8408 = vsub.f32 %v8376, %v8392
    %v8409 = vsub.f32 %v8377, %v8393
    %v8410 = vsub.f32 %v8223, %v8298
    %v8411 = vsub.f32 %v8225, %v8299
    %v8412 = vsub.f32 %v8228, %v8300
    %v8413 = vsub.f32 %v8230, %v8301
    %v8414 = vsub.f32 %v8233, %v8302
    %v8415 = vsub.f32 %v8235, %v8303
    %v8416 = vsub.f32 %v8238, %v8304
    %v8417 = vsub.f32 %v8240, %v8305
    %v8418 = vsub.f32 %v8243, %v8306
    %v8419 = vsub.f32 %v8245, %v8307
    %v8420 = vsub.f32 %v8248, %v8308
    %v8421 = vsub.f32 %v8250, %v8309
    %v8422 = vsub.f32 %v8253, %v8310
    %v8423 = vsub.f32 %v8255, %v8311
    %v8424 = vsub.f32 %v8258, %v8312
    %v8425 = vsub.f32 %v8260, %v8313
    %v8426 = vadd.f32 %v8394, 1e-05
    %v8427 = vadd.f32 %v8395, 1e-05
    %v8428 = vadd.f32 %v8396, 1e-05
    %v8429 = vadd.f32 %v8397, 1e-05
    %v8430 = vadd.f32 %v8398, 1e-05
    %v8431 = vadd.f32 %v8399, 1e-05
    %v8432 = vadd.f32 %v8400, 1e-05
    %v8433 = vadd.f32 %v8401, 1e-05
    %v8434 = vadd.f32 %v8402, 1e-05
    %v8435 = vadd.f32 %v8403, 1e-05
    %v8436 = vadd.f32 %v8404, 1e-05
    %v8437 = vadd.f32 %v8405, 1e-05
    %v8438 = vadd.f32 %v8406, 1e-05
    %v8439 = vadd.f32 %v8407, 1e-05
    %v8440 = vadd.f32 %v8408, 1e-05
    %v8441 = vadd.f32 %v8409, 1e-05
    %v8442 = vrsqrt.pop %v8426
    %v8443 = vmul.f32 %v8442, %v8426
    %v8444 = vmul.f32 %v8443, %v8442
    %v8445 = vmul.f32 0.5, %v8444
    %v8446 = vsub.f32 1.5, %v8445
    %v8447 = vmul.f32 %v8442, %v8446
    %vm8448 = vweird.f32 %v8426
    %vm8449 = vweird.f32 %v8442
    %vm8450 = vmor %vm8448, %vm8449
    %v8451 = vsel %vm8450, %v8442, %v8447
    %v8452 = vrsqrt.pop %v8427
    %v8453 = vmul.f32 %v8452, %v8427
    %v8454 = vmul.f32 %v8453, %v8452
    %v8455 = vmul.f32 0.5, %v8454
    %v8456 = vsub.f32 1.5, %v8455
    %v8457 = vmul.f32 %v8452, %v8456
    %vm8458 = vweird.f32 %v8427
    %vm8459 = vweird.f32 %v8452
    %vm8460 = vmor %vm8458, %vm8459
    %v8461 = vsel %vm8460, %v8452, %v8457
    %v8462 = vrsqrt.pop %v8428
    %v8463 = vmul.f32 %v8462, %v8428
    %v8464 = vmul.f32 %v8463, %v8462
    %v8465 = vmul.f32 0.5, %v8464
    %v8466 = vsub.f32 1.5, %v8465
    %v8467 = vmul.f32 %v8462, %v8466
    %vm8468 = vweird.f32 %v8428
    %vm8469 = vweird.f32 %v8462
    %vm8470 = vmor %vm8468, %vm8469
    %v8471 = vsel %vm8470, %v8462, %v8467
    %v8472 = vrsqrt.pop %v8429
    %v8473 = vmul.f32 %v8472, %v8429
    %v8474 = vmul.f32 %v8473, %v8472
    %v8475 = vmul.f32 0.5, %v8474
    %v8476 = vsub.f32 1.5, %v8475
    %v8477 = vmul.f32 %v8472, %v8476
    %vm8478 = vweird.f32 %v8429
    %vm8479 = vweird.f32 %v8472
    %vm8480 = vmor %vm8478, %vm8479
    %v8481 = vsel %vm8480, %v8472, %v8477
    %v8482 = vrsqrt.pop %v8430
    %v8483 = vmul.f32 %v8482, %v8430
    %v8484 = vmul.f32 %v8483, %v8482
    %v8485 = vmul.f32 0.5, %v8484
    %v8486 = vsub.f32 1.5, %v8485
    %v8487 = vmul.f32 %v8482, %v8486
    %vm8488 = vweird.f32 %v8430
    %vm8489 = vweird.f32 %v8482
    %vm8490 = vmor %vm8488, %vm8489
    %v8491 = vsel %vm8490, %v8482, %v8487
    %v8492 = vrsqrt.pop %v8431
    %v8493 = vmul.f32 %v8492, %v8431
    %v8494 = vmul.f32 %v8493, %v8492
    %v8495 = vmul.f32 0.5, %v8494
    %v8496 = vsub.f32 1.5, %v8495
    %v8497 = vmul.f32 %v8492, %v8496
    %vm8498 = vweird.f32 %v8431
    %vm8499 = vweird.f32 %v8492
    %vm8500 = vmor %vm8498, %vm8499
    %v8501 = vsel %vm8500, %v8492, %v8497
    %v8502 = vrsqrt.pop %v8432
    %v8503 = vmul.f32 %v8502, %v8432
    %v8504 = vmul.f32 %v8503, %v8502
    %v8505 = vmul.f32 0.5, %v8504
    %v8506 = vsub.f32 1.5, %v8505
    %v8507 = vmul.f32 %v8502, %v8506
    %vm8508 = vweird.f32 %v8432
    %vm8509 = vweird.f32 %v8502
    %vm8510 = vmor %vm8508, %vm8509
    %v8511 = vsel %vm8510, %v8502, %v8507
    %v8512 = vrsqrt.pop %v8433
    %v8513 = vmul.f32 %v8512, %v8433
    %v8514 = vmul.f32 %v8513, %v8512
    %v8515 = vmul.f32 0.5, %v8514
    %v8516 = vsub.f32 1.5, %v8515
    %v8517 = vmul.f32 %v8512, %v8516
    %vm8518 = vweird.f32 %v8433
    %vm8519 = vweird.f32 %v8512
    %vm8520 = vmor %vm8518, %vm8519
    %v8521 = vsel %vm8520, %v8512, %v8517
    %v8522 = vrsqrt.pop %v8434
    %v8523 = vmul.f32 %v8522, %v8434
    %v8524 = vmul.f32 %v8523, %v8522
    %v8525 = vmul.f32 0.5, %v8524
    %v8526 = vsub.f32 1.5, %v8525
    %v8527 = vmul.f32 %v8522, %v8526
    %vm8528 = vweird.f32 %v8434
    %vm8529 = vweird.f32 %v8522
    %vm8530 = vmor %vm8528, %vm8529
    %v8531 = vsel %vm8530, %v8522, %v8527
    %v8532 = vrsqrt.pop %v8435
    %v8533 = vmul.f32 %v8532, %v8435
    %v8534 = vmul.f32 %v8533, %v8532
    %v8535 = vmul.f32 0.5, %v8534
    %v8536 = vsub.f32 1.5, %v8535
    %v8537 = vmul.f32 %v8532, %v8536
    %vm8538 = vweird.f32 %v8435
    %vm8539 = vweird.f32 %v8532
    %vm8540 = vmor %vm8538, %vm8539
    %v8541 = vsel %vm8540, %v8532, %v8537
    %v8542 = vrsqrt.pop %v8436
    %v8543 = vmul.f32 %v8542, %v8436
    %v8544 = vmul.f32 %v8543, %v8542
    %v8545 = vmul.f32 0.5, %v8544
    %v8546 = vsub.f32 1.5, %v8545
    %v8547 = vmul.f32 %v8542, %v8546
    %vm8548 = vweird.f32 %v8436
    %vm8549 = vweird.f32 %v8542
    %vm8550 = vmor %vm8548, %vm8549
    %v8551 = vsel %vm8550, %v8542, %v8547
    %v8552 = vrsqrt.pop %v8437
    %v8553 = vmul.f32 %v8552, %v8437
    %v8554 = vmul.f32 %v8553, %v8552
    %v8555 = vmul.f32 0.5, %v8554
    %v8556 = vsub.f32 1.5, %v8555
    %v8557 = vmul.f32 %v8552, %v8556
    %vm8558 = vweird.f32 %v8437
    %vm8559 = vweird.f32 %v8552
    %vm8560 = vmor %vm8558, %vm8559
    %v8561 = vsel %vm8560, %v8552, %v8557
    %v8562 = vrsqrt.pop %v8438
    %v8563 = vmul.f32 %v8562, %v8438
    %v8564 = vmul.f32 %v8563, %v8562
    %v8565 = vmul.f32 0.5, %v8564
    %v8566 = vsub.f32 1.5, %v8565
    %v8567 = vmul.f32 %v8562, %v8566
    %vm8568 = vweird.f32 %v8438
    %vm8569 = vweird.f32 %v8562
    %vm8570 = vmor %vm8568, %vm8569
    %v8571 = vsel %vm8570, %v8562, %v8567
    %v8572 = vrsqrt.pop %v8439
    %v8573 = vmul.f32 %v8572, %v8439
    %v8574 = vmul.f32 %v8573, %v8572
    %v8575 = vmul.f32 0.5, %v8574
    %v8576 = vsub.f32 1.5, %v8575
    %v8577 = vmul.f32 %v8572, %v8576
    %vm8578 = vweird.f32 %v8439
    %vm8579 = vweird.f32 %v8572
    %vm8580 = vmor %vm8578, %vm8579
    %v8581 = vsel %vm8580, %v8572, %v8577
    %v8582 = vrsqrt.pop %v8440
    %v8583 = vmul.f32 %v8582, %v8440
    %v8584 = vmul.f32 %v8583, %v8582
    %v8585 = vmul.f32 0.5, %v8584
    %v8586 = vsub.f32 1.5, %v8585
    %v8587 = vmul.f32 %v8582, %v8586
    %vm8588 = vweird.f32 %v8440
    %vm8589 = vweird.f32 %v8582
    %vm8590 = vmor %vm8588, %vm8589
    %v8591 = vsel %vm8590, %v8582, %v8587
    %v8592 = vrsqrt.pop %v8441
    %v8593 = vmul.f32 %v8592, %v8441
    %v8594 = vmul.f32 %v8593, %v8592
    %v8595 = vmul.f32 0.5, %v8594
    %v8596 = vsub.f32 1.5, %v8595
    %v8597 = vmul.f32 %v8592, %v8596
    %vm8598 = vweird.f32 %v8441
    %vm8599 = vweird.f32 %v8592
    %vm8600 = vmor %vm8598, %vm8599
    %v8601 = vsel %vm8600, %v8592, %v8597
    %v8602 = vmul.f32 %v8410, %v8451
    %v8603 = vmul.f32 %v8411, %v8461
    %v8604 = vmul.f32 %v8412, %v8471
    %v8605 = vmul.f32 %v8413, %v8481
    %v8606 = vmul.f32 %v8414, %v8491
    %v8607 = vmul.f32 %v8415, %v8501
    %v8608 = vmul.f32 %v8416, %v8511
    %v8609 = vmul.f32 %v8417, %v8521
    %v8610 = vmul.f32 %v8418, %v8531
    %v8611 = vmul.f32 %v8419, %v8541
    %v8612 = vmul.f32 %v8420, %v8551
    %v8613 = vmul.f32 %v8421, %v8561
    %v8614 = vmul.f32 %v8422, %v8571
    %v8615 = vmul.f32 %v8423, %v8581
    %v8616 = vmul.f32 %v8424, %v8591
    %v8617 = vmul.f32 %v8425, %v8601
    %v8619 = vperm.slane %v8263, 0
    %v8621 = vmul.f32 %v8602, %v8619
    %v8622 = vmul.f32 %v8603, %v8619
    %v8623 = vmul.f32 %v8604, %v8619
    %v8624 = vmul.f32 %v8605, %v8619
    %v8625 = vmul.f32 %v8606, %v8619
    %v8626 = vmul.f32 %v8607, %v8619
    %v8627 = vmul.f32 %v8608, %v8619
    %v8628 = vmul.f32 %v8609, %v8619
    %v8629 = vmul.f32 %v8610, %v8619
    %v8630 = vmul.f32 %v8611, %v8619
    %v8631 = vmul.f32 %v8612, %v8619
    %v8632 = vmul.f32 %v8613, %v8619
    %v8633 = vmul.f32 %v8614, %v8619
    %v8634 = vmul.f32 %v8615, %v8619
    %v8635 = vmul.f32 %v8616, %v8619
    %v8636 = vmul.f32 %v8617, %v8619
    %v8638 = vperm.slane %v8265, 0
    %v8640 = vadd.f32 %v8621, %v8638
    %v8641 = vadd.f32 %v8622, %v8638
    %v8642 = vadd.f32 %v8623, %v8638
    %v8643 = vadd.f32 %v8624, %v8638
    %v8644 = vadd.f32 %v8625, %v8638
    %v8645 = vadd.f32 %v8626, %v8638
    %v8646 = vadd.f32 %v8627, %v8638
    %v8647 = vadd.f32 %v8628, %v8638
    %v8648 = vadd.f32 %v8629, %v8638
    %v8649 = vadd.f32 %v8630, %v8638
    %v8650 = vadd.f32 %v8631, %v8638
    %v8651 = vadd.f32 %v8632, %v8638
    %v8652 = vadd.f32 %v8633, %v8638
    %v8653 = vadd.f32 %v8634, %v8638
    %v8654 = vadd.f32 %v8635, %v8638
    %v8655 = vadd.f32 %v8636, %v8638
    %v8656 = vpack.c.bf16 %v8641, %v8640
    %v8657 = vpack.c.bf16 %v8643, %v8642
    %v8658 = vpack.c.bf16 %v8645, %v8644
    %v8659 = vpack.c.bf16 %v8647, %v8646
    %v8660 = vpack.c.bf16 %v8649, %v8648
    %v8661 = vpack.c.bf16 %v8651, %v8650
    %v8662 = vpack.c.bf16 %v8653, %v8652
    %v8663 = vpack.c.bf16 %v8655, %v8654
    %s8664 = scalar_lea.vmem [#allocation3], 384
    %v8665 = vld [vmem:[%s8664] sm:$0xff]
    %v8666 = vld [vmem:[%s8664 + $0x8] sm:$0xf]
    %v8667 = vld [vmem:[%s8664 + $0xc] sm:$0xff]
    %v8668 = vld [vmem:[%s8664 + $0x14] sm:$0xf]
    %v8669 = vld [vmem:[%s8664 + $0x18] sm:$0xff]
    %v8670 = vld [vmem:[%s8664 + $0x20] sm:$0xf]
    %v8671 = vld [vmem:[%s8664 + $0x24] sm:$0xff]
    %v8672 = vld [vmem:[%s8664 + $0x2c] sm:$0xf]
    %v8673 = vld [vmem:[%s8664 + $0x30] sm:$0xff]
    %v8674 = vld [vmem:[%s8664 + $0x38] sm:$0xf]
    %v8675 = vld [vmem:[%s8664 + $0x3c] sm:$0xff]
    %v8676 = vld [vmem:[%s8664 + $0x44] sm:$0xf]
    %v8677 = vld [vmem:[%s8664 + $0x48] sm:$0xff]
    %v8678 = vld [vmem:[%s8664 + $0x50] sm:$0xf]
    %v8679 = vld [vmem:[%s8664 + $0x54] sm:$0xff]
    %v8680 = vld [vmem:[%s8664 + $0x5c] sm:$0xf]
    %v8681 = vld [vmem:[%s8664 + $0x60] sm:$0xff]
    %v8682 = vld [vmem:[%s8664 + $0x68] sm:$0xf]
    %v8683 = vld [vmem:[%s8664 + $0x6c] sm:$0xff]
    %v8684 = vld [vmem:[%s8664 + $0x74] sm:$0xf]
    %v8685 = vld [vmem:[%s8664 + $0x78] sm:$0xff]
    %v8686 = vld [vmem:[%s8664 + $0x80] sm:$0xf]
    %v8687 = vld [vmem:[%s8664 + $0x84] sm:$0xff]
    %v8688 = vld [vmem:[%s8664 + $0x8c] sm:$0xf]
    %v8689 = vld [vmem:[%s8664 + $0x90] sm:$0xff]
    %v8690 = vld [vmem:[%s8664 + $0x98] sm:$0xf]
    %v8691 = vld [vmem:[%s8664 + $0x9c] sm:$0xff]
    %v8692 = vld [vmem:[%s8664 + $0xa4] sm:$0xf]
    %v8693 = vld [vmem:[%s8664 + $0xa8] sm:$0xff]
    %v8694 = vld [vmem:[%s8664 + $0xb0] sm:$0xf]
    %v8695 = vld [vmem:[%s8664 + $0xb4] sm:$0xff]
    %v8696 = vld [vmem:[%s8664 + $0xbc] sm:$0xf]
    %v8729 = vunpack.c.l.b16 %v8665
    %v8730 = vunpack.c.h.b16 %v8665
    %v8731 = vunpack.c.l.b16 %v8666
    %v8732 = vunpack.c.l.b16 %v8667
    %v8733 = vunpack.c.h.b16 %v8667
    %v8734 = vunpack.c.l.b16 %v8668
    %v8735 = vunpack.c.l.b16 %v8669
    %v8736 = vunpack.c.h.b16 %v8669
    %v8737 = vunpack.c.l.b16 %v8670
    %v8738 = vunpack.c.l.b16 %v8671
    %v8739 = vunpack.c.h.b16 %v8671
    %v8740 = vunpack.c.l.b16 %v8672
    %v8741 = vunpack.c.l.b16 %v8673
    %v8742 = vunpack.c.h.b16 %v8673
    %v8743 = vunpack.c.l.b16 %v8674
    %v8744 = vunpack.c.l.b16 %v8675
    %v8745 = vunpack.c.h.b16 %v8675
    %v8746 = vunpack.c.l.b16 %v8676
    %v8747 = vunpack.c.l.b16 %v8677
    %v8748 = vunpack.c.h.b16 %v8677
    %v8749 = vunpack.c.l.b16 %v8678
    %v8750 = vunpack.c.l.b16 %v8679
    %v8751 = vunpack.c.h.b16 %v8679
    %v8752 = vunpack.c.l.b16 %v8680
    %v8753 = vunpack.c.l.b16 %v8681
    %v8754 = vunpack.c.h.b16 %v8681
    %v8755 = vunpack.c.l.b16 %v8682
    %v8756 = vunpack.c.l.b16 %v8683
    %v8757 = vunpack.c.h.b16 %v8683
    %v8758 = vunpack.c.l.b16 %v8684
    %v8759 = vunpack.c.l.b16 %v8685
    %v8760 = vunpack.c.h.b16 %v8685
    %v8761 = vunpack.c.l.b16 %v8686
    %v8762 = vunpack.c.l.b16 %v8687
    %v8763 = vunpack.c.h.b16 %v8687
    %v8764 = vunpack.c.l.b16 %v8688
    %v8765 = vunpack.c.l.b16 %v8689
    %v8766 = vunpack.c.h.b16 %v8689
    %v8767 = vunpack.c.l.b16 %v8690
    %v8768 = vunpack.c.l.b16 %v8691
    %v8769 = vunpack.c.h.b16 %v8691
    %v8770 = vunpack.c.l.b16 %v8692
    %v8771 = vunpack.c.l.b16 %v8693
    %v8772 = vunpack.c.h.b16 %v8693
    %v8773 = vunpack.c.l.b16 %v8694
    %v8774 = vunpack.c.l.b16 %v8695
    %v8775 = vunpack.c.h.b16 %v8695
    %v8776 = vunpack.c.l.b16 %v8696
    %v8777 = vpack.c.b16 %v8732, %v8729
    %v8778 = vpack.c.b16 %v8733, %v8730
    %v8779 = vpack.c.b16 %v8734, %v8731
    %v8780 = vpack.c.b16 %v8738, %v8735
    %v8781 = vpack.c.b16 %v8739, %v8736
    %v8782 = vpack.c.b16 %v8740, %v8737
    %v8783 = vpack.c.b16 %v8744, %v8741
    %v8784 = vpack.c.b16 %v8745, %v8742
    %v8785 = vpack.c.b16 %v8746, %v8743
    %v8786 = vpack.c.b16 %v8750, %v8747
    %v8787 = vpack.c.b16 %v8751, %v8748
    %v8788 = vpack.c.b16 %v8752, %v8749
    %v8789 = vpack.c.b16 %v8756, %v8753
    %v8790 = vpack.c.b16 %v8757, %v8754
    %v8791 = vpack.c.b16 %v8758, %v8755
    %v8792 = vpack.c.b16 %v8762, %v8759
    %v8793 = vpack.c.b16 %v8763, %v8760
    %v8794 = vpack.c.b16 %v8764, %v8761
    %v8795 = vpack.c.b16 %v8768, %v8765
    %v8796 = vpack.c.b16 %v8769, %v8766
    %v8797 = vpack.c.b16 %v8770, %v8767
    %v8798 = vpack.c.b16 %v8774, %v8771
    %v8799 = vpack.c.b16 %v8775, %v8772
    %v8800 = vpack.c.b16 %v8776, %v8773
    %8825 = vmatpush.bf16.msra.mxu0 %v8798
    %8826 = vmatpush.bf16.msra.mxu0 %v8795
    %8827 = vmatpush.bf16.msra.mxu0 %v8792
    %8828 = vmatpush.bf16.msra.mxu0 %v8789
    %8829 = vmatpush.bf16.msra.mxu0 %v8786
    %8830 = vmatpush.bf16.msra.mxu0 %v8783
    %8831 = vmatpush.bf16.msra.mxu0 %v8780
    %8832 = vmatpush.bf16.msra.mxu0 %v8777
    %8833 = vmatmul.bf16.gmra.mxu0 %v8656
    %v8834 = vpop.f32.mrf.mxu0
    %v8835 = vadd.f32 0.0, %v8834
    %v8836 = vpop.f32.mrf.mxu0
    %v8837 = vadd.f32 0.0, %v8836
    %8838 = vmatmul.bf16.gmra.mxu0 %v8657
    %v8839 = vpop.f32.mrf.mxu0
    %v8840 = vadd.f32 0.0, %v8839
    %v8841 = vpop.f32.mrf.mxu0
    %v8842 = vadd.f32 0.0, %v8841
    %8843 = vmatmul.bf16.gmra.mxu0 %v8658
    %v8844 = vpop.f32.mrf.mxu0
    %v8845 = vadd.f32 0.0, %v8844
    %v8846 = vpop.f32.mrf.mxu0
    %v8847 = vadd.f32 0.0, %v8846
    %8848 = vmatmul.bf16.gmra.mxu0 %v8659
    %v8849 = vpop.f32.mrf.mxu0
    %v8850 = vadd.f32 0.0, %v8849
    %v8851 = vpop.f32.mrf.mxu0
    %v8852 = vadd.f32 0.0, %v8851
    %8853 = vmatmul.bf16.gmra.mxu0 %v8660
    %v8854 = vpop.f32.mrf.mxu0
    %v8855 = vadd.f32 0.0, %v8854
    %v8856 = vpop.f32.mrf.mxu0
    %v8857 = vadd.f32 0.0, %v8856
    %8858 = vmatmul.bf16.gmra.mxu0 %v8661
    %v8859 = vpop.f32.mrf.mxu0
    %v8860 = vadd.f32 0.0, %v8859
    %v8861 = vpop.f32.mrf.mxu0
    %v8862 = vadd.f32 0.0, %v8861
    %8863 = vmatmul.bf16.gmra.mxu0 %v8662
    %v8864 = vpop.f32.mrf.mxu0
    %v8865 = vadd.f32 0.0, %v8864
    %v8866 = vpop.f32.mrf.mxu0
    %v8867 = vadd.f32 0.0, %v8866
    %8868 = vmatmul.bf16.gmra.mxu0 %v8663
    %v8869 = vpop.f32.mrf.mxu0
    %v8870 = vadd.f32 0.0, %v8869
    %v8871 = vpop.f32.mrf.mxu0
    %v8872 = vadd.f32 0.0, %v8871
    %8873 = vdwg.mxu0
    %8874 = vmatpush.bf16.msra.mxu0 %v8799
    %8875 = vmatpush.bf16.msra.mxu0 %v8796
    %8876 = vmatpush.bf16.msra.mxu0 %v8793
    %8877 = vmatpush.bf16.msra.mxu0 %v8790
    %8878 = vmatpush.bf16.msra.mxu0 %v8787
    %8879 = vmatpush.bf16.msra.mxu0 %v8784
    %8880 = vmatpush.bf16.msra.mxu0 %v8781
    %8881 = vmatpush.bf16.msra.mxu0 %v8778
    %8882 = vmatmul.bf16.gmra.mxu0 %v8656
    %v8883 = vpop.f32.mrf.mxu0
    %v8884 = vadd.f32 0.0, %v8883
    %v8885 = vpop.f32.mrf.mxu0
    %v8886 = vadd.f32 0.0, %v8885
    %8887 = vmatmul.bf16.gmra.mxu0 %v8657
    %v8888 = vpop.f32.mrf.mxu0
    %v8889 = vadd.f32 0.0, %v8888
    %v8890 = vpop.f32.mrf.mxu0
    %v8891 = vadd.f32 0.0, %v8890
    %8892 = vmatmul.bf16.gmra.mxu0 %v8658
    %v8893 = vpop.f32.mrf.mxu0
    %v8894 = vadd.f32 0.0, %v8893
    %v8895 = vpop.f32.mrf.mxu0
    %v8896 = vadd.f32 0.0, %v8895
    %8897 = vmatmul.bf16.gmra.mxu0 %v8659
    %v8898 = vpop.f32.mrf.mxu0
    %v8899 = vadd.f32 0.0, %v8898
    %v8900 = vpop.f32.mrf.mxu0
    %v8901 = vadd.f32 0.0, %v8900
    %8902 = vmatmul.bf16.gmra.mxu0 %v8660
    %v8903 = vpop.f32.mrf.mxu0
    %v8904 = vadd.f32 0.0, %v8903
    %v8905 = vpop.f32.mrf.mxu0
    %v8906 = vadd.f32 0.0, %v8905
    %8907 = vmatmul.bf16.gmra.mxu0 %v8661
    %v8908 = vpop.f32.mrf.mxu0
    %v8909 = vadd.f32 0.0, %v8908
    %v8910 = vpop.f32.mrf.mxu0
    %v8911 = vadd.f32 0.0, %v8910
    %8912 = vmatmul.bf16.gmra.mxu0 %v8662
    %v8913 = vpop.f32.mrf.mxu0
    %v8914 = vadd.f32 0.0, %v8913
    %v8915 = vpop.f32.mrf.mxu0
    %v8916 = vadd.f32 0.0, %v8915
    %8917 = vmatmul.bf16.gmra.mxu0 %v8663
    %v8918 = vpop.f32.mrf.mxu0
    %v8919 = vadd.f32 0.0, %v8918
    %v8920 = vpop.f32.mrf.mxu0
    %v8921 = vadd.f32 0.0, %v8920
    %8922 = vdwg.mxu0
    %8923 = vmatpush.bf16.msra.mxu0 %v8800
    %8924 = vmatpush.bf16.msra.mxu0 %v8797
    %8925 = vmatpush.bf16.msra.mxu0 %v8794
    %8926 = vmatpush.bf16.msra.mxu0 %v8791
    %8927 = vmatpush.bf16.msra.mxu0 %v8788
    %8928 = vmatpush.bf16.msra.mxu0 %v8785
    %8929 = vmatpush.bf16.msra.mxu0 %v8782
    %8930 = vmatpush.bf16.msra.mxu0 %v8779
    %8931 = vmatmul.bf16.gmra.mxu0 %v8656
    %v8932 = vpop.f32.mrf.mxu0
    %v8933 = vadd.f32 0.0, %v8932
    %v8934 = vpop.f32.mrf.mxu0
    %v8935 = vadd.f32 0.0, %v8934
    %8936 = vmatmul.bf16.gmra.mxu0 %v8657
    %v8937 = vpop.f32.mrf.mxu0
    %v8938 = vadd.f32 0.0, %v8937
    %v8939 = vpop.f32.mrf.mxu0
    %v8940 = vadd.f32 0.0, %v8939
    %8941 = vmatmul.bf16.gmra.mxu0 %v8658
    %v8942 = vpop.f32.mrf.mxu0
    %v8943 = vadd.f32 0.0, %v8942
    %v8944 = vpop.f32.mrf.mxu0
    %v8945 = vadd.f32 0.0, %v8944
    %8946 = vmatmul.bf16.gmra.mxu0 %v8659
    %v8947 = vpop.f32.mrf.mxu0
    %v8948 = vadd.f32 0.0, %v8947
    %v8949 = vpop.f32.mrf.mxu0
    %v8950 = vadd.f32 0.0, %v8949
    %8951 = vmatmul.bf16.gmra.mxu0 %v8660
    %v8952 = vpop.f32.mrf.mxu0
    %v8953 = vadd.f32 0.0, %v8952
    %v8954 = vpop.f32.mrf.mxu0
    %v8955 = vadd.f32 0.0, %v8954
    %8956 = vmatmul.bf16.gmra.mxu0 %v8661
    %v8957 = vpop.f32.mrf.mxu0
    %v8958 = vadd.f32 0.0, %v8957
    %v8959 = vpop.f32.mrf.mxu0
    %v8960 = vadd.f32 0.0, %v8959
    %8961 = vmatmul.bf16.gmra.mxu0 %v8662
    %v8962 = vpop.f32.mrf.mxu0
    %v8963 = vadd.f32 0.0, %v8962
    %v8964 = vpop.f32.mrf.mxu0
    %v8965 = vadd.f32 0.0, %v8964
    %8966 = vmatmul.bf16.gmra.mxu0 %v8663
    %v8967 = vpop.f32.mrf.mxu0
    %v8968 = vadd.f32 0.0, %v8967
    %v8969 = vpop.f32.mrf.mxu0
    %v8970 = vadd.f32 0.0, %v8969
    %8971 = vdwg.mxu0
    %v8972 = vpack.c.bf16 %v8884, %v8835
    %v8973 = vpack.c.bf16 %v8933, %v8933
    %v8974 = vpack.c.bf16 %v8886, %v8837
    %v8975 = vpack.c.bf16 %v8935, %v8935
    %v8976 = vpack.c.bf16 %v8889, %v8840
    %v8977 = vpack.c.bf16 %v8938, %v8938
    %v8978 = vpack.c.bf16 %v8891, %v8842
    %v8979 = vpack.c.bf16 %v8940, %v8940
    %v8980 = vpack.c.bf16 %v8894, %v8845
    %v8981 = vpack.c.bf16 %v8943, %v8943
    %v8982 = vpack.c.bf16 %v8896, %v8847
    %v8983 = vpack.c.bf16 %v8945, %v8945
    %v8984 = vpack.c.bf16 %v8899, %v8850
    %v8985 = vpack.c.bf16 %v8948, %v8948
    %v8986 = vpack.c.bf16 %v8901, %v8852
    %v8987 = vpack.c.bf16 %v8950, %v8950
    %v8988 = vpack.c.bf16 %v8904, %v8855
    %v8989 = vpack.c.bf16 %v8953, %v8953
    %v8990 = vpack.c.bf16 %v8906, %v8857
    %v8991 = vpack.c.bf16 %v8955, %v8955
    %v8992 = vpack.c.bf16 %v8909, %v8860
    %v8993 = vpack.c.bf16 %v8958, %v8958
    %v8994 = vpack.c.bf16 %v8911, %v8862
    %v8995 = vpack.c.bf16 %v8960, %v8960
    %v8996 = vpack.c.bf16 %v8914, %v8865
    %v8997 = vpack.c.bf16 %v8963, %v8963
    %v8998 = vpack.c.bf16 %v8916, %v8867
    %v8999 = vpack.c.bf16 %v8965, %v8965
    %v9000 = vpack.c.bf16 %v8919, %v8870
    %v9001 = vpack.c.bf16 %v8968, %v8968
    %v9002 = vpack.c.bf16 %v8921, %v8872
    %v9003 = vpack.c.bf16 %v8970, %v8970
    %v9020 = vunpack.c.l.b16 %v8972
    %v9021 = vunpack.c.l.b16 %v8974
    %v9022 = vunpack.c.l.b16 %v8976
    %v9023 = vunpack.c.l.b16 %v8978
    %v9024 = vunpack.c.l.b16 %v8980
    %v9025 = vunpack.c.l.b16 %v8982
    %v9026 = vunpack.c.l.b16 %v8984
    %v9027 = vunpack.c.l.b16 %v8986
    %v9028 = vunpack.c.l.b16 %v8988
    %v9029 = vunpack.c.l.b16 %v8990
    %v9030 = vunpack.c.l.b16 %v8992
    %v9031 = vunpack.c.l.b16 %v8994
    %v9032 = vunpack.c.l.b16 %v8996
    %v9033 = vunpack.c.l.b16 %v8998
    %v9034 = vunpack.c.l.b16 %v9000
    %v9035 = vunpack.c.l.b16 %v9002
    %v9036 = vpack.c.b16 %v9021, %v9020
    %v9037 = vpack.c.b16 %v9023, %v9022
    %v9038 = vpack.c.b16 %v9025, %v9024
    %v9039 = vpack.c.b16 %v9027, %v9026
    %v9040 = vpack.c.b16 %v9029, %v9028
    %v9041 = vpack.c.b16 %v9031, %v9030
    %v9042 = vpack.c.b16 %v9033, %v9032
    %v9043 = vpack.c.b16 %v9035, %v9034
    %v9044 = vunpack.c.h.b16 %v8972
    %v9045 = vunpack.c.h.b16 %v8974
    %v9046 = vunpack.c.h.b16 %v8976
    %v9047 = vunpack.c.h.b16 %v8978
    %v9048 = vunpack.c.h.b16 %v8980
    %v9049 = vunpack.c.h.b16 %v8982
    %v9050 = vunpack.c.h.b16 %v8984
    %v9051 = vunpack.c.h.b16 %v8986
    %v9052 = vunpack.c.h.b16 %v8988
    %v9053 = vunpack.c.h.b16 %v8990
    %v9054 = vunpack.c.h.b16 %v8992
    %v9055 = vunpack.c.h.b16 %v8994
    %v9056 = vunpack.c.h.b16 %v8996
    %v9057 = vunpack.c.h.b16 %v8998
    %v9058 = vunpack.c.h.b16 %v9000
    %v9059 = vunpack.c.h.b16 %v9002
    %v9060 = vpack.c.b16 %v9045, %v9044
    %v9061 = vpack.c.b16 %v9047, %v9046
    %v9062 = vpack.c.b16 %v9049, %v9048
    %v9063 = vpack.c.b16 %v9051, %v9050
    %v9064 = vpack.c.b16 %v9053, %v9052
    %v9065 = vpack.c.b16 %v9055, %v9054
    %v9066 = vpack.c.b16 %v9057, %v9056
    %v9067 = vpack.c.b16 %v9059, %v9058
    %v9069 = vsel %vm925, %v9036, 0
    %v9072 = vsel %vm925, %v9037, 0
    %v9075 = vsel %vm925, %v9038, 0
    %v9078 = vsel %vm925, %v9039, 0
    %v9081 = vsel %vm925, %v9040, 0
    %v9084 = vsel %vm925, %v9041, 0
    %v9087 = vsel %vm925, %v9042, 0
    %v9090 = vsel %vm925, %v9043, 0
    %v9093 = vsel %vm925, %v9060, 0
    %v9096 = vsel %vm925, %v9061, 0
    %v9099 = vsel %vm925, %v9062, 0
    %v9102 = vsel %vm925, %v9063, 0
    %v9105 = vsel %vm925, %v9064, 0
    %v9108 = vsel %vm925, %v9065, 0
    %v9111 = vsel %vm925, %v9066, 0
    %v9114 = vsel %vm925, %v9067, 0
    %9116 = vmatpush.bf16.xpose.msra.mxu0 %v9114
    %9117 = vmatpush.bf16.xpose.msra.mxu0 %v9111
    %9118 = vmatpush.bf16.xpose.msra.mxu0 %v9108
    %9119 = vmatpush.bf16.xpose.msra.mxu0 %v9105
    %9120 = vmatpush.bf16.xpose.msra.mxu0 %v9102
    %9121 = vmatpush.bf16.xpose.msra.mxu0 %v9099
    %9122 = vmatpush.bf16.xpose.msra.mxu0 %v9096
    %9123 = vmatpush.bf16.xpose.msra.mxu0 %v9093
    %9124 = vmatmul.bf16.gmra.mxu0 %v9069
    %v9125 = vpop.f32.mrf.mxu0
    %v9126 = vadd.f32 %v99, %v9125
    %v9127 = vpop.f32.mrf.mxu0
    %v9128 = vadd.f32 %v100, %v9127
    %9129 = vmatmul.bf16.gmra.mxu0 %v9072
    %v9130 = vpop.f32.mrf.mxu0
    %v9131 = vadd.f32 %v101, %v9130
    %v9132 = vpop.f32.mrf.mxu0
    %v9133 = vadd.f32 %v102, %v9132
    %9134 = vmatmul.bf16.gmra.mxu0 %v9075
    %v9135 = vpop.f32.mrf.mxu0
    %v9136 = vadd.f32 %v103, %v9135
    %v9137 = vpop.f32.mrf.mxu0
    %v9138 = vadd.f32 %v104, %v9137
    %9139 = vmatmul.bf16.gmra.mxu0 %v9078
    %v9140 = vpop.f32.mrf.mxu0
    %v9141 = vadd.f32 %v105, %v9140
    %v9142 = vpop.f32.mrf.mxu0
    %v9143 = vadd.f32 %v106, %v9142
    %9144 = vmatmul.bf16.gmra.mxu0 %v9081
    %v9145 = vpop.f32.mrf.mxu0
    %v9146 = vadd.f32 %v107, %v9145
    %v9147 = vpop.f32.mrf.mxu0
    %v9148 = vadd.f32 %v108, %v9147
    %9149 = vmatmul.bf16.gmra.mxu0 %v9084
    %v9150 = vpop.f32.mrf.mxu0
    %v9151 = vadd.f32 %v109, %v9150
    %v9152 = vpop.f32.mrf.mxu0
    %v9153 = vadd.f32 %v110, %v9152
    %9154 = vmatmul.bf16.gmra.mxu0 %v9087
    %v9155 = vpop.f32.mrf.mxu0
    %v9156 = vadd.f32 %v111, %v9155
    %v9157 = vpop.f32.mrf.mxu0
    %v9158 = vadd.f32 %v112, %v9157
    %9159 = vmatmul.bf16.gmra.mxu0 %v9090
    %v9160 = vpop.f32.mrf.mxu0
    %v9161 = vadd.f32 %v113, %v9160
    %v9162 = vpop.f32.mrf.mxu0
    %v9163 = vadd.f32 %v114, %v9162
    %9164 = vdwg.mxu0
    %9165 = vmax.xlane.f32.xlu0 %v9126
    %v9166 = vpop.xlane.xlu0 %9165
    %9167 = vmax.xlane.f32.xlu0 %v9128
    %v9168 = vpop.xlane.xlu0 %9167
    %9169 = vmax.xlane.f32.xlu0 %v9131
    %v9170 = vpop.xlane.xlu0 %9169
    %9171 = vmax.xlane.f32.xlu0 %v9133
    %v9172 = vpop.xlane.xlu0 %9171
    %9173 = vmax.xlane.f32.xlu0 %v9136
    %v9174 = vpop.xlane.xlu0 %9173
    %9175 = vmax.xlane.f32.xlu0 %v9138
    %v9176 = vpop.xlane.xlu0 %9175
    %9177 = vmax.xlane.f32.xlu0 %v9141
    %v9178 = vpop.xlane.xlu0 %9177
    %9179 = vmax.xlane.f32.xlu0 %v9143
    %v9180 = vpop.xlane.xlu0 %9179
    %9181 = vmax.xlane.f32.xlu0 %v9146
    %v9182 = vpop.xlane.xlu0 %9181
    %9183 = vmax.xlane.f32.xlu0 %v9148
    %v9184 = vpop.xlane.xlu0 %9183
    %9185 = vmax.xlane.f32.xlu0 %v9151
    %v9186 = vpop.xlane.xlu0 %9185
    %9187 = vmax.xlane.f32.xlu0 %v9153
    %v9188 = vpop.xlane.xlu0 %9187
    %9189 = vmax.xlane.f32.xlu0 %v9156
    %v9190 = vpop.xlane.xlu0 %9189
    %9191 = vmax.xlane.f32.xlu0 %v9158
    %v9192 = vpop.xlane.xlu0 %9191
    %9193 = vmax.xlane.f32.xlu0 %v9161
    %v9194 = vpop.xlane.xlu0 %9193
    %9195 = vmax.xlane.f32.xlu0 %v9163
    %v9196 = vpop.xlane.xlu0 %9195
    %v9197 = vsub.f32 %v9126, %v9166
    %v9198 = vsub.f32 %v9128, %v9168
    %v9199 = vsub.f32 %v9131, %v9170
    %v9200 = vsub.f32 %v9133, %v9172
    %v9201 = vsub.f32 %v9136, %v9174
    %v9202 = vsub.f32 %v9138, %v9176
    %v9203 = vsub.f32 %v9141, %v9178
    %v9204 = vsub.f32 %v9143, %v9180
    %v9205 = vsub.f32 %v9146, %v9182
    %v9206 = vsub.f32 %v9148, %v9184
    %v9207 = vsub.f32 %v9151, %v9186
    %v9208 = vsub.f32 %v9153, %v9188
    %v9209 = vsub.f32 %v9156, %v9190
    %v9210 = vsub.f32 %v9158, %v9192
    %v9211 = vsub.f32 %v9161, %v9194
    %v9212 = vsub.f32 %v9163, %v9196
    %v9213 = vmul.f32 %v9197, 1.442695
    %v9214 = vpow.pop %v9213
    %v9215 = vmul.f32 %v9198, 1.442695
    %v9216 = vpow.pop %v9215
    %v9217 = vmul.f32 %v9199, 1.442695
    %v9218 = vpow.pop %v9217
    %v9219 = vmul.f32 %v9200, 1.442695
    %v9220 = vpow.pop %v9219
    %v9221 = vmul.f32 %v9201, 1.442695
    %v9222 = vpow.pop %v9221
    %v9223 = vmul.f32 %v9202, 1.442695
    %v9224 = vpow.pop %v9223
    %v9225 = vmul.f32 %v9203, 1.442695
    %v9226 = vpow.pop %v9225
    %v9227 = vmul.f32 %v9204, 1.442695
    %v9228 = vpow.pop %v9227
    %v9229 = vmul.f32 %v9205, 1.442695
    %v9230 = vpow.pop %v9229
    %v9231 = vmul.f32 %v9206, 1.442695
    %v9232 = vpow.pop %v9231
    %v9233 = vmul.f32 %v9207, 1.442695
    %v9234 = vpow.pop %v9233
    %v9235 = vmul.f32 %v9208, 1.442695
    %v9236 = vpow.pop %v9235
    %v9237 = vmul.f32 %v9209, 1.442695
    %v9238 = vpow.pop %v9237
    %v9239 = vmul.f32 %v9210, 1.442695
    %v9240 = vpow.pop %v9239
    %v9241 = vmul.f32 %v9211, 1.442695
    %v9242 = vpow.pop %v9241
    %v9243 = vmul.f32 %v9212, 1.442695
    %v9244 = vpow.pop %v9243
    %9245 = vadd.xlane.f32.xlu0 %v9214
    %v9246 = vpop.xlane.xlu0 %9245
    %9247 = vadd.xlane.f32.xlu0 %v9216
    %v9248 = vpop.xlane.xlu0 %9247
    %9249 = vadd.xlane.f32.xlu0 %v9218
    %v9250 = vpop.xlane.xlu0 %9249
    %9251 = vadd.xlane.f32.xlu0 %v9220
    %v9252 = vpop.xlane.xlu0 %9251
    %9253 = vadd.xlane.f32.xlu0 %v9222
    %v9254 = vpop.xlane.xlu0 %9253
    %9255 = vadd.xlane.f32.xlu0 %v9224
    %v9256 = vpop.xlane.xlu0 %9255
    %9257 = vadd.xlane.f32.xlu0 %v9226
    %v9258 = vpop.xlane.xlu0 %9257
    %9259 = vadd.xlane.f32.xlu0 %v9228
    %v9260 = vpop.xlane.xlu0 %9259
    %9261 = vadd.xlane.f32.xlu0 %v9230
    %v9262 = vpop.xlane.xlu0 %9261
    %9263 = vadd.xlane.f32.xlu0 %v9232
    %v9264 = vpop.xlane.xlu0 %9263
    %9265 = vadd.xlane.f32.xlu0 %v9234
    %v9266 = vpop.xlane.xlu0 %9265
    %9267 = vadd.xlane.f32.xlu0 %v9236
    %v9268 = vpop.xlane.xlu0 %9267
    %9269 = vadd.xlane.f32.xlu0 %v9238
    %v9270 = vpop.xlane.xlu0 %9269
    %9271 = vadd.xlane.f32.xlu0 %v9240
    %v9272 = vpop.xlane.xlu0 %9271
    %9273 = vadd.xlane.f32.xlu0 %v9242
    %v9274 = vpop.xlane.xlu0 %9273
    %9275 = vadd.xlane.f32.xlu0 %v9244
    %v9276 = vpop.xlane.xlu0 %9275
    %v9277 = vrcp.pop %v9246
    %v9278 = vrcp.pop %v9248
    %v9279 = vrcp.pop %v9250
    %v9280 = vrcp.pop %v9252
    %v9281 = vrcp.pop %v9254
    %v9282 = vrcp.pop %v9256
    %v9283 = vrcp.pop %v9258
    %v9284 = vrcp.pop %v9260
    %v9285 = vrcp.pop %v9262
    %v9286 = vrcp.pop %v9264
    %v9287 = vrcp.pop %v9266
    %v9288 = vrcp.pop %v9268
    %v9289 = vrcp.pop %v9270
    %v9290 = vrcp.pop %v9272
    %v9291 = vrcp.pop %v9274
    %v9292 = vrcp.pop %v9276
    %v9293 = vmul.f32 %v9214, %v9277
    %v9294 = vmul.f32 %v9216, %v9278
    %v9295 = vmul.f32 %v9218, %v9279
    %v9296 = vmul.f32 %v9220, %v9280
    %v9297 = vmul.f32 %v9222, %v9281
    %v9298 = vmul.f32 %v9224, %v9282
    %v9299 = vmul.f32 %v9226, %v9283
    %v9300 = vmul.f32 %v9228, %v9284
    %v9301 = vmul.f32 %v9230, %v9285
    %v9302 = vmul.f32 %v9232, %v9286
    %v9303 = vmul.f32 %v9234, %v9287
    %v9304 = vmul.f32 %v9236, %v9288
    %v9305 = vmul.f32 %v9238, %v9289
    %v9306 = vmul.f32 %v9240, %v9290
    %v9307 = vmul.f32 %v9242, %v9291
    %v9308 = vmul.f32 %v9244, %v9292
    %v9309 = vpack.c.bf16 %v9294, %v9293
    %v9310 = vpack.c.bf16 %v9296, %v9295
    %v9311 = vpack.c.bf16 %v9298, %v9297
    %v9312 = vpack.c.bf16 %v9300, %v9299
    %v9313 = vpack.c.bf16 %v9302, %v9301
    %v9314 = vpack.c.bf16 %v9304, %v9303
    %v9315 = vpack.c.bf16 %v9306, %v9305
    %v9316 = vpack.c.bf16 %v9308, %v9307
    %v9333 = vunpack.c.l.b16 %v8973
    %v9334 = vunpack.c.l.b16 %v8975
    %v9335 = vunpack.c.l.b16 %v8977
    %v9336 = vunpack.c.l.b16 %v8979
    %v9337 = vunpack.c.l.b16 %v8981
    %v9338 = vunpack.c.l.b16 %v8983
    %v9339 = vunpack.c.l.b16 %v8985
    %v9340 = vunpack.c.l.b16 %v8987
    %v9341 = vunpack.c.l.b16 %v8989
    %v9342 = vunpack.c.l.b16 %v8991
    %v9343 = vunpack.c.l.b16 %v8993
    %v9344 = vunpack.c.l.b16 %v8995
    %v9345 = vunpack.c.l.b16 %v8997
    %v9346 = vunpack.c.l.b16 %v8999
    %v9347 = vunpack.c.l.b16 %v9001
    %v9348 = vunpack.c.l.b16 %v9003
    %v9349 = vpack.c.b16 %v9334, %v9333
    %v9350 = vpack.c.b16 %v9336, %v9335
    %v9351 = vpack.c.b16 %v9338, %v9337
    %v9352 = vpack.c.b16 %v9340, %v9339
    %v9353 = vpack.c.b16 %v9342, %v9341
    %v9354 = vpack.c.b16 %v9344, %v9343
    %v9355 = vpack.c.b16 %v9346, %v9345
    %v9356 = vpack.c.b16 %v9348, %v9347
    %9365 = vmatpush.bf16.msra.mxu0 %v9356
    %9366 = vmatpush.bf16.msra.mxu0 %v9355
    %9367 = vmatpush.bf16.msra.mxu0 %v9354
    %9368 = vmatpush.bf16.msra.mxu0 %v9353
    %9369 = vmatpush.bf16.msra.mxu0 %v9352
    %9370 = vmatpush.bf16.msra.mxu0 %v9351
    %9371 = vmatpush.bf16.msra.mxu0 %v9350
    %9372 = vmatpush.bf16.msra.mxu0 %v9349
    %9373 = vmatmul.bf16.gmra.mxu0 %v9309
    %v9374 = vpop.f32.mrf.mxu0
    %v9375 = vadd.f32 0.0, %v9374
    %v9376 = vpop.f32.mrf.mxu0
    %v9377 = vadd.f32 0.0, %v9376
    %9378 = vmatmul.bf16.gmra.mxu0 %v9310
    %v9379 = vpop.f32.mrf.mxu0
    %v9380 = vadd.f32 0.0, %v9379
    %v9381 = vpop.f32.mrf.mxu0
    %v9382 = vadd.f32 0.0, %v9381
    %9383 = vmatmul.bf16.gmra.mxu0 %v9311
    %v9384 = vpop.f32.mrf.mxu0
    %v9385 = vadd.f32 0.0, %v9384
    %v9386 = vpop.f32.mrf.mxu0
    %v9387 = vadd.f32 0.0, %v9386
    %9388 = vmatmul.bf16.gmra.mxu0 %v9312
    %v9389 = vpop.f32.mrf.mxu0
    %v9390 = vadd.f32 0.0, %v9389
    %v9391 = vpop.f32.mrf.mxu0
    %v9392 = vadd.f32 0.0, %v9391
    %9393 = vmatmul.bf16.gmra.mxu0 %v9313
    %v9394 = vpop.f32.mrf.mxu0
    %v9395 = vadd.f32 0.0, %v9394
    %v9396 = vpop.f32.mrf.mxu0
    %v9397 = vadd.f32 0.0, %v9396
    %9398 = vmatmul.bf16.gmra.mxu0 %v9314
    %v9399 = vpop.f32.mrf.mxu0
    %v9400 = vadd.f32 0.0, %v9399
    %v9401 = vpop.f32.mrf.mxu0
    %v9402 = vadd.f32 0.0, %v9401
    %9403 = vmatmul.bf16.gmra.mxu0 %v9315
    %v9404 = vpop.f32.mrf.mxu0
    %v9405 = vadd.f32 0.0, %v9404
    %v9406 = vpop.f32.mrf.mxu0
    %v9407 = vadd.f32 0.0, %v9406
    %9408 = vmatmul.bf16.gmra.mxu0 %v9316
    %v9409 = vpop.f32.mrf.mxu0
    %v9410 = vadd.f32 0.0, %v9409
    %v9411 = vpop.f32.mrf.mxu0
    %v9412 = vadd.f32 0.0, %v9411
    %9413 = vdwg.mxu0
    %v9414 = vpack.c.bf16 %v9375, %v9375
    %v9415 = vpack.c.bf16 %v9377, %v9377
    %v9416 = vpack.c.bf16 %v9380, %v9380
    %v9417 = vpack.c.bf16 %v9382, %v9382
    %v9418 = vpack.c.bf16 %v9385, %v9385
    %v9419 = vpack.c.bf16 %v9387, %v9387
    %v9420 = vpack.c.bf16 %v9390, %v9390
    %v9421 = vpack.c.bf16 %v9392, %v9392
    %v9422 = vpack.c.bf16 %v9395, %v9395
    %v9423 = vpack.c.bf16 %v9397, %v9397
    %v9424 = vpack.c.bf16 %v9400, %v9400
    %v9425 = vpack.c.bf16 %v9402, %v9402
    %v9426 = vpack.c.bf16 %v9405, %v9405
    %v9427 = vpack.c.bf16 %v9407, %v9407
    %v9428 = vpack.c.bf16 %v9410, %v9410
    %v9429 = vpack.c.bf16 %v9412, %v9412
    %9430 = vst.msk [vmem:[#allocation2] sm:$0xf] %vm1288, %v9414
    %9431 = vst.msk [vmem:[#allocation2 + $0x4] sm:$0xf] %vm1288, %v9415
    %9432 = vst.msk [vmem:[#allocation2 + $0x8] sm:$0xf] %vm1288, %v9416
    %9433 = vst.msk [vmem:[#allocation2 + $0xc] sm:$0xf] %vm1288, %v9417
    %9434 = vst.msk [vmem:[#allocation2 + $0x10] sm:$0xf] %vm1288, %v9418
    %9435 = vst.msk [vmem:[#allocation2 + $0x14] sm:$0xf] %vm1288, %v9419
    %9436 = vst.msk [vmem:[#allocation2 + $0x18] sm:$0xf] %vm1288, %v9420
    %9437 = vst.msk [vmem:[#allocation2 + $0x1c] sm:$0xf] %vm1288, %v9421
    %9438 = vst.msk [vmem:[#allocation2 + $0x20] sm:$0xf] %vm1288, %v9422
    %9439 = vst.msk [vmem:[#allocation2 + $0x24] sm:$0xf] %vm1288, %v9423
    %9440 = vst.msk [vmem:[#allocation2 + $0x28] sm:$0xf] %vm1288, %v9424
    %9441 = vst.msk [vmem:[#allocation2 + $0x2c] sm:$0xf] %vm1288, %v9425
    %9442 = vst.msk [vmem:[#allocation2 + $0x30] sm:$0xf] %vm1288, %v9426
    %9443 = vst.msk [vmem:[#allocation2 + $0x34] sm:$0xf] %vm1288, %v9427
    %9444 = vst.msk [vmem:[#allocation2 + $0x38] sm:$0xf] %vm1288, %v9428
    %9445 = vst.msk [vmem:[#allocation2 + $0x3c] sm:$0xf] %vm1288, %v9429
    %9446 = vrot.lane.b32.xlu0 %v9036, 96
    %v9447 = vpop.permute.xlu0 %9446
    %9448 = vrot.lane.b32.xlu0 %v9037, 96
    %v9449 = vpop.permute.xlu0 %9448
    %9450 = vrot.lane.b32.xlu0 %v9038, 96
    %v9451 = vpop.permute.xlu0 %9450
    %9452 = vrot.lane.b32.xlu0 %v9039, 96
    %v9453 = vpop.permute.xlu0 %9452
    %9454 = vrot.lane.b32.xlu0 %v9040, 96
    %v9455 = vpop.permute.xlu0 %9454
    %9456 = vrot.lane.b32.xlu0 %v9041, 96
    %v9457 = vpop.permute.xlu0 %9456
    %9458 = vrot.lane.b32.xlu0 %v9042, 96
    %v9459 = vpop.permute.xlu0 %9458
    %9460 = vrot.lane.b32.xlu0 %v9043, 96
    %v9461 = vpop.permute.xlu0 %9460
    %9462 = vrot.lane.b32.xlu0 %v9060, 96
    %v9463 = vpop.permute.xlu0 %9462
    %9464 = vrot.lane.b32.xlu0 %v9061, 96
    %v9465 = vpop.permute.xlu0 %9464
    %9466 = vrot.lane.b32.xlu0 %v9062, 96
    %v9467 = vpop.permute.xlu0 %9466
    %9468 = vrot.lane.b32.xlu0 %v9063, 96
    %v9469 = vpop.permute.xlu0 %9468
    %9470 = vrot.lane.b32.xlu0 %v9064, 96
    %v9471 = vpop.permute.xlu0 %9470
    %9472 = vrot.lane.b32.xlu0 %v9065, 96
    %v9473 = vpop.permute.xlu0 %9472
    %9474 = vrot.lane.b32.xlu0 %v9066, 96
    %v9475 = vpop.permute.xlu0 %9474
    %9476 = vrot.lane.b32.xlu0 %v9067, 96
    %v9477 = vpop.permute.xlu0 %9476
    %v9479 = vsel %vm925, %v9447, 0
    %v9482 = vsel %vm925, %v9449, 0
    %v9485 = vsel %vm925, %v9451, 0
    %v9488 = vsel %vm925, %v9453, 0
    %v9491 = vsel %vm925, %v9455, 0
    %v9494 = vsel %vm925, %v9457, 0
    %v9497 = vsel %vm925, %v9459, 0
    %v9500 = vsel %vm925, %v9461, 0
    %v9503 = vsel %vm925, %v9463, 0
    %v9506 = vsel %vm925, %v9465, 0
    %v9509 = vsel %vm925, %v9467, 0
    %v9512 = vsel %vm925, %v9469, 0
    %v9515 = vsel %vm925, %v9471, 0
    %v9518 = vsel %vm925, %v9473, 0
    %v9521 = vsel %vm925, %v9475, 0
    %v9524 = vsel %vm925, %v9477, 0
    %9526 = vmatpush.bf16.xpose.msra.mxu0 %v9524
    %9527 = vmatpush.bf16.xpose.msra.mxu0 %v9521
    %9528 = vmatpush.bf16.xpose.msra.mxu0 %v9518
    %9529 = vmatpush.bf16.xpose.msra.mxu0 %v9515
    %9530 = vmatpush.bf16.xpose.msra.mxu0 %v9512
    %9531 = vmatpush.bf16.xpose.msra.mxu0 %v9509
    %9532 = vmatpush.bf16.xpose.msra.mxu0 %v9506
    %9533 = vmatpush.bf16.xpose.msra.mxu0 %v9503
    %9534 = vmatmul.bf16.gmra.mxu0 %v9479
    %v9535 = vpop.f32.mrf.mxu0
    %v9536 = vadd.f32 %v99, %v9535
    %v9537 = vpop.f32.mrf.mxu0
    %v9538 = vadd.f32 %v100, %v9537
    %9539 = vmatmul.bf16.gmra.mxu0 %v9482
    %v9540 = vpop.f32.mrf.mxu0
    %v9541 = vadd.f32 %v101, %v9540
    %v9542 = vpop.f32.mrf.mxu0
    %v9543 = vadd.f32 %v102, %v9542
    %9544 = vmatmul.bf16.gmra.mxu0 %v9485
    %v9545 = vpop.f32.mrf.mxu0
    %v9546 = vadd.f32 %v103, %v9545
    %v9547 = vpop.f32.mrf.mxu0
    %v9548 = vadd.f32 %v104, %v9547
    %9549 = vmatmul.bf16.gmra.mxu0 %v9488
    %v9550 = vpop.f32.mrf.mxu0
    %v9551 = vadd.f32 %v105, %v9550
    %v9552 = vpop.f32.mrf.mxu0
    %v9553 = vadd.f32 %v106, %v9552
    %9554 = vmatmul.bf16.gmra.mxu0 %v9491
    %v9555 = vpop.f32.mrf.mxu0
    %v9556 = vadd.f32 %v107, %v9555
    %v9557 = vpop.f32.mrf.mxu0
    %v9558 = vadd.f32 %v108, %v9557
    %9559 = vmatmul.bf16.gmra.mxu0 %v9494
    %v9560 = vpop.f32.mrf.mxu0
    %v9561 = vadd.f32 %v109, %v9560
    %v9562 = vpop.f32.mrf.mxu0
    %v9563 = vadd.f32 %v110, %v9562
    %9564 = vmatmul.bf16.gmra.mxu0 %v9497
    %v9565 = vpop.f32.mrf.mxu0
    %v9566 = vadd.f32 %v111, %v9565
    %v9567 = vpop.f32.mrf.mxu0
    %v9568 = vadd.f32 %v112, %v9567
    %9569 = vmatmul.bf16.gmra.mxu0 %v9500
    %v9570 = vpop.f32.mrf.mxu0
    %v9571 = vadd.f32 %v113, %v9570
    %v9572 = vpop.f32.mrf.mxu0
    %v9573 = vadd.f32 %v114, %v9572
    %9574 = vdwg.mxu0
    %9575 = vmax.xlane.f32.xlu0 %v9536
    %v9576 = vpop.xlane.xlu0 %9575
    %9577 = vmax.xlane.f32.xlu0 %v9538
    %v9578 = vpop.xlane.xlu0 %9577
    %9579 = vmax.xlane.f32.xlu0 %v9541
    %v9580 = vpop.xlane.xlu0 %9579
    %9581 = vmax.xlane.f32.xlu0 %v9543
    %v9582 = vpop.xlane.xlu0 %9581
    %9583 = vmax.xlane.f32.xlu0 %v9546
    %v9584 = vpop.xlane.xlu0 %9583
    %9585 = vmax.xlane.f32.xlu0 %v9548
    %v9586 = vpop.xlane.xlu0 %9585
    %9587 = vmax.xlane.f32.xlu0 %v9551
    %v9588 = vpop.xlane.xlu0 %9587
    %9589 = vmax.xlane.f32.xlu0 %v9553
    %v9590 = vpop.xlane.xlu0 %9589
    %9591 = vmax.xlane.f32.xlu0 %v9556
    %v9592 = vpop.xlane.xlu0 %9591
    %9593 = vmax.xlane.f32.xlu0 %v9558
    %v9594 = vpop.xlane.xlu0 %9593
    %9595 = vmax.xlane.f32.xlu0 %v9561
    %v9596 = vpop.xlane.xlu0 %9595
    %9597 = vmax.xlane.f32.xlu0 %v9563
    %v9598 = vpop.xlane.xlu0 %9597
    %9599 = vmax.xlane.f32.xlu0 %v9566
    %v9600 = vpop.xlane.xlu0 %9599
    %9601 = vmax.xlane.f32.xlu0 %v9568
    %v9602 = vpop.xlane.xlu0 %9601
    %9603 = vmax.xlane.f32.xlu0 %v9571
    %v9604 = vpop.xlane.xlu0 %9603
    %9605 = vmax.xlane.f32.xlu0 %v9573
    %v9606 = vpop.xlane.xlu0 %9605
    %v9607 = vsub.f32 %v9536, %v9576
    %v9608 = vsub.f32 %v9538, %v9578
    %v9609 = vsub.f32 %v9541, %v9580
    %v9610 = vsub.f32 %v9543, %v9582
    %v9611 = vsub.f32 %v9546, %v9584
    %v9612 = vsub.f32 %v9548, %v9586
    %v9613 = vsub.f32 %v9551, %v9588
    %v9614 = vsub.f32 %v9553, %v9590
    %v9615 = vsub.f32 %v9556, %v9592
    %v9616 = vsub.f32 %v9558, %v9594
    %v9617 = vsub.f32 %v9561, %v9596
    %v9618 = vsub.f32 %v9563, %v9598
    %v9619 = vsub.f32 %v9566, %v9600
    %v9620 = vsub.f32 %v9568, %v9602
    %v9621 = vsub.f32 %v9571, %v9604
    %v9622 = vsub.f32 %v9573, %v9606
    %v9623 = vmul.f32 %v9607, 1.442695
    %v9624 = vpow.pop %v9623
    %v9625 = vmul.f32 %v9608, 1.442695
    %v9626 = vpow.pop %v9625
    %v9627 = vmul.f32 %v9609, 1.442695
    %v9628 = vpow.pop %v9627
    %v9629 = vmul.f32 %v9610, 1.442695
    %v9630 = vpow.pop %v9629
    %v9631 = vmul.f32 %v9611, 1.442695
    %v9632 = vpow.pop %v9631
    %v9633 = vmul.f32 %v9612, 1.442695
    %v9634 = vpow.pop %v9633
    %v9635 = vmul.f32 %v9613, 1.442695
    %v9636 = vpow.pop %v9635
    %v9637 = vmul.f32 %v9614, 1.442695
    %v9638 = vpow.pop %v9637
    %v9639 = vmul.f32 %v9615, 1.442695
    %v9640 = vpow.pop %v9639
    %v9641 = vmul.f32 %v9616, 1.442695
    %v9642 = vpow.pop %v9641
    %v9643 = vmul.f32 %v9617, 1.442695
    %v9644 = vpow.pop %v9643
    %v9645 = vmul.f32 %v9618, 1.442695
    %v9646 = vpow.pop %v9645
    %v9647 = vmul.f32 %v9619, 1.442695
    %v9648 = vpow.pop %v9647
    %v9649 = vmul.f32 %v9620, 1.442695
    %v9650 = vpow.pop %v9649
    %v9651 = vmul.f32 %v9621, 1.442695
    %v9652 = vpow.pop %v9651
    %v9653 = vmul.f32 %v9622, 1.442695
    %v9654 = vpow.pop %v9653
    %9655 = vadd.xlane.f32.xlu0 %v9624
    %v9656 = vpop.xlane.xlu0 %9655
    %9657 = vadd.xlane.f32.xlu0 %v9626
    %v9658 = vpop.xlane.xlu0 %9657
    %9659 = vadd.xlane.f32.xlu0 %v9628
    %v9660 = vpop.xlane.xlu0 %9659
    %9661 = vadd.xlane.f32.xlu0 %v9630
    %v9662 = vpop.xlane.xlu0 %9661
    %9663 = vadd.xlane.f32.xlu0 %v9632
    %v9664 = vpop.xlane.xlu0 %9663
    %9665 = vadd.xlane.f32.xlu0 %v9634
    %v9666 = vpop.xlane.xlu0 %9665
    %9667 = vadd.xlane.f32.xlu0 %v9636
    %v9668 = vpop.xlane.xlu0 %9667
    %9669 = vadd.xlane.f32.xlu0 %v9638
    %v9670 = vpop.xlane.xlu0 %9669
    %9671 = vadd.xlane.f32.xlu0 %v9640
    %v9672 = vpop.xlane.xlu0 %9671
    %9673 = vadd.xlane.f32.xlu0 %v9642
    %v9674 = vpop.xlane.xlu0 %9673
    %9675 = vadd.xlane.f32.xlu0 %v9644
    %v9676 = vpop.xlane.xlu0 %9675
    %9677 = vadd.xlane.f32.xlu0 %v9646
    %v9678 = vpop.xlane.xlu0 %9677
    %9679 = vadd.xlane.f32.xlu0 %v9648
    %v9680 = vpop.xlane.xlu0 %9679
    %9681 = vadd.xlane.f32.xlu0 %v9650
    %v9682 = vpop.xlane.xlu0 %9681
    %9683 = vadd.xlane.f32.xlu0 %v9652
    %v9684 = vpop.xlane.xlu0 %9683
    %9685 = vadd.xlane.f32.xlu0 %v9654
    %v9686 = vpop.xlane.xlu0 %9685
    %v9687 = vrcp.pop %v9656
    %v9688 = vrcp.pop %v9658
    %v9689 = vrcp.pop %v9660
    %v9690 = vrcp.pop %v9662
    %v9691 = vrcp.pop %v9664
    %v9692 = vrcp.pop %v9666
    %v9693 = vrcp.pop %v9668
    %v9694 = vrcp.pop %v9670
    %v9695 = vrcp.pop %v9672
    %v9696 = vrcp.pop %v9674
    %v9697 = vrcp.pop %v9676
    %v9698 = vrcp.pop %v9678
    %v9699 = vrcp.pop %v9680
    %v9700 = vrcp.pop %v9682
    %v9701 = vrcp.pop %v9684
    %v9702 = vrcp.pop %v9686
    %v9703 = vmul.f32 %v9624, %v9687
    %v9704 = vmul.f32 %v9626, %v9688
    %v9705 = vmul.f32 %v9628, %v9689
    %v9706 = vmul.f32 %v9630, %v9690
    %v9707 = vmul.f32 %v9632, %v9691
    %v9708 = vmul.f32 %v9634, %v9692
    %v9709 = vmul.f32 %v9636, %v9693
    %v9710 = vmul.f32 %v9638, %v9694
    %v9711 = vmul.f32 %v9640, %v9695
    %v9712 = vmul.f32 %v9642, %v9696
    %v9713 = vmul.f32 %v9644, %v9697
    %v9714 = vmul.f32 %v9646, %v9698
    %v9715 = vmul.f32 %v9648, %v9699
    %v9716 = vmul.f32 %v9650, %v9700
    %v9717 = vmul.f32 %v9652, %v9701
    %v9718 = vmul.f32 %v9654, %v9702
    %v9719 = vpack.c.bf16 %v9704, %v9703
    %v9720 = vpack.c.bf16 %v9706, %v9705
    %v9721 = vpack.c.bf16 %v9708, %v9707
    %v9722 = vpack.c.bf16 %v9710, %v9709
    %v9723 = vpack.c.bf16 %v9712, %v9711
    %v9724 = vpack.c.bf16 %v9714, %v9713
    %v9725 = vpack.c.bf16 %v9716, %v9715
    %v9726 = vpack.c.bf16 %v9718, %v9717
    %9727 = vrot.lane.b32.xlu0 %v9349, 96
    %v9728 = vpop.permute.xlu0 %9727
    %9729 = vrot.lane.b32.xlu0 %v9350, 96
    %v9730 = vpop.permute.xlu0 %9729
    %9731 = vrot.lane.b32.xlu0 %v9351, 96
    %v9732 = vpop.permute.xlu0 %9731
    %9733 = vrot.lane.b32.xlu0 %v9352, 96
    %v9734 = vpop.permute.xlu0 %9733
    %9735 = vrot.lane.b32.xlu0 %v9353, 96
    %v9736 = vpop.permute.xlu0 %9735
    %9737 = vrot.lane.b32.xlu0 %v9354, 96
    %v9738 = vpop.permute.xlu0 %9737
    %9739 = vrot.lane.b32.xlu0 %v9355, 96
    %v9740 = vpop.permute.xlu0 %9739
    %9741 = vrot.lane.b32.xlu0 %v9356, 96
    %v9742 = vpop.permute.xlu0 %9741
    %9751 = vmatpush.bf16.msra.mxu0 %v9742
    %9752 = vmatpush.bf16.msra.mxu0 %v9740
    %9753 = vmatpush.bf16.msra.mxu0 %v9738
    %9754 = vmatpush.bf16.msra.mxu0 %v9736
    %9755 = vmatpush.bf16.msra.mxu0 %v9734
    %9756 = vmatpush.bf16.msra.mxu0 %v9732
    %9757 = vmatpush.bf16.msra.mxu0 %v9730
    %9758 = vmatpush.bf16.msra.mxu0 %v9728
    %9759 = vmatmul.bf16.gmra.mxu0 %v9719
    %v9760 = vpop.f32.mrf.mxu0
    %v9761 = vadd.f32 0.0, %v9760
    %v9762 = vpop.f32.mrf.mxu0
    %v9763 = vadd.f32 0.0, %v9762
    %9764 = vmatmul.bf16.gmra.mxu0 %v9720
    %v9765 = vpop.f32.mrf.mxu0
    %v9766 = vadd.f32 0.0, %v9765
    %v9767 = vpop.f32.mrf.mxu0
    %v9768 = vadd.f32 0.0, %v9767
    %9769 = vmatmul.bf16.gmra.mxu0 %v9721
    %v9770 = vpop.f32.mrf.mxu0
    %v9771 = vadd.f32 0.0, %v9770
    %v9772 = vpop.f32.mrf.mxu0
    %v9773 = vadd.f32 0.0, %v9772
    %9774 = vmatmul.bf16.gmra.mxu0 %v9722
    %v9775 = vpop.f32.mrf.mxu0
    %v9776 = vadd.f32 0.0, %v9775
    %v9777 = vpop.f32.mrf.mxu0
    %v9778 = vadd.f32 0.0, %v9777
    %9779 = vmatmul.bf16.gmra.mxu0 %v9723
    %v9780 = vpop.f32.mrf.mxu0
    %v9781 = vadd.f32 0.0, %v9780
    %v9782 = vpop.f32.mrf.mxu0
    %v9783 = vadd.f32 0.0, %v9782
    %9784 = vmatmul.bf16.gmra.mxu0 %v9724
    %v9785 = vpop.f32.mrf.mxu0
    %v9786 = vadd.f32 0.0, %v9785
    %v9787 = vpop.f32.mrf.mxu0
    %v9788 = vadd.f32 0.0, %v9787
    %9789 = vmatmul.bf16.gmra.mxu0 %v9725
    %v9790 = vpop.f32.mrf.mxu0
    %v9791 = vadd.f32 0.0, %v9790
    %v9792 = vpop.f32.mrf.mxu0
    %v9793 = vadd.f32 0.0, %v9792
    %9794 = vmatmul.bf16.gmra.mxu0 %v9726
    %v9795 = vpop.f32.mrf.mxu0
    %v9796 = vadd.f32 0.0, %v9795
    %v9797 = vpop.f32.mrf.mxu0
    %v9798 = vadd.f32 0.0, %v9797
    %9799 = vdwg.mxu0
    %v9800 = vpack.c.bf16 %v9761, %v9761
    %v9801 = vpack.c.bf16 %v9763, %v9763
    %v9802 = vpack.c.bf16 %v9766, %v9766
    %v9803 = vpack.c.bf16 %v9768, %v9768
    %v9804 = vpack.c.bf16 %v9771, %v9771
    %v9805 = vpack.c.bf16 %v9773, %v9773
    %v9806 = vpack.c.bf16 %v9776, %v9776
    %v9807 = vpack.c.bf16 %v9778, %v9778
    %v9808 = vpack.c.bf16 %v9781, %v9781
    %v9809 = vpack.c.bf16 %v9783, %v9783
    %v9810 = vpack.c.bf16 %v9786, %v9786
    %v9811 = vpack.c.bf16 %v9788, %v9788
    %v9812 = vpack.c.bf16 %v9791, %v9791
    %v9813 = vpack.c.bf16 %v9793, %v9793
    %v9814 = vpack.c.bf16 %v9796, %v9796
    %v9815 = vpack.c.bf16 %v9798, %v9798
    %9832 = vrot.lane.b32.xlu0 %v9800, 32
    %v9833 = vpop.permute.xlu0 %9832
    %9834 = vrot.lane.b32.xlu0 %v9801, 32
    %v9835 = vpop.permute.xlu0 %9834
    %9836 = vrot.lane.b32.xlu0 %v9802, 32
    %v9837 = vpop.permute.xlu0 %9836
    %9838 = vrot.lane.b32.xlu0 %v9803, 32
    %v9839 = vpop.permute.xlu0 %9838
    %9840 = vrot.lane.b32.xlu0 %v9804, 32
    %v9841 = vpop.permute.xlu0 %9840
    %9842 = vrot.lane.b32.xlu0 %v9805, 32
    %v9843 = vpop.permute.xlu0 %9842
    %9844 = vrot.lane.b32.xlu0 %v9806, 32
    %v9845 = vpop.permute.xlu0 %9844
    %9846 = vrot.lane.b32.xlu0 %v9807, 32
    %v9847 = vpop.permute.xlu0 %9846
    %9848 = vrot.lane.b32.xlu0 %v9808, 32
    %v9849 = vpop.permute.xlu0 %9848
    %9850 = vrot.lane.b32.xlu0 %v9809, 32
    %v9851 = vpop.permute.xlu0 %9850
    %9852 = vrot.lane.b32.xlu0 %v9810, 32
    %v9853 = vpop.permute.xlu0 %9852
    %9854 = vrot.lane.b32.xlu0 %v9811, 32
    %v9855 = vpop.permute.xlu0 %9854
    %9856 = vrot.lane.b32.xlu0 %v9812, 32
    %v9857 = vpop.permute.xlu0 %9856
    %9858 = vrot.lane.b32.xlu0 %v9813, 32
    %v9859 = vpop.permute.xlu0 %9858
    %9860 = vrot.lane.b32.xlu0 %v9814, 32
    %v9861 = vpop.permute.xlu0 %9860
    %9862 = vrot.lane.b32.xlu0 %v9815, 32
    %v9863 = vpop.permute.xlu0 %9862
    %9880 = vst.msk [vmem:[#allocation2] sm:$0xf] %vm1739, %v9833
    %9881 = vst.msk [vmem:[#allocation2 + $0x4] sm:$0xf] %vm1739, %v9835
    %9882 = vst.msk [vmem:[#allocation2 + $0x8] sm:$0xf] %vm1739, %v9837
    %9883 = vst.msk [vmem:[#allocation2 + $0xc] sm:$0xf] %vm1739, %v9839
    %9884 = vst.msk [vmem:[#allocation2 + $0x10] sm:$0xf] %vm1739, %v9841
    %9885 = vst.msk [vmem:[#allocation2 + $0x14] sm:$0xf] %vm1739, %v9843
    %9886 = vst.msk [vmem:[#allocation2 + $0x18] sm:$0xf] %vm1739, %v9845
    %9887 = vst.msk [vmem:[#allocation2 + $0x1c] sm:$0xf] %vm1739, %v9847
    %9888 = vst.msk [vmem:[#allocation2 + $0x20] sm:$0xf] %vm1739, %v9849
    %9889 = vst.msk [vmem:[#allocation2 + $0x24] sm:$0xf] %vm1739, %v9851
    %9890 = vst.msk [vmem:[#allocation2 + $0x28] sm:$0xf] %vm1739, %v9853
    %9891 = vst.msk [vmem:[#allocation2 + $0x2c] sm:$0xf] %vm1739, %v9855
    %9892 = vst.msk [vmem:[#allocation2 + $0x30] sm:$0xf] %vm1739, %v9857
    %9893 = vst.msk [vmem:[#allocation2 + $0x34] sm:$0xf] %vm1739, %v9859
    %9894 = vst.msk [vmem:[#allocation2 + $0x38] sm:$0xf] %vm1739, %v9861
    %9895 = vst.msk [vmem:[#allocation2 + $0x3c] sm:$0xf] %vm1739, %v9863
    %9896 = vrot.lane.b32.xlu0 %v9036, 64
    %v9897 = vpop.permute.xlu0 %9896
    %9898 = vrot.lane.b32.xlu0 %v9037, 64
    %v9899 = vpop.permute.xlu0 %9898
    %9900 = vrot.lane.b32.xlu0 %v9038, 64
    %v9901 = vpop.permute.xlu0 %9900
    %9902 = vrot.lane.b32.xlu0 %v9039, 64
    %v9903 = vpop.permute.xlu0 %9902
    %9904 = vrot.lane.b32.xlu0 %v9040, 64
    %v9905 = vpop.permute.xlu0 %9904
    %9906 = vrot.lane.b32.xlu0 %v9041, 64
    %v9907 = vpop.permute.xlu0 %9906
    %9908 = vrot.lane.b32.xlu0 %v9042, 64
    %v9909 = vpop.permute.xlu0 %9908
    %9910 = vrot.lane.b32.xlu0 %v9043, 64
    %v9911 = vpop.permute.xlu0 %9910
    %9912 = vrot.lane.b32.xlu0 %v9060, 64
    %v9913 = vpop.permute.xlu0 %9912
    %9914 = vrot.lane.b32.xlu0 %v9061, 64
    %v9915 = vpop.permute.xlu0 %9914
    %9916 = vrot.lane.b32.xlu0 %v9062, 64
    %v9917 = vpop.permute.xlu0 %9916
    %9918 = vrot.lane.b32.xlu0 %v9063, 64
    %v9919 = vpop.permute.xlu0 %9918
    %9920 = vrot.lane.b32.xlu0 %v9064, 64
    %v9921 = vpop.permute.xlu0 %9920
    %9922 = vrot.lane.b32.xlu0 %v9065, 64
    %v9923 = vpop.permute.xlu0 %9922
    %9924 = vrot.lane.b32.xlu0 %v9066, 64
    %v9925 = vpop.permute.xlu0 %9924
    %9926 = vrot.lane.b32.xlu0 %v9067, 64
    %v9927 = vpop.permute.xlu0 %9926
    %v9929 = vsel %vm925, %v9897, 0
    %v9932 = vsel %vm925, %v9899, 0
    %v9935 = vsel %vm925, %v9901, 0
    %v9938 = vsel %vm925, %v9903, 0
    %v9941 = vsel %vm925, %v9905, 0
    %v9944 = vsel %vm925, %v9907, 0
    %v9947 = vsel %vm925, %v9909, 0
    %v9950 = vsel %vm925, %v9911, 0
    %v9953 = vsel %vm925, %v9913, 0
    %v9956 = vsel %vm925, %v9915, 0
    %v9959 = vsel %vm925, %v9917, 0
    %v9962 = vsel %vm925, %v9919, 0
    %v9965 = vsel %vm925, %v9921, 0
    %v9968 = vsel %vm925, %v9923, 0
    %v9971 = vsel %vm925, %v9925, 0
    %v9974 = vsel %vm925, %v9927, 0
    %9976 = vmatpush.bf16.xpose.msra.mxu0 %v9974
    %9977 = vmatpush.bf16.xpose.msra.mxu0 %v9971
    %9978 = vmatpush.bf16.xpose.msra.mxu0 %v9968
    %9979 = vmatpush.bf16.xpose.msra.mxu0 %v9965
    %9980 = vmatpush.bf16.xpose.msra.mxu0 %v9962
    %9981 = vmatpush.bf16.xpose.msra.mxu0 %v9959
    %9982 = vmatpush.bf16.xpose.msra.mxu0 %v9956
    %9983 = vmatpush.bf16.xpose.msra.mxu0 %v9953
    %9984 = vmatmul.bf16.gmra.mxu0 %v9929
    %v9985 = vpop.f32.mrf.mxu0
    %v9986 = vadd.f32 %v99, %v9985
    %v9987 = vpop.f32.mrf.mxu0
    %v9988 = vadd.f32 %v100, %v9987
    %9989 = vmatmul.bf16.gmra.mxu0 %v9932
    %v9990 = vpop.f32.mrf.mxu0
    %v9991 = vadd.f32 %v101, %v9990
    %v9992 = vpop.f32.mrf.mxu0
    %v9993 = vadd.f32 %v102, %v9992
    %9994 = vmatmul.bf16.gmra.mxu0 %v9935
    %v9995 = vpop.f32.mrf.mxu0
    %v9996 = vadd.f32 %v103, %v9995
    %v9997 = vpop.f32.mrf.mxu0
    %v9998 = vadd.f32 %v104, %v9997
    %9999 = vmatmul.bf16.gmra.mxu0 %v9938
    %v10000 = vpop.f32.mrf.mxu0
    %v10001 = vadd.f32 %v105, %v10000
    %v10002 = vpop.f32.mrf.mxu0
    %v10003 = vadd.f32 %v106, %v10002
    %10004 = vmatmul.bf16.gmra.mxu0 %v9941
    %v10005 = vpop.f32.mrf.mxu0
    %v10006 = vadd.f32 %v107, %v10005
    %v10007 = vpop.f32.mrf.mxu0
    %v10008 = vadd.f32 %v108, %v10007
    %10009 = vmatmul.bf16.gmra.mxu0 %v9944
    %v10010 = vpop.f32.mrf.mxu0
    %v10011 = vadd.f32 %v109, %v10010
    %v10012 = vpop.f32.mrf.mxu0
    %v10013 = vadd.f32 %v110, %v10012
    %10014 = vmatmul.bf16.gmra.mxu0 %v9947
    %v10015 = vpop.f32.mrf.mxu0
    %v10016 = vadd.f32 %v111, %v10015
    %v10017 = vpop.f32.mrf.mxu0
    %v10018 = vadd.f32 %v112, %v10017
    %10019 = vmatmul.bf16.gmra.mxu0 %v9950
    %v10020 = vpop.f32.mrf.mxu0
    %v10021 = vadd.f32 %v113, %v10020
    %v10022 = vpop.f32.mrf.mxu0
    %v10023 = vadd.f32 %v114, %v10022
    %10024 = vdwg.mxu0
    %10025 = vmax.xlane.f32.xlu0 %v9986
    %v10026 = vpop.xlane.xlu0 %10025
    %10027 = vmax.xlane.f32.xlu0 %v9988
    %v10028 = vpop.xlane.xlu0 %10027
    %10029 = vmax.xlane.f32.xlu0 %v9991
    %v10030 = vpop.xlane.xlu0 %10029
    %10031 = vmax.xlane.f32.xlu0 %v9993
    %v10032 = vpop.xlane.xlu0 %10031
    %10033 = vmax.xlane.f32.xlu0 %v9996
    %v10034 = vpop.xlane.xlu0 %10033
    %10035 = vmax.xlane.f32.xlu0 %v9998
    %v10036 = vpop.xlane.xlu0 %10035
    %10037 = vmax.xlane.f32.xlu0 %v10001
    %v10038 = vpop.xlane.xlu0 %10037
    %10039 = vmax.xlane.f32.xlu0 %v10003
    %v10040 = vpop.xlane.xlu0 %10039
    %10041 = vmax.xlane.f32.xlu0 %v10006
    %v10042 = vpop.xlane.xlu0 %10041
    %10043 = vmax.xlane.f32.xlu0 %v10008
    %v10044 = vpop.xlane.xlu0 %10043
    %10045 = vmax.xlane.f32.xlu0 %v10011
    %v10046 = vpop.xlane.xlu0 %10045
    %10047 = vmax.xlane.f32.xlu0 %v10013
    %v10048 = vpop.xlane.xlu0 %10047
    %10049 = vmax.xlane.f32.xlu0 %v10016
    %v10050 = vpop.xlane.xlu0 %10049
    %10051 = vmax.xlane.f32.xlu0 %v10018
    %v10052 = vpop.xlane.xlu0 %10051
    %10053 = vmax.xlane.f32.xlu0 %v10021
    %v10054 = vpop.xlane.xlu0 %10053
    %10055 = vmax.xlane.f32.xlu0 %v10023
    %v10056 = vpop.xlane.xlu0 %10055
    %v10057 = vsub.f32 %v9986, %v10026
    %v10058 = vsub.f32 %v9988, %v10028
    %v10059 = vsub.f32 %v9991, %v10030
    %v10060 = vsub.f32 %v9993, %v10032
    %v10061 = vsub.f32 %v9996, %v10034
    %v10062 = vsub.f32 %v9998, %v10036
    %v10063 = vsub.f32 %v10001, %v10038
    %v10064 = vsub.f32 %v10003, %v10040
    %v10065 = vsub.f32 %v10006, %v10042
    %v10066 = vsub.f32 %v10008, %v10044
    %v10067 = vsub.f32 %v10011, %v10046
    %v10068 = vsub.f32 %v10013, %v10048
    %v10069 = vsub.f32 %v10016, %v10050
    %v10070 = vsub.f32 %v10018, %v10052
    %v10071 = vsub.f32 %v10021, %v10054
    %v10072 = vsub.f32 %v10023, %v10056
    %v10073 = vmul.f32 %v10057, 1.442695
    %v10074 = vpow.pop %v10073
    %v10075 = vmul.f32 %v10058, 1.442695
    %v10076 = vpow.pop %v10075
    %v10077 = vmul.f32 %v10059, 1.442695
    %v10078 = vpow.pop %v10077
    %v10079 = vmul.f32 %v10060, 1.442695
    %v10080 = vpow.pop %v10079
    %v10081 = vmul.f32 %v10061, 1.442695
    %v10082 = vpow.pop %v10081
    %v10083 = vmul.f32 %v10062, 1.442695
    %v10084 = vpow.pop %v10083
    %v10085 = vmul.f32 %v10063, 1.442695
    %v10086 = vpow.pop %v10085
    %v10087 = vmul.f32 %v10064, 1.442695
    %v10088 = vpow.pop %v10087
    %v10089 = vmul.f32 %v10065, 1.442695
    %v10090 = vpow.pop %v10089
    %v10091 = vmul.f32 %v10066, 1.442695
    %v10092 = vpow.pop %v10091
    %v10093 = vmul.f32 %v10067, 1.442695
    %v10094 = vpow.pop %v10093
    %v10095 = vmul.f32 %v10068, 1.442695
    %v10096 = vpow.pop %v10095
    %v10097 = vmul.f32 %v10069, 1.442695
    %v10098 = vpow.pop %v10097
    %v10099 = vmul.f32 %v10070, 1.442695
    %v10100 = vpow.pop %v10099
    %v10101 = vmul.f32 %v10071, 1.442695
    %v10102 = vpow.pop %v10101
    %v10103 = vmul.f32 %v10072, 1.442695
    %v10104 = vpow.pop %v10103
    %10105 = vadd.xlane.f32.xlu0 %v10074
    %v10106 = vpop.xlane.xlu0 %10105
    %10107 = vadd.xlane.f32.xlu0 %v10076
    %v10108 = vpop.xlane.xlu0 %10107
    %10109 = vadd.xlane.f32.xlu0 %v10078
    %v10110 = vpop.xlane.xlu0 %10109
    %10111 = vadd.xlane.f32.xlu0 %v10080
    %v10112 = vpop.xlane.xlu0 %10111
    %10113 = vadd.xlane.f32.xlu0 %v10082
    %v10114 = vpop.xlane.xlu0 %10113
    %10115 = vadd.xlane.f32.xlu0 %v10084
    %v10116 = vpop.xlane.xlu0 %10115
    %10117 = vadd.xlane.f32.xlu0 %v10086
    %v10118 = vpop.xlane.xlu0 %10117
    %10119 = vadd.xlane.f32.xlu0 %v10088
    %v10120 = vpop.xlane.xlu0 %10119
    %10121 = vadd.xlane.f32.xlu0 %v10090
    %v10122 = vpop.xlane.xlu0 %10121
    %10123 = vadd.xlane.f32.xlu0 %v10092
    %v10124 = vpop.xlane.xlu0 %10123
    %10125 = vadd.xlane.f32.xlu0 %v10094
    %v10126 = vpop.xlane.xlu0 %10125
    %10127 = vadd.xlane.f32.xlu0 %v10096
    %v10128 = vpop.xlane.xlu0 %10127
    %10129 = vadd.xlane.f32.xlu0 %v10098
    %v10130 = vpop.xlane.xlu0 %10129
    %10131 = vadd.xlane.f32.xlu0 %v10100
    %v10132 = vpop.xlane.xlu0 %10131
    %10133 = vadd.xlane.f32.xlu0 %v10102
    %v10134 = vpop.xlane.xlu0 %10133
    %10135 = vadd.xlane.f32.xlu0 %v10104
    %v10136 = vpop.xlane.xlu0 %10135
    %v10137 = vrcp.pop %v10106
    %v10138 = vrcp.pop %v10108
    %v10139 = vrcp.pop %v10110
    %v10140 = vrcp.pop %v10112
    %v10141 = vrcp.pop %v10114
    %v10142 = vrcp.pop %v10116
    %v10143 = vrcp.pop %v10118
    %v10144 = vrcp.pop %v10120
    %v10145 = vrcp.pop %v10122
    %v10146 = vrcp.pop %v10124
    %v10147 = vrcp.pop %v10126
    %v10148 = vrcp.pop %v10128
    %v10149 = vrcp.pop %v10130
    %v10150 = vrcp.pop %v10132
    %v10151 = vrcp.pop %v10134
    %v10152 = vrcp.pop %v10136
    %v10153 = vmul.f32 %v10074, %v10137
    %v10154 = vmul.f32 %v10076, %v10138
    %v10155 = vmul.f32 %v10078, %v10139
    %v10156 = vmul.f32 %v10080, %v10140
    %v10157 = vmul.f32 %v10082, %v10141
    %v10158 = vmul.f32 %v10084, %v10142
    %v10159 = vmul.f32 %v10086, %v10143
    %v10160 = vmul.f32 %v10088, %v10144
    %v10161 = vmul.f32 %v10090, %v10145
    %v10162 = vmul.f32 %v10092, %v10146
    %v10163 = vmul.f32 %v10094, %v10147
    %v10164 = vmul.f32 %v10096, %v10148
    %v10165 = vmul.f32 %v10098, %v10149
    %v10166 = vmul.f32 %v10100, %v10150
    %v10167 = vmul.f32 %v10102, %v10151
    %v10168 = vmul.f32 %v10104, %v10152
    %v10169 = vpack.c.bf16 %v10154, %v10153
    %v10170 = vpack.c.bf16 %v10156, %v10155
    %v10171 = vpack.c.bf16 %v10158, %v10157
    %v10172 = vpack.c.bf16 %v10160, %v10159
    %v10173 = vpack.c.bf16 %v10162, %v10161
    %v10174 = vpack.c.bf16 %v10164, %v10163
    %v10175 = vpack.c.bf16 %v10166, %v10165
    %v10176 = vpack.c.bf16 %v10168, %v10167
    %10177 = vrot.lane.b32.xlu0 %v9349, 64
    %v10178 = vpop.permute.xlu0 %10177
    %10179 = vrot.lane.b32.xlu0 %v9350, 64
    %v10180 = vpop.permute.xlu0 %10179
    %10181 = vrot.lane.b32.xlu0 %v9351, 64
    %v10182 = vpop.permute.xlu0 %10181
    %10183 = vrot.lane.b32.xlu0 %v9352, 64
    %v10184 = vpop.permute.xlu0 %10183
    %10185 = vrot.lane.b32.xlu0 %v9353, 64
    %v10186 = vpop.permute.xlu0 %10185
    %10187 = vrot.lane.b32.xlu0 %v9354, 64
    %v10188 = vpop.permute.xlu0 %10187
    %10189 = vrot.lane.b32.xlu0 %v9355, 64
    %v10190 = vpop.permute.xlu0 %10189
    %10191 = vrot.lane.b32.xlu0 %v9356, 64
    %v10192 = vpop.permute.xlu0 %10191
    %10201 = vmatpush.bf16.msra.mxu0 %v10192
    %10202 = vmatpush.bf16.msra.mxu0 %v10190
    %10203 = vmatpush.bf16.msra.mxu0 %v10188
    %10204 = vmatpush.bf16.msra.mxu0 %v10186
    %10205 = vmatpush.bf16.msra.mxu0 %v10184
    %10206 = vmatpush.bf16.msra.mxu0 %v10182
    %10207 = vmatpush.bf16.msra.mxu0 %v10180
    %10208 = vmatpush.bf16.msra.mxu0 %v10178
    %10209 = vmatmul.bf16.gmra.mxu0 %v10169
    %v10210 = vpop.f32.mrf.mxu0
    %v10211 = vadd.f32 0.0, %v10210
    %v10212 = vpop.f32.mrf.mxu0
    %v10213 = vadd.f32 0.0, %v10212
    %10214 = vmatmul.bf16.gmra.mxu0 %v10170
    %v10215 = vpop.f32.mrf.mxu0
    %v10216 = vadd.f32 0.0, %v10215
    %v10217 = vpop.f32.mrf.mxu0
    %v10218 = vadd.f32 0.0, %v10217
    %10219 = vmatmul.bf16.gmra.mxu0 %v10171
    %v10220 = vpop.f32.mrf.mxu0
    %v10221 = vadd.f32 0.0, %v10220
    %v10222 = vpop.f32.mrf.mxu0
    %v10223 = vadd.f32 0.0, %v10222
    %10224 = vmatmul.bf16.gmra.mxu0 %v10172
    %v10225 = vpop.f32.mrf.mxu0
    %v10226 = vadd.f32 0.0, %v10225
    %v10227 = vpop.f32.mrf.mxu0
    %v10228 = vadd.f32 0.0, %v10227
    %10229 = vmatmul.bf16.gmra.mxu0 %v10173
    %v10230 = vpop.f32.mrf.mxu0
    %v10231 = vadd.f32 0.0, %v10230
    %v10232 = vpop.f32.mrf.mxu0
    %v10233 = vadd.f32 0.0, %v10232
    %10234 = vmatmul.bf16.gmra.mxu0 %v10174
    %v10235 = vpop.f32.mrf.mxu0
    %v10236 = vadd.f32 0.0, %v10235
    %v10237 = vpop.f32.mrf.mxu0
    %v10238 = vadd.f32 0.0, %v10237
    %10239 = vmatmul.bf16.gmra.mxu0 %v10175
    %v10240 = vpop.f32.mrf.mxu0
    %v10241 = vadd.f32 0.0, %v10240
    %v10242 = vpop.f32.mrf.mxu0
    %v10243 = vadd.f32 0.0, %v10242
    %10244 = vmatmul.bf16.gmra.mxu0 %v10176
    %v10245 = vpop.f32.mrf.mxu0
    %v10246 = vadd.f32 0.0, %v10245
    %v10247 = vpop.f32.mrf.mxu0
    %v10248 = vadd.f32 0.0, %v10247
    %10249 = vdwg.mxu0
    %v10250 = vpack.c.bf16 %v10211, %v10211
    %v10251 = vpack.c.bf16 %v10213, %v10213
    %v10252 = vpack.c.bf16 %v10216, %v10216
    %v10253 = vpack.c.bf16 %v10218, %v10218
    %v10254 = vpack.c.bf16 %v10221, %v10221
    %v10255 = vpack.c.bf16 %v10223, %v10223
    %v10256 = vpack.c.bf16 %v10226, %v10226
    %v10257 = vpack.c.bf16 %v10228, %v10228
    %v10258 = vpack.c.bf16 %v10231, %v10231
    %v10259 = vpack.c.bf16 %v10233, %v10233
    %v10260 = vpack.c.bf16 %v10236, %v10236
    %v10261 = vpack.c.bf16 %v10238, %v10238
    %v10262 = vpack.c.bf16 %v10241, %v10241
    %v10263 = vpack.c.bf16 %v10243, %v10243
    %v10264 = vpack.c.bf16 %v10246, %v10246
    %v10265 = vpack.c.bf16 %v10248, %v10248
    %10282 = vrot.lane.b32.xlu0 %v10250, 64
    %v10283 = vpop.permute.xlu0 %10282
    %10284 = vrot.lane.b32.xlu0 %v10251, 64
    %v10285 = vpop.permute.xlu0 %10284
    %10286 = vrot.lane.b32.xlu0 %v10252, 64
    %v10287 = vpop.permute.xlu0 %10286
    %10288 = vrot.lane.b32.xlu0 %v10253, 64
    %v10289 = vpop.permute.xlu0 %10288
    %10290 = vrot.lane.b32.xlu0 %v10254, 64
    %v10291 = vpop.permute.xlu0 %10290
    %10292 = vrot.lane.b32.xlu0 %v10255, 64
    %v10293 = vpop.permute.xlu0 %10292
    %10294 = vrot.lane.b32.xlu0 %v10256, 64
    %v10295 = vpop.permute.xlu0 %10294
    %10296 = vrot.lane.b32.xlu0 %v10257, 64
    %v10297 = vpop.permute.xlu0 %10296
    %10298 = vrot.lane.b32.xlu0 %v10258, 64
    %v10299 = vpop.permute.xlu0 %10298
    %10300 = vrot.lane.b32.xlu0 %v10259, 64
    %v10301 = vpop.permute.xlu0 %10300
    %10302 = vrot.lane.b32.xlu0 %v10260, 64
    %v10303 = vpop.permute.xlu0 %10302
    %10304 = vrot.lane.b32.xlu0 %v10261, 64
    %v10305 = vpop.permute.xlu0 %10304
    %10306 = vrot.lane.b32.xlu0 %v10262, 64
    %v10307 = vpop.permute.xlu0 %10306
    %10308 = vrot.lane.b32.xlu0 %v10263, 64
    %v10309 = vpop.permute.xlu0 %10308
    %10310 = vrot.lane.b32.xlu0 %v10264, 64
    %v10311 = vpop.permute.xlu0 %10310
    %10312 = vrot.lane.b32.xlu0 %v10265, 64
    %v10313 = vpop.permute.xlu0 %10312
    %10330 = vst.msk [vmem:[#allocation2] sm:$0xf] %vm2190, %v10283
    %10331 = vst.msk [vmem:[#allocation2 + $0x4] sm:$0xf] %vm2190, %v10285
    %10332 = vst.msk [vmem:[#allocation2 + $0x8] sm:$0xf] %vm2190, %v10287
    %10333 = vst.msk [vmem:[#allocation2 + $0xc] sm:$0xf] %vm2190, %v10289
    %10334 = vst.msk [vmem:[#allocation2 + $0x10] sm:$0xf] %vm2190, %v10291
    %10335 = vst.msk [vmem:[#allocation2 + $0x14] sm:$0xf] %vm2190, %v10293
    %10336 = vst.msk [vmem:[#allocation2 + $0x18] sm:$0xf] %vm2190, %v10295
    %10337 = vst.msk [vmem:[#allocation2 + $0x1c] sm:$0xf] %vm2190, %v10297
    %10338 = vst.msk [vmem:[#allocation2 + $0x20] sm:$0xf] %vm2190, %v10299
    %10339 = vst.msk [vmem:[#allocation2 + $0x24] sm:$0xf] %vm2190, %v10301
    %10340 = vst.msk [vmem:[#allocation2 + $0x28] sm:$0xf] %vm2190, %v10303
    %10341 = vst.msk [vmem:[#allocation2 + $0x2c] sm:$0xf] %vm2190, %v10305
    %10342 = vst.msk [vmem:[#allocation2 + $0x30] sm:$0xf] %vm2190, %v10307
    %10343 = vst.msk [vmem:[#allocation2 + $0x34] sm:$0xf] %vm2190, %v10309
    %10344 = vst.msk [vmem:[#allocation2 + $0x38] sm:$0xf] %vm2190, %v10311
    %10345 = vst.msk [vmem:[#allocation2 + $0x3c] sm:$0xf] %vm2190, %v10313
    %10346 = vrot.lane.b32.xlu0 %v9036, 32
    %v10347 = vpop.permute.xlu0 %10346
    %10348 = vrot.lane.b32.xlu0 %v9037, 32
    %v10349 = vpop.permute.xlu0 %10348
    %10350 = vrot.lane.b32.xlu0 %v9038, 32
    %v10351 = vpop.permute.xlu0 %10350
    %10352 = vrot.lane.b32.xlu0 %v9039, 32
    %v10353 = vpop.permute.xlu0 %10352
    %10354 = vrot.lane.b32.xlu0 %v9040, 32
    %v10355 = vpop.permute.xlu0 %10354
    %10356 = vrot.lane.b32.xlu0 %v9041, 32
    %v10357 = vpop.permute.xlu0 %10356
    %10358 = vrot.lane.b32.xlu0 %v9042, 32
    %v10359 = vpop.permute.xlu0 %10358
    %10360 = vrot.lane.b32.xlu0 %v9043, 32
    %v10361 = vpop.permute.xlu0 %10360
    %10362 = vrot.lane.b32.xlu0 %v9060, 32
    %v10363 = vpop.permute.xlu0 %10362
    %10364 = vrot.lane.b32.xlu0 %v9061, 32
    %v10365 = vpop.permute.xlu0 %10364
    %10366 = vrot.lane.b32.xlu0 %v9062, 32
    %v10367 = vpop.permute.xlu0 %10366
    %10368 = vrot.lane.b32.xlu0 %v9063, 32
    %v10369 = vpop.permute.xlu0 %10368
    %10370 = vrot.lane.b32.xlu0 %v9064, 32
    %v10371 = vpop.permute.xlu0 %10370
    %10372 = vrot.lane.b32.xlu0 %v9065, 32
    %v10373 = vpop.permute.xlu0 %10372
    %10374 = vrot.lane.b32.xlu0 %v9066, 32
    %v10375 = vpop.permute.xlu0 %10374
    %10376 = vrot.lane.b32.xlu0 %v9067, 32
    %v10377 = vpop.permute.xlu0 %10376
    %v10379 = vsel %vm925, %v10347, 0
    %v10382 = vsel %vm925, %v10349, 0
    %v10385 = vsel %vm925, %v10351, 0
    %v10388 = vsel %vm925, %v10353, 0
    %v10391 = vsel %vm925, %v10355, 0
    %v10394 = vsel %vm925, %v10357, 0
    %v10397 = vsel %vm925, %v10359, 0
    %v10400 = vsel %vm925, %v10361, 0
    %v10403 = vsel %vm925, %v10363, 0
    %v10406 = vsel %vm925, %v10365, 0
    %v10409 = vsel %vm925, %v10367, 0
    %v10412 = vsel %vm925, %v10369, 0
    %v10415 = vsel %vm925, %v10371, 0
    %v10418 = vsel %vm925, %v10373, 0
    %v10421 = vsel %vm925, %v10375, 0
    %v10424 = vsel %vm925, %v10377, 0
    %10426 = vmatpush.bf16.xpose.msra.mxu0 %v10424
    %10427 = vmatpush.bf16.xpose.msra.mxu0 %v10421
    %10428 = vmatpush.bf16.xpose.msra.mxu0 %v10418
    %10429 = vmatpush.bf16.xpose.msra.mxu0 %v10415
    %10430 = vmatpush.bf16.xpose.msra.mxu0 %v10412
    %10431 = vmatpush.bf16.xpose.msra.mxu0 %v10409
    %10432 = vmatpush.bf16.xpose.msra.mxu0 %v10406
    %10433 = vmatpush.bf16.xpose.msra.mxu0 %v10403
    %10434 = vmatmul.bf16.gmra.mxu0 %v10379
    %v10435 = vpop.f32.mrf.mxu0
    %v10436 = vadd.f32 %v99, %v10435
    %v10437 = vpop.f32.mrf.mxu0
    %v10438 = vadd.f32 %v100, %v10437
    %10439 = vmatmul.bf16.gmra.mxu0 %v10382
    %v10440 = vpop.f32.mrf.mxu0
    %v10441 = vadd.f32 %v101, %v10440
    %v10442 = vpop.f32.mrf.mxu0
    %v10443 = vadd.f32 %v102, %v10442
    %10444 = vmatmul.bf16.gmra.mxu0 %v10385
    %v10445 = vpop.f32.mrf.mxu0
    %v10446 = vadd.f32 %v103, %v10445
    %v10447 = vpop.f32.mrf.mxu0
    %v10448 = vadd.f32 %v104, %v10447
    %10449 = vmatmul.bf16.gmra.mxu0 %v10388
    %v10450 = vpop.f32.mrf.mxu0
    %v10451 = vadd.f32 %v105, %v10450
    %v10452 = vpop.f32.mrf.mxu0
    %v10453 = vadd.f32 %v106, %v10452
    %10454 = vmatmul.bf16.gmra.mxu0 %v10391
    %v10455 = vpop.f32.mrf.mxu0
    %v10456 = vadd.f32 %v107, %v10455
    %v10457 = vpop.f32.mrf.mxu0
    %v10458 = vadd.f32 %v108, %v10457
    %10459 = vmatmul.bf16.gmra.mxu0 %v10394
    %v10460 = vpop.f32.mrf.mxu0
    %v10461 = vadd.f32 %v109, %v10460
    %v10462 = vpop.f32.mrf.mxu0
    %v10463 = vadd.f32 %v110, %v10462
    %10464 = vmatmul.bf16.gmra.mxu0 %v10397
    %v10465 = vpop.f32.mrf.mxu0
    %v10466 = vadd.f32 %v111, %v10465
    %v10467 = vpop.f32.mrf.mxu0
    %v10468 = vadd.f32 %v112, %v10467
    %10469 = vmatmul.bf16.gmra.mxu0 %v10400
    %v10470 = vpop.f32.mrf.mxu0
    %v10471 = vadd.f32 %v113, %v10470
    %v10472 = vpop.f32.mrf.mxu0
    %v10473 = vadd.f32 %v114, %v10472
    %10474 = vdwg.mxu0
    %10475 = vmax.xlane.f32.xlu0 %v10436
    %v10476 = vpop.xlane.xlu0 %10475
    %10477 = vmax.xlane.f32.xlu0 %v10438
    %v10478 = vpop.xlane.xlu0 %10477
    %10479 = vmax.xlane.f32.xlu0 %v10441
    %v10480 = vpop.xlane.xlu0 %10479
    %10481 = vmax.xlane.f32.xlu0 %v10443
    %v10482 = vpop.xlane.xlu0 %10481
    %10483 = vmax.xlane.f32.xlu0 %v10446
    %v10484 = vpop.xlane.xlu0 %10483
    %10485 = vmax.xlane.f32.xlu0 %v10448
    %v10486 = vpop.xlane.xlu0 %10485
    %10487 = vmax.xlane.f32.xlu0 %v10451
    %v10488 = vpop.xlane.xlu0 %10487
    %10489 = vmax.xlane.f32.xlu0 %v10453
    %v10490 = vpop.xlane.xlu0 %10489
    %10491 = vmax.xlane.f32.xlu0 %v10456
    %v10492 = vpop.xlane.xlu0 %10491
    %10493 = vmax.xlane.f32.xlu0 %v10458
    %v10494 = vpop.xlane.xlu0 %10493
    %10495 = vmax.xlane.f32.xlu0 %v10461
    %v10496 = vpop.xlane.xlu0 %10495
    %10497 = vmax.xlane.f32.xlu0 %v10463
    %v10498 = vpop.xlane.xlu0 %10497
    %10499 = vmax.xlane.f32.xlu0 %v10466
    %v10500 = vpop.xlane.xlu0 %10499
    %10501 = vmax.xlane.f32.xlu0 %v10468
    %v10502 = vpop.xlane.xlu0 %10501
    %10503 = vmax.xlane.f32.xlu0 %v10471
    %v10504 = vpop.xlane.xlu0 %10503
    %10505 = vmax.xlane.f32.xlu0 %v10473
    %v10506 = vpop.xlane.xlu0 %10505
    %v10507 = vsub.f32 %v10436, %v10476
    %v10508 = vsub.f32 %v10438, %v10478
    %v10509 = vsub.f32 %v10441, %v10480
    %v10510 = vsub.f32 %v10443, %v10482
    %v10511 = vsub.f32 %v10446, %v10484
    %v10512 = vsub.f32 %v10448, %v10486
    %v10513 = vsub.f32 %v10451, %v10488
    %v10514 = vsub.f32 %v10453, %v10490
    %v10515 = vsub.f32 %v10456, %v10492
    %v10516 = vsub.f32 %v10458, %v10494
    %v10517 = vsub.f32 %v10461, %v10496
    %v10518 = vsub.f32 %v10463, %v10498
    %v10519 = vsub.f32 %v10466, %v10500
    %v10520 = vsub.f32 %v10468, %v10502
    %v10521 = vsub.f32 %v10471, %v10504
    %v10522 = vsub.f32 %v10473, %v10506
    %v10523 = vmul.f32 %v10507, 1.442695
    %v10524 = vpow.pop %v10523
    %v10525 = vmul.f32 %v10508, 1.442695
    %v10526 = vpow.pop %v10525
    %v10527 = vmul.f32 %v10509, 1.442695
    %v10528 = vpow.pop %v10527
    %v10529 = vmul.f32 %v10510, 1.442695
    %v10530 = vpow.pop %v10529
    %v10531 = vmul.f32 %v10511, 1.442695
    %v10532 = vpow.pop %v10531
    %v10533 = vmul.f32 %v10512, 1.442695
    %v10534 = vpow.pop %v10533
    %v10535 = vmul.f32 %v10513, 1.442695
    %v10536 = vpow.pop %v10535
    %v10537 = vmul.f32 %v10514, 1.442695
    %v10538 = vpow.pop %v10537
    %v10539 = vmul.f32 %v10515, 1.442695
    %v10540 = vpow.pop %v10539
    %v10541 = vmul.f32 %v10516, 1.442695
    %v10542 = vpow.pop %v10541
    %v10543 = vmul.f32 %v10517, 1.442695
    %v10544 = vpow.pop %v10543
    %v10545 = vmul.f32 %v10518, 1.442695
    %v10546 = vpow.pop %v10545
    %v10547 = vmul.f32 %v10519, 1.442695
    %v10548 = vpow.pop %v10547
    %v10549 = vmul.f32 %v10520, 1.442695
    %v10550 = vpow.pop %v10549
    %v10551 = vmul.f32 %v10521, 1.442695
    %v10552 = vpow.pop %v10551
    %v10553 = vmul.f32 %v10522, 1.442695
    %v10554 = vpow.pop %v10553
    %10555 = vadd.xlane.f32.xlu0 %v10524
    %v10556 = vpop.xlane.xlu0 %10555
    %10557 = vadd.xlane.f32.xlu0 %v10526
    %v10558 = vpop.xlane.xlu0 %10557
    %10559 = vadd.xlane.f32.xlu0 %v10528
    %v10560 = vpop.xlane.xlu0 %10559
    %10561 = vadd.xlane.f32.xlu0 %v10530
    %v10562 = vpop.xlane.xlu0 %10561
    %10563 = vadd.xlane.f32.xlu0 %v10532
    %v10564 = vpop.xlane.xlu0 %10563
    %10565 = vadd.xlane.f32.xlu0 %v10534
    %v10566 = vpop.xlane.xlu0 %10565
    %10567 = vadd.xlane.f32.xlu0 %v10536
    %v10568 = vpop.xlane.xlu0 %10567
    %10569 = vadd.xlane.f32.xlu0 %v10538
    %v10570 = vpop.xlane.xlu0 %10569
    %10571 = vadd.xlane.f32.xlu0 %v10540
    %v10572 = vpop.xlane.xlu0 %10571
    %10573 = vadd.xlane.f32.xlu0 %v10542
    %v10574 = vpop.xlane.xlu0 %10573
    %10575 = vadd.xlane.f32.xlu0 %v10544
    %v10576 = vpop.xlane.xlu0 %10575
    %10577 = vadd.xlane.f32.xlu0 %v10546
    %v10578 = vpop.xlane.xlu0 %10577
    %10579 = vadd.xlane.f32.xlu0 %v10548
    %v10580 = vpop.xlane.xlu0 %10579
    %10581 = vadd.xlane.f32.xlu0 %v10550
    %v10582 = vpop.xlane.xlu0 %10581
    %10583 = vadd.xlane.f32.xlu0 %v10552
    %v10584 = vpop.xlane.xlu0 %10583
    %10585 = vadd.xlane.f32.xlu0 %v10554
    %v10586 = vpop.xlane.xlu0 %10585
    %v10587 = vrcp.pop %v10556
    %v10588 = vrcp.pop %v10558
    %v10589 = vrcp.pop %v10560
    %v10590 = vrcp.pop %v10562
    %v10591 = vrcp.pop %v10564
    %v10592 = vrcp.pop %v10566
    %v10593 = vrcp.pop %v10568
    %v10594 = vrcp.pop %v10570
    %v10595 = vrcp.pop %v10572
    %v10596 = vrcp.pop %v10574
    %v10597 = vrcp.pop %v10576
    %v10598 = vrcp.pop %v10578
    %v10599 = vrcp.pop %v10580
    %v10600 = vrcp.pop %v10582
    %v10601 = vrcp.pop %v10584
    %v10602 = vrcp.pop %v10586
    %v10603 = vmul.f32 %v10524, %v10587
    %v10604 = vmul.f32 %v10526, %v10588
    %v10605 = vmul.f32 %v10528, %v10589
    %v10606 = vmul.f32 %v10530, %v10590
    %v10607 = vmul.f32 %v10532, %v10591
    %v10608 = vmul.f32 %v10534, %v10592
    %v10609 = vmul.f32 %v10536, %v10593
    %v10610 = vmul.f32 %v10538, %v10594
    %v10611 = vmul.f32 %v10540, %v10595
    %v10612 = vmul.f32 %v10542, %v10596
    %v10613 = vmul.f32 %v10544, %v10597
    %v10614 = vmul.f32 %v10546, %v10598
    %v10615 = vmul.f32 %v10548, %v10599
    %v10616 = vmul.f32 %v10550, %v10600
    %v10617 = vmul.f32 %v10552, %v10601
    %v10618 = vmul.f32 %v10554, %v10602
    %v10619 = vpack.c.bf16 %v10604, %v10603
    %v10620 = vpack.c.bf16 %v10606, %v10605
    %v10621 = vpack.c.bf16 %v10608, %v10607
    %v10622 = vpack.c.bf16 %v10610, %v10609
    %v10623 = vpack.c.bf16 %v10612, %v10611
    %v10624 = vpack.c.bf16 %v10614, %v10613
    %v10625 = vpack.c.bf16 %v10616, %v10615
    %v10626 = vpack.c.bf16 %v10618, %v10617
    %10627 = vrot.lane.b32.xlu0 %v9349, 32
    %v10628 = vpop.permute.xlu0 %10627
    %10629 = vrot.lane.b32.xlu0 %v9350, 32
    %v10630 = vpop.permute.xlu0 %10629
    %10631 = vrot.lane.b32.xlu0 %v9351, 32
    %v10632 = vpop.permute.xlu0 %10631
    %10633 = vrot.lane.b32.xlu0 %v9352, 32
    %v10634 = vpop.permute.xlu0 %10633
    %10635 = vrot.lane.b32.xlu0 %v9353, 32
    %v10636 = vpop.permute.xlu0 %10635
    %10637 = vrot.lane.b32.xlu0 %v9354, 32
    %v10638 = vpop.permute.xlu0 %10637
    %10639 = vrot.lane.b32.xlu0 %v9355, 32
    %v10640 = vpop.permute.xlu0 %10639
    %10641 = vrot.lane.b32.xlu0 %v9356, 32
    %v10642 = vpop.permute.xlu0 %10641
    %10651 = vmatpush.bf16.msra.mxu0 %v10642
    %10652 = vmatpush.bf16.msra.mxu0 %v10640
    %10653 = vmatpush.bf16.msra.mxu0 %v10638
    %10654 = vmatpush.bf16.msra.mxu0 %v10636
    %10655 = vmatpush.bf16.msra.mxu0 %v10634
    %10656 = vmatpush.bf16.msra.mxu0 %v10632
    %10657 = vmatpush.bf16.msra.mxu0 %v10630
    %10658 = vmatpush.bf16.msra.mxu0 %v10628
    %10659 = vmatmul.bf16.gmra.mxu0 %v10619
    %v10660 = vpop.f32.mrf.mxu0
    %v10661 = vadd.f32 0.0, %v10660
    %v10662 = vpop.f32.mrf.mxu0
    %v10663 = vadd.f32 0.0, %v10662
    %10664 = vmatmul.bf16.gmra.mxu0 %v10620
    %v10665 = vpop.f32.mrf.mxu0
    %v10666 = vadd.f32 0.0, %v10665
    %v10667 = vpop.f32.mrf.mxu0
    %v10668 = vadd.f32 0.0, %v10667
    %10669 = vmatmul.bf16.gmra.mxu0 %v10621
    %v10670 = vpop.f32.mrf.mxu0
    %v10671 = vadd.f32 0.0, %v10670
    %v10672 = vpop.f32.mrf.mxu0
    %v10673 = vadd.f32 0.0, %v10672
    %10674 = vmatmul.bf16.gmra.mxu0 %v10622
    %v10675 = vpop.f32.mrf.mxu0
    %v10676 = vadd.f32 0.0, %v10675
    %v10677 = vpop.f32.mrf.mxu0
    %v10678 = vadd.f32 0.0, %v10677
    %10679 = vmatmul.bf16.gmra.mxu0 %v10623
    %v10680 = vpop.f32.mrf.mxu0
    %v10681 = vadd.f32 0.0, %v10680
    %v10682 = vpop.f32.mrf.mxu0
    %v10683 = vadd.f32 0.0, %v10682
    %10684 = vmatmul.bf16.gmra.mxu0 %v10624
    %v10685 = vpop.f32.mrf.mxu0
    %v10686 = vadd.f32 0.0, %v10685
    %v10687 = vpop.f32.mrf.mxu0
    %v10688 = vadd.f32 0.0, %v10687
    %10689 = vmatmul.bf16.gmra.mxu0 %v10625
    %v10690 = vpop.f32.mrf.mxu0
    %v10691 = vadd.f32 0.0, %v10690
    %v10692 = vpop.f32.mrf.mxu0
    %v10693 = vadd.f32 0.0, %v10692
    %10694 = vmatmul.bf16.gmra.mxu0 %v10626
    %v10695 = vpop.f32.mrf.mxu0
    %v10696 = vadd.f32 0.0, %v10695
    %v10697 = vpop.f32.mrf.mxu0
    %v10698 = vadd.f32 0.0, %v10697
    %10699 = vdwg.mxu0
    %v10700 = vpack.c.bf16 %v10661, %v10661
    %v10701 = vpack.c.bf16 %v10663, %v10663
    %v10702 = vpack.c.bf16 %v10666, %v10666
    %v10703 = vpack.c.bf16 %v10668, %v10668
    %v10704 = vpack.c.bf16 %v10671, %v10671
    %v10705 = vpack.c.bf16 %v10673, %v10673
    %v10706 = vpack.c.bf16 %v10676, %v10676
    %v10707 = vpack.c.bf16 %v10678, %v10678
    %v10708 = vpack.c.bf16 %v10681, %v10681
    %v10709 = vpack.c.bf16 %v10683, %v10683
    %v10710 = vpack.c.bf16 %v10686, %v10686
    %v10711 = vpack.c.bf16 %v10688, %v10688
    %v10712 = vpack.c.bf16 %v10691, %v10691
    %v10713 = vpack.c.bf16 %v10693, %v10693
    %v10714 = vpack.c.bf16 %v10696, %v10696
    %v10715 = vpack.c.bf16 %v10698, %v10698
    %10732 = vrot.lane.b32.xlu0 %v10700, 96
    %v10733 = vpop.permute.xlu0 %10732
    %10734 = vrot.lane.b32.xlu0 %v10701, 96
    %v10735 = vpop.permute.xlu0 %10734
    %10736 = vrot.lane.b32.xlu0 %v10702, 96
    %v10737 = vpop.permute.xlu0 %10736
    %10738 = vrot.lane.b32.xlu0 %v10703, 96
    %v10739 = vpop.permute.xlu0 %10738
    %10740 = vrot.lane.b32.xlu0 %v10704, 96
    %v10741 = vpop.permute.xlu0 %10740
    %10742 = vrot.lane.b32.xlu0 %v10705, 96
    %v10743 = vpop.permute.xlu0 %10742
    %10744 = vrot.lane.b32.xlu0 %v10706, 96
    %v10745 = vpop.permute.xlu0 %10744
    %10746 = vrot.lane.b32.xlu0 %v10707, 96
    %v10747 = vpop.permute.xlu0 %10746
    %10748 = vrot.lane.b32.xlu0 %v10708, 96
    %v10749 = vpop.permute.xlu0 %10748
    %10750 = vrot.lane.b32.xlu0 %v10709, 96
    %v10751 = vpop.permute.xlu0 %10750
    %10752 = vrot.lane.b32.xlu0 %v10710, 96
    %v10753 = vpop.permute.xlu0 %10752
    %10754 = vrot.lane.b32.xlu0 %v10711, 96
    %v10755 = vpop.permute.xlu0 %10754
    %10756 = vrot.lane.b32.xlu0 %v10712, 96
    %v10757 = vpop.permute.xlu0 %10756
    %10758 = vrot.lane.b32.xlu0 %v10713, 96
    %v10759 = vpop.permute.xlu0 %10758
    %10760 = vrot.lane.b32.xlu0 %v10714, 96
    %v10761 = vpop.permute.xlu0 %10760
    %10762 = vrot.lane.b32.xlu0 %v10715, 96
    %v10763 = vpop.permute.xlu0 %10762
    %10780 = vst.msk [vmem:[#allocation2] sm:$0xf] %vm2641, %v10733
    %10781 = vst.msk [vmem:[#allocation2 + $0x4] sm:$0xf] %vm2641, %v10735
    %10782 = vst.msk [vmem:[#allocation2 + $0x8] sm:$0xf] %vm2641, %v10737
    %10783 = vst.msk [vmem:[#allocation2 + $0xc] sm:$0xf] %vm2641, %v10739
    %10784 = vst.msk [vmem:[#allocation2 + $0x10] sm:$0xf] %vm2641, %v10741
    %10785 = vst.msk [vmem:[#allocation2 + $0x14] sm:$0xf] %vm2641, %v10743
    %10786 = vst.msk [vmem:[#allocation2 + $0x18] sm:$0xf] %vm2641, %v10745
    %10787 = vst.msk [vmem:[#allocation2 + $0x1c] sm:$0xf] %vm2641, %v10747
    %10788 = vst.msk [vmem:[#allocation2 + $0x20] sm:$0xf] %vm2641, %v10749
    %10789 = vst.msk [vmem:[#allocation2 + $0x24] sm:$0xf] %vm2641, %v10751
    %10790 = vst.msk [vmem:[#allocation2 + $0x28] sm:$0xf] %vm2641, %v10753
    %10791 = vst.msk [vmem:[#allocation2 + $0x2c] sm:$0xf] %vm2641, %v10755
    %10792 = vst.msk [vmem:[#allocation2 + $0x30] sm:$0xf] %vm2641, %v10757
    %10793 = vst.msk [vmem:[#allocation2 + $0x34] sm:$0xf] %vm2641, %v10759
    %10794 = vst.msk [vmem:[#allocation2 + $0x38] sm:$0xf] %vm2641, %v10761
    %10795 = vst.msk [vmem:[#allocation2 + $0x3c] sm:$0xf] %vm2641, %v10763
    %v10796 = vld [vmem:[#allocation2] sm:$0xf]
    %v10797 = vld [vmem:[#allocation2 + $0x4] sm:$0xf]
    %v10798 = vld [vmem:[#allocation2 + $0x8] sm:$0xf]
    %v10799 = vld [vmem:[#allocation2 + $0xc] sm:$0xf]
    %v10800 = vld [vmem:[#allocation2 + $0x10] sm:$0xf]
    %v10801 = vld [vmem:[#allocation2 + $0x14] sm:$0xf]
    %v10802 = vld [vmem:[#allocation2 + $0x18] sm:$0xf]
    %v10803 = vld [vmem:[#allocation2 + $0x1c] sm:$0xf]
    %v10804 = vld [vmem:[#allocation2 + $0x20] sm:$0xf]
    %v10805 = vld [vmem:[#allocation2 + $0x24] sm:$0xf]
    %v10806 = vld [vmem:[#allocation2 + $0x28] sm:$0xf]
    %v10807 = vld [vmem:[#allocation2 + $0x2c] sm:$0xf]
    %v10808 = vld [vmem:[#allocation2 + $0x30] sm:$0xf]
    %v10809 = vld [vmem:[#allocation2 + $0x34] sm:$0xf]
    %v10810 = vld [vmem:[#allocation2 + $0x38] sm:$0xf]
    %v10811 = vld [vmem:[#allocation2 + $0x3c] sm:$0xf]
    %s10812 = scalar_lea.vmem %s5, 128
    %v10813 = vld [vmem:[%s10812] sm:$0xf]
    %v10814 = vld [vmem:[%s10812 + $0x4] sm:$0xf]
    %v10815 = vld [vmem:[%s10812 + $0x8] sm:$0xf]
    %v10816 = vld [vmem:[%s10812 + $0xc] sm:$0xf]
    %v10817 = vld [vmem:[%s10812 + $0x10] sm:$0xf]
    %v10818 = vld [vmem:[%s10812 + $0x14] sm:$0xf]
    %v10819 = vld [vmem:[%s10812 + $0x18] sm:$0xf]
    %v10820 = vld [vmem:[%s10812 + $0x1c] sm:$0xf]
    %v10821 = vld [vmem:[%s10812 + $0x20] sm:$0xf]
    %v10822 = vld [vmem:[%s10812 + $0x24] sm:$0xf]
    %v10823 = vld [vmem:[%s10812 + $0x28] sm:$0xf]
    %v10824 = vld [vmem:[%s10812 + $0x2c] sm:$0xf]
    %v10825 = vld [vmem:[%s10812 + $0x30] sm:$0xf]
    %v10826 = vld [vmem:[%s10812 + $0x34] sm:$0xf]
    %v10827 = vld [vmem:[%s10812 + $0x38] sm:$0xf]
    %v10828 = vld [vmem:[%s10812 + $0x3c] sm:$0xf]
    %s10829 = scalar_lea.vmem %s6, 2
    %v10830 = vld [vmem:[%s10829] sm:$0x1]
    %v10832 = vperm.slane %v10830, 0
    %v10850 = vunpack.c.l.b16 %v10796
    %v10851 = vunpack.c.l.b16 %v10797
    %v10852 = vunpack.c.l.b16 %v10798
    %v10853 = vunpack.c.l.b16 %v10799
    %v10854 = vunpack.c.l.b16 %v10800
    %v10855 = vunpack.c.l.b16 %v10801
    %v10856 = vunpack.c.l.b16 %v10802
    %v10857 = vunpack.c.l.b16 %v10803
    %v10858 = vunpack.c.l.b16 %v10804
    %v10859 = vunpack.c.l.b16 %v10805
    %v10860 = vunpack.c.l.b16 %v10806
    %v10861 = vunpack.c.l.b16 %v10807
    %v10862 = vunpack.c.l.b16 %v10808
    %v10863 = vunpack.c.l.b16 %v10809
    %v10864 = vunpack.c.l.b16 %v10810
    %v10865 = vunpack.c.l.b16 %v10811
    %v10866 = vpack.c.b16 %v10851, %v10850
    %v10867 = vpack.c.b16 %v10853, %v10852
    %v10868 = vpack.c.b16 %v10855, %v10854
    %v10869 = vpack.c.b16 %v10857, %v10856
    %v10870 = vpack.c.b16 %v10859, %v10858
    %v10871 = vpack.c.b16 %v10861, %v10860
    %v10872 = vpack.c.b16 %v10863, %v10862
    %v10873 = vpack.c.b16 %v10865, %v10864
    %v10898 = vunpack.c.l.b16 %v10813
    %v10899 = vunpack.c.l.b16 %v10814
    %v10900 = vunpack.c.l.b16 %v10815
    %v10901 = vunpack.c.l.b16 %v10816
    %v10902 = vunpack.c.l.b16 %v10817
    %v10903 = vunpack.c.l.b16 %v10818
    %v10904 = vunpack.c.l.b16 %v10819
    %v10905 = vunpack.c.l.b16 %v10820
    %v10906 = vunpack.c.l.b16 %v10821
    %v10907 = vunpack.c.l.b16 %v10822
    %v10908 = vunpack.c.l.b16 %v10823
    %v10909 = vunpack.c.l.b16 %v10824
    %v10910 = vunpack.c.l.b16 %v10825
    %v10911 = vunpack.c.l.b16 %v10826
    %v10912 = vunpack.c.l.b16 %v10827
    %v10913 = vunpack.c.l.b16 %v10828
    %v10914 = vpack.c.b16 %v10899, %v10898
    %v10915 = vpack.c.b16 %v10901, %v10900
    %v10916 = vpack.c.b16 %v10903, %v10902
    %v10917 = vpack.c.b16 %v10905, %v10904
    %v10918 = vpack.c.b16 %v10907, %v10906
    %v10919 = vpack.c.b16 %v10909, %v10908
    %v10920 = vpack.c.b16 %v10911, %v10910
    %v10921 = vpack.c.b16 %v10913, %v10912
    %10930 = vmatpush.bf16.msra.mxu0 %v10921
    %10931 = vmatpush.bf16.msra.mxu0 %v10920
    %10932 = vmatpush.bf16.msra.mxu0 %v10919
    %10933 = vmatpush.bf16.msra.mxu0 %v10918
    %10934 = vmatpush.bf16.msra.mxu0 %v10917
    %10935 = vmatpush.bf16.msra.mxu0 %v10916
    %10936 = vmatpush.bf16.msra.mxu0 %v10915
    %10937 = vmatpush.bf16.msra.mxu0 %v10914
    %10938 = vmatmul.bf16.gmra.mxu0 %v10866
    %v10939 = vpop.f32.mrf.mxu0
    %v10940 = vadd.f32 %v10832, %v10939
    %v10941 = vpop.f32.mrf.mxu0
    %v10942 = vadd.f32 %v10832, %v10941
    %10943 = vmatmul.bf16.gmra.mxu0 %v10867
    %v10944 = vpop.f32.mrf.mxu0
    %v10945 = vadd.f32 %v10832, %v10944
    %v10946 = vpop.f32.mrf.mxu0
    %v10947 = vadd.f32 %v10832, %v10946
    %10948 = vmatmul.bf16.gmra.mxu0 %v10868
    %v10949 = vpop.f32.mrf.mxu0
    %v10950 = vadd.f32 %v10832, %v10949
    %v10951 = vpop.f32.mrf.mxu0
    %v10952 = vadd.f32 %v10832, %v10951
    %10953 = vmatmul.bf16.gmra.mxu0 %v10869
    %v10954 = vpop.f32.mrf.mxu0
    %v10955 = vadd.f32 %v10832, %v10954
    %v10956 = vpop.f32.mrf.mxu0
    %v10957 = vadd.f32 %v10832, %v10956
    %10958 = vmatmul.bf16.gmra.mxu0 %v10870
    %v10959 = vpop.f32.mrf.mxu0
    %v10960 = vadd.f32 %v10832, %v10959
    %v10961 = vpop.f32.mrf.mxu0
    %v10962 = vadd.f32 %v10832, %v10961
    %10963 = vmatmul.bf16.gmra.mxu0 %v10871
    %v10964 = vpop.f32.mrf.mxu0
    %v10965 = vadd.f32 %v10832, %v10964
    %v10966 = vpop.f32.mrf.mxu0
    %v10967 = vadd.f32 %v10832, %v10966
    %10968 = vmatmul.bf16.gmra.mxu0 %v10872
    %v10969 = vpop.f32.mrf.mxu0
    %v10970 = vadd.f32 %v10832, %v10969
    %v10971 = vpop.f32.mrf.mxu0
    %v10972 = vadd.f32 %v10832, %v10971
    %10973 = vmatmul.bf16.gmra.mxu0 %v10873
    %v10974 = vpop.f32.mrf.mxu0
    %v10975 = vadd.f32 %v10832, %v10974
    %v10976 = vpop.f32.mrf.mxu0
    %v10977 = vadd.f32 %v10832, %v10976
    %10978 = vdwg.mxu0
    %s10979 = scalar_lea.vmem %s7, 2
    %v10980 = vld [vmem:[%s10979] sm:$0x1]
    %s10981 = scalar_lea.vmem %s8, 2
    %v10982 = vld [vmem:[%s10981] sm:$0x1]
    %10983 = vadd.xlane.f32.xlu0 %v10940
    %v10984 = vpop.xlane.xlu0 %10983
    %10985 = vadd.xlane.f32.xlu0 %v10942
    %v10986 = vpop.xlane.xlu0 %10985
    %10987 = vadd.xlane.f32.xlu0 %v10945
    %v10988 = vpop.xlane.xlu0 %10987
    %10989 = vadd.xlane.f32.xlu0 %v10947
    %v10990 = vpop.xlane.xlu0 %10989
    %10991 = vadd.xlane.f32.xlu0 %v10950
    %v10992 = vpop.xlane.xlu0 %10991
    %10993 = vadd.xlane.f32.xlu0 %v10952
    %v10994 = vpop.xlane.xlu0 %10993
    %10995 = vadd.xlane.f32.xlu0 %v10955
    %v10996 = vpop.xlane.xlu0 %10995
    %10997 = vadd.xlane.f32.xlu0 %v10957
    %v10998 = vpop.xlane.xlu0 %10997
    %10999 = vadd.xlane.f32.xlu0 %v10960
    %v11000 = vpop.xlane.xlu0 %10999
    %11001 = vadd.xlane.f32.xlu0 %v10962
    %v11002 = vpop.xlane.xlu0 %11001
    %11003 = vadd.xlane.f32.xlu0 %v10965
    %v11004 = vpop.xlane.xlu0 %11003
    %11005 = vadd.xlane.f32.xlu0 %v10967
    %v11006 = vpop.xlane.xlu0 %11005
    %11007 = vadd.xlane.f32.xlu0 %v10970
    %v11008 = vpop.xlane.xlu0 %11007
    %11009 = vadd.xlane.f32.xlu0 %v10972
    %v11010 = vpop.xlane.xlu0 %11009
    %11011 = vadd.xlane.f32.xlu0 %v10975
    %v11012 = vpop.xlane.xlu0 %11011
    %11013 = vadd.xlane.f32.xlu0 %v10977
    %v11014 = vpop.xlane.xlu0 %11013
    %v11015 = vmul.f32 %v10984, %v155
    %v11016 = vmul.f32 %v10986, %v155
    %v11017 = vmul.f32 %v10988, %v155
    %v11018 = vmul.f32 %v10990, %v155
    %v11019 = vmul.f32 %v10992, %v155
    %v11020 = vmul.f32 %v10994, %v155
    %v11021 = vmul.f32 %v10996, %v155
    %v11022 = vmul.f32 %v10998, %v155
    %v11023 = vmul.f32 %v11000, %v155
    %v11024 = vmul.f32 %v11002, %v155
    %v11025 = vmul.f32 %v11004, %v155
    %v11026 = vmul.f32 %v11006, %v155
    %v11027 = vmul.f32 %v11008, %v155
    %v11028 = vmul.f32 %v11010, %v155
    %v11029 = vmul.f32 %v11012, %v155
    %v11030 = vmul.f32 %v11014, %v155
    %v11031 = vmul.f32 %v10940, %v10940
    %v11032 = vmul.f32 %v10942, %v10942
    %v11033 = vmul.f32 %v10945, %v10945
    %v11034 = vmul.f32 %v10947, %v10947
    %v11035 = vmul.f32 %v10950, %v10950
    %v11036 = vmul.f32 %v10952, %v10952
    %v11037 = vmul.f32 %v10955, %v10955
    %v11038 = vmul.f32 %v10957, %v10957
    %v11039 = vmul.f32 %v10960, %v10960
    %v11040 = vmul.f32 %v10962, %v10962
    %v11041 = vmul.f32 %v10965, %v10965
    %v11042 = vmul.f32 %v10967, %v10967
    %v11043 = vmul.f32 %v10970, %v10970
    %v11044 = vmul.f32 %v10972, %v10972
    %v11045 = vmul.f32 %v10975, %v10975
    %v11046 = vmul.f32 %v10977, %v10977
    %11047 = vadd.xlane.f32.xlu0 %v11031
    %v11048 = vpop.xlane.xlu0 %11047
    %11049 = vadd.xlane.f32.xlu0 %v11032
    %v11050 = vpop.xlane.xlu0 %11049
    %11051 = vadd.xlane.f32.xlu0 %v11033
    %v11052 = vpop.xlane.xlu0 %11051
    %11053 = vadd.xlane.f32.xlu0 %v11034
    %v11054 = vpop.xlane.xlu0 %11053
    %11055 = vadd.xlane.f32.xlu0 %v11035
    %v11056 = vpop.xlane.xlu0 %11055
    %11057 = vadd.xlane.f32.xlu0 %v11036
    %v11058 = vpop.xlane.xlu0 %11057
    %11059 = vadd.xlane.f32.xlu0 %v11037
    %v11060 = vpop.xlane.xlu0 %11059
    %11061 = vadd.xlane.f32.xlu0 %v11038
    %v11062 = vpop.xlane.xlu0 %11061
    %11063 = vadd.xlane.f32.xlu0 %v11039
    %v11064 = vpop.xlane.xlu0 %11063
    %11065 = vadd.xlane.f32.xlu0 %v11040
    %v11066 = vpop.xlane.xlu0 %11065
    %11067 = vadd.xlane.f32.xlu0 %v11041
    %v11068 = vpop.xlane.xlu0 %11067
    %11069 = vadd.xlane.f32.xlu0 %v11042
    %v11070 = vpop.xlane.xlu0 %11069
    %11071 = vadd.xlane.f32.xlu0 %v11043
    %v11072 = vpop.xlane.xlu0 %11071
    %11073 = vadd.xlane.f32.xlu0 %v11044
    %v11074 = vpop.xlane.xlu0 %11073
    %11075 = vadd.xlane.f32.xlu0 %v11045
    %v11076 = vpop.xlane.xlu0 %11075
    %11077 = vadd.xlane.f32.xlu0 %v11046
    %v11078 = vpop.xlane.xlu0 %11077
    %v11079 = vmul.f32 %v11048, %v155
    %v11080 = vmul.f32 %v11050, %v155
    %v11081 = vmul.f32 %v11052, %v155
    %v11082 = vmul.f32 %v11054, %v155
    %v11083 = vmul.f32 %v11056, %v155
    %v11084 = vmul.f32 %v11058, %v155
    %v11085 = vmul.f32 %v11060, %v155
    %v11086 = vmul.f32 %v11062, %v155
    %v11087 = vmul.f32 %v11064, %v155
    %v11088 = vmul.f32 %v11066, %v155
    %v11089 = vmul.f32 %v11068, %v155
    %v11090 = vmul.f32 %v11070, %v155
    %v11091 = vmul.f32 %v11072, %v155
    %v11092 = vmul.f32 %v11074, %v155
    %v11093 = vmul.f32 %v11076, %v155
    %v11094 = vmul.f32 %v11078, %v155
    %v11095 = vmul.f32 %v11015, %v11015
    %v11096 = vmul.f32 %v11016, %v11016
    %v11097 = vmul.f32 %v11017, %v11017
    %v11098 = vmul.f32 %v11018, %v11018
    %v11099 = vmul.f32 %v11019, %v11019
    %v11100 = vmul.f32 %v11020, %v11020
    %v11101 = vmul.f32 %v11021, %v11021
    %v11102 = vmul.f32 %v11022, %v11022
    %v11103 = vmul.f32 %v11023, %v11023
    %v11104 = vmul.f32 %v11024, %v11024
    %v11105 = vmul.f32 %v11025, %v11025
    %v11106 = vmul.f32 %v11026, %v11026
    %v11107 = vmul.f32 %v11027, %v11027
    %v11108 = vmul.f32 %v11028, %v11028
    %v11109 = vmul.f32 %v11029, %v11029
    %v11110 = vmul.f32 %v11030, %v11030
    %v11111 = vsub.f32 %v11079, %v11095
    %v11112 = vsub.f32 %v11080, %v11096
    %v11113 = vsub.f32 %v11081, %v11097
    %v11114 = vsub.f32 %v11082, %v11098
    %v11115 = vsub.f32 %v11083, %v11099
    %v11116 = vsub.f32 %v11084, %v11100
    %v11117 = vsub.f32 %v11085, %v11101
    %v11118 = vsub.f32 %v11086, %v11102
    %v11119 = vsub.f32 %v11087, %v11103
    %v11120 = vsub.f32 %v11088, %v11104
    %v11121 = vsub.f32 %v11089, %v11105
    %v11122 = vsub.f32 %v11090, %v11106
    %v11123 = vsub.f32 %v11091, %v11107
    %v11124 = vsub.f32 %v11092, %v11108
    %v11125 = vsub.f32 %v11093, %v11109
    %v11126 = vsub.f32 %v11094, %v11110
    %v11127 = vsub.f32 %v10940, %v11015
    %v11128 = vsub.f32 %v10942, %v11016
    %v11129 = vsub.f32 %v10945, %v11017
    %v11130 = vsub.f32 %v10947, %v11018
    %v11131 = vsub.f32 %v10950, %v11019
    %v11132 = vsub.f32 %v10952, %v11020
    %v11133 = vsub.f32 %v10955, %v11021
    %v11134 = vsub.f32 %v10957, %v11022
    %v11135 = vsub.f32 %v10960, %v11023
    %v11136 = vsub.f32 %v10962, %v11024
    %v11137 = vsub.f32 %v10965, %v11025
    %v11138 = vsub.f32 %v10967, %v11026
    %v11139 = vsub.f32 %v10970, %v11027
    %v11140 = vsub.f32 %v10972, %v11028
    %v11141 = vsub.f32 %v10975, %v11029
    %v11142 = vsub.f32 %v10977, %v11030
    %v11143 = vadd.f32 %v11111, 1e-05
    %v11144 = vadd.f32 %v11112, 1e-05
    %v11145 = vadd.f32 %v11113, 1e-05
    %v11146 = vadd.f32 %v11114, 1e-05
    %v11147 = vadd.f32 %v11115, 1e-05
    %v11148 = vadd.f32 %v11116, 1e-05
    %v11149 = vadd.f32 %v11117, 1e-05
    %v11150 = vadd.f32 %v11118, 1e-05
    %v11151 = vadd.f32 %v11119, 1e-05
    %v11152 = vadd.f32 %v11120, 1e-05
    %v11153 = vadd.f32 %v11121, 1e-05
    %v11154 = vadd.f32 %v11122, 1e-05
    %v11155 = vadd.f32 %v11123, 1e-05
    %v11156 = vadd.f32 %v11124, 1e-05
    %v11157 = vadd.f32 %v11125, 1e-05
    %v11158 = vadd.f32 %v11126, 1e-05
    %v11159 = vrsqrt.pop %v11143
    %v11160 = vmul.f32 %v11159, %v11143
    %v11161 = vmul.f32 %v11160, %v11159
    %v11162 = vmul.f32 0.5, %v11161
    %v11163 = vsub.f32 1.5, %v11162
    %v11164 = vmul.f32 %v11159, %v11163
    %vm11165 = vweird.f32 %v11143
    %vm11166 = vweird.f32 %v11159
    %vm11167 = vmor %vm11165, %vm11166
    %v11168 = vsel %vm11167, %v11159, %v11164
    %v11169 = vrsqrt.pop %v11144
    %v11170 = vmul.f32 %v11169, %v11144
    %v11171 = vmul.f32 %v11170, %v11169
    %v11172 = vmul.f32 0.5, %v11171
    %v11173 = vsub.f32 1.5, %v11172
    %v11174 = vmul.f32 %v11169, %v11173
    %vm11175 = vweird.f32 %v11144
    %vm11176 = vweird.f32 %v11169
    %vm11177 = vmor %vm11175, %vm11176
    %v11178 = vsel %vm11177, %v11169, %v11174
    %v11179 = vrsqrt.pop %v11145
    %v11180 = vmul.f32 %v11179, %v11145
    %v11181 = vmul.f32 %v11180, %v11179
    %v11182 = vmul.f32 0.5, %v11181
    %v11183 = vsub.f32 1.5, %v11182
    %v11184 = vmul.f32 %v11179, %v11183
    %vm11185 = vweird.f32 %v11145
    %vm11186 = vweird.f32 %v11179
    %vm11187 = vmor %vm11185, %vm11186
    %v11188 = vsel %vm11187, %v11179, %v11184
    %v11189 = vrsqrt.pop %v11146
    %v11190 = vmul.f32 %v11189, %v11146
    %v11191 = vmul.f32 %v11190, %v11189
    %v11192 = vmul.f32 0.5, %v11191
    %v11193 = vsub.f32 1.5, %v11192
    %v11194 = vmul.f32 %v11189, %v11193
    %vm11195 = vweird.f32 %v11146
    %vm11196 = vweird.f32 %v11189
    %vm11197 = vmor %vm11195, %vm11196
    %v11198 = vsel %vm11197, %v11189, %v11194
    %v11199 = vrsqrt.pop %v11147
    %v11200 = vmul.f32 %v11199, %v11147
    %v11201 = vmul.f32 %v11200, %v11199
    %v11202 = vmul.f32 0.5, %v11201
    %v11203 = vsub.f32 1.5, %v11202
    %v11204 = vmul.f32 %v11199, %v11203
    %vm11205 = vweird.f32 %v11147
    %vm11206 = vweird.f32 %v11199
    %vm11207 = vmor %vm11205, %vm11206
    %v11208 = vsel %vm11207, %v11199, %v11204
    %v11209 = vrsqrt.pop %v11148
    %v11210 = vmul.f32 %v11209, %v11148
    %v11211 = vmul.f32 %v11210, %v11209
    %v11212 = vmul.f32 0.5, %v11211
    %v11213 = vsub.f32 1.5, %v11212
    %v11214 = vmul.f32 %v11209, %v11213
    %vm11215 = vweird.f32 %v11148
    %vm11216 = vweird.f32 %v11209
    %vm11217 = vmor %vm11215, %vm11216
    %v11218 = vsel %vm11217, %v11209, %v11214
    %v11219 = vrsqrt.pop %v11149
    %v11220 = vmul.f32 %v11219, %v11149
    %v11221 = vmul.f32 %v11220, %v11219
    %v11222 = vmul.f32 0.5, %v11221
    %v11223 = vsub.f32 1.5, %v11222
    %v11224 = vmul.f32 %v11219, %v11223
    %vm11225 = vweird.f32 %v11149
    %vm11226 = vweird.f32 %v11219
    %vm11227 = vmor %vm11225, %vm11226
    %v11228 = vsel %vm11227, %v11219, %v11224
    %v11229 = vrsqrt.pop %v11150
    %v11230 = vmul.f32 %v11229, %v11150
    %v11231 = vmul.f32 %v11230, %v11229
    %v11232 = vmul.f32 0.5, %v11231
    %v11233 = vsub.f32 1.5, %v11232
    %v11234 = vmul.f32 %v11229, %v11233
    %vm11235 = vweird.f32 %v11150
    %vm11236 = vweird.f32 %v11229
    %vm11237 = vmor %vm11235, %vm11236
    %v11238 = vsel %vm11237, %v11229, %v11234
    %v11239 = vrsqrt.pop %v11151
    %v11240 = vmul.f32 %v11239, %v11151
    %v11241 = vmul.f32 %v11240, %v11239
    %v11242 = vmul.f32 0.5, %v11241
    %v11243 = vsub.f32 1.5, %v11242
    %v11244 = vmul.f32 %v11239, %v11243
    %vm11245 = vweird.f32 %v11151
    %vm11246 = vweird.f32 %v11239
    %vm11247 = vmor %vm11245, %vm11246
    %v11248 = vsel %vm11247, %v11239, %v11244
    %v11249 = vrsqrt.pop %v11152
    %v11250 = vmul.f32 %v11249, %v11152
    %v11251 = vmul.f32 %v11250, %v11249
    %v11252 = vmul.f32 0.5, %v11251
    %v11253 = vsub.f32 1.5, %v11252
    %v11254 = vmul.f32 %v11249, %v11253
    %vm11255 = vweird.f32 %v11152
    %vm11256 = vweird.f32 %v11249
    %vm11257 = vmor %vm11255, %vm11256
    %v11258 = vsel %vm11257, %v11249, %v11254
    %v11259 = vrsqrt.pop %v11153
    %v11260 = vmul.f32 %v11259, %v11153
    %v11261 = vmul.f32 %v11260, %v11259
    %v11262 = vmul.f32 0.5, %v11261
    %v11263 = vsub.f32 1.5, %v11262
    %v11264 = vmul.f32 %v11259, %v11263
    %vm11265 = vweird.f32 %v11153
    %vm11266 = vweird.f32 %v11259
    %vm11267 = vmor %vm11265, %vm11266
    %v11268 = vsel %vm11267, %v11259, %v11264
    %v11269 = vrsqrt.pop %v11154
    %v11270 = vmul.f32 %v11269, %v11154
    %v11271 = vmul.f32 %v11270, %v11269
    %v11272 = vmul.f32 0.5, %v11271
    %v11273 = vsub.f32 1.5, %v11272
    %v11274 = vmul.f32 %v11269, %v11273
    %vm11275 = vweird.f32 %v11154
    %vm11276 = vweird.f32 %v11269
    %vm11277 = vmor %vm11275, %vm11276
    %v11278 = vsel %vm11277, %v11269, %v11274
    %v11279 = vrsqrt.pop %v11155
    %v11280 = vmul.f32 %v11279, %v11155
    %v11281 = vmul.f32 %v11280, %v11279
    %v11282 = vmul.f32 0.5, %v11281
    %v11283 = vsub.f32 1.5, %v11282
    %v11284 = vmul.f32 %v11279, %v11283
    %vm11285 = vweird.f32 %v11155
    %vm11286 = vweird.f32 %v11279
    %vm11287 = vmor %vm11285, %vm11286
    %v11288 = vsel %vm11287, %v11279, %v11284
    %v11289 = vrsqrt.pop %v11156
    %v11290 = vmul.f32 %v11289, %v11156
    %v11291 = vmul.f32 %v11290, %v11289
    %v11292 = vmul.f32 0.5, %v11291
    %v11293 = vsub.f32 1.5, %v11292
    %v11294 = vmul.f32 %v11289, %v11293
    %vm11295 = vweird.f32 %v11156
    %vm11296 = vweird.f32 %v11289
    %vm11297 = vmor %vm11295, %vm11296
    %v11298 = vsel %vm11297, %v11289, %v11294
    %v11299 = vrsqrt.pop %v11157
    %v11300 = vmul.f32 %v11299, %v11157
    %v11301 = vmul.f32 %v11300, %v11299
    %v11302 = vmul.f32 0.5, %v11301
    %v11303 = vsub.f32 1.5, %v11302
    %v11304 = vmul.f32 %v11299, %v11303
    %vm11305 = vweird.f32 %v11157
    %vm11306 = vweird.f32 %v11299
    %vm11307 = vmor %vm11305, %vm11306
    %v11308 = vsel %vm11307, %v11299, %v11304
    %v11309 = vrsqrt.pop %v11158
    %v11310 = vmul.f32 %v11309, %v11158
    %v11311 = vmul.f32 %v11310, %v11309
    %v11312 = vmul.f32 0.5, %v11311
    %v11313 = vsub.f32 1.5, %v11312
    %v11314 = vmul.f32 %v11309, %v11313
    %vm11315 = vweird.f32 %v11158
    %vm11316 = vweird.f32 %v11309
    %vm11317 = vmor %vm11315, %vm11316
    %v11318 = vsel %vm11317, %v11309, %v11314
    %v11319 = vmul.f32 %v11127, %v11168
    %v11320 = vmul.f32 %v11128, %v11178
    %v11321 = vmul.f32 %v11129, %v11188
    %v11322 = vmul.f32 %v11130, %v11198
    %v11323 = vmul.f32 %v11131, %v11208
    %v11324 = vmul.f32 %v11132, %v11218
    %v11325 = vmul.f32 %v11133, %v11228
    %v11326 = vmul.f32 %v11134, %v11238
    %v11327 = vmul.f32 %v11135, %v11248
    %v11328 = vmul.f32 %v11136, %v11258
    %v11329 = vmul.f32 %v11137, %v11268
    %v11330 = vmul.f32 %v11138, %v11278
    %v11331 = vmul.f32 %v11139, %v11288
    %v11332 = vmul.f32 %v11140, %v11298
    %v11333 = vmul.f32 %v11141, %v11308
    %v11334 = vmul.f32 %v11142, %v11318
    %v11336 = vperm.slane %v10980, 0
    %v11338 = vmul.f32 %v11319, %v11336
    %v11339 = vmul.f32 %v11320, %v11336
    %v11340 = vmul.f32 %v11321, %v11336
    %v11341 = vmul.f32 %v11322, %v11336
    %v11342 = vmul.f32 %v11323, %v11336
    %v11343 = vmul.f32 %v11324, %v11336
    %v11344 = vmul.f32 %v11325, %v11336
    %v11345 = vmul.f32 %v11326, %v11336
    %v11346 = vmul.f32 %v11327, %v11336
    %v11347 = vmul.f32 %v11328, %v11336
    %v11348 = vmul.f32 %v11329, %v11336
    %v11349 = vmul.f32 %v11330, %v11336
    %v11350 = vmul.f32 %v11331, %v11336
    %v11351 = vmul.f32 %v11332, %v11336
    %v11352 = vmul.f32 %v11333, %v11336
    %v11353 = vmul.f32 %v11334, %v11336
    %v11355 = vperm.slane %v10982, 0
    %v11357 = vadd.f32 %v11338, %v11355
    %v11358 = vadd.f32 %v11339, %v11355
    %v11359 = vadd.f32 %v11340, %v11355
    %v11360 = vadd.f32 %v11341, %v11355
    %v11361 = vadd.f32 %v11342, %v11355
    %v11362 = vadd.f32 %v11343, %v11355
    %v11363 = vadd.f32 %v11344, %v11355
    %v11364 = vadd.f32 %v11345, %v11355
    %v11365 = vadd.f32 %v11346, %v11355
    %v11366 = vadd.f32 %v11347, %v11355
    %v11367 = vadd.f32 %v11348, %v11355
    %v11368 = vadd.f32 %v11349, %v11355
    %v11369 = vadd.f32 %v11350, %v11355
    %v11370 = vadd.f32 %v11351, %v11355
    %v11371 = vadd.f32 %v11352, %v11355
    %v11372 = vadd.f32 %v11353, %v11355
    %v11373 = vpack.c.bf16 %v11358, %v11357
    %v11374 = vpack.c.bf16 %v11360, %v11359
    %v11375 = vpack.c.bf16 %v11362, %v11361
    %v11376 = vpack.c.bf16 %v11364, %v11363
    %v11377 = vpack.c.bf16 %v11366, %v11365
    %v11378 = vpack.c.bf16 %v11368, %v11367
    %v11379 = vpack.c.bf16 %v11370, %v11369
    %v11380 = vpack.c.bf16 %v11372, %v11371
    %s11381 = scalar_lea.vmem %s9, 512
    %v11382 = vld [vmem:[%s11381] sm:$0xff]
    %v11383 = vld [vmem:[%s11381 + $0x8] sm:$0xff]
    %v11384 = vld [vmem:[%s11381 + $0x10] sm:$0xff]
    %v11385 = vld [vmem:[%s11381 + $0x18] sm:$0xff]
    %v11386 = vld [vmem:[%s11381 + $0x20] sm:$0xff]
    %v11387 = vld [vmem:[%s11381 + $0x28] sm:$0xff]
    %v11388 = vld [vmem:[%s11381 + $0x30] sm:$0xff]
    %v11389 = vld [vmem:[%s11381 + $0x38] sm:$0xff]
    %v11390 = vld [vmem:[%s11381 + $0x40] sm:$0xff]
    %v11391 = vld [vmem:[%s11381 + $0x48] sm:$0xff]
    %v11392 = vld [vmem:[%s11381 + $0x50] sm:$0xff]
    %v11393 = vld [vmem:[%s11381 + $0x58] sm:$0xff]
    %v11394 = vld [vmem:[%s11381 + $0x60] sm:$0xff]
    %v11395 = vld [vmem:[%s11381 + $0x68] sm:$0xff]
    %v11396 = vld [vmem:[%s11381 + $0x70] sm:$0xff]
    %v11397 = vld [vmem:[%s11381 + $0x78] sm:$0xff]
    %v11398 = vld [vmem:[%s11381 + $0x80] sm:$0xff]
    %v11399 = vld [vmem:[%s11381 + $0x88] sm:$0xff]
    %v11400 = vld [vmem:[%s11381 + $0x90] sm:$0xff]
    %v11401 = vld [vmem:[%s11381 + $0x98] sm:$0xff]
    %v11402 = vld [vmem:[%s11381 + $0xa0] sm:$0xff]
    %v11403 = vld [vmem:[%s11381 + $0xa8] sm:$0xff]
    %v11404 = vld [vmem:[%s11381 + $0xb0] sm:$0xff]
    %v11405 = vld [vmem:[%s11381 + $0xb8] sm:$0xff]
    %v11406 = vld [vmem:[%s11381 + $0xc0] sm:$0xff]
    %v11407 = vld [vmem:[%s11381 + $0xc8] sm:$0xff]
    %v11408 = vld [vmem:[%s11381 + $0xd0] sm:$0xff]
    %v11409 = vld [vmem:[%s11381 + $0xd8] sm:$0xff]
    %v11410 = vld [vmem:[%s11381 + $0xe0] sm:$0xff]
    %v11411 = vld [vmem:[%s11381 + $0xe8] sm:$0xff]
    %v11412 = vld [vmem:[%s11381 + $0xf0] sm:$0xff]
    %v11413 = vld [vmem:[%s11381 + $0xf8] sm:$0xff]
    %s11414 = scalar_lea.vmem %s10, 8
    %v11415 = vld [vmem:[%s11414] sm:$0xf]
    %v11417 = vperm.slane %v11415, 0
    %v11418 = vperm.slane %v11415, 1
    %v11419 = vperm.slane %v11415, 2
    %v11420 = vperm.slane %v11415, 3
    %v11457 = vunpack.c.l.b16 %v11382
    %v11458 = vunpack.c.h.b16 %v11382
    %v11459 = vunpack.c.l.b16 %v11383
    %v11460 = vunpack.c.h.b16 %v11383
    %v11461 = vunpack.c.l.b16 %v11384
    %v11462 = vunpack.c.h.b16 %v11384
    %v11463 = vunpack.c.l.b16 %v11385
    %v11464 = vunpack.c.h.b16 %v11385
    %v11465 = vunpack.c.l.b16 %v11386
    %v11466 = vunpack.c.h.b16 %v11386
    %v11467 = vunpack.c.l.b16 %v11387
    %v11468 = vunpack.c.h.b16 %v11387
    %v11469 = vunpack.c.l.b16 %v11388
    %v11470 = vunpack.c.h.b16 %v11388
    %v11471 = vunpack.c.l.b16 %v11389
    %v11472 = vunpack.c.h.b16 %v11389
    %v11473 = vunpack.c.l.b16 %v11390
    %v11474 = vunpack.c.h.b16 %v11390
    %v11475 = vunpack.c.l.b16 %v11391
    %v11476 = vunpack.c.h.b16 %v11391
    %v11477 = vunpack.c.l.b16 %v11392
    %v11478 = vunpack.c.h.b16 %v11392
    %v11479 = vunpack.c.l.b16 %v11393
    %v11480 = vunpack.c.h.b16 %v11393
    %v11481 = vunpack.c.l.b16 %v11394
    %v11482 = vunpack.c.h.b16 %v11394
    %v11483 = vunpack.c.l.b16 %v11395
    %v11484 = vunpack.c.h.b16 %v11395
    %v11485 = vunpack.c.l.b16 %v11396
    %v11486 = vunpack.c.h.b16 %v11396
    %v11487 = vunpack.c.l.b16 %v11397
    %v11488 = vunpack.c.h.b16 %v11397
    %v11489 = vunpack.c.l.b16 %v11398
    %v11490 = vunpack.c.h.b16 %v11398
    %v11491 = vunpack.c.l.b16 %v11399
    %v11492 = vunpack.c.h.b16 %v11399
    %v11493 = vunpack.c.l.b16 %v11400
    %v11494 = vunpack.c.h.b16 %v11400
    %v11495 = vunpack.c.l.b16 %v11401
    %v11496 = vunpack.c.h.b16 %v11401
    %v11497 = vunpack.c.l.b16 %v11402
    %v11498 = vunpack.c.h.b16 %v11402
    %v11499 = vunpack.c.l.b16 %v11403
    %v11500 = vunpack.c.h.b16 %v11403
    %v11501 = vunpack.c.l.b16 %v11404
    %v11502 = vunpack.c.h.b16 %v11404
    %v11503 = vunpack.c.l.b16 %v11405
    %v11504 = vunpack.c.h.b16 %v11405
    %v11505 = vunpack.c.l.b16 %v11406
    %v11506 = vunpack.c.h.b16 %v11406
    %v11507 = vunpack.c.l.b16 %v11407
    %v11508 = vunpack.c.h.b16 %v11407
    %v11509 = vunpack.c.l.b16 %v11408
    %v11510 = vunpack.c.h.b16 %v11408
    %v11511 = vunpack.c.l.b16 %v11409
    %v11512 = vunpack.c.h.b16 %v11409
    %v11513 = vunpack.c.l.b16 %v11410
    %v11514 = vunpack.c.h.b16 %v11410
    %v11515 = vunpack.c.l.b16 %v11411
    %v11516 = vunpack.c.h.b16 %v11411
    %v11517 = vunpack.c.l.b16 %v11412
    %v11518 = vunpack.c.h.b16 %v11412
    %v11519 = vunpack.c.l.b16 %v11413
    %v11520 = vunpack.c.h.b16 %v11413
    %v11521 = vpack.c.b16 %v11461, %v11457
    %v11522 = vpack.c.b16 %v11462, %v11458
    %v11523 = vpack.c.b16 %v11463, %v11459
    %v11524 = vpack.c.b16 %v11464, %v11460
    %v11525 = vpack.c.b16 %v11469, %v11465
    %v11526 = vpack.c.b16 %v11470, %v11466
    %v11527 = vpack.c.b16 %v11471, %v11467
    %v11528 = vpack.c.b16 %v11472, %v11468
    %v11529 = vpack.c.b16 %v11477, %v11473
    %v11530 = vpack.c.b16 %v11478, %v11474
    %v11531 = vpack.c.b16 %v11479, %v11475
    %v11532 = vpack.c.b16 %v11480, %v11476
    %v11533 = vpack.c.b16 %v11485, %v11481
    %v11534 = vpack.c.b16 %v11486, %v11482
    %v11535 = vpack.c.b16 %v11487, %v11483
    %v11536 = vpack.c.b16 %v11488, %v11484
    %v11537 = vpack.c.b16 %v11493, %v11489
    %v11538 = vpack.c.b16 %v11494, %v11490
    %v11539 = vpack.c.b16 %v11495, %v11491
    %v11540 = vpack.c.b16 %v11496, %v11492
    %v11541 = vpack.c.b16 %v11501, %v11497
    %v11542 = vpack.c.b16 %v11502, %v11498
    %v11543 = vpack.c.b16 %v11503, %v11499
    %v11544 = vpack.c.b16 %v11504, %v11500
    %v11545 = vpack.c.b16 %v11509, %v11505
    %v11546 = vpack.c.b16 %v11510, %v11506
    %v11547 = vpack.c.b16 %v11511, %v11507
    %v11548 = vpack.c.b16 %v11512, %v11508
    %v11549 = vpack.c.b16 %v11517, %v11513
    %v11550 = vpack.c.b16 %v11518, %v11514
    %v11551 = vpack.c.b16 %v11519, %v11515
    %v11552 = vpack.c.b16 %v11520, %v11516
    %11585 = vmatpush.bf16.msra.mxu0 %v11549
    %11586 = vmatpush.bf16.msra.mxu0 %v11545
    %11587 = vmatpush.bf16.msra.mxu0 %v11541
    %11588 = vmatpush.bf16.msra.mxu0 %v11537
    %11589 = vmatpush.bf16.msra.mxu0 %v11533
    %11590 = vmatpush.bf16.msra.mxu0 %v11529
    %11591 = vmatpush.bf16.msra.mxu0 %v11525
    %11592 = vmatpush.bf16.msra.mxu0 %v11521
    %11593 = vmatmul.bf16.gmra.mxu0 %v11373
    %v11594 = vpop.f32.mrf.mxu0
    %v11595 = vadd.f32 %v11417, %v11594
    %v11596 = vpop.f32.mrf.mxu0
    %v11597 = vadd.f32 %v11417, %v11596
    %11598 = vmatmul.bf16.gmra.mxu0 %v11374
    %v11599 = vpop.f32.mrf.mxu0
    %v11600 = vadd.f32 %v11417, %v11599
    %v11601 = vpop.f32.mrf.mxu0
    %v11602 = vadd.f32 %v11417, %v11601
    %11603 = vmatmul.bf16.gmra.mxu0 %v11375
    %v11604 = vpop.f32.mrf.mxu0
    %v11605 = vadd.f32 %v11417, %v11604
    %v11606 = vpop.f32.mrf.mxu0
    %v11607 = vadd.f32 %v11417, %v11606
    %11608 = vmatmul.bf16.gmra.mxu0 %v11376
    %v11609 = vpop.f32.mrf.mxu0
    %v11610 = vadd.f32 %v11417, %v11609
    %v11611 = vpop.f32.mrf.mxu0
    %v11612 = vadd.f32 %v11417, %v11611
    %11613 = vmatmul.bf16.gmra.mxu0 %v11377
    %v11614 = vpop.f32.mrf.mxu0
    %v11615 = vadd.f32 %v11417, %v11614
    %v11616 = vpop.f32.mrf.mxu0
    %v11617 = vadd.f32 %v11417, %v11616
    %11618 = vmatmul.bf16.gmra.mxu0 %v11378
    %v11619 = vpop.f32.mrf.mxu0
    %v11620 = vadd.f32 %v11417, %v11619
    %v11621 = vpop.f32.mrf.mxu0
    %v11622 = vadd.f32 %v11417, %v11621
    %11623 = vmatmul.bf16.gmra.mxu0 %v11379
    %v11624 = vpop.f32.mrf.mxu0
    %v11625 = vadd.f32 %v11417, %v11624
    %v11626 = vpop.f32.mrf.mxu0
    %v11627 = vadd.f32 %v11417, %v11626
    %11628 = vmatmul.bf16.gmra.mxu0 %v11380
    %v11629 = vpop.f32.mrf.mxu0
    %v11630 = vadd.f32 %v11417, %v11629
    %v11631 = vpop.f32.mrf.mxu0
    %v11632 = vadd.f32 %v11417, %v11631
    %11633 = vdwg.mxu0
    %11634 = vmatpush.bf16.msra.mxu0 %v11550
    %11635 = vmatpush.bf16.msra.mxu0 %v11546
    %11636 = vmatpush.bf16.msra.mxu0 %v11542
    %11637 = vmatpush.bf16.msra.mxu0 %v11538
    %11638 = vmatpush.bf16.msra.mxu0 %v11534
    %11639 = vmatpush.bf16.msra.mxu0 %v11530
    %11640 = vmatpush.bf16.msra.mxu0 %v11526
    %11641 = vmatpush.bf16.msra.mxu0 %v11522
    %11642 = vmatmul.bf16.gmra.mxu0 %v11373
    %v11643 = vpop.f32.mrf.mxu0
    %v11644 = vadd.f32 %v11418, %v11643
    %v11645 = vpop.f32.mrf.mxu0
    %v11646 = vadd.f32 %v11418, %v11645
    %11647 = vmatmul.bf16.gmra.mxu0 %v11374
    %v11648 = vpop.f32.mrf.mxu0
    %v11649 = vadd.f32 %v11418, %v11648
    %v11650 = vpop.f32.mrf.mxu0
    %v11651 = vadd.f32 %v11418, %v11650
    %11652 = vmatmul.bf16.gmra.mxu0 %v11375
    %v11653 = vpop.f32.mrf.mxu0
    %v11654 = vadd.f32 %v11418, %v11653
    %v11655 = vpop.f32.mrf.mxu0
    %v11656 = vadd.f32 %v11418, %v11655
    %11657 = vmatmul.bf16.gmra.mxu0 %v11376
    %v11658 = vpop.f32.mrf.mxu0
    %v11659 = vadd.f32 %v11418, %v11658
    %v11660 = vpop.f32.mrf.mxu0
    %v11661 = vadd.f32 %v11418, %v11660
    %11662 = vmatmul.bf16.gmra.mxu0 %v11377
    %v11663 = vpop.f32.mrf.mxu0
    %v11664 = vadd.f32 %v11418, %v11663
    %v11665 = vpop.f32.mrf.mxu0
    %v11666 = vadd.f32 %v11418, %v11665
    %11667 = vmatmul.bf16.gmra.mxu0 %v11378
    %v11668 = vpop.f32.mrf.mxu0
    %v11669 = vadd.f32 %v11418, %v11668
    %v11670 = vpop.f32.mrf.mxu0
    %v11671 = vadd.f32 %v11418, %v11670
    %11672 = vmatmul.bf16.gmra.mxu0 %v11379
    %v11673 = vpop.f32.mrf.mxu0
    %v11674 = vadd.f32 %v11418, %v11673
    %v11675 = vpop.f32.mrf.mxu0
    %v11676 = vadd.f32 %v11418, %v11675
    %11677 = vmatmul.bf16.gmra.mxu0 %v11380
    %v11678 = vpop.f32.mrf.mxu0
    %v11679 = vadd.f32 %v11418, %v11678
    %v11680 = vpop.f32.mrf.mxu0
    %v11681 = vadd.f32 %v11418, %v11680
    %11682 = vdwg.mxu0
    %11683 = vmatpush.bf16.msra.mxu0 %v11551
    %11684 = vmatpush.bf16.msra.mxu0 %v11547
    %11685 = vmatpush.bf16.msra.mxu0 %v11543
    %11686 = vmatpush.bf16.msra.mxu0 %v11539
    %11687 = vmatpush.bf16.msra.mxu0 %v11535
    %11688 = vmatpush.bf16.msra.mxu0 %v11531
    %11689 = vmatpush.bf16.msra.mxu0 %v11527
    %11690 = vmatpush.bf16.msra.mxu0 %v11523
    %11691 = vmatmul.bf16.gmra.mxu0 %v11373
    %v11692 = vpop.f32.mrf.mxu0
    %v11693 = vadd.f32 %v11419, %v11692
    %v11694 = vpop.f32.mrf.mxu0
    %v11695 = vadd.f32 %v11419, %v11694
    %11696 = vmatmul.bf16.gmra.mxu0 %v11374
    %v11697 = vpop.f32.mrf.mxu0
    %v11698 = vadd.f32 %v11419, %v11697
    %v11699 = vpop.f32.mrf.mxu0
    %v11700 = vadd.f32 %v11419, %v11699
    %11701 = vmatmul.bf16.gmra.mxu0 %v11375
    %v11702 = vpop.f32.mrf.mxu0
    %v11703 = vadd.f32 %v11419, %v11702
    %v11704 = vpop.f32.mrf.mxu0
    %v11705 = vadd.f32 %v11419, %v11704
    %11706 = vmatmul.bf16.gmra.mxu0 %v11376
    %v11707 = vpop.f32.mrf.mxu0
    %v11708 = vadd.f32 %v11419, %v11707
    %v11709 = vpop.f32.mrf.mxu0
    %v11710 = vadd.f32 %v11419, %v11709
    %11711 = vmatmul.bf16.gmra.mxu0 %v11377
    %v11712 = vpop.f32.mrf.mxu0
    %v11713 = vadd.f32 %v11419, %v11712
    %v11714 = vpop.f32.mrf.mxu0
    %v11715 = vadd.f32 %v11419, %v11714
    %11716 = vmatmul.bf16.gmra.mxu0 %v11378
    %v11717 = vpop.f32.mrf.mxu0
    %v11718 = vadd.f32 %v11419, %v11717
    %v11719 = vpop.f32.mrf.mxu0
    %v11720 = vadd.f32 %v11419, %v11719
    %11721 = vmatmul.bf16.gmra.mxu0 %v11379
    %v11722 = vpop.f32.mrf.mxu0
    %v11723 = vadd.f32 %v11419, %v11722
    %v11724 = vpop.f32.mrf.mxu0
    %v11725 = vadd.f32 %v11419, %v11724
    %11726 = vmatmul.bf16.gmra.mxu0 %v11380
    %v11727 = vpop.f32.mrf.mxu0
    %v11728 = vadd.f32 %v11419, %v11727
    %v11729 = vpop.f32.mrf.mxu0
    %v11730 = vadd.f32 %v11419, %v11729
    %11731 = vdwg.mxu0
    %11732 = vmatpush.bf16.msra.mxu0 %v11552
    %11733 = vmatpush.bf16.msra.mxu0 %v11548
    %11734 = vmatpush.bf16.msra.mxu0 %v11544
    %11735 = vmatpush.bf16.msra.mxu0 %v11540
    %11736 = vmatpush.bf16.msra.mxu0 %v11536
    %11737 = vmatpush.bf16.msra.mxu0 %v11532
    %11738 = vmatpush.bf16.msra.mxu0 %v11528
    %11739 = vmatpush.bf16.msra.mxu0 %v11524
    %11740 = vmatmul.bf16.gmra.mxu0 %v11373
    %v11741 = vpop.f32.mrf.mxu0
    %v11742 = vadd.f32 %v11420, %v11741
    %v11743 = vpop.f32.mrf.mxu0
    %v11744 = vadd.f32 %v11420, %v11743
    %11745 = vmatmul.bf16.gmra.mxu0 %v11374
    %v11746 = vpop.f32.mrf.mxu0
    %v11747 = vadd.f32 %v11420, %v11746
    %v11748 = vpop.f32.mrf.mxu0
    %v11749 = vadd.f32 %v11420, %v11748
    %11750 = vmatmul.bf16.gmra.mxu0 %v11375
    %v11751 = vpop.f32.mrf.mxu0
    %v11752 = vadd.f32 %v11420, %v11751
    %v11753 = vpop.f32.mrf.mxu0
    %v11754 = vadd.f32 %v11420, %v11753
    %11755 = vmatmul.bf16.gmra.mxu0 %v11376
    %v11756 = vpop.f32.mrf.mxu0
    %v11757 = vadd.f32 %v11420, %v11756
    %v11758 = vpop.f32.mrf.mxu0
    %v11759 = vadd.f32 %v11420, %v11758
    %11760 = vmatmul.bf16.gmra.mxu0 %v11377
    %v11761 = vpop.f32.mrf.mxu0
    %v11762 = vadd.f32 %v11420, %v11761
    %v11763 = vpop.f32.mrf.mxu0
    %v11764 = vadd.f32 %v11420, %v11763
    %11765 = vmatmul.bf16.gmra.mxu0 %v11378
    %v11766 = vpop.f32.mrf.mxu0
    %v11767 = vadd.f32 %v11420, %v11766
    %v11768 = vpop.f32.mrf.mxu0
    %v11769 = vadd.f32 %v11420, %v11768
    %11770 = vmatmul.bf16.gmra.mxu0 %v11379
    %v11771 = vpop.f32.mrf.mxu0
    %v11772 = vadd.f32 %v11420, %v11771
    %v11773 = vpop.f32.mrf.mxu0
    %v11774 = vadd.f32 %v11420, %v11773
    %11775 = vmatmul.bf16.gmra.mxu0 %v11380
    %v11776 = vpop.f32.mrf.mxu0
    %v11777 = vadd.f32 %v11420, %v11776
    %v11778 = vpop.f32.mrf.mxu0
    %v11779 = vadd.f32 %v11420, %v11778
    %11780 = vdwg.mxu0
    %v11781 = vmax.f32 %v11595, 0.0
    %v11782 = vmax.f32 %v11644, 0.0
    %v11783 = vmax.f32 %v11693, 0.0
    %v11784 = vmax.f32 %v11742, 0.0
    %v11785 = vmax.f32 %v11597, 0.0
    %v11786 = vmax.f32 %v11646, 0.0
    %v11787 = vmax.f32 %v11695, 0.0
    %v11788 = vmax.f32 %v11744, 0.0
    %v11789 = vmax.f32 %v11600, 0.0
    %v11790 = vmax.f32 %v11649, 0.0
    %v11791 = vmax.f32 %v11698, 0.0
    %v11792 = vmax.f32 %v11747, 0.0
    %v11793 = vmax.f32 %v11602, 0.0
    %v11794 = vmax.f32 %v11651, 0.0
    %v11795 = vmax.f32 %v11700, 0.0
    %v11796 = vmax.f32 %v11749, 0.0
    %v11797 = vmax.f32 %v11605, 0.0
    %v11798 = vmax.f32 %v11654, 0.0
    %v11799 = vmax.f32 %v11703, 0.0
    %v11800 = vmax.f32 %v11752, 0.0
    %v11801 = vmax.f32 %v11607, 0.0
    %v11802 = vmax.f32 %v11656, 0.0
    %v11803 = vmax.f32 %v11705, 0.0
    %v11804 = vmax.f32 %v11754, 0.0
    %v11805 = vmax.f32 %v11610, 0.0
    %v11806 = vmax.f32 %v11659, 0.0
    %v11807 = vmax.f32 %v11708, 0.0
    %v11808 = vmax.f32 %v11757, 0.0
    %v11809 = vmax.f32 %v11612, 0.0
    %v11810 = vmax.f32 %v11661, 0.0
    %v11811 = vmax.f32 %v11710, 0.0
    %v11812 = vmax.f32 %v11759, 0.0
    %v11813 = vmax.f32 %v11615, 0.0
    %v11814 = vmax.f32 %v11664, 0.0
    %v11815 = vmax.f32 %v11713, 0.0
    %v11816 = vmax.f32 %v11762, 0.0
    %v11817 = vmax.f32 %v11617, 0.0
    %v11818 = vmax.f32 %v11666, 0.0
    %v11819 = vmax.f32 %v11715, 0.0
    %v11820 = vmax.f32 %v11764, 0.0
    %v11821 = vmax.f32 %v11620, 0.0
    %v11822 = vmax.f32 %v11669, 0.0
    %v11823 = vmax.f32 %v11718, 0.0
    %v11824 = vmax.f32 %v11767, 0.0
    %v11825 = vmax.f32 %v11622, 0.0
    %v11826 = vmax.f32 %v11671, 0.0
    %v11827 = vmax.f32 %v11720, 0.0
    %v11828 = vmax.f32 %v11769, 0.0
    %v11829 = vmax.f32 %v11625, 0.0
    %v11830 = vmax.f32 %v11674, 0.0
    %v11831 = vmax.f32 %v11723, 0.0
    %v11832 = vmax.f32 %v11772, 0.0
    %v11833 = vmax.f32 %v11627, 0.0
    %v11834 = vmax.f32 %v11676, 0.0
    %v11835 = vmax.f32 %v11725, 0.0
    %v11836 = vmax.f32 %v11774, 0.0
    %v11837 = vmax.f32 %v11630, 0.0
    %v11838 = vmax.f32 %v11679, 0.0
    %v11839 = vmax.f32 %v11728, 0.0
    %v11840 = vmax.f32 %v11777, 0.0
    %v11841 = vmax.f32 %v11632, 0.0
    %v11842 = vmax.f32 %v11681, 0.0
    %v11843 = vmax.f32 %v11730, 0.0
    %v11844 = vmax.f32 %v11779, 0.0
    %v11845 = vpack.c.bf16 %v11785, %v11781
    %v11846 = vpack.c.bf16 %v11786, %v11782
    %v11847 = vpack.c.bf16 %v11787, %v11783
    %v11848 = vpack.c.bf16 %v11788, %v11784
    %v11849 = vpack.c.bf16 %v11793, %v11789
    %v11850 = vpack.c.bf16 %v11794, %v11790
    %v11851 = vpack.c.bf16 %v11795, %v11791
    %v11852 = vpack.c.bf16 %v11796, %v11792
    %v11853 = vpack.c.bf16 %v11801, %v11797
    %v11854 = vpack.c.bf16 %v11802, %v11798
    %v11855 = vpack.c.bf16 %v11803, %v11799
    %v11856 = vpack.c.bf16 %v11804, %v11800
    %v11857 = vpack.c.bf16 %v11809, %v11805
    %v11858 = vpack.c.bf16 %v11810, %v11806
    %v11859 = vpack.c.bf16 %v11811, %v11807
    %v11860 = vpack.c.bf16 %v11812, %v11808
    %v11861 = vpack.c.bf16 %v11817, %v11813
    %v11862 = vpack.c.bf16 %v11818, %v11814
    %v11863 = vpack.c.bf16 %v11819, %v11815
    %v11864 = vpack.c.bf16 %v11820, %v11816
    %v11865 = vpack.c.bf16 %v11825, %v11821
    %v11866 = vpack.c.bf16 %v11826, %v11822
    %v11867 = vpack.c.bf16 %v11827, %v11823
    %v11868 = vpack.c.bf16 %v11828, %v11824
    %v11869 = vpack.c.bf16 %v11833, %v11829
    %v11870 = vpack.c.bf16 %v11834, %v11830
    %v11871 = vpack.c.bf16 %v11835, %v11831
    %v11872 = vpack.c.bf16 %v11836, %v11832
    %v11873 = vpack.c.bf16 %v11841, %v11837
    %v11874 = vpack.c.bf16 %v11842, %v11838
    %v11875 = vpack.c.bf16 %v11843, %v11839
    %v11876 = vpack.c.bf16 %v11844, %v11840
    %s11877 = scalar_lea.vmem %s11, 512
    %v11878 = vld [vmem:[%s11877] sm:$0xf]
    %v11879 = vld [vmem:[%s11877 + $0x4] sm:$0xf]
    %v11880 = vld [vmem:[%s11877 + $0x8] sm:$0xf]
    %v11881 = vld [vmem:[%s11877 + $0xc] sm:$0xf]
    %v11882 = vld [vmem:[%s11877 + $0x10] sm:$0xf]
    %v11883 = vld [vmem:[%s11877 + $0x14] sm:$0xf]
    %v11884 = vld [vmem:[%s11877 + $0x18] sm:$0xf]
    %v11885 = vld [vmem:[%s11877 + $0x1c] sm:$0xf]
    %v11886 = vld [vmem:[%s11877 + $0x20] sm:$0xf]
    %v11887 = vld [vmem:[%s11877 + $0x24] sm:$0xf]
    %v11888 = vld [vmem:[%s11877 + $0x28] sm:$0xf]
    %v11889 = vld [vmem:[%s11877 + $0x2c] sm:$0xf]
    %v11890 = vld [vmem:[%s11877 + $0x30] sm:$0xf]
    %v11891 = vld [vmem:[%s11877 + $0x34] sm:$0xf]
    %v11892 = vld [vmem:[%s11877 + $0x38] sm:$0xf]
    %v11893 = vld [vmem:[%s11877 + $0x3c] sm:$0xf]
    %v11894 = vld [vmem:[%s11877 + $0x40] sm:$0xf]
    %v11895 = vld [vmem:[%s11877 + $0x44] sm:$0xf]
    %v11896 = vld [vmem:[%s11877 + $0x48] sm:$0xf]
    %v11897 = vld [vmem:[%s11877 + $0x4c] sm:$0xf]
    %v11898 = vld [vmem:[%s11877 + $0x50] sm:$0xf]
    %v11899 = vld [vmem:[%s11877 + $0x54] sm:$0xf]
    %v11900 = vld [vmem:[%s11877 + $0x58] sm:$0xf]
    %v11901 = vld [vmem:[%s11877 + $0x5c] sm:$0xf]
    %v11902 = vld [vmem:[%s11877 + $0x60] sm:$0xf]
    %v11903 = vld [vmem:[%s11877 + $0x64] sm:$0xf]
    %v11904 = vld [vmem:[%s11877 + $0x68] sm:$0xf]
    %v11905 = vld [vmem:[%s11877 + $0x6c] sm:$0xf]
    %v11906 = vld [vmem:[%s11877 + $0x70] sm:$0xf]
    %v11907 = vld [vmem:[%s11877 + $0x74] sm:$0xf]
    %v11908 = vld [vmem:[%s11877 + $0x78] sm:$0xf]
    %v11909 = vld [vmem:[%s11877 + $0x7c] sm:$0xf]
    %v11910 = vld [vmem:[%s11877 + $0x80] sm:$0xf]
    %v11911 = vld [vmem:[%s11877 + $0x84] sm:$0xf]
    %v11912 = vld [vmem:[%s11877 + $0x88] sm:$0xf]
    %v11913 = vld [vmem:[%s11877 + $0x8c] sm:$0xf]
    %v11914 = vld [vmem:[%s11877 + $0x90] sm:$0xf]
    %v11915 = vld [vmem:[%s11877 + $0x94] sm:$0xf]
    %v11916 = vld [vmem:[%s11877 + $0x98] sm:$0xf]
    %v11917 = vld [vmem:[%s11877 + $0x9c] sm:$0xf]
    %v11918 = vld [vmem:[%s11877 + $0xa0] sm:$0xf]
    %v11919 = vld [vmem:[%s11877 + $0xa4] sm:$0xf]
    %v11920 = vld [vmem:[%s11877 + $0xa8] sm:$0xf]
    %v11921 = vld [vmem:[%s11877 + $0xac] sm:$0xf]
    %v11922 = vld [vmem:[%s11877 + $0xb0] sm:$0xf]
    %v11923 = vld [vmem:[%s11877 + $0xb4] sm:$0xf]
    %v11924 = vld [vmem:[%s11877 + $0xb8] sm:$0xf]
    %v11925 = vld [vmem:[%s11877 + $0xbc] sm:$0xf]
    %v11926 = vld [vmem:[%s11877 + $0xc0] sm:$0xf]
    %v11927 = vld [vmem:[%s11877 + $0xc4] sm:$0xf]
    %v11928 = vld [vmem:[%s11877 + $0xc8] sm:$0xf]
    %v11929 = vld [vmem:[%s11877 + $0xcc] sm:$0xf]
    %v11930 = vld [vmem:[%s11877 + $0xd0] sm:$0xf]
    %v11931 = vld [vmem:[%s11877 + $0xd4] sm:$0xf]
    %v11932 = vld [vmem:[%s11877 + $0xd8] sm:$0xf]
    %v11933 = vld [vmem:[%s11877 + $0xdc] sm:$0xf]
    %v11934 = vld [vmem:[%s11877 + $0xe0] sm:$0xf]
    %v11935 = vld [vmem:[%s11877 + $0xe4] sm:$0xf]
    %v11936 = vld [vmem:[%s11877 + $0xe8] sm:$0xf]
    %v11937 = vld [vmem:[%s11877 + $0xec] sm:$0xf]
    %v11938 = vld [vmem:[%s11877 + $0xf0] sm:$0xf]
    %v11939 = vld [vmem:[%s11877 + $0xf4] sm:$0xf]
    %v11940 = vld [vmem:[%s11877 + $0xf8] sm:$0xf]
    %v11941 = vld [vmem:[%s11877 + $0xfc] sm:$0xf]
    %s11942 = scalar_lea.vmem [#allocation6], 2
    %v11943 = vld [vmem:[%s11942] sm:$0x1]
    %v11945 = vperm.slane %v11943, 0
    %v12011 = vunpack.c.l.b16 %v11878
    %v12012 = vunpack.c.l.b16 %v11879
    %v12013 = vunpack.c.l.b16 %v11880
    %v12014 = vunpack.c.l.b16 %v11881
    %v12015 = vunpack.c.l.b16 %v11882
    %v12016 = vunpack.c.l.b16 %v11883
    %v12017 = vunpack.c.l.b16 %v11884
    %v12018 = vunpack.c.l.b16 %v11885
    %v12019 = vunpack.c.l.b16 %v11886
    %v12020 = vunpack.c.l.b16 %v11887
    %v12021 = vunpack.c.l.b16 %v11888
    %v12022 = vunpack.c.l.b16 %v11889
    %v12023 = vunpack.c.l.b16 %v11890
    %v12024 = vunpack.c.l.b16 %v11891
    %v12025 = vunpack.c.l.b16 %v11892
    %v12026 = vunpack.c.l.b16 %v11893
    %v12027 = vunpack.c.l.b16 %v11894
    %v12028 = vunpack.c.l.b16 %v11895
    %v12029 = vunpack.c.l.b16 %v11896
    %v12030 = vunpack.c.l.b16 %v11897
    %v12031 = vunpack.c.l.b16 %v11898
    %v12032 = vunpack.c.l.b16 %v11899
    %v12033 = vunpack.c.l.b16 %v11900
    %v12034 = vunpack.c.l.b16 %v11901
    %v12035 = vunpack.c.l.b16 %v11902
    %v12036 = vunpack.c.l.b16 %v11903
    %v12037 = vunpack.c.l.b16 %v11904
    %v12038 = vunpack.c.l.b16 %v11905
    %v12039 = vunpack.c.l.b16 %v11906
    %v12040 = vunpack.c.l.b16 %v11907
    %v12041 = vunpack.c.l.b16 %v11908
    %v12042 = vunpack.c.l.b16 %v11909
    %v12043 = vunpack.c.l.b16 %v11910
    %v12044 = vunpack.c.l.b16 %v11911
    %v12045 = vunpack.c.l.b16 %v11912
    %v12046 = vunpack.c.l.b16 %v11913
    %v12047 = vunpack.c.l.b16 %v11914
    %v12048 = vunpack.c.l.b16 %v11915
    %v12049 = vunpack.c.l.b16 %v11916
    %v12050 = vunpack.c.l.b16 %v11917
    %v12051 = vunpack.c.l.b16 %v11918
    %v12052 = vunpack.c.l.b16 %v11919
    %v12053 = vunpack.c.l.b16 %v11920
    %v12054 = vunpack.c.l.b16 %v11921
    %v12055 = vunpack.c.l.b16 %v11922
    %v12056 = vunpack.c.l.b16 %v11923
    %v12057 = vunpack.c.l.b16 %v11924
    %v12058 = vunpack.c.l.b16 %v11925
    %v12059 = vunpack.c.l.b16 %v11926
    %v12060 = vunpack.c.l.b16 %v11927
    %v12061 = vunpack.c.l.b16 %v11928
    %v12062 = vunpack.c.l.b16 %v11929
    %v12063 = vunpack.c.l.b16 %v11930
    %v12064 = vunpack.c.l.b16 %v11931
    %v12065 = vunpack.c.l.b16 %v11932
    %v12066 = vunpack.c.l.b16 %v11933
    %v12067 = vunpack.c.l.b16 %v11934
    %v12068 = vunpack.c.l.b16 %v11935
    %v12069 = vunpack.c.l.b16 %v11936
    %v12070 = vunpack.c.l.b16 %v11937
    %v12071 = vunpack.c.l.b16 %v11938
    %v12072 = vunpack.c.l.b16 %v11939
    %v12073 = vunpack.c.l.b16 %v11940
    %v12074 = vunpack.c.l.b16 %v11941
    %v12075 = vpack.c.b16 %v12012, %v12011
    %v12076 = vpack.c.b16 %v12014, %v12013
    %v12077 = vpack.c.b16 %v12016, %v12015
    %v12078 = vpack.c.b16 %v12018, %v12017
    %v12079 = vpack.c.b16 %v12020, %v12019
    %v12080 = vpack.c.b16 %v12022, %v12021
    %v12081 = vpack.c.b16 %v12024, %v12023
    %v12082 = vpack.c.b16 %v12026, %v12025
    %v12083 = vpack.c.b16 %v12028, %v12027
    %v12084 = vpack.c.b16 %v12030, %v12029
    %v12085 = vpack.c.b16 %v12032, %v12031
    %v12086 = vpack.c.b16 %v12034, %v12033
    %v12087 = vpack.c.b16 %v12036, %v12035
    %v12088 = vpack.c.b16 %v12038, %v12037
    %v12089 = vpack.c.b16 %v12040, %v12039
    %v12090 = vpack.c.b16 %v12042, %v12041
    %v12091 = vpack.c.b16 %v12044, %v12043
    %v12092 = vpack.c.b16 %v12046, %v12045
    %v12093 = vpack.c.b16 %v12048, %v12047
    %v12094 = vpack.c.b16 %v12050, %v12049
    %v12095 = vpack.c.b16 %v12052, %v12051
    %v12096 = vpack.c.b16 %v12054, %v12053
    %v12097 = vpack.c.b16 %v12056, %v12055
    %v12098 = vpack.c.b16 %v12058, %v12057
    %v12099 = vpack.c.b16 %v12060, %v12059
    %v12100 = vpack.c.b16 %v12062, %v12061
    %v12101 = vpack.c.b16 %v12064, %v12063
    %v12102 = vpack.c.b16 %v12066, %v12065
    %v12103 = vpack.c.b16 %v12068, %v12067
    %v12104 = vpack.c.b16 %v12070, %v12069
    %v12105 = vpack.c.b16 %v12072, %v12071
    %v12106 = vpack.c.b16 %v12074, %v12073
    %12139 = vmatpush.bf16.msra.mxu0 %v12082
    %12140 = vmatpush.bf16.msra.mxu0 %v12081
    %12141 = vmatpush.bf16.msra.mxu0 %v12080
    %12142 = vmatpush.bf16.msra.mxu0 %v12079
    %12143 = vmatpush.bf16.msra.mxu0 %v12078
    %12144 = vmatpush.bf16.msra.mxu0 %v12077
    %12145 = vmatpush.bf16.msra.mxu0 %v12076
    %12146 = vmatpush.bf16.msra.mxu0 %v12075
    %12147 = vmatmul.bf16.gmra.mxu0 %v11845
    %v12148 = vpop.f32.mrf.mxu0
    %v12149 = vadd.f32 %v11945, %v12148
    %v12150 = vpop.f32.mrf.mxu0
    %v12151 = vadd.f32 %v11945, %v12150
    %12152 = vmatmul.bf16.gmra.mxu0 %v11849
    %v12153 = vpop.f32.mrf.mxu0
    %v12154 = vadd.f32 %v11945, %v12153
    %v12155 = vpop.f32.mrf.mxu0
    %v12156 = vadd.f32 %v11945, %v12155
    %12157 = vmatmul.bf16.gmra.mxu0 %v11853
    %v12158 = vpop.f32.mrf.mxu0
    %v12159 = vadd.f32 %v11945, %v12158
    %v12160 = vpop.f32.mrf.mxu0
    %v12161 = vadd.f32 %v11945, %v12160
    %12162 = vmatmul.bf16.gmra.mxu0 %v11857
    %v12163 = vpop.f32.mrf.mxu0
    %v12164 = vadd.f32 %v11945, %v12163
    %v12165 = vpop.f32.mrf.mxu0
    %v12166 = vadd.f32 %v11945, %v12165
    %12167 = vmatmul.bf16.gmra.mxu0 %v11861
    %v12168 = vpop.f32.mrf.mxu0
    %v12169 = vadd.f32 %v11945, %v12168
    %v12170 = vpop.f32.mrf.mxu0
    %v12171 = vadd.f32 %v11945, %v12170
    %12172 = vmatmul.bf16.gmra.mxu0 %v11865
    %v12173 = vpop.f32.mrf.mxu0
    %v12174 = vadd.f32 %v11945, %v12173
    %v12175 = vpop.f32.mrf.mxu0
    %v12176 = vadd.f32 %v11945, %v12175
    %12177 = vmatmul.bf16.gmra.mxu0 %v11869
    %v12178 = vpop.f32.mrf.mxu0
    %v12179 = vadd.f32 %v11945, %v12178
    %v12180 = vpop.f32.mrf.mxu0
    %v12181 = vadd.f32 %v11945, %v12180
    %12182 = vmatmul.bf16.gmra.mxu0 %v11873
    %v12183 = vpop.f32.mrf.mxu0
    %v12184 = vadd.f32 %v11945, %v12183
    %v12185 = vpop.f32.mrf.mxu0
    %v12186 = vadd.f32 %v11945, %v12185
    %12187 = vdwg.mxu0
    %12188 = vmatpush.bf16.msra.mxu0 %v12090
    %12189 = vmatpush.bf16.msra.mxu0 %v12089
    %12190 = vmatpush.bf16.msra.mxu0 %v12088
    %12191 = vmatpush.bf16.msra.mxu0 %v12087
    %12192 = vmatpush.bf16.msra.mxu0 %v12086
    %12193 = vmatpush.bf16.msra.mxu0 %v12085
    %12194 = vmatpush.bf16.msra.mxu0 %v12084
    %12195 = vmatpush.bf16.msra.mxu0 %v12083
    %12196 = vmatmul.bf16.gmra.mxu0 %v11846
    %v12197 = vpop.f32.mrf.mxu0
    %v12198 = vadd.f32 %v12149, %v12197
    %v12199 = vpop.f32.mrf.mxu0
    %v12200 = vadd.f32 %v12151, %v12199
    %12201 = vmatmul.bf16.gmra.mxu0 %v11850
    %v12202 = vpop.f32.mrf.mxu0
    %v12203 = vadd.f32 %v12154, %v12202
    %v12204 = vpop.f32.mrf.mxu0
    %v12205 = vadd.f32 %v12156, %v12204
    %12206 = vmatmul.bf16.gmra.mxu0 %v11854
    %v12207 = vpop.f32.mrf.mxu0
    %v12208 = vadd.f32 %v12159, %v12207
    %v12209 = vpop.f32.mrf.mxu0
    %v12210 = vadd.f32 %v12161, %v12209
    %12211 = vmatmul.bf16.gmra.mxu0 %v11858
    %v12212 = vpop.f32.mrf.mxu0
    %v12213 = vadd.f32 %v12164, %v12212
    %v12214 = vpop.f32.mrf.mxu0
    %v12215 = vadd.f32 %v12166, %v12214
    %12216 = vmatmul.bf16.gmra.mxu0 %v11862
    %v12217 = vpop.f32.mrf.mxu0
    %v12218 = vadd.f32 %v12169, %v12217
    %v12219 = vpop.f32.mrf.mxu0
    %v12220 = vadd.f32 %v12171, %v12219
    %12221 = vmatmul.bf16.gmra.mxu0 %v11866
    %v12222 = vpop.f32.mrf.mxu0
    %v12223 = vadd.f32 %v12174, %v12222
    %v12224 = vpop.f32.mrf.mxu0
    %v12225 = vadd.f32 %v12176, %v12224
    %12226 = vmatmul.bf16.gmra.mxu0 %v11870
    %v12227 = vpop.f32.mrf.mxu0
    %v12228 = vadd.f32 %v12179, %v12227
    %v12229 = vpop.f32.mrf.mxu0
    %v12230 = vadd.f32 %v12181, %v12229
    %12231 = vmatmul.bf16.gmra.mxu0 %v11874
    %v12232 = vpop.f32.mrf.mxu0
    %v12233 = vadd.f32 %v12184, %v12232
    %v12234 = vpop.f32.mrf.mxu0
    %v12235 = vadd.f32 %v12186, %v12234
    %12236 = vdwg.mxu0
    %12237 = vmatpush.bf16.msra.mxu0 %v12098
    %12238 = vmatpush.bf16.msra.mxu0 %v12097
    %12239 = vmatpush.bf16.msra.mxu0 %v12096
    %12240 = vmatpush.bf16.msra.mxu0 %v12095
    %12241 = vmatpush.bf16.msra.mxu0 %v12094
    %12242 = vmatpush.bf16.msra.mxu0 %v12093
    %12243 = vmatpush.bf16.msra.mxu0 %v12092
    %12244 = vmatpush.bf16.msra.mxu0 %v12091
    %12245 = vmatmul.bf16.gmra.mxu0 %v11847
    %v12246 = vpop.f32.mrf.mxu0
    %v12247 = vadd.f32 %v12198, %v12246
    %v12248 = vpop.f32.mrf.mxu0
    %v12249 = vadd.f32 %v12200, %v12248
    %12250 = vmatmul.bf16.gmra.mxu0 %v11851
    %v12251 = vpop.f32.mrf.mxu0
    %v12252 = vadd.f32 %v12203, %v12251
    %v12253 = vpop.f32.mrf.mxu0
    %v12254 = vadd.f32 %v12205, %v12253
    %12255 = vmatmul.bf16.gmra.mxu0 %v11855
    %v12256 = vpop.f32.mrf.mxu0
    %v12257 = vadd.f32 %v12208, %v12256
    %v12258 = vpop.f32.mrf.mxu0
    %v12259 = vadd.f32 %v12210, %v12258
    %12260 = vmatmul.bf16.gmra.mxu0 %v11859
    %v12261 = vpop.f32.mrf.mxu0
    %v12262 = vadd.f32 %v12213, %v12261
    %v12263 = vpop.f32.mrf.mxu0
    %v12264 = vadd.f32 %v12215, %v12263
    %12265 = vmatmul.bf16.gmra.mxu0 %v11863
    %v12266 = vpop.f32.mrf.mxu0
    %v12267 = vadd.f32 %v12218, %v12266
    %v12268 = vpop.f32.mrf.mxu0
    %v12269 = vadd.f32 %v12220, %v12268
    %12270 = vmatmul.bf16.gmra.mxu0 %v11867
    %v12271 = vpop.f32.mrf.mxu0
    %v12272 = vadd.f32 %v12223, %v12271
    %v12273 = vpop.f32.mrf.mxu0
    %v12274 = vadd.f32 %v12225, %v12273
    %12275 = vmatmul.bf16.gmra.mxu0 %v11871
    %v12276 = vpop.f32.mrf.mxu0
    %v12277 = vadd.f32 %v12228, %v12276
    %v12278 = vpop.f32.mrf.mxu0
    %v12279 = vadd.f32 %v12230, %v12278
    %12280 = vmatmul.bf16.gmra.mxu0 %v11875
    %v12281 = vpop.f32.mrf.mxu0
    %v12282 = vadd.f32 %v12233, %v12281
    %v12283 = vpop.f32.mrf.mxu0
    %v12284 = vadd.f32 %v12235, %v12283
    %12285 = vdwg.mxu0
    %12286 = vmatpush.bf16.msra.mxu0 %v12106
    %12287 = vmatpush.bf16.msra.mxu0 %v12105
    %12288 = vmatpush.bf16.msra.mxu0 %v12104
    %12289 = vmatpush.bf16.msra.mxu0 %v12103
    %12290 = vmatpush.bf16.msra.mxu0 %v12102
    %12291 = vmatpush.bf16.msra.mxu0 %v12101
    %12292 = vmatpush.bf16.msra.mxu0 %v12100
    %12293 = vmatpush.bf16.msra.mxu0 %v12099
    %12294 = vmatmul.bf16.gmra.mxu0 %v11848
    %v12295 = vpop.f32.mrf.mxu0
    %v12296 = vadd.f32 %v12247, %v12295
    %v12297 = vpop.f32.mrf.mxu0
    %v12298 = vadd.f32 %v12249, %v12297
    %12299 = vmatmul.bf16.gmra.mxu0 %v11852
    %v12300 = vpop.f32.mrf.mxu0
    %v12301 = vadd.f32 %v12252, %v12300
    %v12302 = vpop.f32.mrf.mxu0
    %v12303 = vadd.f32 %v12254, %v12302
    %12304 = vmatmul.bf16.gmra.mxu0 %v11856
    %v12305 = vpop.f32.mrf.mxu0
    %v12306 = vadd.f32 %v12257, %v12305
    %v12307 = vpop.f32.mrf.mxu0
    %v12308 = vadd.f32 %v12259, %v12307
    %12309 = vmatmul.bf16.gmra.mxu0 %v11860
    %v12310 = vpop.f32.mrf.mxu0
    %v12311 = vadd.f32 %v12262, %v12310
    %v12312 = vpop.f32.mrf.mxu0
    %v12313 = vadd.f32 %v12264, %v12312
    %12314 = vmatmul.bf16.gmra.mxu0 %v11864
    %v12315 = vpop.f32.mrf.mxu0
    %v12316 = vadd.f32 %v12267, %v12315
    %v12317 = vpop.f32.mrf.mxu0
    %v12318 = vadd.f32 %v12269, %v12317
    %12319 = vmatmul.bf16.gmra.mxu0 %v11868
    %v12320 = vpop.f32.mrf.mxu0
    %v12321 = vadd.f32 %v12272, %v12320
    %v12322 = vpop.f32.mrf.mxu0
    %v12323 = vadd.f32 %v12274, %v12322
    %12324 = vmatmul.bf16.gmra.mxu0 %v11872
    %v12325 = vpop.f32.mrf.mxu0
    %v12326 = vadd.f32 %v12277, %v12325
    %v12327 = vpop.f32.mrf.mxu0
    %v12328 = vadd.f32 %v12279, %v12327
    %12329 = vmatmul.bf16.gmra.mxu0 %v11876
    %v12330 = vpop.f32.mrf.mxu0
    %v12331 = vadd.f32 %v12282, %v12330
    %v12332 = vpop.f32.mrf.mxu0
    %v12333 = vadd.f32 %v12284, %v12332
    %12334 = vdwg.mxu0
    %v12335 = vpack.c.bf16 %v12298, %v12296
    %v12336 = vpack.c.bf16 %v12303, %v12301
    %v12337 = vpack.c.bf16 %v12308, %v12306
    %v12338 = vpack.c.bf16 %v12313, %v12311
    %v12339 = vpack.c.bf16 %v12318, %v12316
    %v12340 = vpack.c.bf16 %v12323, %v12321
    %v12341 = vpack.c.bf16 %v12328, %v12326
    %v12342 = vpack.c.bf16 %v12333, %v12331
    %v12343 = vld [vmem:[%s13] sm:$0xf]
    %v12344 = vld [vmem:[%s13 + $0x4] sm:$0xf]
    %v12345 = vld [vmem:[%s13 + $0x8] sm:$0xf]
    %v12346 = vld [vmem:[%s13 + $0xc] sm:$0xf]
    %v12347 = vld [vmem:[%s13 + $0x10] sm:$0xf]
    %v12348 = vld [vmem:[%s13 + $0x14] sm:$0xf]
    %v12349 = vld [vmem:[%s13 + $0x18] sm:$0xf]
    %v12350 = vld [vmem:[%s13 + $0x1c] sm:$0xf]
    %v12351 = vld [vmem:[%s13 + $0x20] sm:$0xf]
    %v12352 = vld [vmem:[%s13 + $0x24] sm:$0xf]
    %v12353 = vld [vmem:[%s13 + $0x28] sm:$0xf]
    %v12354 = vld [vmem:[%s13 + $0x2c] sm:$0xf]
    %v12355 = vld [vmem:[%s13 + $0x30] sm:$0xf]
    %v12356 = vld [vmem:[%s13 + $0x34] sm:$0xf]
    %v12357 = vld [vmem:[%s13 + $0x38] sm:$0xf]
    %v12358 = vld [vmem:[%s13 + $0x3c] sm:$0xf]
    %v12359 = vld [vmem:[%s14] sm:$0x1]
    %v12361 = vperm.slane %v12359, 0
    %v12379 = vunpack.c.l.b16 %v12343
    %v12380 = vunpack.c.l.b16 %v12344
    %v12381 = vunpack.c.l.b16 %v12345
    %v12382 = vunpack.c.l.b16 %v12346
    %v12383 = vunpack.c.l.b16 %v12347
    %v12384 = vunpack.c.l.b16 %v12348
    %v12385 = vunpack.c.l.b16 %v12349
    %v12386 = vunpack.c.l.b16 %v12350
    %v12387 = vunpack.c.l.b16 %v12351
    %v12388 = vunpack.c.l.b16 %v12352
    %v12389 = vunpack.c.l.b16 %v12353
    %v12390 = vunpack.c.l.b16 %v12354
    %v12391 = vunpack.c.l.b16 %v12355
    %v12392 = vunpack.c.l.b16 %v12356
    %v12393 = vunpack.c.l.b16 %v12357
    %v12394 = vunpack.c.l.b16 %v12358
    %v12395 = vpack.c.b16 %v12380, %v12379
    %v12396 = vpack.c.b16 %v12382, %v12381
    %v12397 = vpack.c.b16 %v12384, %v12383
    %v12398 = vpack.c.b16 %v12386, %v12385
    %v12399 = vpack.c.b16 %v12388, %v12387
    %v12400 = vpack.c.b16 %v12390, %v12389
    %v12401 = vpack.c.b16 %v12392, %v12391
    %v12402 = vpack.c.b16 %v12394, %v12393
    %12411 = vmatpush.bf16.msra.mxu0 %v12402
    %12412 = vmatpush.bf16.msra.mxu0 %v12401
    %12413 = vmatpush.bf16.msra.mxu0 %v12400
    %12414 = vmatpush.bf16.msra.mxu0 %v12399
    %12415 = vmatpush.bf16.msra.mxu0 %v12398
    %12416 = vmatpush.bf16.msra.mxu0 %v12397
    %12417 = vmatpush.bf16.msra.mxu0 %v12396
    %12418 = vmatpush.bf16.msra.mxu0 %v12395
    %12419 = vmatmul.bf16.gmra.mxu0 %v12335
    %v12420 = vpop.f32.mrf.mxu0
    %v12421 = vadd.f32 %v12361, %v12420
    %v12422 = vpop.f32.mrf.mxu0
    %v12423 = vadd.f32 %v12361, %v12422
    %12424 = vmatmul.bf16.gmra.mxu0 %v12336
    %v12425 = vpop.f32.mrf.mxu0
    %v12426 = vadd.f32 %v12361, %v12425
    %v12427 = vpop.f32.mrf.mxu0
    %v12428 = vadd.f32 %v12361, %v12427
    %12429 = vmatmul.bf16.gmra.mxu0 %v12337
    %v12430 = vpop.f32.mrf.mxu0
    %v12431 = vadd.f32 %v12361, %v12430
    %v12432 = vpop.f32.mrf.mxu0
    %v12433 = vadd.f32 %v12361, %v12432
    %12434 = vmatmul.bf16.gmra.mxu0 %v12338
    %v12435 = vpop.f32.mrf.mxu0
    %v12436 = vadd.f32 %v12361, %v12435
    %v12437 = vpop.f32.mrf.mxu0
    %v12438 = vadd.f32 %v12361, %v12437
    %12439 = vmatmul.bf16.gmra.mxu0 %v12339
    %v12440 = vpop.f32.mrf.mxu0
    %v12441 = vadd.f32 %v12361, %v12440
    %v12442 = vpop.f32.mrf.mxu0
    %v12443 = vadd.f32 %v12361, %v12442
    %12444 = vmatmul.bf16.gmra.mxu0 %v12340
    %v12445 = vpop.f32.mrf.mxu0
    %v12446 = vadd.f32 %v12361, %v12445
    %v12447 = vpop.f32.mrf.mxu0
    %v12448 = vadd.f32 %v12361, %v12447
    %12449 = vmatmul.bf16.gmra.mxu0 %v12341
    %v12450 = vpop.f32.mrf.mxu0
    %v12451 = vadd.f32 %v12361, %v12450
    %v12452 = vpop.f32.mrf.mxu0
    %v12453 = vadd.f32 %v12361, %v12452
    %12454 = vmatmul.bf16.gmra.mxu0 %v12342
    %v12455 = vpop.f32.mrf.mxu0
    %v12456 = vadd.f32 %v12361, %v12455
    %v12457 = vpop.f32.mrf.mxu0
    %v12458 = vadd.f32 %v12361, %v12457
    %12459 = vdwg.mxu0
    %12460 = vst [vmem:[#allocation8] sm:$0xff] %v12421
    %12461 = vst [vmem:[#allocation8 + $0x8] sm:$0xff] %v12423
    %12462 = vst [vmem:[#allocation8 + $0x10] sm:$0xff] %v12426
    %12463 = vst [vmem:[#allocation8 + $0x18] sm:$0xff] %v12428
    %12464 = vst [vmem:[#allocation8 + $0x20] sm:$0xff] %v12431
    %12465 = vst [vmem:[#allocation8 + $0x28] sm:$0xff] %v12433
    %12466 = vst [vmem:[#allocation8 + $0x30] sm:$0xff] %v12436
    %12467 = vst [vmem:[#allocation8 + $0x38] sm:$0xff] %v12438
    %12468 = vst [vmem:[#allocation8 + $0x40] sm:$0xff] %v12441
    %12469 = vst [vmem:[#allocation8 + $0x48] sm:$0xff] %v12443
    %12470 = vst [vmem:[#allocation8 + $0x50] sm:$0xff] %v12446
    %12471 = vst [vmem:[#allocation8 + $0x58] sm:$0xff] %v12448
    %12472 = vst [vmem:[#allocation8 + $0x60] sm:$0xff] %v12451
    %12473 = vst [vmem:[#allocation8 + $0x68] sm:$0xff] %v12453
    %12474 = vst [vmem:[#allocation8 + $0x70] sm:$0xff] %v12456
    %12475 = vst [vmem:[#allocation8 + $0x78] sm:$0xff] %v12458
    // Predicated region
    $region70: #{forward.1} parent=1 // pred_check
      _
    $region71: #{forward.1} parent=1 // pred_check_branch
      %12477 = sbr.rel (0) target = $region73
    $region72: #{forward.1} parent=1 // pred_region
      %12479 = vsyncadd [#allocation5], 0
      %s12480 = sshll.u32 [#allocation8], 4
      %s12481 = int_to_ptr.vmem [resolvable:$true] %s12480
      %s12482 = sshll.u32 %s15, 4
      %s12483 = int_to_ptr.hbm [resolvable:$true] %s12482
      %12488 = dma.vmem_to_hbm [thread:$0]  %s12481, 2048, %s12483, [#allocation5], 128, 128, 8
    $region73: #{forward.1} parent=1 // pred_fallthru
      _
    // Predicated region
    $region74: #{forward.1} parent=1 // pred_check
      _
    $region75: #{forward.1} parent=1 // pred_check_branch
      %12490 = sbr.rel (0) target = $region77
    $region76: #{forward.1} parent=1 // pred_region
      %12492 = dma.done [#allocation5], 2048
    $region77: #{forward.1} parent=1 // pred_fallthru
      _
    %12493 = vsyncpa [#allocation4], 1
    %12494 = vsyncpa [#allocation7], 1
    %12495 = vsyncpa [#allocation5], 1

</llo_original>
